<compile_context>
chip_gen: v7x
topology: tpu7x:2x2x1
jax: 0.10.0
libtpu: 0.0.40
codegen_flags: <defaults>
</compile_context>

<pallas_src>
import jax
import jax.numpy as jnp
from jax import lax
from jax.experimental import pallas as pl
from jax.experimental.pallas import tpu as pltpu

B, C, H, W = 2, 32, 16, 16      # batch, channels (in == out), spatial
RED = 16                        # SE reduction
CR = C // RED                   # SE bottleneck width
EPS = 1e-5                      # BatchNorm eps
WC = W * C                      # packed lane width (512)
BH = B * H                      # packed rows (32)

assert W & (W - 1) == 0, "lane-fold butterfly assumes power-of-two W"


# ---------------------------------------------------------------------------
# Pallas kernel
# ---------------------------------------------------------------------------
def _shift_rows(a, direction):
    """Shift the packed (B*H, W*C) activation by one h-row within each batch.

    direction = -1: row (b,h) receives a[b,h-1] (zero at h == 0)    -> dh = 0 taps
    direction = +1: row (b,h) receives a[b,h+1] (zero at h == H-1)  -> dh = 2 taps
    """
    z = jnp.zeros((1, WC), a.dtype)
    blocks = []
    for b in range(B):
        blk = a[b * H:(b + 1) * H]
        if direction < 0:
            blocks += [z, blk[:H - 1]]
        else:
            blocks += [blk[1:], z]
    return jnp.concatenate(blocks, axis=0)


def _lane_allsum_w(row):
    """(1, W*C) -> (1, W*C): every lane ends up holding the sum over its
    period-C congruence class, i.e. the per-channel total already broadcast
    back into the packed layout.  log2(W) roll+add steps on the XLU."""
    s = row
    step = WC // 2
    while step >= C:
        s = s + pltpu.roll(s, shift=step, axis=1)
        step //= 2
    return s


def _layer(a, w_ref, g_ref, b_ref, *, relu):
    """One DepthwiseSeparableConv2d(3x3, pad=1) + BatchNorm(train) [+ ReLU].

    a      : (B*H, W*C) f32 packed, lane-dense activation
    w_ref  : (3*W*C, W*C) bf16 block-banded fused (depthwise x pointwise) weight
    g_ref, b_ref : (1, W*C) f32 gamma / beta pre-tiled to the packed layout
    returns: (B*H, W*C) f32
    """
    # LHS = [h-1 rows | h rows | h+1 rows]  -> single K = 3*W*C matmul; the W
    # taps are folded into the banded weight so accumulation stays in the MXU.
    lhs = jnp.concatenate(
        [_shift_rows(a, -1), a, _shift_rows(a, +1)], axis=1).astype(jnp.bfloat16)
    y = jnp.dot(lhs, w_ref[...], preferred_element_type=jnp.float32)   # (BH, WC)

    # BatchNorm2d (training mode, biased variance) in f32, two-pass (centered).
    inv_n = 1.0 / float(B * H * W)
    mean_rep = _lane_allsum_w(jnp.sum(y, axis=0, keepdims=True)) * inv_n
    d = y - mean_rep
    var_rep = _lane_allsum_w(jnp.sum(d * d, axis=0, keepdims=True)) * inv_n
    scale_rep = g_ref[...] * lax.rsqrt(var_rep + EPS)
    shift_rep = b_ref[...] - mean_rep * scale_rep
    y = y * scale_rep + shift_rep
    if relu:
        y = jnp.maximum(y, 0.0)
    return y


def residual_block_kernel(x_ref,
                          w1_ref, g1_ref, b1_ref,
                          w2_ref, g2_ref, b2_ref,
                          w3_ref, g3_ref, b3_ref,
                          wf1_ref, wf2t_ref,
                          o_ref):
    x = x_ref[...]                                                     # (BH, WC) f32

    y1 = _layer(x, w1_ref, g1_ref, b1_ref, relu=True)
    y2 = _layer(y1, w2_ref, g2_ref, b2_ref, relu=True)
    y3 = _layer(y2, w3_ref, g3_ref, b3_ref, relu=False)

    # ---- SE block: global avg pool -> fc1 -> ReLU -> fc2 -> sigmoid -> scale ----
    inv_hw = 1.0 / float(H * W)
    pooled_rows = []
    for b in range(B):
        srow = jnp.sum(y3[b * H:(b + 1) * H], axis=0, keepdims=True)   # (1, WC)
        pooled_rows.append(_lane_allsum_w(srow)[:, :C])                # (1, C)
    pooled = jnp.concatenate(pooled_rows, axis=0) * inv_hw             # (B, C)

    # Tiny SE "matmuls" on the VPU (broadcast-mul + reduce), not the MXU.
    w1 = wf1_ref[...]                                                  # (CR, C)
    z = jnp.maximum(
        jnp.sum(pooled[:, None, :] * w1[None, :, :], axis=-1), 0.0)    # (B, CR)
    # fc2 weight is pre-tiled to (CR, W*C), so the gate comes out already in
    # the packed, lane-replicated layout.
    gate_t = jax.nn.sigmoid(
        jnp.sum(z[:, :, None] * wf2t_ref[...][None, :, :], axis=1))    # (B, WC)
    gate_rows = jnp.concatenate(
        [jnp.broadcast_to(gate_t[b:b + 1], (H, WC)) for b in range(B)], axis=0)

    # ---- identity shortcut + final ReLU; single lane-dense (32, 512) store ----
    o_ref[...] = jnp.maximum(y3 * gate_rows + x, 0.0).astype(o_ref.dtype)


# ---------------------------------------------------------------------------
# Wrapper (weight folding + packing done once, outside the kernel)
# ---------------------------------------------------------------------------
def _band_weight(dwk, pw):
    """Fold depthwise(3x3) + pointwise(1x1) into a block-banded packed weight.

    dwk: (9, C) depthwise taps (kh*3+kw major); pw: (Cin, Cout).
    Returns (3*W*C, W*C) bf16 with
      out[dh*W*C + wp*C + ci, w*C + co] = dwk[dh*3 + (wp-w+1), ci] * pw[ci, co]
    for |wp - w| <= 1 and zero elsewhere (W-edge zero padding folded in).
    """
    wf = (dwk[:, :, None] * pw[None, :, :]).reshape(3, 3, C, C)   # (dh, dw, ci, co)
    wp = jnp.arange(W)[:, None]
    w = jnp.arange(W)[None, :]
    off = wp - w + 1
    valid = ((off >= 0) & (off <= 2)).astype(jnp.float32)
    band = wf[:, jnp.clip(off, 0, 2)]                  # (3, W, W, C, C)
    band = band * valid[None, :, :, None, None]
    band = jnp.transpose(band, (0, 1, 3, 2, 4))        # (dh, wp, ci, w, co)
    return band.reshape(3 * W * C, W * C).astype(jnp.bfloat16)


def _full_spec(shape):
    nd = len(shape)
    return pl.BlockSpec(shape, lambda i, _nd=nd: (0,) * _nd)


def residual_block(x_nhwc, p):
    # NHWC -> packed (B*H, W*C): identical memory layout, free relayout.
    x_packed = x_nhwc.astype(jnp.float32).reshape(BH, WC)

    tile_w = lambda v: jnp.tile(v, (1, W))             # (.., C) -> (.., W*C)
    args = (x_packed,
            _band_weight(p["dw1"], p["pw1"]), tile_w(p["g1"]), tile_w(p["b1"]),
            _band_weight(p["dw2"], p["pw2"]), tile_w(p["g2"]), tile_w(p["b2"]),
            _band_weight(p["dw3"], p["pw3"]), tile_w(p["g3"]), tile_w(p["b3"]),
            p["wf1"].T,                # (CR, C)
            tile_w(p["wf2"]))          # (CR, W*C), pre-tiled so the SE gate is packed

    flops = 3 * 2 * BH * (3 * WC) * WC + 12 * BH * WC
    transcendentals = 3 * C + B * C + B * CR
    bytes_accessed = int(4 * x_packed.size
                         + sum(int(a.size) * a.dtype.itemsize for a in args[1:])
                         + 4 * BH * WC)

    out = pl.pallas_call(
        residual_block_kernel,
        out_shape=jax.ShapeDtypeStruct((BH, WC), x_nhwc.dtype),   # lane-dense slab
        grid=(1,),
        in_specs=[_full_spec(a.shape) for a in args],
        out_specs=pl.BlockSpec((BH, WC), lambda i: (0, 0)),
        compiler_params=pltpu.CompilerParams(
            dimension_semantics=("arbitrary",),
            vmem_limit_bytes=32 * 1024 * 1024),
        cost_estimate=pl.CostEstimate(
            flops=flops, transcendentals=transcendentals,
            bytes_accessed=bytes_accessed),
    )(*args)
    return out.reshape(B, H, W, C)     # free: same memory layout as NHWC


# ---------------------------------------------------------------------------
# Pure-JAX reference (lax.conv) for the correctness check
# ---------------------------------------------------------------------------
def _ref_dsconv_bn(x, dw, pw, g, bt, relu):
    wdw = dw.reshape(3, 3, 1, C)  # HWIO, feature_group_count=C (depthwise)
    y = lax.conv_general_dilated(
        x, wdw, window_strides=(1, 1), padding=((1, 1), (1, 1)),
        dimension_numbers=("NHWC", "HWIO", "NHWC"),
        feature_group_count=C, precision=lax.Precision.HIGHEST)
    y = jnp.einsum("bhwc,cd->bhwd", y, pw, precision=lax.Precision.HIGHEST)
    yf = y.reshape(-1, C)
    mean = jnp.mean(yf, axis=0)
    var = jnp.mean((yf - mean) ** 2, axis=0)
    y = (y - mean) * lax.rsqrt(var + EPS) * g[0] + bt[0]
    return jnp.maximum(y, 0.0) if relu else y


def residual_block_ref(x, p):
    h1 = _ref_dsconv_bn(x, p["dw1"], p["pw1"], p["g1"], p["b1"], True)
    h2 = _ref_dsconv_bn(h1, p["dw2"], p["pw2"], p["g2"], p["b2"], True)
    h3 = _ref_dsconv_bn(h2, p["dw3"], p["pw3"], p["g3"], p["b3"], False)
    pooled = jnp.mean(h3, axis=(1, 2))                       # (B, C)
    z = jnp.maximum(pooled @ p["wf1"], 0.0)
    gate = jax.nn.sigmoid(z @ p["wf2"])
    h3 = h3 * gate[:, None, None, :]
    return jnp.maximum(h3 + x, 0.0)


# ---------------------------------------------------------------------------
# Deterministic parameter init (synthetic; shapes follow the PyTorch module)
# ---------------------------------------------------------------------------
def init_params(key):
    ks = jax.random.split(key, 20)
    nrm = lambda k, s, sc: sc * jax.random.normal(k, s, jnp.float32)
    p = {}
    for i, name in enumerate(("1", "2", "3")):
        p["dw" + name] = nrm(ks[4 * i + 0], (9, C), 0.2)        # depthwise (C,1,3,3) -> (9,C)
        p["pw" + name] = nrm(ks[4 * i + 1], (C, C), 0.15)       # pointwise (Cout,Cin,1,1) -> (Cin,Cout)
        p["g" + name] = 1.0 + nrm(ks[4 * i + 2], (1, C), 0.1)   # BN gamma
        p["b" + name] = nrm(ks[4 * i + 3], (1, C), 0.1)         # BN beta
    p["wf1"] = nrm(ks[12], (C, CR), 0.3)                        # Linear(C, C//16), no bias
    p["wf2"] = nrm(ks[13], (CR, C), 0.3)                        # Linear(C//16, C), no bias
    return p


if __name__ == "__main__":
    key = jax.random.PRNGKey(0)
    kx, kp = jax.random.split(key)

    # PyTorch-style NCHW input, transposed to NHWC for the kernel.
    x_nchw = jax.random.normal(kx, (B, C, H, W), jnp.float32)
    x_nhwc = jnp.transpose(x_nchw, (0, 2, 3, 1))

    params = init_params(kp)

    out = jax.block_until_ready(residual_block(x_nhwc, params))
    ref = jax.block_until_ready(residual_block_ref(x_nhwc, params))

    assert out.shape == (B, H, W, C)
    err = float(jnp.max(jnp.abs(out - ref)))
    # bf16 MXU operands (per perf review) => slightly looser tolerance than pure f32.
    assert err < 3e-2, err

    print("KERNEL_OK")
</pallas_src>

<mosaic_0001>
module attributes {stable_mosaic.version = 11 : i64} {
  func.func @residual_block_kernel(%arg0: i32, %arg1: memref<32x512xf32, #tpu.memory_space<vmem>>, %arg2: memref<1536x512xbf16, #tpu.memory_space<vmem>>, %arg3: memref<1x512xf32, #tpu.memory_space<vmem>>, %arg4: memref<1x512xf32, #tpu.memory_space<vmem>>, %arg5: memref<1536x512xbf16, #tpu.memory_space<vmem>>, %arg6: memref<1x512xf32, #tpu.memory_space<vmem>>, %arg7: memref<1x512xf32, #tpu.memory_space<vmem>>, %arg8: memref<1536x512xbf16, #tpu.memory_space<vmem>>, %arg9: memref<1x512xf32, #tpu.memory_space<vmem>>, %arg10: memref<1x512xf32, #tpu.memory_space<vmem>>, %arg11: memref<2x32xf32, #tpu.memory_space<vmem>>, %arg12: memref<2x512xf32, #tpu.memory_space<vmem>>, %arg13: memref<32x512xf32, #tpu.memory_space<vmem>>) attributes {dimension_semantics = [#tpu.dimension_semantics<arbitrary>], iteration_bounds = array<i64: 1>, scalar_prefetch = 0 : i64, scratch_operands = 0 : i64, tpu.core_type = #tpu.core_type<tc>, window_params = [{pipeline_mode = #tpu.pipeline_mode<synchronous>, transform_indices = @transform_0, window_bounds = array<i64: 32, 512>}, {pipeline_mode = #tpu.pipeline_mode<synchronous>, transform_indices = @transform_1, window_bounds = array<i64: 1536, 512>}, {pipeline_mode = #tpu.pipeline_mode<synchronous>, transform_indices = @transform_2, window_bounds = array<i64: 1, 512>}, {pipeline_mode = #tpu.pipeline_mode<synchronous>, transform_indices = @transform_3, window_bounds = array<i64: 1, 512>}, {pipeline_mode = #tpu.pipeline_mode<synchronous>, transform_indices = @transform_4, window_bounds = array<i64: 1536, 512>}, {pipeline_mode = #tpu.pipeline_mode<synchronous>, transform_indices = @transform_5, window_bounds = array<i64: 1, 512>}, {pipeline_mode = #tpu.pipeline_mode<synchronous>, transform_indices = @transform_6, window_bounds = array<i64: 1, 512>}, {pipeline_mode = #tpu.pipeline_mode<synchronous>, transform_indices = @transform_7, window_bounds = array<i64: 1536, 512>}, {pipeline_mode = #tpu.pipeline_mode<synchronous>, transform_indices = @transform_8, window_bounds = array<i64: 1, 512>}, {pipeline_mode = #tpu.pipeline_mode<synchronous>, transform_indices = @transform_9, window_bounds = array<i64: 1, 512>}, {pipeline_mode = #tpu.pipeline_mode<synchronous>, transform_indices = @transform_10, window_bounds = array<i64: 2, 32>}, {pipeline_mode = #tpu.pipeline_mode<synchronous>, transform_indices = @transform_11, window_bounds = array<i64: 2, 512>}, {pipeline_mode = #tpu.pipeline_mode<synchronous>, transform_indices = @transform_12, window_bounds = array<i64: 32, 512>}]} {
    %c0 = arith.constant 0 : index
    %c0_0 = arith.constant 0 : index
    %0 = vector.load %arg1[%c0, %c0_0] : memref<32x512xf32, #tpu.memory_space<vmem>>, vector<32x512xf32>
    %cst = arith.constant 0.000000e+00 : f32
    %1 = vector.broadcast %cst : f32 to vector<1x512xf32>
    %2 = vector.extract_strided_slice %0 {offsets = [0, 0], sizes = [16, 512], strides = [1, 1]} : vector<32x512xf32> to vector<16x512xf32>
    %3 = vector.extract_strided_slice %2 {offsets = [0, 0], sizes = [15, 512], strides = [1, 1]} : vector<16x512xf32> to vector<15x512xf32>
    %4 = vector.extract_strided_slice %0 {offsets = [16, 0], sizes = [16, 512], strides = [1, 1]} : vector<32x512xf32> to vector<16x512xf32>
    %5 = vector.extract_strided_slice %4 {offsets = [0, 0], sizes = [15, 512], strides = [1, 1]} : vector<16x512xf32> to vector<15x512xf32>
    %6 = tpu.concatenate %1, %3, %1, %5 in 0 : vector<1x512xf32>, vector<15x512xf32>, vector<1x512xf32>, vector<15x512xf32> -> vector<32x512xf32>
    %cst_1 = arith.constant 0.000000e+00 : f32
    %7 = vector.broadcast %cst_1 : f32 to vector<1x512xf32>
    %8 = vector.extract_strided_slice %0 {offsets = [0, 0], sizes = [16, 512], strides = [1, 1]} : vector<32x512xf32> to vector<16x512xf32>
    %9 = vector.extract_strided_slice %8 {offsets = [1, 0], sizes = [15, 512], strides = [1, 1]} : vector<16x512xf32> to vector<15x512xf32>
    %10 = vector.extract_strided_slice %0 {offsets = [16, 0], sizes = [16, 512], strides = [1, 1]} : vector<32x512xf32> to vector<16x512xf32>
    %11 = vector.extract_strided_slice %10 {offsets = [1, 0], sizes = [15, 512], strides = [1, 1]} : vector<16x512xf32> to vector<15x512xf32>
    %12 = tpu.concatenate %9, %7, %11, %7 in 0 : vector<15x512xf32>, vector<1x512xf32>, vector<15x512xf32>, vector<1x512xf32> -> vector<32x512xf32>
    %13 = tpu.concatenate %6, %0, %12 in 1 : vector<32x512xf32>, vector<32x512xf32>, vector<32x512xf32> -> vector<32x1536xf32>
    %14 = arith.truncf %13 : vector<32x1536xf32> to vector<32x1536xbf16>
    %c0_2 = arith.constant 0 : index
    %c0_3 = arith.constant 0 : index
    %15 = vector.load %arg2[%c0_2, %c0_3] : memref<1536x512xbf16, #tpu.memory_space<vmem>>, vector<1536x512xbf16>
    %cst_4 = arith.constant dense<0.000000e+00> : vector<32x512xf32>
    %16 = tpu.matmul %14, %15, %cst_4 {dimension_numbers = #tpu.dot_dimension_numbers<[1], [0], [0], [1], [0, 0, 1, 1], [], []>} : vector<32x1536xbf16>, vector<1536x512xbf16>, vector<32x512xf32> -> vector<32x512xf32>
    %cst_5 = arith.constant dense<0.000000e+00> : vector<512xf32>
    %17 = vector.multi_reduction <add>, %16, %cst_5 [0] : vector<32x512xf32> to vector<512xf32>
    %18 = vector.shape_cast %17 : vector<512xf32> to vector<1x512xf32>
    %c256_i32 = arith.constant 256 : i32
    %19 = tpu.dynamic_rotate %18 by %c256_i32 dim 1 : vector<1x512xf32>, i32 -> vector<1x512xf32>
    %20 = arith.addf %18, %19 : vector<1x512xf32>
    %c128_i32 = arith.constant 128 : i32
    %21 = tpu.dynamic_rotate %20 by %c128_i32 dim 1 : vector<1x512xf32>, i32 -> vector<1x512xf32>
    %22 = arith.addf %20, %21 : vector<1x512xf32>
    %c64_i32 = arith.constant 64 : i32
    %23 = tpu.dynamic_rotate %22 by %c64_i32 dim 1 : vector<1x512xf32>, i32 -> vector<1x512xf32>
    %24 = arith.addf %22, %23 : vector<1x512xf32>
    %c32_i32 = arith.constant 32 : i32
    %25 = tpu.dynamic_rotate %24 by %c32_i32 dim 1 : vector<1x512xf32>, i32 -> vector<1x512xf32>
    %26 = arith.addf %24, %25 : vector<1x512xf32>
    %cst_6 = arith.constant 0.001953125 : f32
    %27 = vector.broadcast %cst_6 : f32 to vector<1x512xf32>
    %28 = arith.mulf %26, %27 : vector<1x512xf32>
    %29 = vector.broadcast %28 : vector<1x512xf32> to vector<32x512xf32>
    %30 = arith.subf %16, %29 : vector<32x512xf32>
    %31 = arith.mulf %30, %30 : vector<32x512xf32>
    %cst_7 = arith.constant dense<0.000000e+00> : vector<512xf32>
    %32 = vector.multi_reduction <add>, %31, %cst_7 [0] : vector<32x512xf32> to vector<512xf32>
    %33 = vector.shape_cast %32 : vector<512xf32> to vector<1x512xf32>
    %c256_i32_8 = arith.constant 256 : i32
    %34 = tpu.dynamic_rotate %33 by %c256_i32_8 dim 1 : vector<1x512xf32>, i32 -> vector<1x512xf32>
    %35 = arith.addf %33, %34 : vector<1x512xf32>
    %c128_i32_9 = arith.constant 128 : i32
    %36 = tpu.dynamic_rotate %35 by %c128_i32_9 dim 1 : vector<1x512xf32>, i32 -> vector<1x512xf32>
    %37 = arith.addf %35, %36 : vector<1x512xf32>
    %c64_i32_10 = arith.constant 64 : i32
    %38 = tpu.dynamic_rotate %37 by %c64_i32_10 dim 1 : vector<1x512xf32>, i32 -> vector<1x512xf32>
    %39 = arith.addf %37, %38 : vector<1x512xf32>
    %c32_i32_11 = arith.constant 32 : i32
    %40 = tpu.dynamic_rotate %39 by %c32_i32_11 dim 1 : vector<1x512xf32>, i32 -> vector<1x512xf32>
    %41 = arith.addf %39, %40 : vector<1x512xf32>
    %cst_12 = arith.constant 0.001953125 : f32
    %42 = vector.broadcast %cst_12 : f32 to vector<1x512xf32>
    %43 = arith.mulf %41, %42 : vector<1x512xf32>
    %c0_13 = arith.constant 0 : index
    %c0_14 = arith.constant 0 : index
    %44 = vector.load %arg3[%c0_13, %c0_14] : memref<1x512xf32, #tpu.memory_space<vmem>>, vector<1x512xf32>
    %cst_15 = arith.constant 9.99999974E-6 : f32
    %45 = vector.broadcast %cst_15 : f32 to vector<1x512xf32>
    %46 = arith.addf %43, %45 : vector<1x512xf32>
    %47 = math.rsqrt %46 : vector<1x512xf32>
    %48 = arith.mulf %44, %47 : vector<1x512xf32>
    %c0_16 = arith.constant 0 : index
    %c0_17 = arith.constant 0 : index
    %49 = vector.load %arg4[%c0_16, %c0_17] : memref<1x512xf32, #tpu.memory_space<vmem>>, vector<1x512xf32>
    %50 = arith.mulf %28, %48 : vector<1x512xf32>
    %51 = arith.subf %49, %50 : vector<1x512xf32>
    %52 = vector.broadcast %48 : vector<1x512xf32> to vector<32x512xf32>
    %53 = arith.mulf %16, %52 : vector<32x512xf32>
    %54 = vector.broadcast %51 : vector<1x512xf32> to vector<32x512xf32>
    %55 = arith.addf %53, %54 : vector<32x512xf32>
    %cst_18 = arith.constant 0.000000e+00 : f32
    %56 = vector.broadcast %cst_18 : f32 to vector<32x512xf32>
    %57 = arith.maximumf %55, %56 : vector<32x512xf32>
    %cst_19 = arith.constant 0.000000e+00 : f32
    %58 = vector.broadcast %cst_19 : f32 to vector<1x512xf32>
    %59 = vector.extract_strided_slice %57 {offsets = [0, 0], sizes = [16, 512], strides = [1, 1]} : vector<32x512xf32> to vector<16x512xf32>
    %60 = vector.extract_strided_slice %59 {offsets = [0, 0], sizes = [15, 512], strides = [1, 1]} : vector<16x512xf32> to vector<15x512xf32>
    %61 = vector.extract_strided_slice %57 {offsets = [16, 0], sizes = [16, 512], strides = [1, 1]} : vector<32x512xf32> to vector<16x512xf32>
    %62 = vector.extract_strided_slice %61 {offsets = [0, 0], sizes = [15, 512], strides = [1, 1]} : vector<16x512xf32> to vector<15x512xf32>
    %63 = tpu.concatenate %58, %60, %58, %62 in 0 : vector<1x512xf32>, vector<15x512xf32>, vector<1x512xf32>, vector<15x512xf32> -> vector<32x512xf32>
    %cst_20 = arith.constant 0.000000e+00 : f32
    %64 = vector.broadcast %cst_20 : f32 to vector<1x512xf32>
    %65 = vector.extract_strided_slice %57 {offsets = [0, 0], sizes = [16, 512], strides = [1, 1]} : vector<32x512xf32> to vector<16x512xf32>
    %66 = vector.extract_strided_slice %65 {offsets = [1, 0], sizes = [15, 512], strides = [1, 1]} : vector<16x512xf32> to vector<15x512xf32>
    %67 = vector.extract_strided_slice %57 {offsets = [16, 0], sizes = [16, 512], strides = [1, 1]} : vector<32x512xf32> to vector<16x512xf32>
    %68 = vector.extract_strided_slice %67 {offsets = [1, 0], sizes = [15, 512], strides = [1, 1]} : vector<16x512xf32> to vector<15x512xf32>
    %69 = tpu.concatenate %66, %64, %68, %64 in 0 : vector<15x512xf32>, vector<1x512xf32>, vector<15x512xf32>, vector<1x512xf32> -> vector<32x512xf32>
    %70 = tpu.concatenate %63, %57, %69 in 1 : vector<32x512xf32>, vector<32x512xf32>, vector<32x512xf32> -> vector<32x1536xf32>
    %71 = arith.truncf %70 : vector<32x1536xf32> to vector<32x1536xbf16>
    %c0_21 = arith.constant 0 : index
    %c0_22 = arith.constant 0 : index
    %72 = vector.load %arg5[%c0_21, %c0_22] : memref<1536x512xbf16, #tpu.memory_space<vmem>>, vector<1536x512xbf16>
    %cst_23 = arith.constant dense<0.000000e+00> : vector<32x512xf32>
    %73 = tpu.matmul %71, %72, %cst_23 {dimension_numbers = #tpu.dot_dimension_numbers<[1], [0], [0], [1], [0, 0, 1, 1], [], []>} : vector<32x1536xbf16>, vector<1536x512xbf16>, vector<32x512xf32> -> vector<32x512xf32>
    %cst_24 = arith.constant dense<0.000000e+00> : vector<512xf32>
    %74 = vector.multi_reduction <add>, %73, %cst_24 [0] : vector<32x512xf32> to vector<512xf32>
    %75 = vector.shape_cast %74 : vector<512xf32> to vector<1x512xf32>
    %c256_i32_25 = arith.constant 256 : i32
    %76 = tpu.dynamic_rotate %75 by %c256_i32_25 dim 1 : vector<1x512xf32>, i32 -> vector<1x512xf32>
    %77 = arith.addf %75, %76 : vector<1x512xf32>
    %c128_i32_26 = arith.constant 128 : i32
    %78 = tpu.dynamic_rotate %77 by %c128_i32_26 dim 1 : vector<1x512xf32>, i32 -> vector<1x512xf32>
    %79 = arith.addf %77, %78 : vector<1x512xf32>
    %c64_i32_27 = arith.constant 64 : i32
    %80 = tpu.dynamic_rotate %79 by %c64_i32_27 dim 1 : vector<1x512xf32>, i32 -> vector<1x512xf32>
    %81 = arith.addf %79, %80 : vector<1x512xf32>
    %c32_i32_28 = arith.constant 32 : i32
    %82 = tpu.dynamic_rotate %81 by %c32_i32_28 dim 1 : vector<1x512xf32>, i32 -> vector<1x512xf32>
    %83 = arith.addf %81, %82 : vector<1x512xf32>
    %cst_29 = arith.constant 0.001953125 : f32
    %84 = vector.broadcast %cst_29 : f32 to vector<1x512xf32>
    %85 = arith.mulf %83, %84 : vector<1x512xf32>
    %86 = vector.broadcast %85 : vector<1x512xf32> to vector<32x512xf32>
    %87 = arith.subf %73, %86 : vector<32x512xf32>
    %88 = arith.mulf %87, %87 : vector<32x512xf32>
    %cst_30 = arith.constant dense<0.000000e+00> : vector<512xf32>
    %89 = vector.multi_reduction <add>, %88, %cst_30 [0] : vector<32x512xf32> to vector<512xf32>
    %90 = vector.shape_cast %89 : vector<512xf32> to vector<1x512xf32>
    %c256_i32_31 = arith.constant 256 : i32
    %91 = tpu.dynamic_rotate %90 by %c256_i32_31 dim 1 : vector<1x512xf32>, i32 -> vector<1x512xf32>
    %92 = arith.addf %90, %91 : vector<1x512xf32>
    %c128_i32_32 = arith.constant 128 : i32
    %93 = tpu.dynamic_rotate %92 by %c128_i32_32 dim 1 : vector<1x512xf32>, i32 -> vector<1x512xf32>
    %94 = arith.addf %92, %93 : vector<1x512xf32>
    %c64_i32_33 = arith.constant 64 : i32
    %95 = tpu.dynamic_rotate %94 by %c64_i32_33 dim 1 : vector<1x512xf32>, i32 -> vector<1x512xf32>
    %96 = arith.addf %94, %95 : vector<1x512xf32>
    %c32_i32_34 = arith.constant 32 : i32
    %97 = tpu.dynamic_rotate %96 by %c32_i32_34 dim 1 : vector<1x512xf32>, i32 -> vector<1x512xf32>
    %98 = arith.addf %96, %97 : vector<1x512xf32>
    %cst_35 = arith.constant 0.001953125 : f32
    %99 = vector.broadcast %cst_35 : f32 to vector<1x512xf32>
    %100 = arith.mulf %98, %99 : vector<1x512xf32>
    %c0_36 = arith.constant 0 : index
    %c0_37 = arith.constant 0 : index
    %101 = vector.load %arg6[%c0_36, %c0_37] : memref<1x512xf32, #tpu.memory_space<vmem>>, vector<1x512xf32>
    %cst_38 = arith.constant 9.99999974E-6 : f32
    %102 = vector.broadcast %cst_38 : f32 to vector<1x512xf32>
    %103 = arith.addf %100, %102 : vector<1x512xf32>
    %104 = math.rsqrt %103 : vector<1x512xf32>
    %105 = arith.mulf %101, %104 : vector<1x512xf32>
    %c0_39 = arith.constant 0 : index
    %c0_40 = arith.constant 0 : index
    %106 = vector.load %arg7[%c0_39, %c0_40] : memref<1x512xf32, #tpu.memory_space<vmem>>, vector<1x512xf32>
    %107 = arith.mulf %85, %105 : vector<1x512xf32>
    %108 = arith.subf %106, %107 : vector<1x512xf32>
    %109 = vector.broadcast %105 : vector<1x512xf32> to vector<32x512xf32>
    %110 = arith.mulf %73, %109 : vector<32x512xf32>
    %111 = vector.broadcast %108 : vector<1x512xf32> to vector<32x512xf32>
    %112 = arith.addf %110, %111 : vector<32x512xf32>
    %cst_41 = arith.constant 0.000000e+00 : f32
    %113 = vector.broadcast %cst_41 : f32 to vector<32x512xf32>
    %114 = arith.maximumf %112, %113 : vector<32x512xf32>
    %cst_42 = arith.constant 0.000000e+00 : f32
    %115 = vector.broadcast %cst_42 : f32 to vector<1x512xf32>
    %116 = vector.extract_strided_slice %114 {offsets = [0, 0], sizes = [16, 512], strides = [1, 1]} : vector<32x512xf32> to vector<16x512xf32>
    %117 = vector.extract_strided_slice %116 {offsets = [0, 0], sizes = [15, 512], strides = [1, 1]} : vector<16x512xf32> to vector<15x512xf32>
    %118 = vector.extract_strided_slice %114 {offsets = [16, 0], sizes = [16, 512], strides = [1, 1]} : vector<32x512xf32> to vector<16x512xf32>
    %119 = vector.extract_strided_slice %118 {offsets = [0, 0], sizes = [15, 512], strides = [1, 1]} : vector<16x512xf32> to vector<15x512xf32>
    %120 = tpu.concatenate %115, %117, %115, %119 in 0 : vector<1x512xf32>, vector<15x512xf32>, vector<1x512xf32>, vector<15x512xf32> -> vector<32x512xf32>
    %cst_43 = arith.constant 0.000000e+00 : f32
    %121 = vector.broadcast %cst_43 : f32 to vector<1x512xf32>
    %122 = vector.extract_strided_slice %114 {offsets = [0, 0], sizes = [16, 512], strides = [1, 1]} : vector<32x512xf32> to vector<16x512xf32>
    %123 = vector.extract_strided_slice %122 {offsets = [1, 0], sizes = [15, 512], strides = [1, 1]} : vector<16x512xf32> to vector<15x512xf32>
    %124 = vector.extract_strided_slice %114 {offsets = [16, 0], sizes = [16, 512], strides = [1, 1]} : vector<32x512xf32> to vector<16x512xf32>
    %125 = vector.extract_strided_slice %124 {offsets = [1, 0], sizes = [15, 512], strides = [1, 1]} : vector<16x512xf32> to vector<15x512xf32>
    %126 = tpu.concatenate %123, %121, %125, %121 in 0 : vector<15x512xf32>, vector<1x512xf32>, vector<15x512xf32>, vector<1x512xf32> -> vector<32x512xf32>
    %127 = tpu.concatenate %120, %114, %126 in 1 : vector<32x512xf32>, vector<32x512xf32>, vector<32x512xf32> -> vector<32x1536xf32>
    %128 = arith.truncf %127 : vector<32x1536xf32> to vector<32x1536xbf16>
    %c0_44 = arith.constant 0 : index
    %c0_45 = arith.constant 0 : index
    %129 = vector.load %arg8[%c0_44, %c0_45] : memref<1536x512xbf16, #tpu.memory_space<vmem>>, vector<1536x512xbf16>
    %cst_46 = arith.constant dense<0.000000e+00> : vector<32x512xf32>
    %130 = tpu.matmul %128, %129, %cst_46 {dimension_numbers = #tpu.dot_dimension_numbers<[1], [0], [0], [1], [0, 0, 1, 1], [], []>} : vector<32x1536xbf16>, vector<1536x512xbf16>, vector<32x512xf32> -> vector<32x512xf32>
    %cst_47 = arith.constant dense<0.000000e+00> : vector<512xf32>
    %131 = vector.multi_reduction <add>, %130, %cst_47 [0] : vector<32x512xf32> to vector<512xf32>
    %132 = vector.shape_cast %131 : vector<512xf32> to vector<1x512xf32>
    %c256_i32_48 = arith.constant 256 : i32
    %133 = tpu.dynamic_rotate %132 by %c256_i32_48 dim 1 : vector<1x512xf32>, i32 -> vector<1x512xf32>
    %134 = arith.addf %132, %133 : vector<1x512xf32>
    %c128_i32_49 = arith.constant 128 : i32
    %135 = tpu.dynamic_rotate %134 by %c128_i32_49 dim 1 : vector<1x512xf32>, i32 -> vector<1x512xf32>
    %136 = arith.addf %134, %135 : vector<1x512xf32>
    %c64_i32_50 = arith.constant 64 : i32
    %137 = tpu.dynamic_rotate %136 by %c64_i32_50 dim 1 : vector<1x512xf32>, i32 -> vector<1x512xf32>
    %138 = arith.addf %136, %137 : vector<1x512xf32>
    %c32_i32_51 = arith.constant 32 : i32
    %139 = tpu.dynamic_rotate %138 by %c32_i32_51 dim 1 : vector<1x512xf32>, i32 -> vector<1x512xf32>
    %140 = arith.addf %138, %139 : vector<1x512xf32>
    %cst_52 = arith.constant 0.001953125 : f32
    %141 = vector.broadcast %cst_52 : f32 to vector<1x512xf32>
    %142 = arith.mulf %140, %141 : vector<1x512xf32>
    %143 = vector.broadcast %142 : vector<1x512xf32> to vector<32x512xf32>
    %144 = arith.subf %130, %143 : vector<32x512xf32>
    %145 = arith.mulf %144, %144 : vector<32x512xf32>
    %cst_53 = arith.constant dense<0.000000e+00> : vector<512xf32>
    %146 = vector.multi_reduction <add>, %145, %cst_53 [0] : vector<32x512xf32> to vector<512xf32>
    %147 = vector.shape_cast %146 : vector<512xf32> to vector<1x512xf32>
    %c256_i32_54 = arith.constant 256 : i32
    %148 = tpu.dynamic_rotate %147 by %c256_i32_54 dim 1 : vector<1x512xf32>, i32 -> vector<1x512xf32>
    %149 = arith.addf %147, %148 : vector<1x512xf32>
    %c128_i32_55 = arith.constant 128 : i32
    %150 = tpu.dynamic_rotate %149 by %c128_i32_55 dim 1 : vector<1x512xf32>, i32 -> vector<1x512xf32>
    %151 = arith.addf %149, %150 : vector<1x512xf32>
    %c64_i32_56 = arith.constant 64 : i32
    %152 = tpu.dynamic_rotate %151 by %c64_i32_56 dim 1 : vector<1x512xf32>, i32 -> vector<1x512xf32>
    %153 = arith.addf %151, %152 : vector<1x512xf32>
    %c32_i32_57 = arith.constant 32 : i32
    %154 = tpu.dynamic_rotate %153 by %c32_i32_57 dim 1 : vector<1x512xf32>, i32 -> vector<1x512xf32>
    %155 = arith.addf %153, %154 : vector<1x512xf32>
    %cst_58 = arith.constant 0.001953125 : f32
    %156 = vector.broadcast %cst_58 : f32 to vector<1x512xf32>
    %157 = arith.mulf %155, %156 : vector<1x512xf32>
    %c0_59 = arith.constant 0 : index
    %c0_60 = arith.constant 0 : index
    %158 = vector.load %arg9[%c0_59, %c0_60] : memref<1x512xf32, #tpu.memory_space<vmem>>, vector<1x512xf32>
    %cst_61 = arith.constant 9.99999974E-6 : f32
    %159 = vector.broadcast %cst_61 : f32 to vector<1x512xf32>
    %160 = arith.addf %157, %159 : vector<1x512xf32>
    %161 = math.rsqrt %160 : vector<1x512xf32>
    %162 = arith.mulf %158, %161 : vector<1x512xf32>
    %c0_62 = arith.constant 0 : index
    %c0_63 = arith.constant 0 : index
    %163 = vector.load %arg10[%c0_62, %c0_63] : memref<1x512xf32, #tpu.memory_space<vmem>>, vector<1x512xf32>
    %164 = arith.mulf %142, %162 : vector<1x512xf32>
    %165 = arith.subf %163, %164 : vector<1x512xf32>
    %166 = vector.broadcast %162 : vector<1x512xf32> to vector<32x512xf32>
    %167 = arith.mulf %130, %166 : vector<32x512xf32>
    %168 = vector.broadcast %165 : vector<1x512xf32> to vector<32x512xf32>
    %169 = arith.addf %167, %168 : vector<32x512xf32>
    %170 = vector.extract_strided_slice %169 {offsets = [0, 0], sizes = [16, 512], strides = [1, 1]} : vector<32x512xf32> to vector<16x512xf32>
    %cst_64 = arith.constant dense<0.000000e+00> : vector<512xf32>
    %171 = vector.multi_reduction <add>, %170, %cst_64 [0] : vector<16x512xf32> to vector<512xf32>
    %172 = vector.shape_cast %171 : vector<512xf32> to vector<1x512xf32>
    %c256_i32_65 = arith.constant 256 : i32
    %173 = tpu.dynamic_rotate %172 by %c256_i32_65 dim 1 : vector<1x512xf32>, i32 -> vector<1x512xf32>
    %174 = arith.addf %172, %173 : vector<1x512xf32>
    %c128_i32_66 = arith.constant 128 : i32
    %175 = tpu.dynamic_rotate %174 by %c128_i32_66 dim 1 : vector<1x512xf32>, i32 -> vector<1x512xf32>
    %176 = arith.addf %174, %175 : vector<1x512xf32>
    %c64_i32_67 = arith.constant 64 : i32
    %177 = tpu.dynamic_rotate %176 by %c64_i32_67 dim 1 : vector<1x512xf32>, i32 -> vector<1x512xf32>
    %178 = arith.addf %176, %177 : vector<1x512xf32>
    %c32_i32_68 = arith.constant 32 : i32
    %179 = tpu.dynamic_rotate %178 by %c32_i32_68 dim 1 : vector<1x512xf32>, i32 -> vector<1x512xf32>
    %180 = arith.addf %178, %179 : vector<1x512xf32>
    %181 = vector.extract_strided_slice %180 {offsets = [0, 0], sizes = [1, 32], strides = [1, 1]} : vector<1x512xf32> to vector<1x32xf32>
    %182 = vector.extract_strided_slice %169 {offsets = [16, 0], sizes = [16, 512], strides = [1, 1]} : vector<32x512xf32> to vector<16x512xf32>
    %cst_69 = arith.constant dense<0.000000e+00> : vector<512xf32>
    %183 = vector.multi_reduction <add>, %182, %cst_69 [0] : vector<16x512xf32> to vector<512xf32>
    %184 = vector.shape_cast %183 : vector<512xf32> to vector<1x512xf32>
    %c256_i32_70 = arith.constant 256 : i32
    %185 = tpu.dynamic_rotate %184 by %c256_i32_70 dim 1 : vector<1x512xf32>, i32 -> vector<1x512xf32>
    %186 = arith.addf %184, %185 : vector<1x512xf32>
    %c128_i32_71 = arith.constant 128 : i32
    %187 = tpu.dynamic_rotate %186 by %c128_i32_71 dim 1 : vector<1x512xf32>, i32 -> vector<1x512xf32>
    %188 = arith.addf %186, %187 : vector<1x512xf32>
    %c64_i32_72 = arith.constant 64 : i32
    %189 = tpu.dynamic_rotate %188 by %c64_i32_72 dim 1 : vector<1x512xf32>, i32 -> vector<1x512xf32>
    %190 = arith.addf %188, %189 : vector<1x512xf32>
    %c32_i32_73 = arith.constant 32 : i32
    %191 = tpu.dynamic_rotate %190 by %c32_i32_73 dim 1 : vector<1x512xf32>, i32 -> vector<1x512xf32>
    %192 = arith.addf %190, %191 : vector<1x512xf32>
    %193 = vector.extract_strided_slice %192 {offsets = [0, 0], sizes = [1, 32], strides = [1, 1]} : vector<1x512xf32> to vector<1x32xf32>
    %194 = tpu.concatenate %181, %193 in 0 : vector<1x32xf32>, vector<1x32xf32> -> vector<2x32xf32>
    %cst_74 = arith.constant 3.906250e-03 : f32
    %195 = vector.broadcast %cst_74 : f32 to vector<2x32xf32>
    %196 = arith.mulf %194, %195 : vector<2x32xf32>
    %c0_75 = arith.constant 0 : index
    %c0_76 = arith.constant 0 : index
    %197 = vector.load %arg11[%c0_75, %c0_76] : memref<2x32xf32, #tpu.memory_space<vmem>>, vector<2x32xf32>
    %198 = vector.shape_cast %196 : vector<2x32xf32> to vector<2x1x32xf32>
    %199 = vector.shape_cast %197 : vector<2x32xf32> to vector<1x2x32xf32>
    %200 = vector.broadcast %198 : vector<2x1x32xf32> to vector<2x2x32xf32>
    %201 = vector.broadcast %199 : vector<1x2x32xf32> to vector<2x2x32xf32>
    %202 = arith.mulf %200, %201 : vector<2x2x32xf32>
    %cst_77 = arith.constant dense<0.000000e+00> : vector<2x2xf32>
    %203 = vector.multi_reduction <add>, %202, %cst_77 [2] : vector<2x2x32xf32> to vector<2x2xf32>
    %cst_78 = arith.constant 0.000000e+00 : f32
    %204 = vector.broadcast %cst_78 : f32 to vector<2x2xf32>
    %205 = arith.maximumf %203, %204 : vector<2x2xf32>
    %206 = vector.shape_cast %205 : vector<2x2xf32> to vector<2x2x1xf32>
    %c0_79 = arith.constant 0 : index
    %c0_80 = arith.constant 0 : index
    %207 = vector.load %arg12[%c0_79, %c0_80] : memref<2x512xf32, #tpu.memory_space<vmem>>, vector<2x512xf32>
    %208 = vector.shape_cast %207 : vector<2x512xf32> to vector<1x2x512xf32>
    %209 = vector.broadcast %206 : vector<2x2x1xf32> to vector<2x2x512xf32>
    %210 = vector.broadcast %208 : vector<1x2x512xf32> to vector<2x2x512xf32>
    %211 = arith.mulf %209, %210 : vector<2x2x512xf32>
    %cst_81 = arith.constant dense<0.000000e+00> : vector<2x512xf32>
    %212 = vector.multi_reduction <add>, %211, %cst_81 [1] : vector<2x2x512xf32> to vector<2x512xf32>
    %213 = arith.negf %212 : vector<2x512xf32>
    %214 = math.exp %213 : vector<2x512xf32>
    %cst_82 = arith.constant 1.000000e+00 : f32
    %215 = vector.broadcast %cst_82 : f32 to vector<2x512xf32>
    %216 = arith.addf %215, %214 : vector<2x512xf32>
    %217 = arith.divf %215, %216 : vector<2x512xf32>
    %218 = vector.extract_strided_slice %217 {offsets = [0, 0], sizes = [1, 512], strides = [1, 1]} : vector<2x512xf32> to vector<1x512xf32>
    %219 = vector.shape_cast %218 : vector<1x512xf32> to vector<1x512xf32>
    %220 = vector.broadcast %219 : vector<1x512xf32> to vector<16x512xf32>
    %221 = vector.extract_strided_slice %217 {offsets = [1, 0], sizes = [1, 512], strides = [1, 1]} : vector<2x512xf32> to vector<1x512xf32>
    %222 = vector.shape_cast %221 : vector<1x512xf32> to vector<1x512xf32>
    %223 = vector.broadcast %222 : vector<1x512xf32> to vector<16x512xf32>
    %224 = tpu.concatenate %220, %223 in 0 : vector<16x512xf32>, vector<16x512xf32> -> vector<32x512xf32>
    %225 = arith.mulf %169, %224 : vector<32x512xf32>
    %226 = arith.addf %225, %0 : vector<32x512xf32>
    %cst_83 = arith.constant 0.000000e+00 : f32
    %227 = vector.broadcast %cst_83 : f32 to vector<32x512xf32>
    %228 = arith.maximumf %226, %227 : vector<32x512xf32>
    %c0_84 = arith.constant 0 : index
    %c0_85 = arith.constant 0 : index
    %229 = vector.load %arg13[%c0_84, %c0_85] : memref<32x512xf32, #tpu.memory_space<vmem>>, vector<32x512xf32>
    tpu.vector_store %arg13[%c0_84, %c0_85], %228 {strides = array<i32>} : memref<32x512xf32, #tpu.memory_space<vmem>>, vector<32x512xf32>,
    return
  }
  func.func @transform_0(%arg0: i32) -> (i32, i32) {
    %c0_i32 = arith.constant 0 : i32
    %c0_i32_0 = arith.constant 0 : i32
    %c0_i32_1 = arith.constant 0 : i32
    return %c0_i32, %c0_i32_0 : i32, i32
  }
  func.func @transform_1(%arg0: i32) -> (i32, i32) {
    %c0_i32 = arith.constant 0 : i32
    %c0_i32_0 = arith.constant 0 : i32
    %c0_i32_1 = arith.constant 0 : i32
    return %c0_i32, %c0_i32_0 : i32, i32
  }
  func.func @transform_2(%arg0: i32) -> (i32, i32) {
    %c0_i32 = arith.constant 0 : i32
    %c0_i32_0 = arith.constant 0 : i32
    %c0_i32_1 = arith.constant 0 : i32
    return %c0_i32, %c0_i32_0 : i32, i32
  }
  func.func @transform_3(%arg0: i32) -> (i32, i32) {
    %c0_i32 = arith.constant 0 : i32
    %c0_i32_0 = arith.constant 0 : i32
    %c0_i32_1 = arith.constant 0 : i32
    return %c0_i32, %c0_i32_0 : i32, i32
  }
  func.func @transform_4(%arg0: i32) -> (i32, i32) {
    %c0_i32 = arith.constant 0 : i32
    %c0_i32_0 = arith.constant 0 : i32
    %c0_i32_1 = arith.constant 0 : i32
    return %c0_i32, %c0_i32_0 : i32, i32
  }
  func.func @transform_5(%arg0: i32) -> (i32, i32) {
    %c0_i32 = arith.constant 0 : i32
    %c0_i32_0 = arith.constant 0 : i32
    %c0_i32_1 = arith.constant 0 : i32
    return %c0_i32, %c0_i32_0 : i32, i32
  }
  func.func @transform_6(%arg0: i32) -> (i32, i32) {
    %c0_i32 = arith.constant 0 : i32
    %c0_i32_0 = arith.constant 0 : i32
    %c0_i32_1 = arith.constant 0 : i32
    return %c0_i32, %c0_i32_0 : i32, i32
  }
  func.func @transform_7(%arg0: i32) -> (i32, i32) {
    %c0_i32 = arith.constant 0 : i32
    %c0_i32_0 = arith.constant 0 : i32
    %c0_i32_1 = arith.constant 0 : i32
    return %c0_i32, %c0_i32_0 : i32, i32
  }
  func.func @transform_8(%arg0: i32) -> (i32, i32) {
    %c0_i32 = arith.constant 0 : i32
    %c0_i32_0 = arith.constant 0 : i32
    %c0_i32_1 = arith.constant 0 : i32
    return %c0_i32, %c0_i32_0 : i32, i32
  }
  func.func @transform_9(%arg0: i32) -> (i32, i32) {
    %c0_i32 = arith.constant 0 : i32
    %c0_i32_0 = arith.constant 0 : i32
    %c0_i32_1 = arith.constant 0 : i32
    return %c0_i32, %c0_i32_0 : i32, i32
  }
  func.func @transform_10(%arg0: i32) -> (i32, i32) {
    %c0_i32 = arith.constant 0 : i32
    %c0_i32_0 = arith.constant 0 : i32
    %c0_i32_1 = arith.constant 0 : i32
    return %c0_i32, %c0_i32_0 : i32, i32
  }
  func.func @transform_11(%arg0: i32) -> (i32, i32) {
    %c0_i32 = arith.constant 0 : i32
    %c0_i32_0 = arith.constant 0 : i32
    %c0_i32_1 = arith.constant 0 : i32
    return %c0_i32, %c0_i32_0 : i32, i32
  }
  func.func @transform_12(%arg0: i32) -> (i32, i32) {
    %c0_i32 = arith.constant 0 : i32
    %c0_i32_0 = arith.constant 0 : i32
    %c0_i32_1 = arith.constant 0 : i32
    return %c0_i32, %c0_i32_0 : i32, i32
  }
}

</mosaic_0001>

<llo_original>
// kernel: tpu_custom_call.1
$region0: #{tpu_custom_call.1}
  #allocation0 [shape = 'u32[]', space=smem, size = 0x4, offset = 0x4, fixed_abs, tag = 'smem constant byte address 0x4 - core index']
  #allocation1 [shape = 'u32[144,128]{1,0:T(1,128)}', space=vmem, size = 0x12000, scoped, tag = 'internal scratch']
  %s0 = inlined_call_operand.hbm [shape: f32[32,512], index: 0, kind: input, shape index: {}]
  %s1 = inlined_call_operand.hbm [shape: bf16[1536,512], index: 1, kind: input, shape index: {}]
  %s2 = inlined_call_operand.hbm [shape: f32[1,512], index: 2, kind: input, shape index: {}]
  %s3 = inlined_call_operand.hbm [shape: f32[1,512], index: 3, kind: input, shape index: {}]
  %s4 = inlined_call_operand.hbm [shape: bf16[1536,512], index: 4, kind: input, shape index: {}]
  %s5 = inlined_call_operand.hbm [shape: f32[1,512], index: 5, kind: input, shape index: {}]
  %s6 = inlined_call_operand.hbm [shape: f32[1,512], index: 6, kind: input, shape index: {}]
  %s7 = inlined_call_operand.hbm [shape: bf16[1536,512], index: 7, kind: input, shape index: {}]
  %s8 = inlined_call_operand.hbm [shape: f32[1,512], index: 8, kind: input, shape index: {}]
  %s9 = inlined_call_operand.hbm [shape: f32[1,512], index: 9, kind: input, shape index: {}]
  %s10 = inlined_call_operand.hbm [shape: f32[2,32], index: 10, kind: input, shape index: {}]
  %s11 = inlined_call_operand.hbm [shape: f32[2,512], index: 11, kind: input, shape index: {}]
  %s12 = inlined_call_operand.hbm [shape: f32[32,512], index: 12, kind: output, shape index: {}]
  %s13 = sld [smem:[#allocation0]]
  $region106: #{tpu_custom_call.1} parent=0
    _
  %s15 = ssub.s32 1, %s13
  %s16 = scalar_select 0, %s15, %s13
  $region1: #{tpu_custom_call.1} parent=0
    #allocation2 [shape = 'u8[65536]{0}', space=vmem, size = 0x10000, scoped, tag = 'input window, operand 0, single buffered']
    #allocation3 [shape = 's32[1]{0}', space=sflag, size = 0x4, scoped, tag = 'scoped memory for tpu_custom_call.1']
    #allocation4 [shape = 's32[1]{0}', space=sflag, size = 0x4, scoped, tag = 'scoped memory for tpu_custom_call.1']
    #allocation5 [shape = 'u8[1572864]{0}', space=vmem, size = 0x180000, scoped, tag = 'input window, operand 1, single buffered']
    #allocation6 [shape = 's32[1]{0}', space=sflag, size = 0x4, scoped, tag = 'scoped memory for tpu_custom_call.1']
    #allocation7 [shape = 'u8[2048]{0}', space=vmem, size = 0x800, scoped, tag = 'input window, operand 2, single buffered']
    #allocation8 [shape = 'u8[2048]{0}', space=vmem, size = 0x800, scoped, tag = 'input window, operand 3, single buffered']
    #allocation9 [shape = 's32[1]{0}', space=sflag, size = 0x4, scoped, tag = 'scoped memory for tpu_custom_call.1']
    #allocation10 [shape = 'u8[1572864]{0}', space=vmem, size = 0x180000, scoped, tag = 'input window, operand 4, single buffered']
    #allocation11 [shape = 'u8[2048]{0}', space=vmem, size = 0x800, scoped, tag = 'input window, operand 5, single buffered']
    #allocation12 [shape = 's32[1]{0}', space=sflag, size = 0x4, scoped, tag = 'scoped memory for tpu_custom_call.1']
    #allocation13 [shape = 'u8[2048]{0}', space=vmem, size = 0x800, scoped, tag = 'input window, operand 6, single buffered']
    #allocation14 [shape = 'u8[1572864]{0}', space=vmem, size = 0x180000, scoped, tag = 'input window, operand 7, single buffered']
    #allocation15 [shape = 's32[1]{0}', space=sflag, size = 0x4, scoped, tag = 'scoped memory for tpu_custom_call.1']
    #allocation16 [shape = 'u8[2048]{0}', space=vmem, size = 0x800, scoped, tag = 'input window, operand 8, single buffered']
    #allocation17 [shape = 'u8[2048]{0}', space=vmem, size = 0x800, scoped, tag = 'input window, operand 9, single buffered']
    #allocation18 [shape = 's32[1]{0}', space=sflag, size = 0x4, scoped, tag = 'scoped memory for tpu_custom_call.1']
    #allocation19 [shape = 'u8[1024]{0}', space=vmem, size = 0x400, scoped, tag = 'input window, operand 10, single buffered']
    #allocation20 [shape = 'u8[4096]{0}', space=vmem, size = 0x1000, scoped, tag = 'input window, operand 11, single buffered']
    #allocation21 [shape = 's32[1]{0}', space=sflag, size = 0x4, scoped, tag = 'scoped memory for tpu_custom_call.1']
    #allocation22 [shape = 'u8[65536]{0}', space=vmem, size = 0x10000, scoped, tag = 'output window, operand 0, single buffered']
    %17 = vsyncpa [#allocation3], 0
    %18 = vsyncpa [#allocation6], 0
    %19 = vsyncpa [#allocation9], 0
    %20 = vsyncpa [#allocation12], 0
    %21 = vsyncpa [#allocation15], 0
    %22 = vsyncpa [#allocation18], 0
    %23 = vsyncpa [#allocation21], 0
    %24 = vsyncpa [#allocation4], 0
    // Predicated region
    $region2: #{tpu_custom_call.1} parent=1 // pred_check
      _
    $region3: #{tpu_custom_call.1} parent=1 // pred_check_branch
      %26 = sbr.rel (0) target = $region5
    $region4: #{tpu_custom_call.1} parent=1 // pred_region
      %s28 = ssub.s32 2048, 2048
      %29 = vsyncadd [#allocation3], %s28
      %s30 = sshll.u32 [#allocation2], 4
      %s31 = int_to_ptr.vmem [resolvable:$true] %s30
      %36 = dma.hbm_to_vmem [thread:$0]  %s0, 2048, %s31, [#allocation3], 512, 512, 32
    $region5: #{tpu_custom_call.1} parent=1 // pred_fallthru
      _
    // Predicated region
    $region6: #{tpu_custom_call.1} parent=1 // pred_check
      _
    $region7: #{tpu_custom_call.1} parent=1 // pred_check_branch
      %38 = sbr.rel (0) target = $region9
    $region8: #{tpu_custom_call.1} parent=1 // pred_region
      %s40 = ssub.s32 49152, 49152
      %41 = vsyncadd [#allocation6], %s40
      %s42 = sshll.u32 [#allocation5], 4
      %s43 = int_to_ptr.vmem [resolvable:$true] %s42
      %48 = dma.hbm_to_vmem [thread:$0]  %s1, 49152, %s43, [#allocation6], 256, 256, 16
    $region9: #{tpu_custom_call.1} parent=1 // pred_fallthru
      _
    // Predicated region
    $region10: #{tpu_custom_call.1} parent=1 // pred_check
      _
    $region11: #{tpu_custom_call.1} parent=1 // pred_check_branch
      %50 = sbr.rel (0) target = $region13
    $region12: #{tpu_custom_call.1} parent=1 // pred_region
      %s52 = ssub.s32 64, 64
      %53 = vsyncadd [#allocation6], %s52
      %s55 = sshll.u32 [#allocation7], 4
      %s56 = int_to_ptr.vmem [resolvable:$true] %s55
      %58 = dma.hbm_to_vmem [thread:$0]  %s2, 64, %s56, [#allocation6]
    $region13: #{tpu_custom_call.1} parent=1 // pred_fallthru
      _
    // Predicated region
    $region14: #{tpu_custom_call.1} parent=1 // pred_check
      _
    $region15: #{tpu_custom_call.1} parent=1 // pred_check_branch
      %60 = sbr.rel (0) target = $region17
    $region16: #{tpu_custom_call.1} parent=1 // pred_region
      %s62 = ssub.s32 64, 64
      %63 = vsyncadd [#allocation9], %s62
      %s65 = sshll.u32 [#allocation8], 4
      %s66 = int_to_ptr.vmem [resolvable:$true] %s65
      %68 = dma.hbm_to_vmem [thread:$0]  %s3, 64, %s66, [#allocation9]
    $region17: #{tpu_custom_call.1} parent=1 // pred_fallthru
      _
    // Predicated region
    $region18: #{tpu_custom_call.1} parent=1 // pred_check
      _
    $region19: #{tpu_custom_call.1} parent=1 // pred_check_branch
      %70 = sbr.rel (0) target = $region21
    $region20: #{tpu_custom_call.1} parent=1 // pred_region
      %s72 = ssub.s32 49152, 49152
      %73 = vsyncadd [#allocation9], %s72
      %s74 = sshll.u32 [#allocation10], 4
      %s75 = int_to_ptr.vmem [resolvable:$true] %s74
      %80 = dma.hbm_to_vmem [thread:$0]  %s4, 49152, %s75, [#allocation9], 256, 256, 16
    $region21: #{tpu_custom_call.1} parent=1 // pred_fallthru
      _
    // Predicated region
    $region22: #{tpu_custom_call.1} parent=1 // pred_check
      _
    $region23: #{tpu_custom_call.1} parent=1 // pred_check_branch
      %82 = sbr.rel (0) target = $region25
    $region24: #{tpu_custom_call.1} parent=1 // pred_region
      %s84 = ssub.s32 64, 64
      %85 = vsyncadd [#allocation12], %s84
      %s87 = sshll.u32 [#allocation11], 4
      %s88 = int_to_ptr.vmem [resolvable:$true] %s87
      %90 = dma.hbm_to_vmem [thread:$0]  %s5, 64, %s88, [#allocation12]
    $region25: #{tpu_custom_call.1} parent=1 // pred_fallthru
      _
    // Predicated region
    $region26: #{tpu_custom_call.1} parent=1 // pred_check
      _
    $region27: #{tpu_custom_call.1} parent=1 // pred_check_branch
      %92 = sbr.rel (0) target = $region29
    $region28: #{tpu_custom_call.1} parent=1 // pred_region
      %s94 = ssub.s32 64, 64
      %95 = vsyncadd [#allocation12], %s94
      %s97 = sshll.u32 [#allocation13], 4
      %s98 = int_to_ptr.vmem [resolvable:$true] %s97
      %100 = dma.hbm_to_vmem [thread:$0]  %s6, 64, %s98, [#allocation12]
    $region29: #{tpu_custom_call.1} parent=1 // pred_fallthru
      _
    // Predicated region
    $region30: #{tpu_custom_call.1} parent=1 // pred_check
      _
    $region31: #{tpu_custom_call.1} parent=1 // pred_check_branch
      %102 = sbr.rel (0) target = $region33
    $region32: #{tpu_custom_call.1} parent=1 // pred_region
      %s104 = ssub.s32 49152, 49152
      %105 = vsyncadd [#allocation15], %s104
      %s106 = sshll.u32 [#allocation14], 4
      %s107 = int_to_ptr.vmem [resolvable:$true] %s106
      %112 = dma.hbm_to_vmem [thread:$0]  %s7, 49152, %s107, [#allocation15], 256, 256, 16
    $region33: #{tpu_custom_call.1} parent=1 // pred_fallthru
      _
    // Predicated region
    $region34: #{tpu_custom_call.1} parent=1 // pred_check
      _
    $region35: #{tpu_custom_call.1} parent=1 // pred_check_branch
      %114 = sbr.rel (0) target = $region37
    $region36: #{tpu_custom_call.1} parent=1 // pred_region
      %s116 = ssub.s32 64, 64
      %117 = vsyncadd [#allocation15], %s116
      %s119 = sshll.u32 [#allocation16], 4
      %s120 = int_to_ptr.vmem [resolvable:$true] %s119
      %122 = dma.hbm_to_vmem [thread:$0]  %s8, 64, %s120, [#allocation15]
    $region37: #{tpu_custom_call.1} parent=1 // pred_fallthru
      _
    // Predicated region
    $region38: #{tpu_custom_call.1} parent=1 // pred_check
      _
    $region39: #{tpu_custom_call.1} parent=1 // pred_check_branch
      %124 = sbr.rel (0) target = $region41
    $region40: #{tpu_custom_call.1} parent=1 // pred_region
      %s126 = ssub.s32 64, 64
      %127 = vsyncadd [#allocation18], %s126
      %s129 = sshll.u32 [#allocation17], 4
      %s130 = int_to_ptr.vmem [resolvable:$true] %s129
      %132 = dma.hbm_to_vmem [thread:$0]  %s9, 64, %s130, [#allocation18]
    $region41: #{tpu_custom_call.1} parent=1 // pred_fallthru
      _
    // Predicated region
    $region42: #{tpu_custom_call.1} parent=1 // pred_check
      _
    $region43: #{tpu_custom_call.1} parent=1 // pred_check_branch
      %134 = sbr.rel (0) target = $region45
    $region44: #{tpu_custom_call.1} parent=1 // pred_region
      %s136 = ssub.s32 32, 32
      %137 = vsyncadd [#allocation18], %s136
      %s139 = sshll.u32 [#allocation19], 4
      %s140 = int_to_ptr.vmem [resolvable:$true] %s139
      %142 = dma.hbm_to_vmem [thread:$0]  %s10, 32, %s140, [#allocation18]
    $region45: #{tpu_custom_call.1} parent=1 // pred_fallthru
      _
    // Predicated region
    $region46: #{tpu_custom_call.1} parent=1 // pred_check
      _
    $region47: #{tpu_custom_call.1} parent=1 // pred_check_branch
      %144 = sbr.rel (0) target = $region49
    $region48: #{tpu_custom_call.1} parent=1 // pred_region
      %s146 = ssub.s32 128, 128
      %147 = vsyncadd [#allocation21], %s146
      %s149 = sshll.u32 [#allocation20], 4
      %s150 = int_to_ptr.vmem [resolvable:$true] %s149
      %152 = dma.hbm_to_vmem [thread:$0]  %s11, 128, %s150, [#allocation21]
    $region49: #{tpu_custom_call.1} parent=1 // pred_fallthru
      _
    // Predicated region
    $region50: #{tpu_custom_call.1} parent=1 // pred_check
      _
    $region51: #{tpu_custom_call.1} parent=1 // pred_check_branch
      %154 = sbr.rel (0) target = $region53
    $region52: #{tpu_custom_call.1} parent=1 // pred_region
      %155 = dma.done [#allocation3], 2048
    $region53: #{tpu_custom_call.1} parent=1 // pred_fallthru
      _
    // Predicated region
    $region54: #{tpu_custom_call.1} parent=1 // pred_check
      _
    $region55: #{tpu_custom_call.1} parent=1 // pred_check_branch
      %157 = sbr.rel (0) target = $region57
    $region56: #{tpu_custom_call.1} parent=1 // pred_region
      %158 = dma.done [#allocation6], 49152
    $region57: #{tpu_custom_call.1} parent=1 // pred_fallthru
      _
    // Predicated region
    $region58: #{tpu_custom_call.1} parent=1 // pred_check
      _
    $region59: #{tpu_custom_call.1} parent=1 // pred_check_branch
      %160 = sbr.rel (0) target = $region61
    $region60: #{tpu_custom_call.1} parent=1 // pred_region
      %161 = dma.done [#allocation6], 64
    $region61: #{tpu_custom_call.1} parent=1 // pred_fallthru
      _
    // Predicated region
    $region62: #{tpu_custom_call.1} parent=1 // pred_check
      _
    $region63: #{tpu_custom_call.1} parent=1 // pred_check_branch
      %163 = sbr.rel (0) target = $region65
    $region64: #{tpu_custom_call.1} parent=1 // pred_region
      %164 = dma.done [#allocation9], 64
    $region65: #{tpu_custom_call.1} parent=1 // pred_fallthru
      _
    // Predicated region
    $region66: #{tpu_custom_call.1} parent=1 // pred_check
      _
    $region67: #{tpu_custom_call.1} parent=1 // pred_check_branch
      %166 = sbr.rel (0) target = $region69
    $region68: #{tpu_custom_call.1} parent=1 // pred_region
      %167 = dma.done [#allocation9], 49152
    $region69: #{tpu_custom_call.1} parent=1 // pred_fallthru
      _
    // Predicated region
    $region70: #{tpu_custom_call.1} parent=1 // pred_check
      _
    $region71: #{tpu_custom_call.1} parent=1 // pred_check_branch
      %169 = sbr.rel (0) target = $region73
    $region72: #{tpu_custom_call.1} parent=1 // pred_region
      %170 = dma.done [#allocation12], 64
    $region73: #{tpu_custom_call.1} parent=1 // pred_fallthru
      _
    // Predicated region
    $region74: #{tpu_custom_call.1} parent=1 // pred_check
      _
    $region75: #{tpu_custom_call.1} parent=1 // pred_check_branch
      %172 = sbr.rel (0) target = $region77
    $region76: #{tpu_custom_call.1} parent=1 // pred_region
      %173 = dma.done [#allocation12], 64
    $region77: #{tpu_custom_call.1} parent=1 // pred_fallthru
      _
    // Predicated region
    $region78: #{tpu_custom_call.1} parent=1 // pred_check
      _
    $region79: #{tpu_custom_call.1} parent=1 // pred_check_branch
      %175 = sbr.rel (0) target = $region81
    $region80: #{tpu_custom_call.1} parent=1 // pred_region
      %176 = dma.done [#allocation15], 49152
    $region81: #{tpu_custom_call.1} parent=1 // pred_fallthru
      _
    // Predicated region
    $region82: #{tpu_custom_call.1} parent=1 // pred_check
      _
    $region83: #{tpu_custom_call.1} parent=1 // pred_check_branch
      %178 = sbr.rel (0) target = $region85
    $region84: #{tpu_custom_call.1} parent=1 // pred_region
      %179 = dma.done [#allocation15], 64
    $region85: #{tpu_custom_call.1} parent=1 // pred_fallthru
      _
    // Predicated region
    $region86: #{tpu_custom_call.1} parent=1 // pred_check
      _
    $region87: #{tpu_custom_call.1} parent=1 // pred_check_branch
      %181 = sbr.rel (0) target = $region89
    $region88: #{tpu_custom_call.1} parent=1 // pred_region
      %182 = dma.done [#allocation18], 64
    $region89: #{tpu_custom_call.1} parent=1 // pred_fallthru
      _
    // Predicated region
    $region90: #{tpu_custom_call.1} parent=1 // pred_check
      _
    $region91: #{tpu_custom_call.1} parent=1 // pred_check_branch
      %184 = sbr.rel (0) target = $region93
    $region92: #{tpu_custom_call.1} parent=1 // pred_region
      %185 = dma.done [#allocation18], 32
    $region93: #{tpu_custom_call.1} parent=1 // pred_fallthru
      _
    // Predicated region
    $region94: #{tpu_custom_call.1} parent=1 // pred_check
      _
    $region95: #{tpu_custom_call.1} parent=1 // pred_check_branch
      %187 = sbr.rel (0) target = $region97
    $region96: #{tpu_custom_call.1} parent=1 // pred_region
      %188 = dma.done [#allocation21], 128
    $region97: #{tpu_custom_call.1} parent=1 // pred_fallthru
      _
    %v189 = vld [vmem:[#allocation2] sm:$0xff]
    %v190 = vld [vmem:[#allocation2 + $0x8] sm:$0xff]
    %v191 = vld [vmem:[#allocation2 + $0x10] sm:$0xff]
    %v192 = vld [vmem:[#allocation2 + $0x18] sm:$0xff]
    %v193 = vld [vmem:[#allocation2 + $0x20] sm:$0xff]
    %v194 = vld [vmem:[#allocation2 + $0x28] sm:$0xff]
    %v195 = vld [vmem:[#allocation2 + $0x30] sm:$0xff]
    %v196 = vld [vmem:[#allocation2 + $0x38] sm:$0xff]
    %v197 = vld [vmem:[#allocation2 + $0x40] sm:$0xff]
    %v198 = vld [vmem:[#allocation2 + $0x48] sm:$0xff]
    %v199 = vld [vmem:[#allocation2 + $0x50] sm:$0xff]
    %v200 = vld [vmem:[#allocation2 + $0x58] sm:$0xff]
    %v201 = vld [vmem:[#allocation2 + $0x60] sm:$0xff]
    %v202 = vld [vmem:[#allocation2 + $0x68] sm:$0xff]
    %v203 = vld [vmem:[#allocation2 + $0x70] sm:$0xff]
    %v204 = vld [vmem:[#allocation2 + $0x78] sm:$0xff]
    %vm213 = vcmask 1040384
    %v214 = vrot.slane %v189, 7
    %v215 = vrot.slane %v190, 7
    %v216 = vrot.slane %v191, 7
    %v217 = vrot.slane %v192, 7
    %v218 = vrot.slane %v193, 7
    %v219 = vsel %vm213, %v214, %v218
    %v220 = vrot.slane %v194, 7
    %v221 = vsel %vm213, %v215, %v220
    %v222 = vrot.slane %v195, 7
    %v223 = vsel %vm213, %v216, %v222
    %v224 = vrot.slane %v196, 7
    %v225 = vsel %vm213, %v217, %v224
    %v242 = vrot.slane %v197, 7
    %v243 = vrot.slane %v198, 7
    %v244 = vrot.slane %v199, 7
    %v245 = vrot.slane %v200, 7
    %v246 = vrot.slane %v201, 7
    %v247 = vsel %vm213, %v242, %v246
    %v248 = vrot.slane %v202, 7
    %v249 = vsel %vm213, %v243, %v248
    %v250 = vrot.slane %v203, 7
    %v251 = vsel %vm213, %v244, %v250
    %v252 = vrot.slane %v204, 7
    %v253 = vsel %vm213, %v245, %v252
    %v262 = vsel %vm213, 0.0, %v214
    %v263 = vsel %vm213, 0.0, %v215
    %v264 = vsel %vm213, 0.0, %v216
    %v265 = vsel %vm213, 0.0, %v217
    %v266 = vsel %vm213, 0.0, %v242
    %v267 = vsel %vm213, 0.0, %v243
    %v268 = vsel %vm213, 0.0, %v244
    %v269 = vsel %vm213, 0.0, %v245
    %vm270 = vcmask 1046528
    %v271 = vrot.slane %v189, 1
    %v272 = vrot.slane %v193, 1
    %v273 = vsel %vm270, %v271, %v272
    %v274 = vrot.slane %v190, 1
    %v275 = vrot.slane %v194, 1
    %v276 = vsel %vm270, %v274, %v275
    %v277 = vrot.slane %v191, 1
    %v278 = vrot.slane %v195, 1
    %v279 = vsel %vm270, %v277, %v278
    %v280 = vrot.slane %v192, 1
    %v281 = vrot.slane %v196, 1
    %v282 = vsel %vm270, %v280, %v281
    %v291 = vrot.slane %v197, 1
    %v292 = vrot.slane %v201, 1
    %v293 = vsel %vm270, %v291, %v292
    %v294 = vrot.slane %v198, 1
    %v295 = vrot.slane %v202, 1
    %v296 = vsel %vm270, %v294, %v295
    %v297 = vrot.slane %v199, 1
    %v298 = vrot.slane %v203, 1
    %v299 = vsel %vm270, %v297, %v298
    %v300 = vrot.slane %v200, 1
    %v301 = vrot.slane %v204, 1
    %v302 = vsel %vm270, %v300, %v301
    %v311 = vsel %vm270, %v272, 0.0
    %v312 = vsel %vm270, %v275, 0.0
    %v313 = vsel %vm270, %v278, 0.0
    %v314 = vsel %vm270, %v281, 0.0
    %v315 = vsel %vm270, %v292, 0.0
    %v316 = vsel %vm270, %v295, 0.0
    %v317 = vsel %vm270, %v298, 0.0
    %v318 = vsel %vm270, %v301, 0.0
    %v319 = vpack.c.bf16 %v219, %v262
    %v320 = vpack.c.bf16 %v221, %v263
    %v321 = vpack.c.bf16 %v223, %v264
    %v322 = vpack.c.bf16 %v225, %v265
    %v323 = vpack.c.bf16 %v193, %v189
    %v324 = vpack.c.bf16 %v194, %v190
    %v325 = vpack.c.bf16 %v195, %v191
    %v326 = vpack.c.bf16 %v196, %v192
    %v327 = vpack.c.bf16 %v311, %v273
    %v328 = vpack.c.bf16 %v312, %v276
    %v329 = vpack.c.bf16 %v313, %v279
    %v330 = vpack.c.bf16 %v314, %v282
    %v331 = vpack.c.bf16 %v247, %v266
    %v332 = vpack.c.bf16 %v249, %v267
    %v333 = vpack.c.bf16 %v251, %v268
    %v334 = vpack.c.bf16 %v253, %v269
    %v335 = vpack.c.bf16 %v201, %v197
    %v336 = vpack.c.bf16 %v202, %v198
    %v337 = vpack.c.bf16 %v203, %v199
    %v338 = vpack.c.bf16 %v204, %v200
    %v339 = vpack.c.bf16 %v315, %v293
    %v340 = vpack.c.bf16 %v316, %v296
    %v341 = vpack.c.bf16 %v317, %v299
    %v342 = vpack.c.bf16 %v318, %v302
    %v343 = vld [vmem:[#allocation5] sm:$0xff]
    %v344 = vld [vmem:[#allocation5 + $0x8] sm:$0xff]
    %v345 = vld [vmem:[#allocation5 + $0x10] sm:$0xff]
    %v346 = vld [vmem:[#allocation5 + $0x18] sm:$0xff]
    %v347 = vld [vmem:[#allocation5 + $0x20] sm:$0xff]
    %v348 = vld [vmem:[#allocation5 + $0x28] sm:$0xff]
    %v349 = vld [vmem:[#allocation5 + $0x30] sm:$0xff]
    %v350 = vld [vmem:[#allocation5 + $0x38] sm:$0xff]
    %v351 = vld [vmem:[#allocation5 + $0x40] sm:$0xff]
    %v352 = vld [vmem:[#allocation5 + $0x48] sm:$0xff]
    %v353 = vld [vmem:[#allocation5 + $0x50] sm:$0xff]
    %v354 = vld [vmem:[#allocation5 + $0x58] sm:$0xff]
    %v355 = vld [vmem:[#allocation5 + $0x60] sm:$0xff]
    %v356 = vld [vmem:[#allocation5 + $0x68] sm:$0xff]
    %v357 = vld [vmem:[#allocation5 + $0x70] sm:$0xff]
    %v358 = vld [vmem:[#allocation5 + $0x78] sm:$0xff]
    %v359 = vld [vmem:[#allocation5 + $0x80] sm:$0xff]
    %v360 = vld [vmem:[#allocation5 + $0x88] sm:$0xff]
    %v361 = vld [vmem:[#allocation5 + $0x90] sm:$0xff]
    %v362 = vld [vmem:[#allocation5 + $0x98] sm:$0xff]
    %v363 = vld [vmem:[#allocation5 + $0xa0] sm:$0xff]
    %v364 = vld [vmem:[#allocation5 + $0xa8] sm:$0xff]
    %v365 = vld [vmem:[#allocation5 + $0xb0] sm:$0xff]
    %v366 = vld [vmem:[#allocation5 + $0xb8] sm:$0xff]
    %v367 = vld [vmem:[#allocation5 + $0xc0] sm:$0xff]
    %v368 = vld [vmem:[#allocation5 + $0xc8] sm:$0xff]
    %v369 = vld [vmem:[#allocation5 + $0xd0] sm:$0xff]
    %v370 = vld [vmem:[#allocation5 + $0xd8] sm:$0xff]
    %v371 = vld [vmem:[#allocation5 + $0xe0] sm:$0xff]
    %v372 = vld [vmem:[#allocation5 + $0xe8] sm:$0xff]
    %v373 = vld [vmem:[#allocation5 + $0xf0] sm:$0xff]
    %v374 = vld [vmem:[#allocation5 + $0xf8] sm:$0xff]
    %v375 = vld [vmem:[#allocation5 + $0x100] sm:$0xff]
    %v376 = vld [vmem:[#allocation5 + $0x108] sm:$0xff]
    %v377 = vld [vmem:[#allocation5 + $0x110] sm:$0xff]
    %v378 = vld [vmem:[#allocation5 + $0x118] sm:$0xff]
    %v379 = vld [vmem:[#allocation5 + $0x120] sm:$0xff]
    %v380 = vld [vmem:[#allocation5 + $0x128] sm:$0xff]
    %v381 = vld [vmem:[#allocation5 + $0x130] sm:$0xff]
    %v382 = vld [vmem:[#allocation5 + $0x138] sm:$0xff]
    %v383 = vld [vmem:[#allocation5 + $0x140] sm:$0xff]
    %v384 = vld [vmem:[#allocation5 + $0x148] sm:$0xff]
    %v385 = vld [vmem:[#allocation5 + $0x150] sm:$0xff]
    %v386 = vld [vmem:[#allocation5 + $0x158] sm:$0xff]
    %v387 = vld [vmem:[#allocation5 + $0x160] sm:$0xff]
    %v388 = vld [vmem:[#allocation5 + $0x168] sm:$0xff]
    %v389 = vld [vmem:[#allocation5 + $0x170] sm:$0xff]
    %v390 = vld [vmem:[#allocation5 + $0x178] sm:$0xff]
    %v391 = vld [vmem:[#allocation5 + $0x180] sm:$0xff]
    %v392 = vld [vmem:[#allocation5 + $0x188] sm:$0xff]
    %v393 = vld [vmem:[#allocation5 + $0x190] sm:$0xff]
    %v394 = vld [vmem:[#allocation5 + $0x198] sm:$0xff]
    %v395 = vld [vmem:[#allocation5 + $0x1a0] sm:$0xff]
    %v396 = vld [vmem:[#allocation5 + $0x1a8] sm:$0xff]
    %v397 = vld [vmem:[#allocation5 + $0x1b0] sm:$0xff]
    %v398 = vld [vmem:[#allocation5 + $0x1b8] sm:$0xff]
    %v399 = vld [vmem:[#allocation5 + $0x1c0] sm:$0xff]
    %v400 = vld [vmem:[#allocation5 + $0x1c8] sm:$0xff]
    %v401 = vld [vmem:[#allocation5 + $0x1d0] sm:$0xff]
    %v402 = vld [vmem:[#allocation5 + $0x1d8] sm:$0xff]
    %v403 = vld [vmem:[#allocation5 + $0x1e0] sm:$0xff]
    %v404 = vld [vmem:[#allocation5 + $0x1e8] sm:$0xff]
    %v405 = vld [vmem:[#allocation5 + $0x1f0] sm:$0xff]
    %v406 = vld [vmem:[#allocation5 + $0x1f8] sm:$0xff]
    %v407 = vld [vmem:[#allocation5 + $0x200] sm:$0xff]
    %v408 = vld [vmem:[#allocation5 + $0x208] sm:$0xff]
    %v409 = vld [vmem:[#allocation5 + $0x210] sm:$0xff]
    %v410 = vld [vmem:[#allocation5 + $0x218] sm:$0xff]
    %v411 = vld [vmem:[#allocation5 + $0x220] sm:$0xff]
    %v412 = vld [vmem:[#allocation5 + $0x228] sm:$0xff]
    %v413 = vld [vmem:[#allocation5 + $0x230] sm:$0xff]
    %v414 = vld [vmem:[#allocation5 + $0x238] sm:$0xff]
    %v415 = vld [vmem:[#allocation5 + $0x240] sm:$0xff]
    %v416 = vld [vmem:[#allocation5 + $0x248] sm:$0xff]
    %v417 = vld [vmem:[#allocation5 + $0x250] sm:$0xff]
    %v418 = vld [vmem:[#allocation5 + $0x258] sm:$0xff]
    %v419 = vld [vmem:[#allocation5 + $0x260] sm:$0xff]
    %v420 = vld [vmem:[#allocation5 + $0x268] sm:$0xff]
    %v421 = vld [vmem:[#allocation5 + $0x270] sm:$0xff]
    %v422 = vld [vmem:[#allocation5 + $0x278] sm:$0xff]
    %v423 = vld [vmem:[#allocation5 + $0x280] sm:$0xff]
    %v424 = vld [vmem:[#allocation5 + $0x288] sm:$0xff]
    %v425 = vld [vmem:[#allocation5 + $0x290] sm:$0xff]
    %v426 = vld [vmem:[#allocation5 + $0x298] sm:$0xff]
    %v427 = vld [vmem:[#allocation5 + $0x2a0] sm:$0xff]
    %v428 = vld [vmem:[#allocation5 + $0x2a8] sm:$0xff]
    %v429 = vld [vmem:[#allocation5 + $0x2b0] sm:$0xff]
    %v430 = vld [vmem:[#allocation5 + $0x2b8] sm:$0xff]
    %v431 = vld [vmem:[#allocation5 + $0x2c0] sm:$0xff]
    %v432 = vld [vmem:[#allocation5 + $0x2c8] sm:$0xff]
    %v433 = vld [vmem:[#allocation5 + $0x2d0] sm:$0xff]
    %v434 = vld [vmem:[#allocation5 + $0x2d8] sm:$0xff]
    %v435 = vld [vmem:[#allocation5 + $0x2e0] sm:$0xff]
    %v436 = vld [vmem:[#allocation5 + $0x2e8] sm:$0xff]
    %v437 = vld [vmem:[#allocation5 + $0x2f0] sm:$0xff]
    %v438 = vld [vmem:[#allocation5 + $0x2f8] sm:$0xff]
    %v439 = vld [vmem:[#allocation5 + $0x300] sm:$0xff]
    %v440 = vld [vmem:[#allocation5 + $0x308] sm:$0xff]
    %v441 = vld [vmem:[#allocation5 + $0x310] sm:$0xff]
    %v442 = vld [vmem:[#allocation5 + $0x318] sm:$0xff]
    %v443 = vld [vmem:[#allocation5 + $0x320] sm:$0xff]
    %v444 = vld [vmem:[#allocation5 + $0x328] sm:$0xff]
    %v445 = vld [vmem:[#allocation5 + $0x330] sm:$0xff]
    %v446 = vld [vmem:[#allocation5 + $0x338] sm:$0xff]
    %v447 = vld [vmem:[#allocation5 + $0x340] sm:$0xff]
    %v448 = vld [vmem:[#allocation5 + $0x348] sm:$0xff]
    %v449 = vld [vmem:[#allocation5 + $0x350] sm:$0xff]
    %v450 = vld [vmem:[#allocation5 + $0x358] sm:$0xff]
    %v451 = vld [vmem:[#allocation5 + $0x360] sm:$0xff]
    %v452 = vld [vmem:[#allocation5 + $0x368] sm:$0xff]
    %v453 = vld [vmem:[#allocation5 + $0x370] sm:$0xff]
    %v454 = vld [vmem:[#allocation5 + $0x378] sm:$0xff]
    %v455 = vld [vmem:[#allocation5 + $0x380] sm:$0xff]
    %v456 = vld [vmem:[#allocation5 + $0x388] sm:$0xff]
    %v457 = vld [vmem:[#allocation5 + $0x390] sm:$0xff]
    %v458 = vld [vmem:[#allocation5 + $0x398] sm:$0xff]
    %v459 = vld [vmem:[#allocation5 + $0x3a0] sm:$0xff]
    %v460 = vld [vmem:[#allocation5 + $0x3a8] sm:$0xff]
    %v461 = vld [vmem:[#allocation5 + $0x3b0] sm:$0xff]
    %v462 = vld [vmem:[#allocation5 + $0x3b8] sm:$0xff]
    %v463 = vld [vmem:[#allocation5 + $0x3c0] sm:$0xff]
    %v464 = vld [vmem:[#allocation5 + $0x3c8] sm:$0xff]
    %v465 = vld [vmem:[#allocation5 + $0x3d0] sm:$0xff]
    %v466 = vld [vmem:[#allocation5 + $0x3d8] sm:$0xff]
    %v467 = vld [vmem:[#allocation5 + $0x3e0] sm:$0xff]
    %v468 = vld [vmem:[#allocation5 + $0x3e8] sm:$0xff]
    %v469 = vld [vmem:[#allocation5 + $0x3f0] sm:$0xff]
    %v470 = vld [vmem:[#allocation5 + $0x3f8] sm:$0xff]
    %v471 = vld [vmem:[#allocation5 + $0x400] sm:$0xff]
    %v472 = vld [vmem:[#allocation5 + $0x408] sm:$0xff]
    %v473 = vld [vmem:[#allocation5 + $0x410] sm:$0xff]
    %v474 = vld [vmem:[#allocation5 + $0x418] sm:$0xff]
    %v475 = vld [vmem:[#allocation5 + $0x420] sm:$0xff]
    %v476 = vld [vmem:[#allocation5 + $0x428] sm:$0xff]
    %v477 = vld [vmem:[#allocation5 + $0x430] sm:$0xff]
    %v478 = vld [vmem:[#allocation5 + $0x438] sm:$0xff]
    %v479 = vld [vmem:[#allocation5 + $0x440] sm:$0xff]
    %v480 = vld [vmem:[#allocation5 + $0x448] sm:$0xff]
    %v481 = vld [vmem:[#allocation5 + $0x450] sm:$0xff]
    %v482 = vld [vmem:[#allocation5 + $0x458] sm:$0xff]
    %v483 = vld [vmem:[#allocation5 + $0x460] sm:$0xff]
    %v484 = vld [vmem:[#allocation5 + $0x468] sm:$0xff]
    %v485 = vld [vmem:[#allocation5 + $0x470] sm:$0xff]
    %v486 = vld [vmem:[#allocation5 + $0x478] sm:$0xff]
    %v487 = vld [vmem:[#allocation5 + $0x480] sm:$0xff]
    %v488 = vld [vmem:[#allocation5 + $0x488] sm:$0xff]
    %v489 = vld [vmem:[#allocation5 + $0x490] sm:$0xff]
    %v490 = vld [vmem:[#allocation5 + $0x498] sm:$0xff]
    %v491 = vld [vmem:[#allocation5 + $0x4a0] sm:$0xff]
    %v492 = vld [vmem:[#allocation5 + $0x4a8] sm:$0xff]
    %v493 = vld [vmem:[#allocation5 + $0x4b0] sm:$0xff]
    %v494 = vld [vmem:[#allocation5 + $0x4b8] sm:$0xff]
    %v495 = vld [vmem:[#allocation5 + $0x4c0] sm:$0xff]
    %v496 = vld [vmem:[#allocation5 + $0x4c8] sm:$0xff]
    %v497 = vld [vmem:[#allocation5 + $0x4d0] sm:$0xff]
    %v498 = vld [vmem:[#allocation5 + $0x4d8] sm:$0xff]
    %v499 = vld [vmem:[#allocation5 + $0x4e0] sm:$0xff]
    %v500 = vld [vmem:[#allocation5 + $0x4e8] sm:$0xff]
    %v501 = vld [vmem:[#allocation5 + $0x4f0] sm:$0xff]
    %v502 = vld [vmem:[#allocation5 + $0x4f8] sm:$0xff]
    %v503 = vld [vmem:[#allocation5 + $0x500] sm:$0xff]
    %v504 = vld [vmem:[#allocation5 + $0x508] sm:$0xff]
    %v505 = vld [vmem:[#allocation5 + $0x510] sm:$0xff]
    %v506 = vld [vmem:[#allocation5 + $0x518] sm:$0xff]
    %v507 = vld [vmem:[#allocation5 + $0x520] sm:$0xff]
    %v508 = vld [vmem:[#allocation5 + $0x528] sm:$0xff]
    %v509 = vld [vmem:[#allocation5 + $0x530] sm:$0xff]
    %v510 = vld [vmem:[#allocation5 + $0x538] sm:$0xff]
    %v511 = vld [vmem:[#allocation5 + $0x540] sm:$0xff]
    %v512 = vld [vmem:[#allocation5 + $0x548] sm:$0xff]
    %v513 = vld [vmem:[#allocation5 + $0x550] sm:$0xff]
    %v514 = vld [vmem:[#allocation5 + $0x558] sm:$0xff]
    %v515 = vld [vmem:[#allocation5 + $0x560] sm:$0xff]
    %v516 = vld [vmem:[#allocation5 + $0x568] sm:$0xff]
    %v517 = vld [vmem:[#allocation5 + $0x570] sm:$0xff]
    %v518 = vld [vmem:[#allocation5 + $0x578] sm:$0xff]
    %v519 = vld [vmem:[#allocation5 + $0x580] sm:$0xff]
    %v520 = vld [vmem:[#allocation5 + $0x588] sm:$0xff]
    %v521 = vld [vmem:[#allocation5 + $0x590] sm:$0xff]
    %v522 = vld [vmem:[#allocation5 + $0x598] sm:$0xff]
    %v523 = vld [vmem:[#allocation5 + $0x5a0] sm:$0xff]
    %v524 = vld [vmem:[#allocation5 + $0x5a8] sm:$0xff]
    %v525 = vld [vmem:[#allocation5 + $0x5b0] sm:$0xff]
    %v526 = vld [vmem:[#allocation5 + $0x5b8] sm:$0xff]
    %v527 = vld [vmem:[#allocation5 + $0x5c0] sm:$0xff]
    %v528 = vld [vmem:[#allocation5 + $0x5c8] sm:$0xff]
    %v529 = vld [vmem:[#allocation5 + $0x5d0] sm:$0xff]
    %v530 = vld [vmem:[#allocation5 + $0x5d8] sm:$0xff]
    %v531 = vld [vmem:[#allocation5 + $0x5e0] sm:$0xff]
    %v532 = vld [vmem:[#allocation5 + $0x5e8] sm:$0xff]
    %v533 = vld [vmem:[#allocation5 + $0x5f0] sm:$0xff]
    %v534 = vld [vmem:[#allocation5 + $0x5f8] sm:$0xff]
    %v535 = vld [vmem:[#allocation5 + $0x600] sm:$0xff]
    %v536 = vld [vmem:[#allocation5 + $0x608] sm:$0xff]
    %v537 = vld [vmem:[#allocation5 + $0x610] sm:$0xff]
    %v538 = vld [vmem:[#allocation5 + $0x618] sm:$0xff]
    %v539 = vld [vmem:[#allocation5 + $0x620] sm:$0xff]
    %v540 = vld [vmem:[#allocation5 + $0x628] sm:$0xff]
    %v541 = vld [vmem:[#allocation5 + $0x630] sm:$0xff]
    %v542 = vld [vmem:[#allocation5 + $0x638] sm:$0xff]
    %v543 = vld [vmem:[#allocation5 + $0x640] sm:$0xff]
    %v544 = vld [vmem:[#allocation5 + $0x648] sm:$0xff]
    %v545 = vld [vmem:[#allocation5 + $0x650] sm:$0xff]
    %v546 = vld [vmem:[#allocation5 + $0x658] sm:$0xff]
    %v547 = vld [vmem:[#allocation5 + $0x660] sm:$0xff]
    %v548 = vld [vmem:[#allocation5 + $0x668] sm:$0xff]
    %v549 = vld [vmem:[#allocation5 + $0x670] sm:$0xff]
    %v550 = vld [vmem:[#allocation5 + $0x678] sm:$0xff]
    %v551 = vld [vmem:[#allocation5 + $0x680] sm:$0xff]
    %v552 = vld [vmem:[#allocation5 + $0x688] sm:$0xff]
    %v553 = vld [vmem:[#allocation5 + $0x690] sm:$0xff]
    %v554 = vld [vmem:[#allocation5 + $0x698] sm:$0xff]
    %v555 = vld [vmem:[#allocation5 + $0x6a0] sm:$0xff]
    %v556 = vld [vmem:[#allocation5 + $0x6a8] sm:$0xff]
    %v557 = vld [vmem:[#allocation5 + $0x6b0] sm:$0xff]
    %v558 = vld [vmem:[#allocation5 + $0x6b8] sm:$0xff]
    %v559 = vld [vmem:[#allocation5 + $0x6c0] sm:$0xff]
    %v560 = vld [vmem:[#allocation5 + $0x6c8] sm:$0xff]
    %v561 = vld [vmem:[#allocation5 + $0x6d0] sm:$0xff]
    %v562 = vld [vmem:[#allocation5 + $0x6d8] sm:$0xff]
    %v563 = vld [vmem:[#allocation5 + $0x6e0] sm:$0xff]
    %v564 = vld [vmem:[#allocation5 + $0x6e8] sm:$0xff]
    %v565 = vld [vmem:[#allocation5 + $0x6f0] sm:$0xff]
    %v566 = vld [vmem:[#allocation5 + $0x6f8] sm:$0xff]
    %v567 = vld [vmem:[#allocation5 + $0x700] sm:$0xff]
    %v568 = vld [vmem:[#allocation5 + $0x708] sm:$0xff]
    %v569 = vld [vmem:[#allocation5 + $0x710] sm:$0xff]
    %v570 = vld [vmem:[#allocation5 + $0x718] sm:$0xff]
    %v571 = vld [vmem:[#allocation5 + $0x720] sm:$0xff]
    %v572 = vld [vmem:[#allocation5 + $0x728] sm:$0xff]
    %v573 = vld [vmem:[#allocation5 + $0x730] sm:$0xff]
    %v574 = vld [vmem:[#allocation5 + $0x738] sm:$0xff]
    %v575 = vld [vmem:[#allocation5 + $0x740] sm:$0xff]
    %v576 = vld [vmem:[#allocation5 + $0x748] sm:$0xff]
    %v577 = vld [vmem:[#allocation5 + $0x750] sm:$0xff]
    %v578 = vld [vmem:[#allocation5 + $0x758] sm:$0xff]
    %v579 = vld [vmem:[#allocation5 + $0x760] sm:$0xff]
    %v580 = vld [vmem:[#allocation5 + $0x768] sm:$0xff]
    %v581 = vld [vmem:[#allocation5 + $0x770] sm:$0xff]
    %v582 = vld [vmem:[#allocation5 + $0x778] sm:$0xff]
    %v583 = vld [vmem:[#allocation5 + $0x780] sm:$0xff]
    %v584 = vld [vmem:[#allocation5 + $0x788] sm:$0xff]
    %v585 = vld [vmem:[#allocation5 + $0x790] sm:$0xff]
    %v586 = vld [vmem:[#allocation5 + $0x798] sm:$0xff]
    %v587 = vld [vmem:[#allocation5 + $0x7a0] sm:$0xff]
    %v588 = vld [vmem:[#allocation5 + $0x7a8] sm:$0xff]
    %v589 = vld [vmem:[#allocation5 + $0x7b0] sm:$0xff]
    %v590 = vld [vmem:[#allocation5 + $0x7b8] sm:$0xff]
    %v591 = vld [vmem:[#allocation5 + $0x7c0] sm:$0xff]
    %v592 = vld [vmem:[#allocation5 + $0x7c8] sm:$0xff]
    %v593 = vld [vmem:[#allocation5 + $0x7d0] sm:$0xff]
    %v594 = vld [vmem:[#allocation5 + $0x7d8] sm:$0xff]
    %v595 = vld [vmem:[#allocation5 + $0x7e0] sm:$0xff]
    %v596 = vld [vmem:[#allocation5 + $0x7e8] sm:$0xff]
    %v597 = vld [vmem:[#allocation5 + $0x7f0] sm:$0xff]
    %v598 = vld [vmem:[#allocation5 + $0x7f8] sm:$0xff]
    %v599 = vld [vmem:[#allocation5 + $0x800] sm:$0xff]
    %v600 = vld [vmem:[#allocation5 + $0x808] sm:$0xff]
    %v601 = vld [vmem:[#allocation5 + $0x810] sm:$0xff]
    %v602 = vld [vmem:[#allocation5 + $0x818] sm:$0xff]
    %v603 = vld [vmem:[#allocation5 + $0x820] sm:$0xff]
    %v604 = vld [vmem:[#allocation5 + $0x828] sm:$0xff]
    %v605 = vld [vmem:[#allocation5 + $0x830] sm:$0xff]
    %v606 = vld [vmem:[#allocation5 + $0x838] sm:$0xff]
    %v607 = vld [vmem:[#allocation5 + $0x840] sm:$0xff]
    %v608 = vld [vmem:[#allocation5 + $0x848] sm:$0xff]
    %v609 = vld [vmem:[#allocation5 + $0x850] sm:$0xff]
    %v610 = vld [vmem:[#allocation5 + $0x858] sm:$0xff]
    %v611 = vld [vmem:[#allocation5 + $0x860] sm:$0xff]
    %v612 = vld [vmem:[#allocation5 + $0x868] sm:$0xff]
    %v613 = vld [vmem:[#allocation5 + $0x870] sm:$0xff]
    %v614 = vld [vmem:[#allocation5 + $0x878] sm:$0xff]
    %v615 = vld [vmem:[#allocation5 + $0x880] sm:$0xff]
    %v616 = vld [vmem:[#allocation5 + $0x888] sm:$0xff]
    %v617 = vld [vmem:[#allocation5 + $0x890] sm:$0xff]
    %v618 = vld [vmem:[#allocation5 + $0x898] sm:$0xff]
    %v619 = vld [vmem:[#allocation5 + $0x8a0] sm:$0xff]
    %v620 = vld [vmem:[#allocation5 + $0x8a8] sm:$0xff]
    %v621 = vld [vmem:[#allocation5 + $0x8b0] sm:$0xff]
    %v622 = vld [vmem:[#allocation5 + $0x8b8] sm:$0xff]
    %v623 = vld [vmem:[#allocation5 + $0x8c0] sm:$0xff]
    %v624 = vld [vmem:[#allocation5 + $0x8c8] sm:$0xff]
    %v625 = vld [vmem:[#allocation5 + $0x8d0] sm:$0xff]
    %v626 = vld [vmem:[#allocation5 + $0x8d8] sm:$0xff]
    %v627 = vld [vmem:[#allocation5 + $0x8e0] sm:$0xff]
    %v628 = vld [vmem:[#allocation5 + $0x8e8] sm:$0xff]
    %v629 = vld [vmem:[#allocation5 + $0x8f0] sm:$0xff]
    %v630 = vld [vmem:[#allocation5 + $0x8f8] sm:$0xff]
    %v631 = vld [vmem:[#allocation5 + $0x900] sm:$0xff]
    %v632 = vld [vmem:[#allocation5 + $0x908] sm:$0xff]
    %v633 = vld [vmem:[#allocation5 + $0x910] sm:$0xff]
    %v634 = vld [vmem:[#allocation5 + $0x918] sm:$0xff]
    %v635 = vld [vmem:[#allocation5 + $0x920] sm:$0xff]
    %v636 = vld [vmem:[#allocation5 + $0x928] sm:$0xff]
    %v637 = vld [vmem:[#allocation5 + $0x930] sm:$0xff]
    %v638 = vld [vmem:[#allocation5 + $0x938] sm:$0xff]
    %v639 = vld [vmem:[#allocation5 + $0x940] sm:$0xff]
    %v640 = vld [vmem:[#allocation5 + $0x948] sm:$0xff]
    %v641 = vld [vmem:[#allocation5 + $0x950] sm:$0xff]
    %v642 = vld [vmem:[#allocation5 + $0x958] sm:$0xff]
    %v643 = vld [vmem:[#allocation5 + $0x960] sm:$0xff]
    %v644 = vld [vmem:[#allocation5 + $0x968] sm:$0xff]
    %v645 = vld [vmem:[#allocation5 + $0x970] sm:$0xff]
    %v646 = vld [vmem:[#allocation5 + $0x978] sm:$0xff]
    %v647 = vld [vmem:[#allocation5 + $0x980] sm:$0xff]
    %v648 = vld [vmem:[#allocation5 + $0x988] sm:$0xff]
    %v649 = vld [vmem:[#allocation5 + $0x990] sm:$0xff]
    %v650 = vld [vmem:[#allocation5 + $0x998] sm:$0xff]
    %v651 = vld [vmem:[#allocation5 + $0x9a0] sm:$0xff]
    %v652 = vld [vmem:[#allocation5 + $0x9a8] sm:$0xff]
    %v653 = vld [vmem:[#allocation5 + $0x9b0] sm:$0xff]
    %v654 = vld [vmem:[#allocation5 + $0x9b8] sm:$0xff]
    %v655 = vld [vmem:[#allocation5 + $0x9c0] sm:$0xff]
    %v656 = vld [vmem:[#allocation5 + $0x9c8] sm:$0xff]
    %v657 = vld [vmem:[#allocation5 + $0x9d0] sm:$0xff]
    %v658 = vld [vmem:[#allocation5 + $0x9d8] sm:$0xff]
    %v659 = vld [vmem:[#allocation5 + $0x9e0] sm:$0xff]
    %v660 = vld [vmem:[#allocation5 + $0x9e8] sm:$0xff]
    %v661 = vld [vmem:[#allocation5 + $0x9f0] sm:$0xff]
    %v662 = vld [vmem:[#allocation5 + $0x9f8] sm:$0xff]
    %v663 = vld [vmem:[#allocation5 + $0xa00] sm:$0xff]
    %v664 = vld [vmem:[#allocation5 + $0xa08] sm:$0xff]
    %v665 = vld [vmem:[#allocation5 + $0xa10] sm:$0xff]
    %v666 = vld [vmem:[#allocation5 + $0xa18] sm:$0xff]
    %v667 = vld [vmem:[#allocation5 + $0xa20] sm:$0xff]
    %v668 = vld [vmem:[#allocation5 + $0xa28] sm:$0xff]
    %v669 = vld [vmem:[#allocation5 + $0xa30] sm:$0xff]
    %v670 = vld [vmem:[#allocation5 + $0xa38] sm:$0xff]
    %v671 = vld [vmem:[#allocation5 + $0xa40] sm:$0xff]
    %v672 = vld [vmem:[#allocation5 + $0xa48] sm:$0xff]
    %v673 = vld [vmem:[#allocation5 + $0xa50] sm:$0xff]
    %v674 = vld [vmem:[#allocation5 + $0xa58] sm:$0xff]
    %v675 = vld [vmem:[#allocation5 + $0xa60] sm:$0xff]
    %v676 = vld [vmem:[#allocation5 + $0xa68] sm:$0xff]
    %v677 = vld [vmem:[#allocation5 + $0xa70] sm:$0xff]
    %v678 = vld [vmem:[#allocation5 + $0xa78] sm:$0xff]
    %v679 = vld [vmem:[#allocation5 + $0xa80] sm:$0xff]
    %v680 = vld [vmem:[#allocation5 + $0xa88] sm:$0xff]
    %v681 = vld [vmem:[#allocation5 + $0xa90] sm:$0xff]
    %v682 = vld [vmem:[#allocation5 + $0xa98] sm:$0xff]
    %v683 = vld [vmem:[#allocation5 + $0xaa0] sm:$0xff]
    %v684 = vld [vmem:[#allocation5 + $0xaa8] sm:$0xff]
    %v685 = vld [vmem:[#allocation5 + $0xab0] sm:$0xff]
    %v686 = vld [vmem:[#allocation5 + $0xab8] sm:$0xff]
    %v687 = vld [vmem:[#allocation5 + $0xac0] sm:$0xff]
    %v688 = vld [vmem:[#allocation5 + $0xac8] sm:$0xff]
    %v689 = vld [vmem:[#allocation5 + $0xad0] sm:$0xff]
    %v690 = vld [vmem:[#allocation5 + $0xad8] sm:$0xff]
    %v691 = vld [vmem:[#allocation5 + $0xae0] sm:$0xff]
    %v692 = vld [vmem:[#allocation5 + $0xae8] sm:$0xff]
    %v693 = vld [vmem:[#allocation5 + $0xaf0] sm:$0xff]
    %v694 = vld [vmem:[#allocation5 + $0xaf8] sm:$0xff]
    %v695 = vld [vmem:[#allocation5 + $0xb00] sm:$0xff]
    %v696 = vld [vmem:[#allocation5 + $0xb08] sm:$0xff]
    %v697 = vld [vmem:[#allocation5 + $0xb10] sm:$0xff]
    %v698 = vld [vmem:[#allocation5 + $0xb18] sm:$0xff]
    %v699 = vld [vmem:[#allocation5 + $0xb20] sm:$0xff]
    %v700 = vld [vmem:[#allocation5 + $0xb28] sm:$0xff]
    %v701 = vld [vmem:[#allocation5 + $0xb30] sm:$0xff]
    %v702 = vld [vmem:[#allocation5 + $0xb38] sm:$0xff]
    %v703 = vld [vmem:[#allocation5 + $0xb40] sm:$0xff]
    %v704 = vld [vmem:[#allocation5 + $0xb48] sm:$0xff]
    %v705 = vld [vmem:[#allocation5 + $0xb50] sm:$0xff]
    %v706 = vld [vmem:[#allocation5 + $0xb58] sm:$0xff]
    %v707 = vld [vmem:[#allocation5 + $0xb60] sm:$0xff]
    %v708 = vld [vmem:[#allocation5 + $0xb68] sm:$0xff]
    %v709 = vld [vmem:[#allocation5 + $0xb70] sm:$0xff]
    %v710 = vld [vmem:[#allocation5 + $0xb78] sm:$0xff]
    %v711 = vld [vmem:[#allocation5 + $0xb80] sm:$0xff]
    %v712 = vld [vmem:[#allocation5 + $0xb88] sm:$0xff]
    %v713 = vld [vmem:[#allocation5 + $0xb90] sm:$0xff]
    %v714 = vld [vmem:[#allocation5 + $0xb98] sm:$0xff]
    %v715 = vld [vmem:[#allocation5 + $0xba0] sm:$0xff]
    %v716 = vld [vmem:[#allocation5 + $0xba8] sm:$0xff]
    %v717 = vld [vmem:[#allocation5 + $0xbb0] sm:$0xff]
    %v718 = vld [vmem:[#allocation5 + $0xbb8] sm:$0xff]
    %v719 = vld [vmem:[#allocation5 + $0xbc0] sm:$0xff]
    %v720 = vld [vmem:[#allocation5 + $0xbc8] sm:$0xff]
    %v721 = vld [vmem:[#allocation5 + $0xbd0] sm:$0xff]
    %v722 = vld [vmem:[#allocation5 + $0xbd8] sm:$0xff]
    %v723 = vld [vmem:[#allocation5 + $0xbe0] sm:$0xff]
    %v724 = vld [vmem:[#allocation5 + $0xbe8] sm:$0xff]
    %v725 = vld [vmem:[#allocation5 + $0xbf0] sm:$0xff]
    %v726 = vld [vmem:[#allocation5 + $0xbf8] sm:$0xff]
    %v1111 = vunpack.c.l.b16 %v343
    %v1112 = vunpack.c.h.b16 %v343
    %v1113 = vunpack.c.l.b16 %v344
    %v1114 = vunpack.c.h.b16 %v344
    %v1115 = vunpack.c.l.b16 %v345
    %v1116 = vunpack.c.h.b16 %v345
    %v1117 = vunpack.c.l.b16 %v346
    %v1118 = vunpack.c.h.b16 %v346
    %v1119 = vunpack.c.l.b16 %v347
    %v1120 = vunpack.c.h.b16 %v347
    %v1121 = vunpack.c.l.b16 %v348
    %v1122 = vunpack.c.h.b16 %v348
    %v1123 = vunpack.c.l.b16 %v349
    %v1124 = vunpack.c.h.b16 %v349
    %v1125 = vunpack.c.l.b16 %v350
    %v1126 = vunpack.c.h.b16 %v350
    %v1127 = vunpack.c.l.b16 %v351
    %v1128 = vunpack.c.h.b16 %v351
    %v1129 = vunpack.c.l.b16 %v352
    %v1130 = vunpack.c.h.b16 %v352
    %v1131 = vunpack.c.l.b16 %v353
    %v1132 = vunpack.c.h.b16 %v353
    %v1133 = vunpack.c.l.b16 %v354
    %v1134 = vunpack.c.h.b16 %v354
    %v1135 = vunpack.c.l.b16 %v355
    %v1136 = vunpack.c.h.b16 %v355
    %v1137 = vunpack.c.l.b16 %v356
    %v1138 = vunpack.c.h.b16 %v356
    %v1139 = vunpack.c.l.b16 %v357
    %v1140 = vunpack.c.h.b16 %v357
    %v1141 = vunpack.c.l.b16 %v358
    %v1142 = vunpack.c.h.b16 %v358
    %v1143 = vunpack.c.l.b16 %v359
    %v1144 = vunpack.c.h.b16 %v359
    %v1145 = vunpack.c.l.b16 %v360
    %v1146 = vunpack.c.h.b16 %v360
    %v1147 = vunpack.c.l.b16 %v361
    %v1148 = vunpack.c.h.b16 %v361
    %v1149 = vunpack.c.l.b16 %v362
    %v1150 = vunpack.c.h.b16 %v362
    %v1151 = vunpack.c.l.b16 %v363
    %v1152 = vunpack.c.h.b16 %v363
    %v1153 = vunpack.c.l.b16 %v364
    %v1154 = vunpack.c.h.b16 %v364
    %v1155 = vunpack.c.l.b16 %v365
    %v1156 = vunpack.c.h.b16 %v365
    %v1157 = vunpack.c.l.b16 %v366
    %v1158 = vunpack.c.h.b16 %v366
    %v1159 = vunpack.c.l.b16 %v367
    %v1160 = vunpack.c.h.b16 %v367
    %v1161 = vunpack.c.l.b16 %v368
    %v1162 = vunpack.c.h.b16 %v368
    %v1163 = vunpack.c.l.b16 %v369
    %v1164 = vunpack.c.h.b16 %v369
    %v1165 = vunpack.c.l.b16 %v370
    %v1166 = vunpack.c.h.b16 %v370
    %v1167 = vunpack.c.l.b16 %v371
    %v1168 = vunpack.c.h.b16 %v371
    %v1169 = vunpack.c.l.b16 %v372
    %v1170 = vunpack.c.h.b16 %v372
    %v1171 = vunpack.c.l.b16 %v373
    %v1172 = vunpack.c.h.b16 %v373
    %v1173 = vunpack.c.l.b16 %v374
    %v1174 = vunpack.c.h.b16 %v374
    %v1175 = vunpack.c.l.b16 %v375
    %v1176 = vunpack.c.h.b16 %v375
    %v1177 = vunpack.c.l.b16 %v376
    %v1178 = vunpack.c.h.b16 %v376
    %v1179 = vunpack.c.l.b16 %v377
    %v1180 = vunpack.c.h.b16 %v377
    %v1181 = vunpack.c.l.b16 %v378
    %v1182 = vunpack.c.h.b16 %v378
    %v1183 = vunpack.c.l.b16 %v379
    %v1184 = vunpack.c.h.b16 %v379
    %v1185 = vunpack.c.l.b16 %v380
    %v1186 = vunpack.c.h.b16 %v380
    %v1187 = vunpack.c.l.b16 %v381
    %v1188 = vunpack.c.h.b16 %v381
    %v1189 = vunpack.c.l.b16 %v382
    %v1190 = vunpack.c.h.b16 %v382
    %v1191 = vunpack.c.l.b16 %v383
    %v1192 = vunpack.c.h.b16 %v383
    %v1193 = vunpack.c.l.b16 %v384
    %v1194 = vunpack.c.h.b16 %v384
    %v1195 = vunpack.c.l.b16 %v385
    %v1196 = vunpack.c.h.b16 %v385
    %v1197 = vunpack.c.l.b16 %v386
    %v1198 = vunpack.c.h.b16 %v386
    %v1199 = vunpack.c.l.b16 %v387
    %v1200 = vunpack.c.h.b16 %v387
    %v1201 = vunpack.c.l.b16 %v388
    %v1202 = vunpack.c.h.b16 %v388
    %v1203 = vunpack.c.l.b16 %v389
    %v1204 = vunpack.c.h.b16 %v389
    %v1205 = vunpack.c.l.b16 %v390
    %v1206 = vunpack.c.h.b16 %v390
    %v1207 = vunpack.c.l.b16 %v391
    %v1208 = vunpack.c.h.b16 %v391
    %v1209 = vunpack.c.l.b16 %v392
    %v1210 = vunpack.c.h.b16 %v392
    %v1211 = vunpack.c.l.b16 %v393
    %v1212 = vunpack.c.h.b16 %v393
    %v1213 = vunpack.c.l.b16 %v394
    %v1214 = vunpack.c.h.b16 %v394
    %v1215 = vunpack.c.l.b16 %v395
    %v1216 = vunpack.c.h.b16 %v395
    %v1217 = vunpack.c.l.b16 %v396
    %v1218 = vunpack.c.h.b16 %v396
    %v1219 = vunpack.c.l.b16 %v397
    %v1220 = vunpack.c.h.b16 %v397
    %v1221 = vunpack.c.l.b16 %v398
    %v1222 = vunpack.c.h.b16 %v398
    %v1223 = vunpack.c.l.b16 %v399
    %v1224 = vunpack.c.h.b16 %v399
    %v1225 = vunpack.c.l.b16 %v400
    %v1226 = vunpack.c.h.b16 %v400
    %v1227 = vunpack.c.l.b16 %v401
    %v1228 = vunpack.c.h.b16 %v401
    %v1229 = vunpack.c.l.b16 %v402
    %v1230 = vunpack.c.h.b16 %v402
    %v1231 = vunpack.c.l.b16 %v403
    %v1232 = vunpack.c.h.b16 %v403
    %v1233 = vunpack.c.l.b16 %v404
    %v1234 = vunpack.c.h.b16 %v404
    %v1235 = vunpack.c.l.b16 %v405
    %v1236 = vunpack.c.h.b16 %v405
    %v1237 = vunpack.c.l.b16 %v406
    %v1238 = vunpack.c.h.b16 %v406
    %v1239 = vunpack.c.l.b16 %v407
    %v1240 = vunpack.c.h.b16 %v407
    %v1241 = vunpack.c.l.b16 %v408
    %v1242 = vunpack.c.h.b16 %v408
    %v1243 = vunpack.c.l.b16 %v409
    %v1244 = vunpack.c.h.b16 %v409
    %v1245 = vunpack.c.l.b16 %v410
    %v1246 = vunpack.c.h.b16 %v410
    %v1247 = vunpack.c.l.b16 %v411
    %v1248 = vunpack.c.h.b16 %v411
    %v1249 = vunpack.c.l.b16 %v412
    %v1250 = vunpack.c.h.b16 %v412
    %v1251 = vunpack.c.l.b16 %v413
    %v1252 = vunpack.c.h.b16 %v413
    %v1253 = vunpack.c.l.b16 %v414
    %v1254 = vunpack.c.h.b16 %v414
    %v1255 = vunpack.c.l.b16 %v415
    %v1256 = vunpack.c.h.b16 %v415
    %v1257 = vunpack.c.l.b16 %v416
    %v1258 = vunpack.c.h.b16 %v416
    %v1259 = vunpack.c.l.b16 %v417
    %v1260 = vunpack.c.h.b16 %v417
    %v1261 = vunpack.c.l.b16 %v418
    %v1262 = vunpack.c.h.b16 %v418
    %v1263 = vunpack.c.l.b16 %v419
    %v1264 = vunpack.c.h.b16 %v419
    %v1265 = vunpack.c.l.b16 %v420
    %v1266 = vunpack.c.h.b16 %v420
    %v1267 = vunpack.c.l.b16 %v421
    %v1268 = vunpack.c.h.b16 %v421
    %v1269 = vunpack.c.l.b16 %v422
    %v1270 = vunpack.c.h.b16 %v422
    %v1271 = vunpack.c.l.b16 %v423
    %v1272 = vunpack.c.h.b16 %v423
    %v1273 = vunpack.c.l.b16 %v424
    %v1274 = vunpack.c.h.b16 %v424
    %v1275 = vunpack.c.l.b16 %v425
    %v1276 = vunpack.c.h.b16 %v425
    %v1277 = vunpack.c.l.b16 %v426
    %v1278 = vunpack.c.h.b16 %v426
    %v1279 = vunpack.c.l.b16 %v427
    %v1280 = vunpack.c.h.b16 %v427
    %v1281 = vunpack.c.l.b16 %v428
    %v1282 = vunpack.c.h.b16 %v428
    %v1283 = vunpack.c.l.b16 %v429
    %v1284 = vunpack.c.h.b16 %v429
    %v1285 = vunpack.c.l.b16 %v430
    %v1286 = vunpack.c.h.b16 %v430
    %v1287 = vunpack.c.l.b16 %v431
    %v1288 = vunpack.c.h.b16 %v431
    %v1289 = vunpack.c.l.b16 %v432
    %v1290 = vunpack.c.h.b16 %v432
    %v1291 = vunpack.c.l.b16 %v433
    %v1292 = vunpack.c.h.b16 %v433
    %v1293 = vunpack.c.l.b16 %v434
    %v1294 = vunpack.c.h.b16 %v434
    %v1295 = vunpack.c.l.b16 %v435
    %v1296 = vunpack.c.h.b16 %v435
    %v1297 = vunpack.c.l.b16 %v436
    %v1298 = vunpack.c.h.b16 %v436
    %v1299 = vunpack.c.l.b16 %v437
    %v1300 = vunpack.c.h.b16 %v437
    %v1301 = vunpack.c.l.b16 %v438
    %v1302 = vunpack.c.h.b16 %v438
    %v1303 = vunpack.c.l.b16 %v439
    %v1304 = vunpack.c.h.b16 %v439
    %v1305 = vunpack.c.l.b16 %v440
    %v1306 = vunpack.c.h.b16 %v440
    %v1307 = vunpack.c.l.b16 %v441
    %v1308 = vunpack.c.h.b16 %v441
    %v1309 = vunpack.c.l.b16 %v442
    %v1310 = vunpack.c.h.b16 %v442
    %v1311 = vunpack.c.l.b16 %v443
    %v1312 = vunpack.c.h.b16 %v443
    %v1313 = vunpack.c.l.b16 %v444
    %v1314 = vunpack.c.h.b16 %v444
    %v1315 = vunpack.c.l.b16 %v445
    %v1316 = vunpack.c.h.b16 %v445
    %v1317 = vunpack.c.l.b16 %v446
    %v1318 = vunpack.c.h.b16 %v446
    %v1319 = vunpack.c.l.b16 %v447
    %v1320 = vunpack.c.h.b16 %v447
    %v1321 = vunpack.c.l.b16 %v448
    %v1322 = vunpack.c.h.b16 %v448
    %v1323 = vunpack.c.l.b16 %v449
    %v1324 = vunpack.c.h.b16 %v449
    %v1325 = vunpack.c.l.b16 %v450
    %v1326 = vunpack.c.h.b16 %v450
    %v1327 = vunpack.c.l.b16 %v451
    %v1328 = vunpack.c.h.b16 %v451
    %v1329 = vunpack.c.l.b16 %v452
    %v1330 = vunpack.c.h.b16 %v452
    %v1331 = vunpack.c.l.b16 %v453
    %v1332 = vunpack.c.h.b16 %v453
    %v1333 = vunpack.c.l.b16 %v454
    %v1334 = vunpack.c.h.b16 %v454
    %v1335 = vunpack.c.l.b16 %v455
    %v1336 = vunpack.c.h.b16 %v455
    %v1337 = vunpack.c.l.b16 %v456
    %v1338 = vunpack.c.h.b16 %v456
    %v1339 = vunpack.c.l.b16 %v457
    %v1340 = vunpack.c.h.b16 %v457
    %v1341 = vunpack.c.l.b16 %v458
    %v1342 = vunpack.c.h.b16 %v458
    %v1343 = vunpack.c.l.b16 %v459
    %v1344 = vunpack.c.h.b16 %v459
    %v1345 = vunpack.c.l.b16 %v460
    %v1346 = vunpack.c.h.b16 %v460
    %v1347 = vunpack.c.l.b16 %v461
    %v1348 = vunpack.c.h.b16 %v461
    %v1349 = vunpack.c.l.b16 %v462
    %v1350 = vunpack.c.h.b16 %v462
    %v1351 = vunpack.c.l.b16 %v463
    %v1352 = vunpack.c.h.b16 %v463
    %v1353 = vunpack.c.l.b16 %v464
    %v1354 = vunpack.c.h.b16 %v464
    %v1355 = vunpack.c.l.b16 %v465
    %v1356 = vunpack.c.h.b16 %v465
    %v1357 = vunpack.c.l.b16 %v466
    %v1358 = vunpack.c.h.b16 %v466
    %v1359 = vunpack.c.l.b16 %v467
    %v1360 = vunpack.c.h.b16 %v467
    %v1361 = vunpack.c.l.b16 %v468
    %v1362 = vunpack.c.h.b16 %v468
    %v1363 = vunpack.c.l.b16 %v469
    %v1364 = vunpack.c.h.b16 %v469
    %v1365 = vunpack.c.l.b16 %v470
    %v1366 = vunpack.c.h.b16 %v470
    %v1367 = vunpack.c.l.b16 %v471
    %v1368 = vunpack.c.h.b16 %v471
    %v1369 = vunpack.c.l.b16 %v472
    %v1370 = vunpack.c.h.b16 %v472
    %v1371 = vunpack.c.l.b16 %v473
    %v1372 = vunpack.c.h.b16 %v473
    %v1373 = vunpack.c.l.b16 %v474
    %v1374 = vunpack.c.h.b16 %v474
    %v1375 = vunpack.c.l.b16 %v475
    %v1376 = vunpack.c.h.b16 %v475
    %v1377 = vunpack.c.l.b16 %v476
    %v1378 = vunpack.c.h.b16 %v476
    %v1379 = vunpack.c.l.b16 %v477
    %v1380 = vunpack.c.h.b16 %v477
    %v1381 = vunpack.c.l.b16 %v478
    %v1382 = vunpack.c.h.b16 %v478
    %v1383 = vunpack.c.l.b16 %v479
    %v1384 = vunpack.c.h.b16 %v479
    %v1385 = vunpack.c.l.b16 %v480
    %v1386 = vunpack.c.h.b16 %v480
    %v1387 = vunpack.c.l.b16 %v481
    %v1388 = vunpack.c.h.b16 %v481
    %v1389 = vunpack.c.l.b16 %v482
    %v1390 = vunpack.c.h.b16 %v482
    %v1391 = vunpack.c.l.b16 %v483
    %v1392 = vunpack.c.h.b16 %v483
    %v1393 = vunpack.c.l.b16 %v484
    %v1394 = vunpack.c.h.b16 %v484
    %v1395 = vunpack.c.l.b16 %v485
    %v1396 = vunpack.c.h.b16 %v485
    %v1397 = vunpack.c.l.b16 %v486
    %v1398 = vunpack.c.h.b16 %v486
    %v1399 = vunpack.c.l.b16 %v487
    %v1400 = vunpack.c.h.b16 %v487
    %v1401 = vunpack.c.l.b16 %v488
    %v1402 = vunpack.c.h.b16 %v488
    %v1403 = vunpack.c.l.b16 %v489
    %v1404 = vunpack.c.h.b16 %v489
    %v1405 = vunpack.c.l.b16 %v490
    %v1406 = vunpack.c.h.b16 %v490
    %v1407 = vunpack.c.l.b16 %v491
    %v1408 = vunpack.c.h.b16 %v491
    %v1409 = vunpack.c.l.b16 %v492
    %v1410 = vunpack.c.h.b16 %v492
    %v1411 = vunpack.c.l.b16 %v493
    %v1412 = vunpack.c.h.b16 %v493
    %v1413 = vunpack.c.l.b16 %v494
    %v1414 = vunpack.c.h.b16 %v494
    %v1415 = vunpack.c.l.b16 %v495
    %v1416 = vunpack.c.h.b16 %v495
    %v1417 = vunpack.c.l.b16 %v496
    %v1418 = vunpack.c.h.b16 %v496
    %v1419 = vunpack.c.l.b16 %v497
    %v1420 = vunpack.c.h.b16 %v497
    %v1421 = vunpack.c.l.b16 %v498
    %v1422 = vunpack.c.h.b16 %v498
    %v1423 = vunpack.c.l.b16 %v499
    %v1424 = vunpack.c.h.b16 %v499
    %v1425 = vunpack.c.l.b16 %v500
    %v1426 = vunpack.c.h.b16 %v500
    %v1427 = vunpack.c.l.b16 %v501
    %v1428 = vunpack.c.h.b16 %v501
    %v1429 = vunpack.c.l.b16 %v502
    %v1430 = vunpack.c.h.b16 %v502
    %v1431 = vunpack.c.l.b16 %v503
    %v1432 = vunpack.c.h.b16 %v503
    %v1433 = vunpack.c.l.b16 %v504
    %v1434 = vunpack.c.h.b16 %v504
    %v1435 = vunpack.c.l.b16 %v505
    %v1436 = vunpack.c.h.b16 %v505
    %v1437 = vunpack.c.l.b16 %v506
    %v1438 = vunpack.c.h.b16 %v506
    %v1439 = vunpack.c.l.b16 %v507
    %v1440 = vunpack.c.h.b16 %v507
    %v1441 = vunpack.c.l.b16 %v508
    %v1442 = vunpack.c.h.b16 %v508
    %v1443 = vunpack.c.l.b16 %v509
    %v1444 = vunpack.c.h.b16 %v509
    %v1445 = vunpack.c.l.b16 %v510
    %v1446 = vunpack.c.h.b16 %v510
    %v1447 = vunpack.c.l.b16 %v511
    %v1448 = vunpack.c.h.b16 %v511
    %v1449 = vunpack.c.l.b16 %v512
    %v1450 = vunpack.c.h.b16 %v512
    %v1451 = vunpack.c.l.b16 %v513
    %v1452 = vunpack.c.h.b16 %v513
    %v1453 = vunpack.c.l.b16 %v514
    %v1454 = vunpack.c.h.b16 %v514
    %v1455 = vunpack.c.l.b16 %v515
    %v1456 = vunpack.c.h.b16 %v515
    %v1457 = vunpack.c.l.b16 %v516
    %v1458 = vunpack.c.h.b16 %v516
    %v1459 = vunpack.c.l.b16 %v517
    %v1460 = vunpack.c.h.b16 %v517
    %v1461 = vunpack.c.l.b16 %v518
    %v1462 = vunpack.c.h.b16 %v518
    %v1463 = vunpack.c.l.b16 %v519
    %v1464 = vunpack.c.h.b16 %v519
    %v1465 = vunpack.c.l.b16 %v520
    %v1466 = vunpack.c.h.b16 %v520
    %v1467 = vunpack.c.l.b16 %v521
    %v1468 = vunpack.c.h.b16 %v521
    %v1469 = vunpack.c.l.b16 %v522
    %v1470 = vunpack.c.h.b16 %v522
    %v1471 = vunpack.c.l.b16 %v523
    %v1472 = vunpack.c.h.b16 %v523
    %v1473 = vunpack.c.l.b16 %v524
    %v1474 = vunpack.c.h.b16 %v524
    %v1475 = vunpack.c.l.b16 %v525
    %v1476 = vunpack.c.h.b16 %v525
    %v1477 = vunpack.c.l.b16 %v526
    %v1478 = vunpack.c.h.b16 %v526
    %v1479 = vunpack.c.l.b16 %v527
    %v1480 = vunpack.c.h.b16 %v527
    %v1481 = vunpack.c.l.b16 %v528
    %v1482 = vunpack.c.h.b16 %v528
    %v1483 = vunpack.c.l.b16 %v529
    %v1484 = vunpack.c.h.b16 %v529
    %v1485 = vunpack.c.l.b16 %v530
    %v1486 = vunpack.c.h.b16 %v530
    %v1487 = vunpack.c.l.b16 %v531
    %v1488 = vunpack.c.h.b16 %v531
    %v1489 = vunpack.c.l.b16 %v532
    %v1490 = vunpack.c.h.b16 %v532
    %v1491 = vunpack.c.l.b16 %v533
    %v1492 = vunpack.c.h.b16 %v533
    %v1493 = vunpack.c.l.b16 %v534
    %v1494 = vunpack.c.h.b16 %v534
    %v1495 = vunpack.c.l.b16 %v535
    %v1496 = vunpack.c.h.b16 %v535
    %v1497 = vunpack.c.l.b16 %v536
    %v1498 = vunpack.c.h.b16 %v536
    %v1499 = vunpack.c.l.b16 %v537
    %v1500 = vunpack.c.h.b16 %v537
    %v1501 = vunpack.c.l.b16 %v538
    %v1502 = vunpack.c.h.b16 %v538
    %v1503 = vunpack.c.l.b16 %v539
    %v1504 = vunpack.c.h.b16 %v539
    %v1505 = vunpack.c.l.b16 %v540
    %v1506 = vunpack.c.h.b16 %v540
    %v1507 = vunpack.c.l.b16 %v541
    %v1508 = vunpack.c.h.b16 %v541
    %v1509 = vunpack.c.l.b16 %v542
    %v1510 = vunpack.c.h.b16 %v542
    %v1511 = vunpack.c.l.b16 %v543
    %v1512 = vunpack.c.h.b16 %v543
    %v1513 = vunpack.c.l.b16 %v544
    %v1514 = vunpack.c.h.b16 %v544
    %v1515 = vunpack.c.l.b16 %v545
    %v1516 = vunpack.c.h.b16 %v545
    %v1517 = vunpack.c.l.b16 %v546
    %v1518 = vunpack.c.h.b16 %v546
    %v1519 = vunpack.c.l.b16 %v547
    %v1520 = vunpack.c.h.b16 %v547
    %v1521 = vunpack.c.l.b16 %v548
    %v1522 = vunpack.c.h.b16 %v548
    %v1523 = vunpack.c.l.b16 %v549
    %v1524 = vunpack.c.h.b16 %v549
    %v1525 = vunpack.c.l.b16 %v550
    %v1526 = vunpack.c.h.b16 %v550
    %v1527 = vunpack.c.l.b16 %v551
    %v1528 = vunpack.c.h.b16 %v551
    %v1529 = vunpack.c.l.b16 %v552
    %v1530 = vunpack.c.h.b16 %v552
    %v1531 = vunpack.c.l.b16 %v553
    %v1532 = vunpack.c.h.b16 %v553
    %v1533 = vunpack.c.l.b16 %v554
    %v1534 = vunpack.c.h.b16 %v554
    %v1535 = vunpack.c.l.b16 %v555
    %v1536 = vunpack.c.h.b16 %v555
    %v1537 = vunpack.c.l.b16 %v556
    %v1538 = vunpack.c.h.b16 %v556
    %v1539 = vunpack.c.l.b16 %v557
    %v1540 = vunpack.c.h.b16 %v557
    %v1541 = vunpack.c.l.b16 %v558
    %v1542 = vunpack.c.h.b16 %v558
    %v1543 = vunpack.c.l.b16 %v559
    %v1544 = vunpack.c.h.b16 %v559
    %v1545 = vunpack.c.l.b16 %v560
    %v1546 = vunpack.c.h.b16 %v560
    %v1547 = vunpack.c.l.b16 %v561
    %v1548 = vunpack.c.h.b16 %v561
    %v1549 = vunpack.c.l.b16 %v562
    %v1550 = vunpack.c.h.b16 %v562
    %v1551 = vunpack.c.l.b16 %v563
    %v1552 = vunpack.c.h.b16 %v563
    %v1553 = vunpack.c.l.b16 %v564
    %v1554 = vunpack.c.h.b16 %v564
    %v1555 = vunpack.c.l.b16 %v565
    %v1556 = vunpack.c.h.b16 %v565
    %v1557 = vunpack.c.l.b16 %v566
    %v1558 = vunpack.c.h.b16 %v566
    %v1559 = vunpack.c.l.b16 %v567
    %v1560 = vunpack.c.h.b16 %v567
    %v1561 = vunpack.c.l.b16 %v568
    %v1562 = vunpack.c.h.b16 %v568
    %v1563 = vunpack.c.l.b16 %v569
    %v1564 = vunpack.c.h.b16 %v569
    %v1565 = vunpack.c.l.b16 %v570
    %v1566 = vunpack.c.h.b16 %v570
    %v1567 = vunpack.c.l.b16 %v571
    %v1568 = vunpack.c.h.b16 %v571
    %v1569 = vunpack.c.l.b16 %v572
    %v1570 = vunpack.c.h.b16 %v572
    %v1571 = vunpack.c.l.b16 %v573
    %v1572 = vunpack.c.h.b16 %v573
    %v1573 = vunpack.c.l.b16 %v574
    %v1574 = vunpack.c.h.b16 %v574
    %v1575 = vunpack.c.l.b16 %v575
    %v1576 = vunpack.c.h.b16 %v575
    %v1577 = vunpack.c.l.b16 %v576
    %v1578 = vunpack.c.h.b16 %v576
    %v1579 = vunpack.c.l.b16 %v577
    %v1580 = vunpack.c.h.b16 %v577
    %v1581 = vunpack.c.l.b16 %v578
    %v1582 = vunpack.c.h.b16 %v578
    %v1583 = vunpack.c.l.b16 %v579
    %v1584 = vunpack.c.h.b16 %v579
    %v1585 = vunpack.c.l.b16 %v580
    %v1586 = vunpack.c.h.b16 %v580
    %v1587 = vunpack.c.l.b16 %v581
    %v1588 = vunpack.c.h.b16 %v581
    %v1589 = vunpack.c.l.b16 %v582
    %v1590 = vunpack.c.h.b16 %v582
    %v1591 = vunpack.c.l.b16 %v583
    %v1592 = vunpack.c.h.b16 %v583
    %v1593 = vunpack.c.l.b16 %v584
    %v1594 = vunpack.c.h.b16 %v584
    %v1595 = vunpack.c.l.b16 %v585
    %v1596 = vunpack.c.h.b16 %v585
    %v1597 = vunpack.c.l.b16 %v586
    %v1598 = vunpack.c.h.b16 %v586
    %v1599 = vunpack.c.l.b16 %v587
    %v1600 = vunpack.c.h.b16 %v587
    %v1601 = vunpack.c.l.b16 %v588
    %v1602 = vunpack.c.h.b16 %v588
    %v1603 = vunpack.c.l.b16 %v589
    %v1604 = vunpack.c.h.b16 %v589
    %v1605 = vunpack.c.l.b16 %v590
    %v1606 = vunpack.c.h.b16 %v590
    %v1607 = vunpack.c.l.b16 %v591
    %v1608 = vunpack.c.h.b16 %v591
    %v1609 = vunpack.c.l.b16 %v592
    %v1610 = vunpack.c.h.b16 %v592
    %v1611 = vunpack.c.l.b16 %v593
    %v1612 = vunpack.c.h.b16 %v593
    %v1613 = vunpack.c.l.b16 %v594
    %v1614 = vunpack.c.h.b16 %v594
    %v1615 = vunpack.c.l.b16 %v595
    %v1616 = vunpack.c.h.b16 %v595
    %v1617 = vunpack.c.l.b16 %v596
    %v1618 = vunpack.c.h.b16 %v596
    %v1619 = vunpack.c.l.b16 %v597
    %v1620 = vunpack.c.h.b16 %v597
    %v1621 = vunpack.c.l.b16 %v598
    %v1622 = vunpack.c.h.b16 %v598
    %v1623 = vunpack.c.l.b16 %v599
    %v1624 = vunpack.c.h.b16 %v599
    %v1625 = vunpack.c.l.b16 %v600
    %v1626 = vunpack.c.h.b16 %v600
    %v1627 = vunpack.c.l.b16 %v601
    %v1628 = vunpack.c.h.b16 %v601
    %v1629 = vunpack.c.l.b16 %v602
    %v1630 = vunpack.c.h.b16 %v602
    %v1631 = vunpack.c.l.b16 %v603
    %v1632 = vunpack.c.h.b16 %v603
    %v1633 = vunpack.c.l.b16 %v604
    %v1634 = vunpack.c.h.b16 %v604
    %v1635 = vunpack.c.l.b16 %v605
    %v1636 = vunpack.c.h.b16 %v605
    %v1637 = vunpack.c.l.b16 %v606
    %v1638 = vunpack.c.h.b16 %v606
    %v1639 = vunpack.c.l.b16 %v607
    %v1640 = vunpack.c.h.b16 %v607
    %v1641 = vunpack.c.l.b16 %v608
    %v1642 = vunpack.c.h.b16 %v608
    %v1643 = vunpack.c.l.b16 %v609
    %v1644 = vunpack.c.h.b16 %v609
    %v1645 = vunpack.c.l.b16 %v610
    %v1646 = vunpack.c.h.b16 %v610
    %v1647 = vunpack.c.l.b16 %v611
    %v1648 = vunpack.c.h.b16 %v611
    %v1649 = vunpack.c.l.b16 %v612
    %v1650 = vunpack.c.h.b16 %v612
    %v1651 = vunpack.c.l.b16 %v613
    %v1652 = vunpack.c.h.b16 %v613
    %v1653 = vunpack.c.l.b16 %v614
    %v1654 = vunpack.c.h.b16 %v614
    %v1655 = vunpack.c.l.b16 %v615
    %v1656 = vunpack.c.h.b16 %v615
    %v1657 = vunpack.c.l.b16 %v616
    %v1658 = vunpack.c.h.b16 %v616
    %v1659 = vunpack.c.l.b16 %v617
    %v1660 = vunpack.c.h.b16 %v617
    %v1661 = vunpack.c.l.b16 %v618
    %v1662 = vunpack.c.h.b16 %v618
    %v1663 = vunpack.c.l.b16 %v619
    %v1664 = vunpack.c.h.b16 %v619
    %v1665 = vunpack.c.l.b16 %v620
    %v1666 = vunpack.c.h.b16 %v620
    %v1667 = vunpack.c.l.b16 %v621
    %v1668 = vunpack.c.h.b16 %v621
    %v1669 = vunpack.c.l.b16 %v622
    %v1670 = vunpack.c.h.b16 %v622
    %v1671 = vunpack.c.l.b16 %v623
    %v1672 = vunpack.c.h.b16 %v623
    %v1673 = vunpack.c.l.b16 %v624
    %v1674 = vunpack.c.h.b16 %v624
    %v1675 = vunpack.c.l.b16 %v625
    %v1676 = vunpack.c.h.b16 %v625
    %v1677 = vunpack.c.l.b16 %v626
    %v1678 = vunpack.c.h.b16 %v626
    %v1679 = vunpack.c.l.b16 %v627
    %v1680 = vunpack.c.h.b16 %v627
    %v1681 = vunpack.c.l.b16 %v628
    %v1682 = vunpack.c.h.b16 %v628
    %v1683 = vunpack.c.l.b16 %v629
    %v1684 = vunpack.c.h.b16 %v629
    %v1685 = vunpack.c.l.b16 %v630
    %v1686 = vunpack.c.h.b16 %v630
    %v1687 = vunpack.c.l.b16 %v631
    %v1688 = vunpack.c.h.b16 %v631
    %v1689 = vunpack.c.l.b16 %v632
    %v1690 = vunpack.c.h.b16 %v632
    %v1691 = vunpack.c.l.b16 %v633
    %v1692 = vunpack.c.h.b16 %v633
    %v1693 = vunpack.c.l.b16 %v634
    %v1694 = vunpack.c.h.b16 %v634
    %v1695 = vunpack.c.l.b16 %v635
    %v1696 = vunpack.c.h.b16 %v635
    %v1697 = vunpack.c.l.b16 %v636
    %v1698 = vunpack.c.h.b16 %v636
    %v1699 = vunpack.c.l.b16 %v637
    %v1700 = vunpack.c.h.b16 %v637
    %v1701 = vunpack.c.l.b16 %v638
    %v1702 = vunpack.c.h.b16 %v638
    %v1703 = vunpack.c.l.b16 %v639
    %v1704 = vunpack.c.h.b16 %v639
    %v1705 = vunpack.c.l.b16 %v640
    %v1706 = vunpack.c.h.b16 %v640
    %v1707 = vunpack.c.l.b16 %v641
    %v1708 = vunpack.c.h.b16 %v641
    %v1709 = vunpack.c.l.b16 %v642
    %v1710 = vunpack.c.h.b16 %v642
    %v1711 = vunpack.c.l.b16 %v643
    %v1712 = vunpack.c.h.b16 %v643
    %v1713 = vunpack.c.l.b16 %v644
    %v1714 = vunpack.c.h.b16 %v644
    %v1715 = vunpack.c.l.b16 %v645
    %v1716 = vunpack.c.h.b16 %v645
    %v1717 = vunpack.c.l.b16 %v646
    %v1718 = vunpack.c.h.b16 %v646
    %v1719 = vunpack.c.l.b16 %v647
    %v1720 = vunpack.c.h.b16 %v647
    %v1721 = vunpack.c.l.b16 %v648
    %v1722 = vunpack.c.h.b16 %v648
    %v1723 = vunpack.c.l.b16 %v649
    %v1724 = vunpack.c.h.b16 %v649
    %v1725 = vunpack.c.l.b16 %v650
    %v1726 = vunpack.c.h.b16 %v650
    %v1727 = vunpack.c.l.b16 %v651
    %v1728 = vunpack.c.h.b16 %v651
    %v1729 = vunpack.c.l.b16 %v652
    %v1730 = vunpack.c.h.b16 %v652
    %v1731 = vunpack.c.l.b16 %v653
    %v1732 = vunpack.c.h.b16 %v653
    %v1733 = vunpack.c.l.b16 %v654
    %v1734 = vunpack.c.h.b16 %v654
    %v1735 = vunpack.c.l.b16 %v655
    %v1736 = vunpack.c.h.b16 %v655
    %v1737 = vunpack.c.l.b16 %v656
    %v1738 = vunpack.c.h.b16 %v656
    %v1739 = vunpack.c.l.b16 %v657
    %v1740 = vunpack.c.h.b16 %v657
    %v1741 = vunpack.c.l.b16 %v658
    %v1742 = vunpack.c.h.b16 %v658
    %v1743 = vunpack.c.l.b16 %v659
    %v1744 = vunpack.c.h.b16 %v659
    %v1745 = vunpack.c.l.b16 %v660
    %v1746 = vunpack.c.h.b16 %v660
    %v1747 = vunpack.c.l.b16 %v661
    %v1748 = vunpack.c.h.b16 %v661
    %v1749 = vunpack.c.l.b16 %v662
    %v1750 = vunpack.c.h.b16 %v662
    %v1751 = vunpack.c.l.b16 %v663
    %v1752 = vunpack.c.h.b16 %v663
    %v1753 = vunpack.c.l.b16 %v664
    %v1754 = vunpack.c.h.b16 %v664
    %v1755 = vunpack.c.l.b16 %v665
    %v1756 = vunpack.c.h.b16 %v665
    %v1757 = vunpack.c.l.b16 %v666
    %v1758 = vunpack.c.h.b16 %v666
    %v1759 = vunpack.c.l.b16 %v667
    %v1760 = vunpack.c.h.b16 %v667
    %v1761 = vunpack.c.l.b16 %v668
    %v1762 = vunpack.c.h.b16 %v668
    %v1763 = vunpack.c.l.b16 %v669
    %v1764 = vunpack.c.h.b16 %v669
    %v1765 = vunpack.c.l.b16 %v670
    %v1766 = vunpack.c.h.b16 %v670
    %v1767 = vunpack.c.l.b16 %v671
    %v1768 = vunpack.c.h.b16 %v671
    %v1769 = vunpack.c.l.b16 %v672
    %v1770 = vunpack.c.h.b16 %v672
    %v1771 = vunpack.c.l.b16 %v673
    %v1772 = vunpack.c.h.b16 %v673
    %v1773 = vunpack.c.l.b16 %v674
    %v1774 = vunpack.c.h.b16 %v674
    %v1775 = vunpack.c.l.b16 %v675
    %v1776 = vunpack.c.h.b16 %v675
    %v1777 = vunpack.c.l.b16 %v676
    %v1778 = vunpack.c.h.b16 %v676
    %v1779 = vunpack.c.l.b16 %v677
    %v1780 = vunpack.c.h.b16 %v677
    %v1781 = vunpack.c.l.b16 %v678
    %v1782 = vunpack.c.h.b16 %v678
    %v1783 = vunpack.c.l.b16 %v679
    %v1784 = vunpack.c.h.b16 %v679
    %v1785 = vunpack.c.l.b16 %v680
    %v1786 = vunpack.c.h.b16 %v680
    %v1787 = vunpack.c.l.b16 %v681
    %v1788 = vunpack.c.h.b16 %v681
    %v1789 = vunpack.c.l.b16 %v682
    %v1790 = vunpack.c.h.b16 %v682
    %v1791 = vunpack.c.l.b16 %v683
    %v1792 = vunpack.c.h.b16 %v683
    %v1793 = vunpack.c.l.b16 %v684
    %v1794 = vunpack.c.h.b16 %v684
    %v1795 = vunpack.c.l.b16 %v685
    %v1796 = vunpack.c.h.b16 %v685
    %v1797 = vunpack.c.l.b16 %v686
    %v1798 = vunpack.c.h.b16 %v686
    %v1799 = vunpack.c.l.b16 %v687
    %v1800 = vunpack.c.h.b16 %v687
    %v1801 = vunpack.c.l.b16 %v688
    %v1802 = vunpack.c.h.b16 %v688
    %v1803 = vunpack.c.l.b16 %v689
    %v1804 = vunpack.c.h.b16 %v689
    %v1805 = vunpack.c.l.b16 %v690
    %v1806 = vunpack.c.h.b16 %v690
    %v1807 = vunpack.c.l.b16 %v691
    %v1808 = vunpack.c.h.b16 %v691
    %v1809 = vunpack.c.l.b16 %v692
    %v1810 = vunpack.c.h.b16 %v692
    %v1811 = vunpack.c.l.b16 %v693
    %v1812 = vunpack.c.h.b16 %v693
    %v1813 = vunpack.c.l.b16 %v694
    %v1814 = vunpack.c.h.b16 %v694
    %v1815 = vunpack.c.l.b16 %v695
    %v1816 = vunpack.c.h.b16 %v695
    %v1817 = vunpack.c.l.b16 %v696
    %v1818 = vunpack.c.h.b16 %v696
    %v1819 = vunpack.c.l.b16 %v697
    %v1820 = vunpack.c.h.b16 %v697
    %v1821 = vunpack.c.l.b16 %v698
    %v1822 = vunpack.c.h.b16 %v698
    %v1823 = vunpack.c.l.b16 %v699
    %v1824 = vunpack.c.h.b16 %v699
    %v1825 = vunpack.c.l.b16 %v700
    %v1826 = vunpack.c.h.b16 %v700
    %v1827 = vunpack.c.l.b16 %v701
    %v1828 = vunpack.c.h.b16 %v701
    %v1829 = vunpack.c.l.b16 %v702
    %v1830 = vunpack.c.h.b16 %v702
    %v1831 = vunpack.c.l.b16 %v703
    %v1832 = vunpack.c.h.b16 %v703
    %v1833 = vunpack.c.l.b16 %v704
    %v1834 = vunpack.c.h.b16 %v704
    %v1835 = vunpack.c.l.b16 %v705
    %v1836 = vunpack.c.h.b16 %v705
    %v1837 = vunpack.c.l.b16 %v706
    %v1838 = vunpack.c.h.b16 %v706
    %v1839 = vunpack.c.l.b16 %v707
    %v1840 = vunpack.c.h.b16 %v707
    %v1841 = vunpack.c.l.b16 %v708
    %v1842 = vunpack.c.h.b16 %v708
    %v1843 = vunpack.c.l.b16 %v709
    %v1844 = vunpack.c.h.b16 %v709
    %v1845 = vunpack.c.l.b16 %v710
    %v1846 = vunpack.c.h.b16 %v710
    %v1847 = vunpack.c.l.b16 %v711
    %v1848 = vunpack.c.h.b16 %v711
    %v1849 = vunpack.c.l.b16 %v712
    %v1850 = vunpack.c.h.b16 %v712
    %v1851 = vunpack.c.l.b16 %v713
    %v1852 = vunpack.c.h.b16 %v713
    %v1853 = vunpack.c.l.b16 %v714
    %v1854 = vunpack.c.h.b16 %v714
    %v1855 = vunpack.c.l.b16 %v715
    %v1856 = vunpack.c.h.b16 %v715
    %v1857 = vunpack.c.l.b16 %v716
    %v1858 = vunpack.c.h.b16 %v716
    %v1859 = vunpack.c.l.b16 %v717
    %v1860 = vunpack.c.h.b16 %v717
    %v1861 = vunpack.c.l.b16 %v718
    %v1862 = vunpack.c.h.b16 %v718
    %v1863 = vunpack.c.l.b16 %v719
    %v1864 = vunpack.c.h.b16 %v719
    %v1865 = vunpack.c.l.b16 %v720
    %v1866 = vunpack.c.h.b16 %v720
    %v1867 = vunpack.c.l.b16 %v721
    %v1868 = vunpack.c.h.b16 %v721
    %v1869 = vunpack.c.l.b16 %v722
    %v1870 = vunpack.c.h.b16 %v722
    %v1871 = vunpack.c.l.b16 %v723
    %v1872 = vunpack.c.h.b16 %v723
    %v1873 = vunpack.c.l.b16 %v724
    %v1874 = vunpack.c.h.b16 %v724
    %v1875 = vunpack.c.l.b16 %v725
    %v1876 = vunpack.c.h.b16 %v725
    %v1877 = vunpack.c.l.b16 %v726
    %v1878 = vunpack.c.h.b16 %v726
    %v1879 = vpack.c.b16 %v1115, %v1111
    %v1880 = vpack.c.b16 %v1116, %v1112
    %v1881 = vpack.c.b16 %v1117, %v1113
    %v1882 = vpack.c.b16 %v1118, %v1114
    %v1883 = vpack.c.b16 %v1123, %v1119
    %v1884 = vpack.c.b16 %v1124, %v1120
    %v1885 = vpack.c.b16 %v1125, %v1121
    %v1886 = vpack.c.b16 %v1126, %v1122
    %v1887 = vpack.c.b16 %v1131, %v1127
    %v1888 = vpack.c.b16 %v1132, %v1128
    %v1889 = vpack.c.b16 %v1133, %v1129
    %v1890 = vpack.c.b16 %v1134, %v1130
    %v1891 = vpack.c.b16 %v1139, %v1135
    %v1892 = vpack.c.b16 %v1140, %v1136
    %v1893 = vpack.c.b16 %v1141, %v1137
    %v1894 = vpack.c.b16 %v1142, %v1138
    %v1895 = vpack.c.b16 %v1147, %v1143
    %v1896 = vpack.c.b16 %v1148, %v1144
    %v1897 = vpack.c.b16 %v1149, %v1145
    %v1898 = vpack.c.b16 %v1150, %v1146
    %v1899 = vpack.c.b16 %v1155, %v1151
    %v1900 = vpack.c.b16 %v1156, %v1152
    %v1901 = vpack.c.b16 %v1157, %v1153
    %v1902 = vpack.c.b16 %v1158, %v1154
    %v1903 = vpack.c.b16 %v1163, %v1159
    %v1904 = vpack.c.b16 %v1164, %v1160
    %v1905 = vpack.c.b16 %v1165, %v1161
    %v1906 = vpack.c.b16 %v1166, %v1162
    %v1907 = vpack.c.b16 %v1171, %v1167
    %v1908 = vpack.c.b16 %v1172, %v1168
    %v1909 = vpack.c.b16 %v1173, %v1169
    %v1910 = vpack.c.b16 %v1174, %v1170
    %v1911 = vpack.c.b16 %v1179, %v1175
    %v1912 = vpack.c.b16 %v1180, %v1176
    %v1913 = vpack.c.b16 %v1181, %v1177
    %v1914 = vpack.c.b16 %v1182, %v1178
    %v1915 = vpack.c.b16 %v1187, %v1183
    %v1916 = vpack.c.b16 %v1188, %v1184
    %v1917 = vpack.c.b16 %v1189, %v1185
    %v1918 = vpack.c.b16 %v1190, %v1186
    %v1919 = vpack.c.b16 %v1195, %v1191
    %v1920 = vpack.c.b16 %v1196, %v1192
    %v1921 = vpack.c.b16 %v1197, %v1193
    %v1922 = vpack.c.b16 %v1198, %v1194
    %v1923 = vpack.c.b16 %v1203, %v1199
    %v1924 = vpack.c.b16 %v1204, %v1200
    %v1925 = vpack.c.b16 %v1205, %v1201
    %v1926 = vpack.c.b16 %v1206, %v1202
    %v1927 = vpack.c.b16 %v1211, %v1207
    %v1928 = vpack.c.b16 %v1212, %v1208
    %v1929 = vpack.c.b16 %v1213, %v1209
    %v1930 = vpack.c.b16 %v1214, %v1210
    %v1931 = vpack.c.b16 %v1219, %v1215
    %v1932 = vpack.c.b16 %v1220, %v1216
    %v1933 = vpack.c.b16 %v1221, %v1217
    %v1934 = vpack.c.b16 %v1222, %v1218
    %v1935 = vpack.c.b16 %v1227, %v1223
    %v1936 = vpack.c.b16 %v1228, %v1224
    %v1937 = vpack.c.b16 %v1229, %v1225
    %v1938 = vpack.c.b16 %v1230, %v1226
    %v1939 = vpack.c.b16 %v1235, %v1231
    %v1940 = vpack.c.b16 %v1236, %v1232
    %v1941 = vpack.c.b16 %v1237, %v1233
    %v1942 = vpack.c.b16 %v1238, %v1234
    %v1943 = vpack.c.b16 %v1243, %v1239
    %v1944 = vpack.c.b16 %v1244, %v1240
    %v1945 = vpack.c.b16 %v1245, %v1241
    %v1946 = vpack.c.b16 %v1246, %v1242
    %v1947 = vpack.c.b16 %v1251, %v1247
    %v1948 = vpack.c.b16 %v1252, %v1248
    %v1949 = vpack.c.b16 %v1253, %v1249
    %v1950 = vpack.c.b16 %v1254, %v1250
    %v1951 = vpack.c.b16 %v1259, %v1255
    %v1952 = vpack.c.b16 %v1260, %v1256
    %v1953 = vpack.c.b16 %v1261, %v1257
    %v1954 = vpack.c.b16 %v1262, %v1258
    %v1955 = vpack.c.b16 %v1267, %v1263
    %v1956 = vpack.c.b16 %v1268, %v1264
    %v1957 = vpack.c.b16 %v1269, %v1265
    %v1958 = vpack.c.b16 %v1270, %v1266
    %v1959 = vpack.c.b16 %v1275, %v1271
    %v1960 = vpack.c.b16 %v1276, %v1272
    %v1961 = vpack.c.b16 %v1277, %v1273
    %v1962 = vpack.c.b16 %v1278, %v1274
    %v1963 = vpack.c.b16 %v1283, %v1279
    %v1964 = vpack.c.b16 %v1284, %v1280
    %v1965 = vpack.c.b16 %v1285, %v1281
    %v1966 = vpack.c.b16 %v1286, %v1282
    %v1967 = vpack.c.b16 %v1291, %v1287
    %v1968 = vpack.c.b16 %v1292, %v1288
    %v1969 = vpack.c.b16 %v1293, %v1289
    %v1970 = vpack.c.b16 %v1294, %v1290
    %v1971 = vpack.c.b16 %v1299, %v1295
    %v1972 = vpack.c.b16 %v1300, %v1296
    %v1973 = vpack.c.b16 %v1301, %v1297
    %v1974 = vpack.c.b16 %v1302, %v1298
    %v1975 = vpack.c.b16 %v1307, %v1303
    %v1976 = vpack.c.b16 %v1308, %v1304
    %v1977 = vpack.c.b16 %v1309, %v1305
    %v1978 = vpack.c.b16 %v1310, %v1306
    %v1979 = vpack.c.b16 %v1315, %v1311
    %v1980 = vpack.c.b16 %v1316, %v1312
    %v1981 = vpack.c.b16 %v1317, %v1313
    %v1982 = vpack.c.b16 %v1318, %v1314
    %v1983 = vpack.c.b16 %v1323, %v1319
    %v1984 = vpack.c.b16 %v1324, %v1320
    %v1985 = vpack.c.b16 %v1325, %v1321
    %v1986 = vpack.c.b16 %v1326, %v1322
    %v1987 = vpack.c.b16 %v1331, %v1327
    %v1988 = vpack.c.b16 %v1332, %v1328
    %v1989 = vpack.c.b16 %v1333, %v1329
    %v1990 = vpack.c.b16 %v1334, %v1330
    %v1991 = vpack.c.b16 %v1339, %v1335
    %v1992 = vpack.c.b16 %v1340, %v1336
    %v1993 = vpack.c.b16 %v1341, %v1337
    %v1994 = vpack.c.b16 %v1342, %v1338
    %v1995 = vpack.c.b16 %v1347, %v1343
    %v1996 = vpack.c.b16 %v1348, %v1344
    %v1997 = vpack.c.b16 %v1349, %v1345
    %v1998 = vpack.c.b16 %v1350, %v1346
    %v1999 = vpack.c.b16 %v1355, %v1351
    %v2000 = vpack.c.b16 %v1356, %v1352
    %v2001 = vpack.c.b16 %v1357, %v1353
    %v2002 = vpack.c.b16 %v1358, %v1354
    %v2003 = vpack.c.b16 %v1363, %v1359
    %v2004 = vpack.c.b16 %v1364, %v1360
    %v2005 = vpack.c.b16 %v1365, %v1361
    %v2006 = vpack.c.b16 %v1366, %v1362
    %v2007 = vpack.c.b16 %v1371, %v1367
    %v2008 = vpack.c.b16 %v1372, %v1368
    %v2009 = vpack.c.b16 %v1373, %v1369
    %v2010 = vpack.c.b16 %v1374, %v1370
    %v2011 = vpack.c.b16 %v1379, %v1375
    %v2012 = vpack.c.b16 %v1380, %v1376
    %v2013 = vpack.c.b16 %v1381, %v1377
    %v2014 = vpack.c.b16 %v1382, %v1378
    %v2015 = vpack.c.b16 %v1387, %v1383
    %v2016 = vpack.c.b16 %v1388, %v1384
    %v2017 = vpack.c.b16 %v1389, %v1385
    %v2018 = vpack.c.b16 %v1390, %v1386
    %v2019 = vpack.c.b16 %v1395, %v1391
    %v2020 = vpack.c.b16 %v1396, %v1392
    %v2021 = vpack.c.b16 %v1397, %v1393
    %v2022 = vpack.c.b16 %v1398, %v1394
    %v2023 = vpack.c.b16 %v1403, %v1399
    %v2024 = vpack.c.b16 %v1404, %v1400
    %v2025 = vpack.c.b16 %v1405, %v1401
    %v2026 = vpack.c.b16 %v1406, %v1402
    %v2027 = vpack.c.b16 %v1411, %v1407
    %v2028 = vpack.c.b16 %v1412, %v1408
    %v2029 = vpack.c.b16 %v1413, %v1409
    %v2030 = vpack.c.b16 %v1414, %v1410
    %v2031 = vpack.c.b16 %v1419, %v1415
    %v2032 = vpack.c.b16 %v1420, %v1416
    %v2033 = vpack.c.b16 %v1421, %v1417
    %v2034 = vpack.c.b16 %v1422, %v1418
    %v2035 = vpack.c.b16 %v1427, %v1423
    %v2036 = vpack.c.b16 %v1428, %v1424
    %v2037 = vpack.c.b16 %v1429, %v1425
    %v2038 = vpack.c.b16 %v1430, %v1426
    %v2039 = vpack.c.b16 %v1435, %v1431
    %v2040 = vpack.c.b16 %v1436, %v1432
    %v2041 = vpack.c.b16 %v1437, %v1433
    %v2042 = vpack.c.b16 %v1438, %v1434
    %v2043 = vpack.c.b16 %v1443, %v1439
    %v2044 = vpack.c.b16 %v1444, %v1440
    %v2045 = vpack.c.b16 %v1445, %v1441
    %v2046 = vpack.c.b16 %v1446, %v1442
    %v2047 = vpack.c.b16 %v1451, %v1447
    %v2048 = vpack.c.b16 %v1452, %v1448
    %v2049 = vpack.c.b16 %v1453, %v1449
    %v2050 = vpack.c.b16 %v1454, %v1450
    %v2051 = vpack.c.b16 %v1459, %v1455
    %v2052 = vpack.c.b16 %v1460, %v1456
    %v2053 = vpack.c.b16 %v1461, %v1457
    %v2054 = vpack.c.b16 %v1462, %v1458
    %v2055 = vpack.c.b16 %v1467, %v1463
    %v2056 = vpack.c.b16 %v1468, %v1464
    %v2057 = vpack.c.b16 %v1469, %v1465
    %v2058 = vpack.c.b16 %v1470, %v1466
    %v2059 = vpack.c.b16 %v1475, %v1471
    %v2060 = vpack.c.b16 %v1476, %v1472
    %v2061 = vpack.c.b16 %v1477, %v1473
    %v2062 = vpack.c.b16 %v1478, %v1474
    %v2063 = vpack.c.b16 %v1483, %v1479
    %v2064 = vpack.c.b16 %v1484, %v1480
    %v2065 = vpack.c.b16 %v1485, %v1481
    %v2066 = vpack.c.b16 %v1486, %v1482
    %v2067 = vpack.c.b16 %v1491, %v1487
    %v2068 = vpack.c.b16 %v1492, %v1488
    %v2069 = vpack.c.b16 %v1493, %v1489
    %v2070 = vpack.c.b16 %v1494, %v1490
    %v2071 = vpack.c.b16 %v1499, %v1495
    %v2072 = vpack.c.b16 %v1500, %v1496
    %v2073 = vpack.c.b16 %v1501, %v1497
    %v2074 = vpack.c.b16 %v1502, %v1498
    %v2075 = vpack.c.b16 %v1507, %v1503
    %v2076 = vpack.c.b16 %v1508, %v1504
    %v2077 = vpack.c.b16 %v1509, %v1505
    %v2078 = vpack.c.b16 %v1510, %v1506
    %v2079 = vpack.c.b16 %v1515, %v1511
    %v2080 = vpack.c.b16 %v1516, %v1512
    %v2081 = vpack.c.b16 %v1517, %v1513
    %v2082 = vpack.c.b16 %v1518, %v1514
    %v2083 = vpack.c.b16 %v1523, %v1519
    %v2084 = vpack.c.b16 %v1524, %v1520
    %v2085 = vpack.c.b16 %v1525, %v1521
    %v2086 = vpack.c.b16 %v1526, %v1522
    %v2087 = vpack.c.b16 %v1531, %v1527
    %v2088 = vpack.c.b16 %v1532, %v1528
    %v2089 = vpack.c.b16 %v1533, %v1529
    %v2090 = vpack.c.b16 %v1534, %v1530
    %v2091 = vpack.c.b16 %v1539, %v1535
    %v2092 = vpack.c.b16 %v1540, %v1536
    %v2093 = vpack.c.b16 %v1541, %v1537
    %v2094 = vpack.c.b16 %v1542, %v1538
    %v2095 = vpack.c.b16 %v1547, %v1543
    %v2096 = vpack.c.b16 %v1548, %v1544
    %v2097 = vpack.c.b16 %v1549, %v1545
    %v2098 = vpack.c.b16 %v1550, %v1546
    %v2099 = vpack.c.b16 %v1555, %v1551
    %v2100 = vpack.c.b16 %v1556, %v1552
    %v2101 = vpack.c.b16 %v1557, %v1553
    %v2102 = vpack.c.b16 %v1558, %v1554
    %v2103 = vpack.c.b16 %v1563, %v1559
    %v2104 = vpack.c.b16 %v1564, %v1560
    %v2105 = vpack.c.b16 %v1565, %v1561
    %v2106 = vpack.c.b16 %v1566, %v1562
    %v2107 = vpack.c.b16 %v1571, %v1567
    %v2108 = vpack.c.b16 %v1572, %v1568
    %v2109 = vpack.c.b16 %v1573, %v1569
    %v2110 = vpack.c.b16 %v1574, %v1570
    %v2111 = vpack.c.b16 %v1579, %v1575
    %v2112 = vpack.c.b16 %v1580, %v1576
    %v2113 = vpack.c.b16 %v1581, %v1577
    %v2114 = vpack.c.b16 %v1582, %v1578
    %v2115 = vpack.c.b16 %v1587, %v1583
    %v2116 = vpack.c.b16 %v1588, %v1584
    %v2117 = vpack.c.b16 %v1589, %v1585
    %v2118 = vpack.c.b16 %v1590, %v1586
    %v2119 = vpack.c.b16 %v1595, %v1591
    %v2120 = vpack.c.b16 %v1596, %v1592
    %v2121 = vpack.c.b16 %v1597, %v1593
    %v2122 = vpack.c.b16 %v1598, %v1594
    %v2123 = vpack.c.b16 %v1603, %v1599
    %v2124 = vpack.c.b16 %v1604, %v1600
    %v2125 = vpack.c.b16 %v1605, %v1601
    %v2126 = vpack.c.b16 %v1606, %v1602
    %v2127 = vpack.c.b16 %v1611, %v1607
    %v2128 = vpack.c.b16 %v1612, %v1608
    %v2129 = vpack.c.b16 %v1613, %v1609
    %v2130 = vpack.c.b16 %v1614, %v1610
    %v2131 = vpack.c.b16 %v1619, %v1615
    %v2132 = vpack.c.b16 %v1620, %v1616
    %v2133 = vpack.c.b16 %v1621, %v1617
    %v2134 = vpack.c.b16 %v1622, %v1618
    %v2135 = vpack.c.b16 %v1627, %v1623
    %v2136 = vpack.c.b16 %v1628, %v1624
    %v2137 = vpack.c.b16 %v1629, %v1625
    %v2138 = vpack.c.b16 %v1630, %v1626
    %v2139 = vpack.c.b16 %v1635, %v1631
    %v2140 = vpack.c.b16 %v1636, %v1632
    %v2141 = vpack.c.b16 %v1637, %v1633
    %v2142 = vpack.c.b16 %v1638, %v1634
    %v2143 = vpack.c.b16 %v1643, %v1639
    %v2144 = vpack.c.b16 %v1644, %v1640
    %v2145 = vpack.c.b16 %v1645, %v1641
    %v2146 = vpack.c.b16 %v1646, %v1642
    %v2147 = vpack.c.b16 %v1651, %v1647
    %v2148 = vpack.c.b16 %v1652, %v1648
    %v2149 = vpack.c.b16 %v1653, %v1649
    %v2150 = vpack.c.b16 %v1654, %v1650
    %v2151 = vpack.c.b16 %v1659, %v1655
    %v2152 = vpack.c.b16 %v1660, %v1656
    %v2153 = vpack.c.b16 %v1661, %v1657
    %v2154 = vpack.c.b16 %v1662, %v1658
    %v2155 = vpack.c.b16 %v1667, %v1663
    %v2156 = vpack.c.b16 %v1668, %v1664
    %v2157 = vpack.c.b16 %v1669, %v1665
    %v2158 = vpack.c.b16 %v1670, %v1666
    %v2159 = vpack.c.b16 %v1675, %v1671
    %v2160 = vpack.c.b16 %v1676, %v1672
    %v2161 = vpack.c.b16 %v1677, %v1673
    %v2162 = vpack.c.b16 %v1678, %v1674
    %v2163 = vpack.c.b16 %v1683, %v1679
    %v2164 = vpack.c.b16 %v1684, %v1680
    %v2165 = vpack.c.b16 %v1685, %v1681
    %v2166 = vpack.c.b16 %v1686, %v1682
    %v2167 = vpack.c.b16 %v1691, %v1687
    %v2168 = vpack.c.b16 %v1692, %v1688
    %v2169 = vpack.c.b16 %v1693, %v1689
    %v2170 = vpack.c.b16 %v1694, %v1690
    %v2171 = vpack.c.b16 %v1699, %v1695
    %v2172 = vpack.c.b16 %v1700, %v1696
    %v2173 = vpack.c.b16 %v1701, %v1697
    %v2174 = vpack.c.b16 %v1702, %v1698
    %v2175 = vpack.c.b16 %v1707, %v1703
    %v2176 = vpack.c.b16 %v1708, %v1704
    %v2177 = vpack.c.b16 %v1709, %v1705
    %v2178 = vpack.c.b16 %v1710, %v1706
    %v2179 = vpack.c.b16 %v1715, %v1711
    %v2180 = vpack.c.b16 %v1716, %v1712
    %v2181 = vpack.c.b16 %v1717, %v1713
    %v2182 = vpack.c.b16 %v1718, %v1714
    %v2183 = vpack.c.b16 %v1723, %v1719
    %v2184 = vpack.c.b16 %v1724, %v1720
    %v2185 = vpack.c.b16 %v1725, %v1721
    %v2186 = vpack.c.b16 %v1726, %v1722
    %v2187 = vpack.c.b16 %v1731, %v1727
    %v2188 = vpack.c.b16 %v1732, %v1728
    %v2189 = vpack.c.b16 %v1733, %v1729
    %v2190 = vpack.c.b16 %v1734, %v1730
    %v2191 = vpack.c.b16 %v1739, %v1735
    %v2192 = vpack.c.b16 %v1740, %v1736
    %v2193 = vpack.c.b16 %v1741, %v1737
    %v2194 = vpack.c.b16 %v1742, %v1738
    %v2195 = vpack.c.b16 %v1747, %v1743
    %v2196 = vpack.c.b16 %v1748, %v1744
    %v2197 = vpack.c.b16 %v1749, %v1745
    %v2198 = vpack.c.b16 %v1750, %v1746
    %v2199 = vpack.c.b16 %v1755, %v1751
    %v2200 = vpack.c.b16 %v1756, %v1752
    %v2201 = vpack.c.b16 %v1757, %v1753
    %v2202 = vpack.c.b16 %v1758, %v1754
    %v2203 = vpack.c.b16 %v1763, %v1759
    %v2204 = vpack.c.b16 %v1764, %v1760
    %v2205 = vpack.c.b16 %v1765, %v1761
    %v2206 = vpack.c.b16 %v1766, %v1762
    %v2207 = vpack.c.b16 %v1771, %v1767
    %v2208 = vpack.c.b16 %v1772, %v1768
    %v2209 = vpack.c.b16 %v1773, %v1769
    %v2210 = vpack.c.b16 %v1774, %v1770
    %v2211 = vpack.c.b16 %v1779, %v1775
    %v2212 = vpack.c.b16 %v1780, %v1776
    %v2213 = vpack.c.b16 %v1781, %v1777
    %v2214 = vpack.c.b16 %v1782, %v1778
    %v2215 = vpack.c.b16 %v1787, %v1783
    %v2216 = vpack.c.b16 %v1788, %v1784
    %v2217 = vpack.c.b16 %v1789, %v1785
    %v2218 = vpack.c.b16 %v1790, %v1786
    %v2219 = vpack.c.b16 %v1795, %v1791
    %v2220 = vpack.c.b16 %v1796, %v1792
    %v2221 = vpack.c.b16 %v1797, %v1793
    %v2222 = vpack.c.b16 %v1798, %v1794
    %v2223 = vpack.c.b16 %v1803, %v1799
    %v2224 = vpack.c.b16 %v1804, %v1800
    %v2225 = vpack.c.b16 %v1805, %v1801
    %v2226 = vpack.c.b16 %v1806, %v1802
    %v2227 = vpack.c.b16 %v1811, %v1807
    %v2228 = vpack.c.b16 %v1812, %v1808
    %v2229 = vpack.c.b16 %v1813, %v1809
    %v2230 = vpack.c.b16 %v1814, %v1810
    %v2231 = vpack.c.b16 %v1819, %v1815
    %v2232 = vpack.c.b16 %v1820, %v1816
    %v2233 = vpack.c.b16 %v1821, %v1817
    %v2234 = vpack.c.b16 %v1822, %v1818
    %v2235 = vpack.c.b16 %v1827, %v1823
    %v2236 = vpack.c.b16 %v1828, %v1824
    %v2237 = vpack.c.b16 %v1829, %v1825
    %v2238 = vpack.c.b16 %v1830, %v1826
    %v2239 = vpack.c.b16 %v1835, %v1831
    %v2240 = vpack.c.b16 %v1836, %v1832
    %v2241 = vpack.c.b16 %v1837, %v1833
    %v2242 = vpack.c.b16 %v1838, %v1834
    %v2243 = vpack.c.b16 %v1843, %v1839
    %v2244 = vpack.c.b16 %v1844, %v1840
    %v2245 = vpack.c.b16 %v1845, %v1841
    %v2246 = vpack.c.b16 %v1846, %v1842
    %v2247 = vpack.c.b16 %v1851, %v1847
    %v2248 = vpack.c.b16 %v1852, %v1848
    %v2249 = vpack.c.b16 %v1853, %v1849
    %v2250 = vpack.c.b16 %v1854, %v1850
    %v2251 = vpack.c.b16 %v1859, %v1855
    %v2252 = vpack.c.b16 %v1860, %v1856
    %v2253 = vpack.c.b16 %v1861, %v1857
    %v2254 = vpack.c.b16 %v1862, %v1858
    %v2255 = vpack.c.b16 %v1867, %v1863
    %v2256 = vpack.c.b16 %v1868, %v1864
    %v2257 = vpack.c.b16 %v1869, %v1865
    %v2258 = vpack.c.b16 %v1870, %v1866
    %v2259 = vpack.c.b16 %v1875, %v1871
    %v2260 = vpack.c.b16 %v1876, %v1872
    %v2261 = vpack.c.b16 %v1877, %v1873
    %v2262 = vpack.c.b16 %v1878, %v1874
    %2647 = vmatprep.subr.bf16.mxu0 %v1880
    %2648 = vmatpush1.bf16.msra.mxu0 %v1879
    %2649 = vmatprep.subr.bf16.mxu0 %v1884
    %2650 = vmatpush1.bf16.msra.mxu0 %v1883
    %2651 = vmatprep.subr.bf16.mxu0 %v1888
    %2652 = vmatpush1.bf16.msra.mxu0 %v1887
    %2653 = vmatprep.subr.bf16.mxu0 %v1892
    %2654 = vmatpush1.bf16.msra.mxu0 %v1891
    %2655 = vmatprep.subr.bf16.mxu0 %v1896
    %2656 = vmatpush1.bf16.msra.mxu0 %v1895
    %2657 = vmatprep.subr.bf16.mxu0 %v1900
    %2658 = vmatpush1.bf16.msra.mxu0 %v1899
    %2659 = vmatprep.subr.bf16.mxu0 %v1904
    %2660 = vmatpush1.bf16.msra.mxu0 %v1903
    %2661 = vmatprep.subr.bf16.mxu0 %v1908
    %2662 = vmatpush1.bf16.msra.mxu0 %v1907
    %2663 = vmatprep.subr.bf16.mxu0 %v1912
    %2664 = vmatpush1.bf16.msra.mxu0 %v1911
    %2665 = vmatprep.subr.bf16.mxu0 %v1916
    %2666 = vmatpush1.bf16.msra.mxu0 %v1915
    %2667 = vmatprep.subr.bf16.mxu0 %v1920
    %2668 = vmatpush1.bf16.msra.mxu0 %v1919
    %2669 = vmatprep.subr.bf16.mxu0 %v1924
    %2670 = vmatpush1.bf16.msra.mxu0 %v1923
    %2671 = vmatprep.subr.bf16.mxu0 %v1928
    %2672 = vmatpush1.bf16.msra.mxu0 %v1927
    %2673 = vmatprep.subr.bf16.mxu0 %v1932
    %2674 = vmatpush1.bf16.msra.mxu0 %v1931
    %2675 = vmatprep.subr.bf16.mxu0 %v1936
    %2676 = vmatpush1.bf16.msra.mxu0 %v1935
    %2677 = vmatprep.subr.bf16.mxu0 %v1940
    %2678 = vmatpush1.bf16.msra.mxu0 %v1939
    %2679 = vmatprep.mubr.bf16.mxu0 %v320
    %2680 = vmatmul.mubr.bf16.gmra.mrb[0].mxu0 %v319
    %v2681 = vpop.f32.mrb[0].mxu0
    %v2682 = vadd.f32 0.0, %v2681
    %v2683 = vpop.f32.mrb[0].mxu0
    %v2684 = vadd.f32 0.0, %v2683
    %v2685 = vpop.f32.mrb[0].mxu0
    %v2686 = vadd.f32 0.0, %v2685
    %v2687 = vpop.f32.mrb[0].mxu0
    %v2688 = vadd.f32 0.0, %v2687
    %2689 = vmatprep.mubr.bf16.mxu0 %v332
    %2690 = vmatmul.mubr.bf16.gmra.mrb[0].mxu0 %v331
    %v2691 = vpop.f32.mrb[0].mxu0
    %v2692 = vadd.f32 0.0, %v2691
    %v2693 = vpop.f32.mrb[0].mxu0
    %v2694 = vadd.f32 0.0, %v2693
    %v2695 = vpop.f32.mrb[0].mxu0
    %v2696 = vadd.f32 0.0, %v2695
    %v2697 = vpop.f32.mrb[0].mxu0
    %v2698 = vadd.f32 0.0, %v2697
    %2699 = vdwg.mxu0
    %2700 = vmatprep.subr.bf16.mxu0 %v1944
    %2701 = vmatpush1.bf16.msra.mxu0 %v1943
    %2702 = vmatprep.subr.bf16.mxu0 %v1948
    %2703 = vmatpush1.bf16.msra.mxu0 %v1947
    %2704 = vmatprep.subr.bf16.mxu0 %v1952
    %2705 = vmatpush1.bf16.msra.mxu0 %v1951
    %2706 = vmatprep.subr.bf16.mxu0 %v1956
    %2707 = vmatpush1.bf16.msra.mxu0 %v1955
    %2708 = vmatprep.subr.bf16.mxu0 %v1960
    %2709 = vmatpush1.bf16.msra.mxu0 %v1959
    %2710 = vmatprep.subr.bf16.mxu0 %v1964
    %2711 = vmatpush1.bf16.msra.mxu0 %v1963
    %2712 = vmatprep.subr.bf16.mxu0 %v1968
    %2713 = vmatpush1.bf16.msra.mxu0 %v1967
    %2714 = vmatprep.subr.bf16.mxu0 %v1972
    %2715 = vmatpush1.bf16.msra.mxu0 %v1971
    %2716 = vmatprep.subr.bf16.mxu0 %v1976
    %2717 = vmatpush1.bf16.msra.mxu0 %v1975
    %2718 = vmatprep.subr.bf16.mxu0 %v1980
    %2719 = vmatpush1.bf16.msra.mxu0 %v1979
    %2720 = vmatprep.subr.bf16.mxu0 %v1984
    %2721 = vmatpush1.bf16.msra.mxu0 %v1983
    %2722 = vmatprep.subr.bf16.mxu0 %v1988
    %2723 = vmatpush1.bf16.msra.mxu0 %v1987
    %2724 = vmatprep.subr.bf16.mxu0 %v1992
    %2725 = vmatpush1.bf16.msra.mxu0 %v1991
    %2726 = vmatprep.subr.bf16.mxu0 %v1996
    %2727 = vmatpush1.bf16.msra.mxu0 %v1995
    %2728 = vmatprep.subr.bf16.mxu0 %v2000
    %2729 = vmatpush1.bf16.msra.mxu0 %v1999
    %2730 = vmatprep.subr.bf16.mxu0 %v2004
    %2731 = vmatpush1.bf16.msra.mxu0 %v2003
    %2732 = vmatprep.mubr.bf16.mxu0 %v322
    %2733 = vmatmul.mubr.bf16.gmra.mrb[0].mxu0 %v321
    %v2734 = vpop.f32.mrb[0].mxu0
    %v2735 = vadd.f32 %v2682, %v2734
    %v2736 = vpop.f32.mrb[0].mxu0
    %v2737 = vadd.f32 %v2684, %v2736
    %v2738 = vpop.f32.mrb[0].mxu0
    %v2739 = vadd.f32 %v2686, %v2738
    %v2740 = vpop.f32.mrb[0].mxu0
    %v2741 = vadd.f32 %v2688, %v2740
    %2742 = vmatprep.mubr.bf16.mxu0 %v334
    %2743 = vmatmul.mubr.bf16.gmra.mrb[0].mxu0 %v333
    %v2744 = vpop.f32.mrb[0].mxu0
    %v2745 = vadd.f32 %v2692, %v2744
    %v2746 = vpop.f32.mrb[0].mxu0
    %v2747 = vadd.f32 %v2694, %v2746
    %v2748 = vpop.f32.mrb[0].mxu0
    %v2749 = vadd.f32 %v2696, %v2748
    %v2750 = vpop.f32.mrb[0].mxu0
    %v2751 = vadd.f32 %v2698, %v2750
    %2752 = vdwg.mxu0
    %2753 = vmatprep.subr.bf16.mxu0 %v2008
    %2754 = vmatpush1.bf16.msra.mxu0 %v2007
    %2755 = vmatprep.subr.bf16.mxu0 %v2012
    %2756 = vmatpush1.bf16.msra.mxu0 %v2011
    %2757 = vmatprep.subr.bf16.mxu0 %v2016
    %2758 = vmatpush1.bf16.msra.mxu0 %v2015
    %2759 = vmatprep.subr.bf16.mxu0 %v2020
    %2760 = vmatpush1.bf16.msra.mxu0 %v2019
    %2761 = vmatprep.subr.bf16.mxu0 %v2024
    %2762 = vmatpush1.bf16.msra.mxu0 %v2023
    %2763 = vmatprep.subr.bf16.mxu0 %v2028
    %2764 = vmatpush1.bf16.msra.mxu0 %v2027
    %2765 = vmatprep.subr.bf16.mxu0 %v2032
    %2766 = vmatpush1.bf16.msra.mxu0 %v2031
    %2767 = vmatprep.subr.bf16.mxu0 %v2036
    %2768 = vmatpush1.bf16.msra.mxu0 %v2035
    %2769 = vmatprep.subr.bf16.mxu0 %v2040
    %2770 = vmatpush1.bf16.msra.mxu0 %v2039
    %2771 = vmatprep.subr.bf16.mxu0 %v2044
    %2772 = vmatpush1.bf16.msra.mxu0 %v2043
    %2773 = vmatprep.subr.bf16.mxu0 %v2048
    %2774 = vmatpush1.bf16.msra.mxu0 %v2047
    %2775 = vmatprep.subr.bf16.mxu0 %v2052
    %2776 = vmatpush1.bf16.msra.mxu0 %v2051
    %2777 = vmatprep.subr.bf16.mxu0 %v2056
    %2778 = vmatpush1.bf16.msra.mxu0 %v2055
    %2779 = vmatprep.subr.bf16.mxu0 %v2060
    %2780 = vmatpush1.bf16.msra.mxu0 %v2059
    %2781 = vmatprep.subr.bf16.mxu0 %v2064
    %2782 = vmatpush1.bf16.msra.mxu0 %v2063
    %2783 = vmatprep.subr.bf16.mxu0 %v2068
    %2784 = vmatpush1.bf16.msra.mxu0 %v2067
    %2785 = vmatprep.mubr.bf16.mxu0 %v324
    %2786 = vmatmul.mubr.bf16.gmra.mrb[0].mxu0 %v323
    %v2787 = vpop.f32.mrb[0].mxu0
    %v2788 = vadd.f32 %v2735, %v2787
    %v2789 = vpop.f32.mrb[0].mxu0
    %v2790 = vadd.f32 %v2737, %v2789
    %v2791 = vpop.f32.mrb[0].mxu0
    %v2792 = vadd.f32 %v2739, %v2791
    %v2793 = vpop.f32.mrb[0].mxu0
    %v2794 = vadd.f32 %v2741, %v2793
    %2795 = vmatprep.mubr.bf16.mxu0 %v336
    %2796 = vmatmul.mubr.bf16.gmra.mrb[0].mxu0 %v335
    %v2797 = vpop.f32.mrb[0].mxu0
    %v2798 = vadd.f32 %v2745, %v2797
    %v2799 = vpop.f32.mrb[0].mxu0
    %v2800 = vadd.f32 %v2747, %v2799
    %v2801 = vpop.f32.mrb[0].mxu0
    %v2802 = vadd.f32 %v2749, %v2801
    %v2803 = vpop.f32.mrb[0].mxu0
    %v2804 = vadd.f32 %v2751, %v2803
    %2805 = vdwg.mxu0
    %2806 = vmatprep.subr.bf16.mxu0 %v2072
    %2807 = vmatpush1.bf16.msra.mxu0 %v2071
    %2808 = vmatprep.subr.bf16.mxu0 %v2076
    %2809 = vmatpush1.bf16.msra.mxu0 %v2075
    %2810 = vmatprep.subr.bf16.mxu0 %v2080
    %2811 = vmatpush1.bf16.msra.mxu0 %v2079
    %2812 = vmatprep.subr.bf16.mxu0 %v2084
    %2813 = vmatpush1.bf16.msra.mxu0 %v2083
    %2814 = vmatprep.subr.bf16.mxu0 %v2088
    %2815 = vmatpush1.bf16.msra.mxu0 %v2087
    %2816 = vmatprep.subr.bf16.mxu0 %v2092
    %2817 = vmatpush1.bf16.msra.mxu0 %v2091
    %2818 = vmatprep.subr.bf16.mxu0 %v2096
    %2819 = vmatpush1.bf16.msra.mxu0 %v2095
    %2820 = vmatprep.subr.bf16.mxu0 %v2100
    %2821 = vmatpush1.bf16.msra.mxu0 %v2099
    %2822 = vmatprep.subr.bf16.mxu0 %v2104
    %2823 = vmatpush1.bf16.msra.mxu0 %v2103
    %2824 = vmatprep.subr.bf16.mxu0 %v2108
    %2825 = vmatpush1.bf16.msra.mxu0 %v2107
    %2826 = vmatprep.subr.bf16.mxu0 %v2112
    %2827 = vmatpush1.bf16.msra.mxu0 %v2111
    %2828 = vmatprep.subr.bf16.mxu0 %v2116
    %2829 = vmatpush1.bf16.msra.mxu0 %v2115
    %2830 = vmatprep.subr.bf16.mxu0 %v2120
    %2831 = vmatpush1.bf16.msra.mxu0 %v2119
    %2832 = vmatprep.subr.bf16.mxu0 %v2124
    %2833 = vmatpush1.bf16.msra.mxu0 %v2123
    %2834 = vmatprep.subr.bf16.mxu0 %v2128
    %2835 = vmatpush1.bf16.msra.mxu0 %v2127
    %2836 = vmatprep.subr.bf16.mxu0 %v2132
    %2837 = vmatpush1.bf16.msra.mxu0 %v2131
    %2838 = vmatprep.mubr.bf16.mxu0 %v326
    %2839 = vmatmul.mubr.bf16.gmra.mrb[0].mxu0 %v325
    %v2840 = vpop.f32.mrb[0].mxu0
    %v2841 = vadd.f32 %v2788, %v2840
    %v2842 = vpop.f32.mrb[0].mxu0
    %v2843 = vadd.f32 %v2790, %v2842
    %v2844 = vpop.f32.mrb[0].mxu0
    %v2845 = vadd.f32 %v2792, %v2844
    %v2846 = vpop.f32.mrb[0].mxu0
    %v2847 = vadd.f32 %v2794, %v2846
    %2848 = vmatprep.mubr.bf16.mxu0 %v338
    %2849 = vmatmul.mubr.bf16.gmra.mrb[0].mxu0 %v337
    %v2850 = vpop.f32.mrb[0].mxu0
    %v2851 = vadd.f32 %v2798, %v2850
    %v2852 = vpop.f32.mrb[0].mxu0
    %v2853 = vadd.f32 %v2800, %v2852
    %v2854 = vpop.f32.mrb[0].mxu0
    %v2855 = vadd.f32 %v2802, %v2854
    %v2856 = vpop.f32.mrb[0].mxu0
    %v2857 = vadd.f32 %v2804, %v2856
    %2858 = vdwg.mxu0
    %2859 = vmatprep.subr.bf16.mxu0 %v2136
    %2860 = vmatpush1.bf16.msra.mxu0 %v2135
    %2861 = vmatprep.subr.bf16.mxu0 %v2140
    %2862 = vmatpush1.bf16.msra.mxu0 %v2139
    %2863 = vmatprep.subr.bf16.mxu0 %v2144
    %2864 = vmatpush1.bf16.msra.mxu0 %v2143
    %2865 = vmatprep.subr.bf16.mxu0 %v2148
    %2866 = vmatpush1.bf16.msra.mxu0 %v2147
    %2867 = vmatprep.subr.bf16.mxu0 %v2152
    %2868 = vmatpush1.bf16.msra.mxu0 %v2151
    %2869 = vmatprep.subr.bf16.mxu0 %v2156
    %2870 = vmatpush1.bf16.msra.mxu0 %v2155
    %2871 = vmatprep.subr.bf16.mxu0 %v2160
    %2872 = vmatpush1.bf16.msra.mxu0 %v2159
    %2873 = vmatprep.subr.bf16.mxu0 %v2164
    %2874 = vmatpush1.bf16.msra.mxu0 %v2163
    %2875 = vmatprep.subr.bf16.mxu0 %v2168
    %2876 = vmatpush1.bf16.msra.mxu0 %v2167
    %2877 = vmatprep.subr.bf16.mxu0 %v2172
    %2878 = vmatpush1.bf16.msra.mxu0 %v2171
    %2879 = vmatprep.subr.bf16.mxu0 %v2176
    %2880 = vmatpush1.bf16.msra.mxu0 %v2175
    %2881 = vmatprep.subr.bf16.mxu0 %v2180
    %2882 = vmatpush1.bf16.msra.mxu0 %v2179
    %2883 = vmatprep.subr.bf16.mxu0 %v2184
    %2884 = vmatpush1.bf16.msra.mxu0 %v2183
    %2885 = vmatprep.subr.bf16.mxu0 %v2188
    %2886 = vmatpush1.bf16.msra.mxu0 %v2187
    %2887 = vmatprep.subr.bf16.mxu0 %v2192
    %2888 = vmatpush1.bf16.msra.mxu0 %v2191
    %2889 = vmatprep.subr.bf16.mxu0 %v2196
    %2890 = vmatpush1.bf16.msra.mxu0 %v2195
    %2891 = vmatprep.mubr.bf16.mxu0 %v328
    %2892 = vmatmul.mubr.bf16.gmra.mrb[0].mxu0 %v327
    %v2893 = vpop.f32.mrb[0].mxu0
    %v2894 = vadd.f32 %v2841, %v2893
    %v2895 = vpop.f32.mrb[0].mxu0
    %v2896 = vadd.f32 %v2843, %v2895
    %v2897 = vpop.f32.mrb[0].mxu0
    %v2898 = vadd.f32 %v2845, %v2897
    %v2899 = vpop.f32.mrb[0].mxu0
    %v2900 = vadd.f32 %v2847, %v2899
    %2901 = vmatprep.mubr.bf16.mxu0 %v340
    %2902 = vmatmul.mubr.bf16.gmra.mrb[0].mxu0 %v339
    %v2903 = vpop.f32.mrb[0].mxu0
    %v2904 = vadd.f32 %v2851, %v2903
    %v2905 = vpop.f32.mrb[0].mxu0
    %v2906 = vadd.f32 %v2853, %v2905
    %v2907 = vpop.f32.mrb[0].mxu0
    %v2908 = vadd.f32 %v2855, %v2907
    %v2909 = vpop.f32.mrb[0].mxu0
    %v2910 = vadd.f32 %v2857, %v2909
    %2911 = vdwg.mxu0
    %2912 = vmatprep.subr.bf16.mxu0 %v2200
    %2913 = vmatpush1.bf16.msra.mxu0 %v2199
    %2914 = vmatprep.subr.bf16.mxu0 %v2204
    %2915 = vmatpush1.bf16.msra.mxu0 %v2203
    %2916 = vmatprep.subr.bf16.mxu0 %v2208
    %2917 = vmatpush1.bf16.msra.mxu0 %v2207
    %2918 = vmatprep.subr.bf16.mxu0 %v2212
    %2919 = vmatpush1.bf16.msra.mxu0 %v2211
    %2920 = vmatprep.subr.bf16.mxu0 %v2216
    %2921 = vmatpush1.bf16.msra.mxu0 %v2215
    %2922 = vmatprep.subr.bf16.mxu0 %v2220
    %2923 = vmatpush1.bf16.msra.mxu0 %v2219
    %2924 = vmatprep.subr.bf16.mxu0 %v2224
    %2925 = vmatpush1.bf16.msra.mxu0 %v2223
    %2926 = vmatprep.subr.bf16.mxu0 %v2228
    %2927 = vmatpush1.bf16.msra.mxu0 %v2227
    %2928 = vmatprep.subr.bf16.mxu0 %v2232
    %2929 = vmatpush1.bf16.msra.mxu0 %v2231
    %2930 = vmatprep.subr.bf16.mxu0 %v2236
    %2931 = vmatpush1.bf16.msra.mxu0 %v2235
    %2932 = vmatprep.subr.bf16.mxu0 %v2240
    %2933 = vmatpush1.bf16.msra.mxu0 %v2239
    %2934 = vmatprep.subr.bf16.mxu0 %v2244
    %2935 = vmatpush1.bf16.msra.mxu0 %v2243
    %2936 = vmatprep.subr.bf16.mxu0 %v2248
    %2937 = vmatpush1.bf16.msra.mxu0 %v2247
    %2938 = vmatprep.subr.bf16.mxu0 %v2252
    %2939 = vmatpush1.bf16.msra.mxu0 %v2251
    %2940 = vmatprep.subr.bf16.mxu0 %v2256
    %2941 = vmatpush1.bf16.msra.mxu0 %v2255
    %2942 = vmatprep.subr.bf16.mxu0 %v2260
    %2943 = vmatpush1.bf16.msra.mxu0 %v2259
    %2944 = vmatprep.mubr.bf16.mxu0 %v330
    %2945 = vmatmul.mubr.bf16.gmra.mrb[0].mxu0 %v329
    %v2946 = vpop.f32.mrb[0].mxu0
    %v2947 = vadd.f32 %v2894, %v2946
    %v2948 = vpop.f32.mrb[0].mxu0
    %v2949 = vadd.f32 %v2896, %v2948
    %v2950 = vpop.f32.mrb[0].mxu0
    %v2951 = vadd.f32 %v2898, %v2950
    %v2952 = vpop.f32.mrb[0].mxu0
    %v2953 = vadd.f32 %v2900, %v2952
    %2954 = vmatprep.mubr.bf16.mxu0 %v342
    %2955 = vmatmul.mubr.bf16.gmra.mrb[0].mxu0 %v341
    %v2956 = vpop.f32.mrb[0].mxu0
    %v2957 = vadd.f32 %v2904, %v2956
    %v2958 = vpop.f32.mrb[0].mxu0
    %v2959 = vadd.f32 %v2906, %v2958
    %v2960 = vpop.f32.mrb[0].mxu0
    %v2961 = vadd.f32 %v2908, %v2960
    %v2962 = vpop.f32.mrb[0].mxu0
    %v2963 = vadd.f32 %v2910, %v2962
    %2964 = vdwg.mxu0
    %2965 = vmatprep.subr.bf16.mxu0 %v1882
    %2966 = vmatpush1.bf16.msra.mxu0 %v1881
    %2967 = vmatprep.subr.bf16.mxu0 %v1886
    %2968 = vmatpush1.bf16.msra.mxu0 %v1885
    %2969 = vmatprep.subr.bf16.mxu0 %v1890
    %2970 = vmatpush1.bf16.msra.mxu0 %v1889
    %2971 = vmatprep.subr.bf16.mxu0 %v1894
    %2972 = vmatpush1.bf16.msra.mxu0 %v1893
    %2973 = vmatprep.subr.bf16.mxu0 %v1898
    %2974 = vmatpush1.bf16.msra.mxu0 %v1897
    %2975 = vmatprep.subr.bf16.mxu0 %v1902
    %2976 = vmatpush1.bf16.msra.mxu0 %v1901
    %2977 = vmatprep.subr.bf16.mxu0 %v1906
    %2978 = vmatpush1.bf16.msra.mxu0 %v1905
    %2979 = vmatprep.subr.bf16.mxu0 %v1910
    %2980 = vmatpush1.bf16.msra.mxu0 %v1909
    %2981 = vmatprep.subr.bf16.mxu0 %v1914
    %2982 = vmatpush1.bf16.msra.mxu0 %v1913
    %2983 = vmatprep.subr.bf16.mxu0 %v1918
    %2984 = vmatpush1.bf16.msra.mxu0 %v1917
    %2985 = vmatprep.subr.bf16.mxu0 %v1922
    %2986 = vmatpush1.bf16.msra.mxu0 %v1921
    %2987 = vmatprep.subr.bf16.mxu0 %v1926
    %2988 = vmatpush1.bf16.msra.mxu0 %v1925
    %2989 = vmatprep.subr.bf16.mxu0 %v1930
    %2990 = vmatpush1.bf16.msra.mxu0 %v1929
    %2991 = vmatprep.subr.bf16.mxu0 %v1934
    %2992 = vmatpush1.bf16.msra.mxu0 %v1933
    %2993 = vmatprep.subr.bf16.mxu0 %v1938
    %2994 = vmatpush1.bf16.msra.mxu0 %v1937
    %2995 = vmatprep.subr.bf16.mxu0 %v1942
    %2996 = vmatpush1.bf16.msra.mxu0 %v1941
    %2997 = vmatprep.mubr.bf16.mxu0 %v320
    %2998 = vmatmul.mubr.bf16.gmra.mrb[0].mxu0 %v319
    %v2999 = vpop.f32.mrb[0].mxu0
    %v3000 = vadd.f32 0.0, %v2999
    %v3001 = vpop.f32.mrb[0].mxu0
    %v3002 = vadd.f32 0.0, %v3001
    %v3003 = vpop.f32.mrb[0].mxu0
    %v3004 = vadd.f32 0.0, %v3003
    %v3005 = vpop.f32.mrb[0].mxu0
    %v3006 = vadd.f32 0.0, %v3005
    %3007 = vmatprep.mubr.bf16.mxu0 %v332
    %3008 = vmatmul.mubr.bf16.gmra.mrb[0].mxu0 %v331
    %v3009 = vpop.f32.mrb[0].mxu0
    %v3010 = vadd.f32 0.0, %v3009
    %v3011 = vpop.f32.mrb[0].mxu0
    %v3012 = vadd.f32 0.0, %v3011
    %v3013 = vpop.f32.mrb[0].mxu0
    %v3014 = vadd.f32 0.0, %v3013
    %v3015 = vpop.f32.mrb[0].mxu0
    %v3016 = vadd.f32 0.0, %v3015
    %3017 = vdwg.mxu0
    %3018 = vmatprep.subr.bf16.mxu0 %v1946
    %3019 = vmatpush1.bf16.msra.mxu0 %v1945
    %3020 = vmatprep.subr.bf16.mxu0 %v1950
    %3021 = vmatpush1.bf16.msra.mxu0 %v1949
    %3022 = vmatprep.subr.bf16.mxu0 %v1954
    %3023 = vmatpush1.bf16.msra.mxu0 %v1953
    %3024 = vmatprep.subr.bf16.mxu0 %v1958
    %3025 = vmatpush1.bf16.msra.mxu0 %v1957
    %3026 = vmatprep.subr.bf16.mxu0 %v1962
    %3027 = vmatpush1.bf16.msra.mxu0 %v1961
    %3028 = vmatprep.subr.bf16.mxu0 %v1966
    %3029 = vmatpush1.bf16.msra.mxu0 %v1965
    %3030 = vmatprep.subr.bf16.mxu0 %v1970
    %3031 = vmatpush1.bf16.msra.mxu0 %v1969
    %3032 = vmatprep.subr.bf16.mxu0 %v1974
    %3033 = vmatpush1.bf16.msra.mxu0 %v1973
    %3034 = vmatprep.subr.bf16.mxu0 %v1978
    %3035 = vmatpush1.bf16.msra.mxu0 %v1977
    %3036 = vmatprep.subr.bf16.mxu0 %v1982
    %3037 = vmatpush1.bf16.msra.mxu0 %v1981
    %3038 = vmatprep.subr.bf16.mxu0 %v1986
    %3039 = vmatpush1.bf16.msra.mxu0 %v1985
    %3040 = vmatprep.subr.bf16.mxu0 %v1990
    %3041 = vmatpush1.bf16.msra.mxu0 %v1989
    %3042 = vmatprep.subr.bf16.mxu0 %v1994
    %3043 = vmatpush1.bf16.msra.mxu0 %v1993
    %3044 = vmatprep.subr.bf16.mxu0 %v1998
    %3045 = vmatpush1.bf16.msra.mxu0 %v1997
    %3046 = vmatprep.subr.bf16.mxu0 %v2002
    %3047 = vmatpush1.bf16.msra.mxu0 %v2001
    %3048 = vmatprep.subr.bf16.mxu0 %v2006
    %3049 = vmatpush1.bf16.msra.mxu0 %v2005
    %3050 = vmatprep.mubr.bf16.mxu0 %v322
    %3051 = vmatmul.mubr.bf16.gmra.mrb[0].mxu0 %v321
    %v3052 = vpop.f32.mrb[0].mxu0
    %v3053 = vadd.f32 %v3000, %v3052
    %v3054 = vpop.f32.mrb[0].mxu0
    %v3055 = vadd.f32 %v3002, %v3054
    %v3056 = vpop.f32.mrb[0].mxu0
    %v3057 = vadd.f32 %v3004, %v3056
    %v3058 = vpop.f32.mrb[0].mxu0
    %v3059 = vadd.f32 %v3006, %v3058
    %3060 = vmatprep.mubr.bf16.mxu0 %v334
    %3061 = vmatmul.mubr.bf16.gmra.mrb[0].mxu0 %v333
    %v3062 = vpop.f32.mrb[0].mxu0
    %v3063 = vadd.f32 %v3010, %v3062
    %v3064 = vpop.f32.mrb[0].mxu0
    %v3065 = vadd.f32 %v3012, %v3064
    %v3066 = vpop.f32.mrb[0].mxu0
    %v3067 = vadd.f32 %v3014, %v3066
    %v3068 = vpop.f32.mrb[0].mxu0
    %v3069 = vadd.f32 %v3016, %v3068
    %3070 = vdwg.mxu0
    %3071 = vmatprep.subr.bf16.mxu0 %v2010
    %3072 = vmatpush1.bf16.msra.mxu0 %v2009
    %3073 = vmatprep.subr.bf16.mxu0 %v2014
    %3074 = vmatpush1.bf16.msra.mxu0 %v2013
    %3075 = vmatprep.subr.bf16.mxu0 %v2018
    %3076 = vmatpush1.bf16.msra.mxu0 %v2017
    %3077 = vmatprep.subr.bf16.mxu0 %v2022
    %3078 = vmatpush1.bf16.msra.mxu0 %v2021
    %3079 = vmatprep.subr.bf16.mxu0 %v2026
    %3080 = vmatpush1.bf16.msra.mxu0 %v2025
    %3081 = vmatprep.subr.bf16.mxu0 %v2030
    %3082 = vmatpush1.bf16.msra.mxu0 %v2029
    %3083 = vmatprep.subr.bf16.mxu0 %v2034
    %3084 = vmatpush1.bf16.msra.mxu0 %v2033
    %3085 = vmatprep.subr.bf16.mxu0 %v2038
    %3086 = vmatpush1.bf16.msra.mxu0 %v2037
    %3087 = vmatprep.subr.bf16.mxu0 %v2042
    %3088 = vmatpush1.bf16.msra.mxu0 %v2041
    %3089 = vmatprep.subr.bf16.mxu0 %v2046
    %3090 = vmatpush1.bf16.msra.mxu0 %v2045
    %3091 = vmatprep.subr.bf16.mxu0 %v2050
    %3092 = vmatpush1.bf16.msra.mxu0 %v2049
    %3093 = vmatprep.subr.bf16.mxu0 %v2054
    %3094 = vmatpush1.bf16.msra.mxu0 %v2053
    %3095 = vmatprep.subr.bf16.mxu0 %v2058
    %3096 = vmatpush1.bf16.msra.mxu0 %v2057
    %3097 = vmatprep.subr.bf16.mxu0 %v2062
    %3098 = vmatpush1.bf16.msra.mxu0 %v2061
    %3099 = vmatprep.subr.bf16.mxu0 %v2066
    %3100 = vmatpush1.bf16.msra.mxu0 %v2065
    %3101 = vmatprep.subr.bf16.mxu0 %v2070
    %3102 = vmatpush1.bf16.msra.mxu0 %v2069
    %3103 = vmatprep.mubr.bf16.mxu0 %v324
    %3104 = vmatmul.mubr.bf16.gmra.mrb[0].mxu0 %v323
    %v3105 = vpop.f32.mrb[0].mxu0
    %v3106 = vadd.f32 %v3053, %v3105
    %v3107 = vpop.f32.mrb[0].mxu0
    %v3108 = vadd.f32 %v3055, %v3107
    %v3109 = vpop.f32.mrb[0].mxu0
    %v3110 = vadd.f32 %v3057, %v3109
    %v3111 = vpop.f32.mrb[0].mxu0
    %v3112 = vadd.f32 %v3059, %v3111
    %3113 = vmatprep.mubr.bf16.mxu0 %v336
    %3114 = vmatmul.mubr.bf16.gmra.mrb[0].mxu0 %v335
    %v3115 = vpop.f32.mrb[0].mxu0
    %v3116 = vadd.f32 %v3063, %v3115
    %v3117 = vpop.f32.mrb[0].mxu0
    %v3118 = vadd.f32 %v3065, %v3117
    %v3119 = vpop.f32.mrb[0].mxu0
    %v3120 = vadd.f32 %v3067, %v3119
    %v3121 = vpop.f32.mrb[0].mxu0
    %v3122 = vadd.f32 %v3069, %v3121
    %3123 = vdwg.mxu0
    %3124 = vmatprep.subr.bf16.mxu0 %v2074
    %3125 = vmatpush1.bf16.msra.mxu0 %v2073
    %3126 = vmatprep.subr.bf16.mxu0 %v2078
    %3127 = vmatpush1.bf16.msra.mxu0 %v2077
    %3128 = vmatprep.subr.bf16.mxu0 %v2082
    %3129 = vmatpush1.bf16.msra.mxu0 %v2081
    %3130 = vmatprep.subr.bf16.mxu0 %v2086
    %3131 = vmatpush1.bf16.msra.mxu0 %v2085
    %3132 = vmatprep.subr.bf16.mxu0 %v2090
    %3133 = vmatpush1.bf16.msra.mxu0 %v2089
    %3134 = vmatprep.subr.bf16.mxu0 %v2094
    %3135 = vmatpush1.bf16.msra.mxu0 %v2093
    %3136 = vmatprep.subr.bf16.mxu0 %v2098
    %3137 = vmatpush1.bf16.msra.mxu0 %v2097
    %3138 = vmatprep.subr.bf16.mxu0 %v2102
    %3139 = vmatpush1.bf16.msra.mxu0 %v2101
    %3140 = vmatprep.subr.bf16.mxu0 %v2106
    %3141 = vmatpush1.bf16.msra.mxu0 %v2105
    %3142 = vmatprep.subr.bf16.mxu0 %v2110
    %3143 = vmatpush1.bf16.msra.mxu0 %v2109
    %3144 = vmatprep.subr.bf16.mxu0 %v2114
    %3145 = vmatpush1.bf16.msra.mxu0 %v2113
    %3146 = vmatprep.subr.bf16.mxu0 %v2118
    %3147 = vmatpush1.bf16.msra.mxu0 %v2117
    %3148 = vmatprep.subr.bf16.mxu0 %v2122
    %3149 = vmatpush1.bf16.msra.mxu0 %v2121
    %3150 = vmatprep.subr.bf16.mxu0 %v2126
    %3151 = vmatpush1.bf16.msra.mxu0 %v2125
    %3152 = vmatprep.subr.bf16.mxu0 %v2130
    %3153 = vmatpush1.bf16.msra.mxu0 %v2129
    %3154 = vmatprep.subr.bf16.mxu0 %v2134
    %3155 = vmatpush1.bf16.msra.mxu0 %v2133
    %3156 = vmatprep.mubr.bf16.mxu0 %v326
    %3157 = vmatmul.mubr.bf16.gmra.mrb[0].mxu0 %v325
    %v3158 = vpop.f32.mrb[0].mxu0
    %v3159 = vadd.f32 %v3106, %v3158
    %v3160 = vpop.f32.mrb[0].mxu0
    %v3161 = vadd.f32 %v3108, %v3160
    %v3162 = vpop.f32.mrb[0].mxu0
    %v3163 = vadd.f32 %v3110, %v3162
    %v3164 = vpop.f32.mrb[0].mxu0
    %v3165 = vadd.f32 %v3112, %v3164
    %3166 = vmatprep.mubr.bf16.mxu0 %v338
    %3167 = vmatmul.mubr.bf16.gmra.mrb[0].mxu0 %v337
    %v3168 = vpop.f32.mrb[0].mxu0
    %v3169 = vadd.f32 %v3116, %v3168
    %v3170 = vpop.f32.mrb[0].mxu0
    %v3171 = vadd.f32 %v3118, %v3170
    %v3172 = vpop.f32.mrb[0].mxu0
    %v3173 = vadd.f32 %v3120, %v3172
    %v3174 = vpop.f32.mrb[0].mxu0
    %v3175 = vadd.f32 %v3122, %v3174
    %3176 = vdwg.mxu0
    %3177 = vmatprep.subr.bf16.mxu0 %v2138
    %3178 = vmatpush1.bf16.msra.mxu0 %v2137
    %3179 = vmatprep.subr.bf16.mxu0 %v2142
    %3180 = vmatpush1.bf16.msra.mxu0 %v2141
    %3181 = vmatprep.subr.bf16.mxu0 %v2146
    %3182 = vmatpush1.bf16.msra.mxu0 %v2145
    %3183 = vmatprep.subr.bf16.mxu0 %v2150
    %3184 = vmatpush1.bf16.msra.mxu0 %v2149
    %3185 = vmatprep.subr.bf16.mxu0 %v2154
    %3186 = vmatpush1.bf16.msra.mxu0 %v2153
    %3187 = vmatprep.subr.bf16.mxu0 %v2158
    %3188 = vmatpush1.bf16.msra.mxu0 %v2157
    %3189 = vmatprep.subr.bf16.mxu0 %v2162
    %3190 = vmatpush1.bf16.msra.mxu0 %v2161
    %3191 = vmatprep.subr.bf16.mxu0 %v2166
    %3192 = vmatpush1.bf16.msra.mxu0 %v2165
    %3193 = vmatprep.subr.bf16.mxu0 %v2170
    %3194 = vmatpush1.bf16.msra.mxu0 %v2169
    %3195 = vmatprep.subr.bf16.mxu0 %v2174
    %3196 = vmatpush1.bf16.msra.mxu0 %v2173
    %3197 = vmatprep.subr.bf16.mxu0 %v2178
    %3198 = vmatpush1.bf16.msra.mxu0 %v2177
    %3199 = vmatprep.subr.bf16.mxu0 %v2182
    %3200 = vmatpush1.bf16.msra.mxu0 %v2181
    %3201 = vmatprep.subr.bf16.mxu0 %v2186
    %3202 = vmatpush1.bf16.msra.mxu0 %v2185
    %3203 = vmatprep.subr.bf16.mxu0 %v2190
    %3204 = vmatpush1.bf16.msra.mxu0 %v2189
    %3205 = vmatprep.subr.bf16.mxu0 %v2194
    %3206 = vmatpush1.bf16.msra.mxu0 %v2193
    %3207 = vmatprep.subr.bf16.mxu0 %v2198
    %3208 = vmatpush1.bf16.msra.mxu0 %v2197
    %3209 = vmatprep.mubr.bf16.mxu0 %v328
    %3210 = vmatmul.mubr.bf16.gmra.mrb[0].mxu0 %v327
    %v3211 = vpop.f32.mrb[0].mxu0
    %v3212 = vadd.f32 %v3159, %v3211
    %v3213 = vpop.f32.mrb[0].mxu0
    %v3214 = vadd.f32 %v3161, %v3213
    %v3215 = vpop.f32.mrb[0].mxu0
    %v3216 = vadd.f32 %v3163, %v3215
    %v3217 = vpop.f32.mrb[0].mxu0
    %v3218 = vadd.f32 %v3165, %v3217
    %3219 = vmatprep.mubr.bf16.mxu0 %v340
    %3220 = vmatmul.mubr.bf16.gmra.mrb[0].mxu0 %v339
    %v3221 = vpop.f32.mrb[0].mxu0
    %v3222 = vadd.f32 %v3169, %v3221
    %v3223 = vpop.f32.mrb[0].mxu0
    %v3224 = vadd.f32 %v3171, %v3223
    %v3225 = vpop.f32.mrb[0].mxu0
    %v3226 = vadd.f32 %v3173, %v3225
    %v3227 = vpop.f32.mrb[0].mxu0
    %v3228 = vadd.f32 %v3175, %v3227
    %3229 = vdwg.mxu0
    %3230 = vmatprep.subr.bf16.mxu0 %v2202
    %3231 = vmatpush1.bf16.msra.mxu0 %v2201
    %3232 = vmatprep.subr.bf16.mxu0 %v2206
    %3233 = vmatpush1.bf16.msra.mxu0 %v2205
    %3234 = vmatprep.subr.bf16.mxu0 %v2210
    %3235 = vmatpush1.bf16.msra.mxu0 %v2209
    %3236 = vmatprep.subr.bf16.mxu0 %v2214
    %3237 = vmatpush1.bf16.msra.mxu0 %v2213
    %3238 = vmatprep.subr.bf16.mxu0 %v2218
    %3239 = vmatpush1.bf16.msra.mxu0 %v2217
    %3240 = vmatprep.subr.bf16.mxu0 %v2222
    %3241 = vmatpush1.bf16.msra.mxu0 %v2221
    %3242 = vmatprep.subr.bf16.mxu0 %v2226
    %3243 = vmatpush1.bf16.msra.mxu0 %v2225
    %3244 = vmatprep.subr.bf16.mxu0 %v2230
    %3245 = vmatpush1.bf16.msra.mxu0 %v2229
    %3246 = vmatprep.subr.bf16.mxu0 %v2234
    %3247 = vmatpush1.bf16.msra.mxu0 %v2233
    %3248 = vmatprep.subr.bf16.mxu0 %v2238
    %3249 = vmatpush1.bf16.msra.mxu0 %v2237
    %3250 = vmatprep.subr.bf16.mxu0 %v2242
    %3251 = vmatpush1.bf16.msra.mxu0 %v2241
    %3252 = vmatprep.subr.bf16.mxu0 %v2246
    %3253 = vmatpush1.bf16.msra.mxu0 %v2245
    %3254 = vmatprep.subr.bf16.mxu0 %v2250
    %3255 = vmatpush1.bf16.msra.mxu0 %v2249
    %3256 = vmatprep.subr.bf16.mxu0 %v2254
    %3257 = vmatpush1.bf16.msra.mxu0 %v2253
    %3258 = vmatprep.subr.bf16.mxu0 %v2258
    %3259 = vmatpush1.bf16.msra.mxu0 %v2257
    %3260 = vmatprep.subr.bf16.mxu0 %v2262
    %3261 = vmatpush1.bf16.msra.mxu0 %v2261
    %3262 = vmatprep.mubr.bf16.mxu0 %v330
    %3263 = vmatmul.mubr.bf16.gmra.mrb[0].mxu0 %v329
    %v3264 = vpop.f32.mrb[0].mxu0
    %v3265 = vadd.f32 %v3212, %v3264
    %v3266 = vpop.f32.mrb[0].mxu0
    %v3267 = vadd.f32 %v3214, %v3266
    %v3268 = vpop.f32.mrb[0].mxu0
    %v3269 = vadd.f32 %v3216, %v3268
    %v3270 = vpop.f32.mrb[0].mxu0
    %v3271 = vadd.f32 %v3218, %v3270
    %3272 = vmatprep.mubr.bf16.mxu0 %v342
    %3273 = vmatmul.mubr.bf16.gmra.mrb[0].mxu0 %v341
    %v3274 = vpop.f32.mrb[0].mxu0
    %v3275 = vadd.f32 %v3222, %v3274
    %v3276 = vpop.f32.mrb[0].mxu0
    %v3277 = vadd.f32 %v3224, %v3276
    %v3278 = vpop.f32.mrb[0].mxu0
    %v3279 = vadd.f32 %v3226, %v3278
    %v3280 = vpop.f32.mrb[0].mxu0
    %v3281 = vadd.f32 %v3228, %v3280
    %3282 = vdwg.mxu0
    %v3283 = vadd.f32 %v2947, %v2951
    %v3284 = vadd.f32 %v3283, %v2957
    %v3285 = vadd.f32 %v3284, %v2961
    %v3286 = vrot.slane %v3285, 4
    %v3287 = vadd.f32 %v3285, %v3286
    %v3288 = vrot.slane %v3287, 2
    %v3289 = vadd.f32 %v3287, %v3288
    %v3290 = vrot.slane %v3289, 1
    %v3291 = vadd.f32 %v3289, %v3290
    %v3292 = vadd.f32 %v2949, %v2953
    %v3293 = vadd.f32 %v3292, %v2959
    %v3294 = vadd.f32 %v3293, %v2963
    %v3295 = vrot.slane %v3294, 4
    %v3296 = vadd.f32 %v3294, %v3295
    %v3297 = vrot.slane %v3296, 2
    %v3298 = vadd.f32 %v3296, %v3297
    %v3299 = vrot.slane %v3298, 1
    %v3300 = vadd.f32 %v3298, %v3299
    %v3301 = vadd.f32 %v3265, %v3269
    %v3302 = vadd.f32 %v3301, %v3275
    %v3303 = vadd.f32 %v3302, %v3279
    %v3304 = vrot.slane %v3303, 4
    %v3305 = vadd.f32 %v3303, %v3304
    %v3306 = vrot.slane %v3305, 2
    %v3307 = vadd.f32 %v3305, %v3306
    %v3308 = vrot.slane %v3307, 1
    %v3309 = vadd.f32 %v3307, %v3308
    %v3310 = vadd.f32 %v3267, %v3271
    %v3311 = vadd.f32 %v3310, %v3277
    %v3312 = vadd.f32 %v3311, %v3281
    %v3313 = vrot.slane %v3312, 4
    %v3314 = vadd.f32 %v3312, %v3313
    %v3315 = vrot.slane %v3314, 2
    %v3316 = vadd.f32 %v3314, %v3315
    %v3317 = vrot.slane %v3316, 1
    %v3318 = vadd.f32 %v3316, %v3317
    %v3319 = vadd.f32 %v3291, %v3309
    %v3320 = vadd.f32 %v3300, %v3318
    %v3321 = vadd.f32 %v3319, %v3320
    %3322 = vrot.lane.b32.xlu0 %v3321, 64
    %v3323 = vpop.permute.xlu0 %3322
    %v3324 = vlaneseq
    %v3325 = vand.u32 %v3324, 127
    %v3326 = vadd.f32 %v3321, %v3323
    %3327 = vrot.lane.b32.xlu0 %v3326, 32
    %v3328 = vpop.permute.xlu0 %3327
    %v3329 = vadd.f32 %v3326, %v3328
    %v3330 = vmul.f32 %v3329, 0.001953125
    %v3331 = vlaneseq
    %v3332 = vshrl.u32 %v3331, 7
    %v3333 = vsub.s32 0, %v3332
    %v3334 = vrot.slane %v3330, %v3333
    %v3335 = vsub.f32 %v2947, %v3334
    %v3336 = vsub.f32 %v2949, %v3334
    %v3337 = vsub.f32 %v3265, %v3334
    %v3338 = vsub.f32 %v3267, %v3334
    %v3339 = vsub.f32 %v2951, %v3334
    %v3340 = vsub.f32 %v2953, %v3334
    %v3341 = vsub.f32 %v3269, %v3334
    %v3342 = vsub.f32 %v3271, %v3334
    %v3343 = vsub.f32 %v2957, %v3334
    %v3344 = vsub.f32 %v2959, %v3334
    %v3345 = vsub.f32 %v3275, %v3334
    %v3346 = vsub.f32 %v3277, %v3334
    %v3347 = vsub.f32 %v2961, %v3334
    %v3348 = vsub.f32 %v2963, %v3334
    %v3349 = vsub.f32 %v3279, %v3334
    %v3350 = vsub.f32 %v3281, %v3334
    %v3351 = vmul.f32 %v3335, %v3335
    %v3352 = vmul.f32 %v3336, %v3336
    %v3353 = vmul.f32 %v3337, %v3337
    %v3354 = vmul.f32 %v3338, %v3338
    %v3355 = vmul.f32 %v3339, %v3339
    %v3356 = vmul.f32 %v3340, %v3340
    %v3357 = vmul.f32 %v3341, %v3341
    %v3358 = vmul.f32 %v3342, %v3342
    %v3359 = vmul.f32 %v3343, %v3343
    %v3360 = vmul.f32 %v3344, %v3344
    %v3361 = vmul.f32 %v3345, %v3345
    %v3362 = vmul.f32 %v3346, %v3346
    %v3363 = vmul.f32 %v3347, %v3347
    %v3364 = vmul.f32 %v3348, %v3348
    %v3365 = vmul.f32 %v3349, %v3349
    %v3366 = vmul.f32 %v3350, %v3350
    %v3367 = vadd.f32 %v3351, %v3355
    %v3368 = vadd.f32 %v3367, %v3359
    %v3369 = vadd.f32 %v3368, %v3363
    %v3370 = vrot.slane %v3369, 4
    %v3371 = vadd.f32 %v3369, %v3370
    %v3372 = vrot.slane %v3371, 2
    %v3373 = vadd.f32 %v3371, %v3372
    %v3374 = vrot.slane %v3373, 1
    %v3375 = vadd.f32 %v3373, %v3374
    %v3376 = vadd.f32 %v3352, %v3356
    %v3377 = vadd.f32 %v3376, %v3360
    %v3378 = vadd.f32 %v3377, %v3364
    %v3379 = vrot.slane %v3378, 4
    %v3380 = vadd.f32 %v3378, %v3379
    %v3381 = vrot.slane %v3380, 2
    %v3382 = vadd.f32 %v3380, %v3381
    %v3383 = vrot.slane %v3382, 1
    %v3384 = vadd.f32 %v3382, %v3383
    %v3385 = vadd.f32 %v3353, %v3357
    %v3386 = vadd.f32 %v3385, %v3361
    %v3387 = vadd.f32 %v3386, %v3365
    %v3388 = vrot.slane %v3387, 4
    %v3389 = vadd.f32 %v3387, %v3388
    %v3390 = vrot.slane %v3389, 2
    %v3391 = vadd.f32 %v3389, %v3390
    %v3392 = vrot.slane %v3391, 1
    %v3393 = vadd.f32 %v3391, %v3392
    %v3394 = vadd.f32 %v3354, %v3358
    %v3395 = vadd.f32 %v3394, %v3362
    %v3396 = vadd.f32 %v3395, %v3366
    %v3397 = vrot.slane %v3396, 4
    %v3398 = vadd.f32 %v3396, %v3397
    %v3399 = vrot.slane %v3398, 2
    %v3400 = vadd.f32 %v3398, %v3399
    %v3401 = vrot.slane %v3400, 1
    %v3402 = vadd.f32 %v3400, %v3401
    %v3403 = vadd.f32 %v3375, %v3393
    %v3404 = vadd.f32 %v3384, %v3402
    %v3405 = vadd.f32 %v3403, %v3404
    %3406 = vrot.lane.b32.xlu0 %v3405, 64
    %v3407 = vpop.permute.xlu0 %3406
    %v3408 = vadd.f32 %v3405, %v3407
    %3409 = vrot.lane.b32.xlu0 %v3408, 32
    %v3410 = vpop.permute.xlu0 %3409
    %v3411 = vadd.f32 %v3408, %v3410
    %v3412 = vmul.f32 %v3411, 0.001953125
    %v3413 = vld [vmem:[#allocation7] sm:$0xf]
    %v3414 = vadd.f32 %v3412, 1e-05
    %v3415 = vrsqrt.pop %v3414
    %v3417 = vcombine.low %v3415, %v3415
    %v3419 = vunpack.c.l.s4 1966171168
    %v3420 = vunpack.c.0.s8 %v3419
    %v3421 = vlaneseq
    %v3422 = vshrl.u32 %v3421, 7
    %v3423 = vsub.s32 %v3420, %v3422
    %v3424 = vrot.slane %v3417, %v3423
    %v3425 = vcombine.low %v3424, %v3424
    %v3427 = vunpack.c.l.s4 1966171168
    %v3428 = vunpack.c.0.s8 %v3427
    %v3429 = vlaneseq
    %v3430 = vshrl.u32 %v3429, 7
    %v3431 = vsub.s32 %v3428, %v3430
    %v3432 = vrot.slane %v3425, %v3431
    %v3434 = vmul.f32 %v3413, %v3432
    %v3435 = vld [vmem:[#allocation8] sm:$0xf]
    %v3437 = vlaneseq
    %v3438 = vshrl.u32 %v3437, 7
    %v3439 = vsub.s32 0, %v3438
    %v3440 = vrot.slane %v3434, %v3439
    %v3441 = vlaneseq
    %v3442 = vshrl.u32 %v3441, 7
    %v3443 = vsub.s32 1, %v3442
    %v3444 = vrot.slane %v3434, %v3443
    %v3445 = vlaneseq
    %v3446 = vshrl.u32 %v3445, 7
    %v3447 = vsub.s32 2, %v3446
    %v3448 = vrot.slane %v3434, %v3447
    %v3449 = vlaneseq
    %v3450 = vshrl.u32 %v3449, 7
    %v3451 = vsub.s32 3, %v3450
    %v3452 = vrot.slane %v3434, %v3451
    %v3457 = vmul.f32 %v3330, %v3440
    %v3458 = vmul.f32 %v3330, %v3444
    %v3459 = vmul.f32 %v3330, %v3448
    %v3460 = vmul.f32 %v3330, %v3452
    %v3465 = vcombine.low %v3457, %v3458
    %v3466 = vcombine.low %v3459, %v3460
    %v3468 = vunpack.c.l.s4 1966171168
    %v3469 = vunpack.c.0.s8 %v3468
    %v3470 = vlaneseq
    %v3471 = vshrl.u32 %v3470, 7
    %v3472 = vsub.s32 %v3469, %v3471
    %v3473 = vrot.slane %v3465, %v3472
    %v3475 = vunpack.c.l.s4 1966171168
    %v3476 = vunpack.c.0.s8 %v3475
    %v3477 = vlaneseq
    %v3478 = vshrl.u32 %v3477, 7
    %v3479 = vsub.s32 %v3476, %v3478
    %v3480 = vrot.slane %v3466, %v3479
    %v3481 = vcombine.low %v3473, %v3480
    %v3483 = vunpack.c.l.s4 1966171168
    %v3484 = vunpack.c.0.s8 %v3483
    %v3485 = vlaneseq
    %v3486 = vshrl.u32 %v3485, 7
    %v3487 = vsub.s32 %v3484, %v3486
    %v3488 = vrot.slane %v3481, %v3487
    %v3490 = vsub.f32 %v3435, %v3488
    %v3491 = vmul.f32 %v2947, %v3440
    %v3492 = vmul.f32 %v2949, %v3444
    %v3493 = vmul.f32 %v3265, %v3448
    %v3494 = vmul.f32 %v3267, %v3452
    %v3495 = vmul.f32 %v2951, %v3440
    %v3496 = vmul.f32 %v2953, %v3444
    %v3497 = vmul.f32 %v3269, %v3448
    %v3498 = vmul.f32 %v3271, %v3452
    %v3499 = vmul.f32 %v2957, %v3440
    %v3500 = vmul.f32 %v2959, %v3444
    %v3501 = vmul.f32 %v3275, %v3448
    %v3502 = vmul.f32 %v3277, %v3452
    %v3503 = vmul.f32 %v2961, %v3440
    %v3504 = vmul.f32 %v2963, %v3444
    %v3505 = vmul.f32 %v3279, %v3448
    %v3506 = vmul.f32 %v3281, %v3452
    %v3508 = vlaneseq
    %v3509 = vshrl.u32 %v3508, 7
    %v3510 = vsub.s32 0, %v3509
    %v3511 = vrot.slane %v3490, %v3510
    %v3512 = vlaneseq
    %v3513 = vshrl.u32 %v3512, 7
    %v3514 = vsub.s32 1, %v3513
    %v3515 = vrot.slane %v3490, %v3514
    %v3516 = vlaneseq
    %v3517 = vshrl.u32 %v3516, 7
    %v3518 = vsub.s32 2, %v3517
    %v3519 = vrot.slane %v3490, %v3518
    %v3520 = vlaneseq
    %v3521 = vshrl.u32 %v3520, 7
    %v3522 = vsub.s32 3, %v3521
    %v3523 = vrot.slane %v3490, %v3522
    %v3528 = vadd.f32 %v3491, %v3511
    %v3529 = vadd.f32 %v3492, %v3515
    %v3530 = vadd.f32 %v3493, %v3519
    %v3531 = vadd.f32 %v3494, %v3523
    %v3532 = vadd.f32 %v3495, %v3511
    %v3533 = vadd.f32 %v3496, %v3515
    %v3534 = vadd.f32 %v3497, %v3519
    %v3535 = vadd.f32 %v3498, %v3523
    %v3536 = vadd.f32 %v3499, %v3511
    %v3537 = vadd.f32 %v3500, %v3515
    %v3538 = vadd.f32 %v3501, %v3519
    %v3539 = vadd.f32 %v3502, %v3523
    %v3540 = vadd.f32 %v3503, %v3511
    %v3541 = vadd.f32 %v3504, %v3515
    %v3542 = vadd.f32 %v3505, %v3519
    %v3543 = vadd.f32 %v3506, %v3523
    %v3544 = vmax.f32 %v3528, 0.0
    %v3545 = vmax.f32 %v3529, 0.0
    %v3546 = vmax.f32 %v3530, 0.0
    %v3547 = vmax.f32 %v3531, 0.0
    %v3548 = vmax.f32 %v3532, 0.0
    %v3549 = vmax.f32 %v3533, 0.0
    %v3550 = vmax.f32 %v3534, 0.0
    %v3551 = vmax.f32 %v3535, 0.0
    %v3552 = vmax.f32 %v3536, 0.0
    %v3553 = vmax.f32 %v3537, 0.0
    %v3554 = vmax.f32 %v3538, 0.0
    %v3555 = vmax.f32 %v3539, 0.0
    %v3556 = vmax.f32 %v3540, 0.0
    %v3557 = vmax.f32 %v3541, 0.0
    %v3558 = vmax.f32 %v3542, 0.0
    %v3559 = vmax.f32 %v3543, 0.0
    %v3568 = vrot.slane %v3544, 7
    %v3569 = vrot.slane %v3545, 7
    %v3570 = vrot.slane %v3546, 7
    %v3571 = vrot.slane %v3547, 7
    %v3572 = vrot.slane %v3548, 7
    %v3573 = vsel %vm213, %v3568, %v3572
    %v3574 = vrot.slane %v3549, 7
    %v3575 = vsel %vm213, %v3569, %v3574
    %v3576 = vrot.slane %v3550, 7
    %v3577 = vsel %vm213, %v3570, %v3576
    %v3578 = vrot.slane %v3551, 7
    %v3579 = vsel %vm213, %v3571, %v3578
    %v3596 = vrot.slane %v3552, 7
    %v3597 = vrot.slane %v3553, 7
    %v3598 = vrot.slane %v3554, 7
    %v3599 = vrot.slane %v3555, 7
    %v3600 = vrot.slane %v3556, 7
    %v3601 = vsel %vm213, %v3596, %v3600
    %v3602 = vrot.slane %v3557, 7
    %v3603 = vsel %vm213, %v3597, %v3602
    %v3604 = vrot.slane %v3558, 7
    %v3605 = vsel %vm213, %v3598, %v3604
    %v3606 = vrot.slane %v3559, 7
    %v3607 = vsel %vm213, %v3599, %v3606
    %v3616 = vsel %vm213, 0.0, %v3568
    %v3617 = vsel %vm213, 0.0, %v3569
    %v3618 = vsel %vm213, 0.0, %v3570
    %v3619 = vsel %vm213, 0.0, %v3571
    %v3620 = vsel %vm213, 0.0, %v3596
    %v3621 = vsel %vm213, 0.0, %v3597
    %v3622 = vsel %vm213, 0.0, %v3598
    %v3623 = vsel %vm213, 0.0, %v3599
    %v3624 = vrot.slane %v3544, 1
    %v3625 = vrot.slane %v3548, 1
    %v3626 = vsel %vm270, %v3624, %v3625
    %v3627 = vrot.slane %v3545, 1
    %v3628 = vrot.slane %v3549, 1
    %v3629 = vsel %vm270, %v3627, %v3628
    %v3630 = vrot.slane %v3546, 1
    %v3631 = vrot.slane %v3550, 1
    %v3632 = vsel %vm270, %v3630, %v3631
    %v3633 = vrot.slane %v3547, 1
    %v3634 = vrot.slane %v3551, 1
    %v3635 = vsel %vm270, %v3633, %v3634
    %v3644 = vrot.slane %v3552, 1
    %v3645 = vrot.slane %v3556, 1
    %v3646 = vsel %vm270, %v3644, %v3645
    %v3647 = vrot.slane %v3553, 1
    %v3648 = vrot.slane %v3557, 1
    %v3649 = vsel %vm270, %v3647, %v3648
    %v3650 = vrot.slane %v3554, 1
    %v3651 = vrot.slane %v3558, 1
    %v3652 = vsel %vm270, %v3650, %v3651
    %v3653 = vrot.slane %v3555, 1
    %v3654 = vrot.slane %v3559, 1
    %v3655 = vsel %vm270, %v3653, %v3654
    %v3664 = vsel %vm270, %v3625, 0.0
    %v3665 = vsel %vm270, %v3628, 0.0
    %v3666 = vsel %vm270, %v3631, 0.0
    %v3667 = vsel %vm270, %v3634, 0.0
    %v3668 = vsel %vm270, %v3645, 0.0
    %v3669 = vsel %vm270, %v3648, 0.0
    %v3670 = vsel %vm270, %v3651, 0.0
    %v3671 = vsel %vm270, %v3654, 0.0
    %v3672 = vpack.c.bf16 %v3573, %v3616
    %v3673 = vpack.c.bf16 %v3575, %v3617
    %v3674 = vpack.c.bf16 %v3577, %v3618
    %v3675 = vpack.c.bf16 %v3579, %v3619
    %v3676 = vpack.c.bf16 %v3548, %v3544
    %v3677 = vpack.c.bf16 %v3549, %v3545
    %v3678 = vpack.c.bf16 %v3550, %v3546
    %v3679 = vpack.c.bf16 %v3551, %v3547
    %v3680 = vpack.c.bf16 %v3664, %v3626
    %v3681 = vpack.c.bf16 %v3665, %v3629
    %v3682 = vpack.c.bf16 %v3666, %v3632
    %v3683 = vpack.c.bf16 %v3667, %v3635
    %v3684 = vpack.c.bf16 %v3601, %v3620
    %v3685 = vpack.c.bf16 %v3603, %v3621
    %v3686 = vpack.c.bf16 %v3605, %v3622
    %v3687 = vpack.c.bf16 %v3607, %v3623
    %v3688 = vpack.c.bf16 %v3556, %v3552
    %v3689 = vpack.c.bf16 %v3557, %v3553
    %v3690 = vpack.c.bf16 %v3558, %v3554
    %v3691 = vpack.c.bf16 %v3559, %v3555
    %v3692 = vpack.c.bf16 %v3668, %v3646
    %v3693 = vpack.c.bf16 %v3669, %v3649
    %v3694 = vpack.c.bf16 %v3670, %v3652
    %v3695 = vpack.c.bf16 %v3671, %v3655
    %v3696 = vld [vmem:[#allocation10] sm:$0xff]
    %v3697 = vld [vmem:[#allocation10 + $0x8] sm:$0xff]
    %v3698 = vld [vmem:[#allocation10 + $0x10] sm:$0xff]
    %v3699 = vld [vmem:[#allocation10 + $0x18] sm:$0xff]
    %v3700 = vld [vmem:[#allocation10 + $0x20] sm:$0xff]
    %v3701 = vld [vmem:[#allocation10 + $0x28] sm:$0xff]
    %v3702 = vld [vmem:[#allocation10 + $0x30] sm:$0xff]
    %v3703 = vld [vmem:[#allocation10 + $0x38] sm:$0xff]
    %v3704 = vld [vmem:[#allocation10 + $0x40] sm:$0xff]
    %v3705 = vld [vmem:[#allocation10 + $0x48] sm:$0xff]
    %v3706 = vld [vmem:[#allocation10 + $0x50] sm:$0xff]
    %v3707 = vld [vmem:[#allocation10 + $0x58] sm:$0xff]
    %v3708 = vld [vmem:[#allocation10 + $0x60] sm:$0xff]
    %v3709 = vld [vmem:[#allocation10 + $0x68] sm:$0xff]
    %v3710 = vld [vmem:[#allocation10 + $0x70] sm:$0xff]
    %v3711 = vld [vmem:[#allocation10 + $0x78] sm:$0xff]
    %v3712 = vld [vmem:[#allocation10 + $0x80] sm:$0xff]
    %v3713 = vld [vmem:[#allocation10 + $0x88] sm:$0xff]
    %v3714 = vld [vmem:[#allocation10 + $0x90] sm:$0xff]
    %v3715 = vld [vmem:[#allocation10 + $0x98] sm:$0xff]
    %v3716 = vld [vmem:[#allocation10 + $0xa0] sm:$0xff]
    %v3717 = vld [vmem:[#allocation10 + $0xa8] sm:$0xff]
    %v3718 = vld [vmem:[#allocation10 + $0xb0] sm:$0xff]
    %v3719 = vld [vmem:[#allocation10 + $0xb8] sm:$0xff]
    %v3720 = vld [vmem:[#allocation10 + $0xc0] sm:$0xff]
    %v3721 = vld [vmem:[#allocation10 + $0xc8] sm:$0xff]
    %v3722 = vld [vmem:[#allocation10 + $0xd0] sm:$0xff]
    %v3723 = vld [vmem:[#allocation10 + $0xd8] sm:$0xff]
    %v3724 = vld [vmem:[#allocation10 + $0xe0] sm:$0xff]
    %v3725 = vld [vmem:[#allocation10 + $0xe8] sm:$0xff]
    %v3726 = vld [vmem:[#allocation10 + $0xf0] sm:$0xff]
    %v3727 = vld [vmem:[#allocation10 + $0xf8] sm:$0xff]
    %v3728 = vld [vmem:[#allocation10 + $0x100] sm:$0xff]
    %v3729 = vld [vmem:[#allocation10 + $0x108] sm:$0xff]
    %v3730 = vld [vmem:[#allocation10 + $0x110] sm:$0xff]
    %v3731 = vld [vmem:[#allocation10 + $0x118] sm:$0xff]
    %v3732 = vld [vmem:[#allocation10 + $0x120] sm:$0xff]
    %v3733 = vld [vmem:[#allocation10 + $0x128] sm:$0xff]
    %v3734 = vld [vmem:[#allocation10 + $0x130] sm:$0xff]
    %v3735 = vld [vmem:[#allocation10 + $0x138] sm:$0xff]
    %v3736 = vld [vmem:[#allocation10 + $0x140] sm:$0xff]
    %v3737 = vld [vmem:[#allocation10 + $0x148] sm:$0xff]
    %v3738 = vld [vmem:[#allocation10 + $0x150] sm:$0xff]
    %v3739 = vld [vmem:[#allocation10 + $0x158] sm:$0xff]
    %v3740 = vld [vmem:[#allocation10 + $0x160] sm:$0xff]
    %v3741 = vld [vmem:[#allocation10 + $0x168] sm:$0xff]
    %v3742 = vld [vmem:[#allocation10 + $0x170] sm:$0xff]
    %v3743 = vld [vmem:[#allocation10 + $0x178] sm:$0xff]
    %v3744 = vld [vmem:[#allocation10 + $0x180] sm:$0xff]
    %v3745 = vld [vmem:[#allocation10 + $0x188] sm:$0xff]
    %v3746 = vld [vmem:[#allocation10 + $0x190] sm:$0xff]
    %v3747 = vld [vmem:[#allocation10 + $0x198] sm:$0xff]
    %v3748 = vld [vmem:[#allocation10 + $0x1a0] sm:$0xff]
    %v3749 = vld [vmem:[#allocation10 + $0x1a8] sm:$0xff]
    %v3750 = vld [vmem:[#allocation10 + $0x1b0] sm:$0xff]
    %v3751 = vld [vmem:[#allocation10 + $0x1b8] sm:$0xff]
    %v3752 = vld [vmem:[#allocation10 + $0x1c0] sm:$0xff]
    %v3753 = vld [vmem:[#allocation10 + $0x1c8] sm:$0xff]
    %v3754 = vld [vmem:[#allocation10 + $0x1d0] sm:$0xff]
    %v3755 = vld [vmem:[#allocation10 + $0x1d8] sm:$0xff]
    %v3756 = vld [vmem:[#allocation10 + $0x1e0] sm:$0xff]
    %v3757 = vld [vmem:[#allocation10 + $0x1e8] sm:$0xff]
    %v3758 = vld [vmem:[#allocation10 + $0x1f0] sm:$0xff]
    %v3759 = vld [vmem:[#allocation10 + $0x1f8] sm:$0xff]
    %v3760 = vld [vmem:[#allocation10 + $0x200] sm:$0xff]
    %v3761 = vld [vmem:[#allocation10 + $0x208] sm:$0xff]
    %v3762 = vld [vmem:[#allocation10 + $0x210] sm:$0xff]
    %v3763 = vld [vmem:[#allocation10 + $0x218] sm:$0xff]
    %v3764 = vld [vmem:[#allocation10 + $0x220] sm:$0xff]
    %v3765 = vld [vmem:[#allocation10 + $0x228] sm:$0xff]
    %v3766 = vld [vmem:[#allocation10 + $0x230] sm:$0xff]
    %v3767 = vld [vmem:[#allocation10 + $0x238] sm:$0xff]
    %v3768 = vld [vmem:[#allocation10 + $0x240] sm:$0xff]
    %v3769 = vld [vmem:[#allocation10 + $0x248] sm:$0xff]
    %v3770 = vld [vmem:[#allocation10 + $0x250] sm:$0xff]
    %v3771 = vld [vmem:[#allocation10 + $0x258] sm:$0xff]
    %v3772 = vld [vmem:[#allocation10 + $0x260] sm:$0xff]
    %v3773 = vld [vmem:[#allocation10 + $0x268] sm:$0xff]
    %v3774 = vld [vmem:[#allocation10 + $0x270] sm:$0xff]
    %v3775 = vld [vmem:[#allocation10 + $0x278] sm:$0xff]
    %v3776 = vld [vmem:[#allocation10 + $0x280] sm:$0xff]
    %v3777 = vld [vmem:[#allocation10 + $0x288] sm:$0xff]
    %v3778 = vld [vmem:[#allocation10 + $0x290] sm:$0xff]
    %v3779 = vld [vmem:[#allocation10 + $0x298] sm:$0xff]
    %v3780 = vld [vmem:[#allocation10 + $0x2a0] sm:$0xff]
    %v3781 = vld [vmem:[#allocation10 + $0x2a8] sm:$0xff]
    %v3782 = vld [vmem:[#allocation10 + $0x2b0] sm:$0xff]
    %v3783 = vld [vmem:[#allocation10 + $0x2b8] sm:$0xff]
    %v3784 = vld [vmem:[#allocation10 + $0x2c0] sm:$0xff]
    %v3785 = vld [vmem:[#allocation10 + $0x2c8] sm:$0xff]
    %v3786 = vld [vmem:[#allocation10 + $0x2d0] sm:$0xff]
    %v3787 = vld [vmem:[#allocation10 + $0x2d8] sm:$0xff]
    %v3788 = vld [vmem:[#allocation10 + $0x2e0] sm:$0xff]
    %v3789 = vld [vmem:[#allocation10 + $0x2e8] sm:$0xff]
    %v3790 = vld [vmem:[#allocation10 + $0x2f0] sm:$0xff]
    %v3791 = vld [vmem:[#allocation10 + $0x2f8] sm:$0xff]
    %v3792 = vld [vmem:[#allocation10 + $0x300] sm:$0xff]
    %v3793 = vld [vmem:[#allocation10 + $0x308] sm:$0xff]
    %v3794 = vld [vmem:[#allocation10 + $0x310] sm:$0xff]
    %v3795 = vld [vmem:[#allocation10 + $0x318] sm:$0xff]
    %v3796 = vld [vmem:[#allocation10 + $0x320] sm:$0xff]
    %v3797 = vld [vmem:[#allocation10 + $0x328] sm:$0xff]
    %v3798 = vld [vmem:[#allocation10 + $0x330] sm:$0xff]
    %v3799 = vld [vmem:[#allocation10 + $0x338] sm:$0xff]
    %v3800 = vld [vmem:[#allocation10 + $0x340] sm:$0xff]
    %v3801 = vld [vmem:[#allocation10 + $0x348] sm:$0xff]
    %v3802 = vld [vmem:[#allocation10 + $0x350] sm:$0xff]
    %v3803 = vld [vmem:[#allocation10 + $0x358] sm:$0xff]
    %v3804 = vld [vmem:[#allocation10 + $0x360] sm:$0xff]
    %v3805 = vld [vmem:[#allocation10 + $0x368] sm:$0xff]
    %v3806 = vld [vmem:[#allocation10 + $0x370] sm:$0xff]
    %v3807 = vld [vmem:[#allocation10 + $0x378] sm:$0xff]
    %v3808 = vld [vmem:[#allocation10 + $0x380] sm:$0xff]
    %v3809 = vld [vmem:[#allocation10 + $0x388] sm:$0xff]
    %v3810 = vld [vmem:[#allocation10 + $0x390] sm:$0xff]
    %v3811 = vld [vmem:[#allocation10 + $0x398] sm:$0xff]
    %v3812 = vld [vmem:[#allocation10 + $0x3a0] sm:$0xff]
    %v3813 = vld [vmem:[#allocation10 + $0x3a8] sm:$0xff]
    %v3814 = vld [vmem:[#allocation10 + $0x3b0] sm:$0xff]
    %v3815 = vld [vmem:[#allocation10 + $0x3b8] sm:$0xff]
    %v3816 = vld [vmem:[#allocation10 + $0x3c0] sm:$0xff]
    %v3817 = vld [vmem:[#allocation10 + $0x3c8] sm:$0xff]
    %v3818 = vld [vmem:[#allocation10 + $0x3d0] sm:$0xff]
    %v3819 = vld [vmem:[#allocation10 + $0x3d8] sm:$0xff]
    %v3820 = vld [vmem:[#allocation10 + $0x3e0] sm:$0xff]
    %v3821 = vld [vmem:[#allocation10 + $0x3e8] sm:$0xff]
    %v3822 = vld [vmem:[#allocation10 + $0x3f0] sm:$0xff]
    %v3823 = vld [vmem:[#allocation10 + $0x3f8] sm:$0xff]
    %v3824 = vld [vmem:[#allocation10 + $0x400] sm:$0xff]
    %v3825 = vld [vmem:[#allocation10 + $0x408] sm:$0xff]
    %v3826 = vld [vmem:[#allocation10 + $0x410] sm:$0xff]
    %v3827 = vld [vmem:[#allocation10 + $0x418] sm:$0xff]
    %v3828 = vld [vmem:[#allocation10 + $0x420] sm:$0xff]
    %v3829 = vld [vmem:[#allocation10 + $0x428] sm:$0xff]
    %v3830 = vld [vmem:[#allocation10 + $0x430] sm:$0xff]
    %v3831 = vld [vmem:[#allocation10 + $0x438] sm:$0xff]
    %v3832 = vld [vmem:[#allocation10 + $0x440] sm:$0xff]
    %v3833 = vld [vmem:[#allocation10 + $0x448] sm:$0xff]
    %v3834 = vld [vmem:[#allocation10 + $0x450] sm:$0xff]
    %v3835 = vld [vmem:[#allocation10 + $0x458] sm:$0xff]
    %v3836 = vld [vmem:[#allocation10 + $0x460] sm:$0xff]
    %v3837 = vld [vmem:[#allocation10 + $0x468] sm:$0xff]
    %v3838 = vld [vmem:[#allocation10 + $0x470] sm:$0xff]
    %v3839 = vld [vmem:[#allocation10 + $0x478] sm:$0xff]
    %v3840 = vld [vmem:[#allocation10 + $0x480] sm:$0xff]
    %v3841 = vld [vmem:[#allocation10 + $0x488] sm:$0xff]
    %v3842 = vld [vmem:[#allocation10 + $0x490] sm:$0xff]
    %v3843 = vld [vmem:[#allocation10 + $0x498] sm:$0xff]
    %v3844 = vld [vmem:[#allocation10 + $0x4a0] sm:$0xff]
    %v3845 = vld [vmem:[#allocation10 + $0x4a8] sm:$0xff]
    %v3846 = vld [vmem:[#allocation10 + $0x4b0] sm:$0xff]
    %v3847 = vld [vmem:[#allocation10 + $0x4b8] sm:$0xff]
    %v3848 = vld [vmem:[#allocation10 + $0x4c0] sm:$0xff]
    %v3849 = vld [vmem:[#allocation10 + $0x4c8] sm:$0xff]
    %v3850 = vld [vmem:[#allocation10 + $0x4d0] sm:$0xff]
    %v3851 = vld [vmem:[#allocation10 + $0x4d8] sm:$0xff]
    %v3852 = vld [vmem:[#allocation10 + $0x4e0] sm:$0xff]
    %v3853 = vld [vmem:[#allocation10 + $0x4e8] sm:$0xff]
    %v3854 = vld [vmem:[#allocation10 + $0x4f0] sm:$0xff]
    %v3855 = vld [vmem:[#allocation10 + $0x4f8] sm:$0xff]
    %v3856 = vld [vmem:[#allocation10 + $0x500] sm:$0xff]
    %v3857 = vld [vmem:[#allocation10 + $0x508] sm:$0xff]
    %v3858 = vld [vmem:[#allocation10 + $0x510] sm:$0xff]
    %v3859 = vld [vmem:[#allocation10 + $0x518] sm:$0xff]
    %v3860 = vld [vmem:[#allocation10 + $0x520] sm:$0xff]
    %v3861 = vld [vmem:[#allocation10 + $0x528] sm:$0xff]
    %v3862 = vld [vmem:[#allocation10 + $0x530] sm:$0xff]
    %v3863 = vld [vmem:[#allocation10 + $0x538] sm:$0xff]
    %v3864 = vld [vmem:[#allocation10 + $0x540] sm:$0xff]
    %v3865 = vld [vmem:[#allocation10 + $0x548] sm:$0xff]
    %v3866 = vld [vmem:[#allocation10 + $0x550] sm:$0xff]
    %v3867 = vld [vmem:[#allocation10 + $0x558] sm:$0xff]
    %v3868 = vld [vmem:[#allocation10 + $0x560] sm:$0xff]
    %v3869 = vld [vmem:[#allocation10 + $0x568] sm:$0xff]
    %v3870 = vld [vmem:[#allocation10 + $0x570] sm:$0xff]
    %v3871 = vld [vmem:[#allocation10 + $0x578] sm:$0xff]
    %v3872 = vld [vmem:[#allocation10 + $0x580] sm:$0xff]
    %v3873 = vld [vmem:[#allocation10 + $0x588] sm:$0xff]
    %v3874 = vld [vmem:[#allocation10 + $0x590] sm:$0xff]
    %v3875 = vld [vmem:[#allocation10 + $0x598] sm:$0xff]
    %v3876 = vld [vmem:[#allocation10 + $0x5a0] sm:$0xff]
    %v3877 = vld [vmem:[#allocation10 + $0x5a8] sm:$0xff]
    %v3878 = vld [vmem:[#allocation10 + $0x5b0] sm:$0xff]
    %v3879 = vld [vmem:[#allocation10 + $0x5b8] sm:$0xff]
    %v3880 = vld [vmem:[#allocation10 + $0x5c0] sm:$0xff]
    %v3881 = vld [vmem:[#allocation10 + $0x5c8] sm:$0xff]
    %v3882 = vld [vmem:[#allocation10 + $0x5d0] sm:$0xff]
    %v3883 = vld [vmem:[#allocation10 + $0x5d8] sm:$0xff]
    %v3884 = vld [vmem:[#allocation10 + $0x5e0] sm:$0xff]
    %v3885 = vld [vmem:[#allocation10 + $0x5e8] sm:$0xff]
    %v3886 = vld [vmem:[#allocation10 + $0x5f0] sm:$0xff]
    %v3887 = vld [vmem:[#allocation10 + $0x5f8] sm:$0xff]
    %v3888 = vld [vmem:[#allocation10 + $0x600] sm:$0xff]
    %v3889 = vld [vmem:[#allocation10 + $0x608] sm:$0xff]
    %v3890 = vld [vmem:[#allocation10 + $0x610] sm:$0xff]
    %v3891 = vld [vmem:[#allocation10 + $0x618] sm:$0xff]
    %v3892 = vld [vmem:[#allocation10 + $0x620] sm:$0xff]
    %v3893 = vld [vmem:[#allocation10 + $0x628] sm:$0xff]
    %v3894 = vld [vmem:[#allocation10 + $0x630] sm:$0xff]
    %v3895 = vld [vmem:[#allocation10 + $0x638] sm:$0xff]
    %v3896 = vld [vmem:[#allocation10 + $0x640] sm:$0xff]
    %v3897 = vld [vmem:[#allocation10 + $0x648] sm:$0xff]
    %v3898 = vld [vmem:[#allocation10 + $0x650] sm:$0xff]
    %v3899 = vld [vmem:[#allocation10 + $0x658] sm:$0xff]
    %v3900 = vld [vmem:[#allocation10 + $0x660] sm:$0xff]
    %v3901 = vld [vmem:[#allocation10 + $0x668] sm:$0xff]
    %v3902 = vld [vmem:[#allocation10 + $0x670] sm:$0xff]
    %v3903 = vld [vmem:[#allocation10 + $0x678] sm:$0xff]
    %v3904 = vld [vmem:[#allocation10 + $0x680] sm:$0xff]
    %v3905 = vld [vmem:[#allocation10 + $0x688] sm:$0xff]
    %v3906 = vld [vmem:[#allocation10 + $0x690] sm:$0xff]
    %v3907 = vld [vmem:[#allocation10 + $0x698] sm:$0xff]
    %v3908 = vld [vmem:[#allocation10 + $0x6a0] sm:$0xff]
    %v3909 = vld [vmem:[#allocation10 + $0x6a8] sm:$0xff]
    %v3910 = vld [vmem:[#allocation10 + $0x6b0] sm:$0xff]
    %v3911 = vld [vmem:[#allocation10 + $0x6b8] sm:$0xff]
    %v3912 = vld [vmem:[#allocation10 + $0x6c0] sm:$0xff]
    %v3913 = vld [vmem:[#allocation10 + $0x6c8] sm:$0xff]
    %v3914 = vld [vmem:[#allocation10 + $0x6d0] sm:$0xff]
    %v3915 = vld [vmem:[#allocation10 + $0x6d8] sm:$0xff]
    %v3916 = vld [vmem:[#allocation10 + $0x6e0] sm:$0xff]
    %v3917 = vld [vmem:[#allocation10 + $0x6e8] sm:$0xff]
    %v3918 = vld [vmem:[#allocation10 + $0x6f0] sm:$0xff]
    %v3919 = vld [vmem:[#allocation10 + $0x6f8] sm:$0xff]
    %v3920 = vld [vmem:[#allocation10 + $0x700] sm:$0xff]
    %v3921 = vld [vmem:[#allocation10 + $0x708] sm:$0xff]
    %v3922 = vld [vmem:[#allocation10 + $0x710] sm:$0xff]
    %v3923 = vld [vmem:[#allocation10 + $0x718] sm:$0xff]
    %v3924 = vld [vmem:[#allocation10 + $0x720] sm:$0xff]
    %v3925 = vld [vmem:[#allocation10 + $0x728] sm:$0xff]
    %v3926 = vld [vmem:[#allocation10 + $0x730] sm:$0xff]
    %v3927 = vld [vmem:[#allocation10 + $0x738] sm:$0xff]
    %v3928 = vld [vmem:[#allocation10 + $0x740] sm:$0xff]
    %v3929 = vld [vmem:[#allocation10 + $0x748] sm:$0xff]
    %v3930 = vld [vmem:[#allocation10 + $0x750] sm:$0xff]
    %v3931 = vld [vmem:[#allocation10 + $0x758] sm:$0xff]
    %v3932 = vld [vmem:[#allocation10 + $0x760] sm:$0xff]
    %v3933 = vld [vmem:[#allocation10 + $0x768] sm:$0xff]
    %v3934 = vld [vmem:[#allocation10 + $0x770] sm:$0xff]
    %v3935 = vld [vmem:[#allocation10 + $0x778] sm:$0xff]
    %v3936 = vld [vmem:[#allocation10 + $0x780] sm:$0xff]
    %v3937 = vld [vmem:[#allocation10 + $0x788] sm:$0xff]
    %v3938 = vld [vmem:[#allocation10 + $0x790] sm:$0xff]
    %v3939 = vld [vmem:[#allocation10 + $0x798] sm:$0xff]
    %v3940 = vld [vmem:[#allocation10 + $0x7a0] sm:$0xff]
    %v3941 = vld [vmem:[#allocation10 + $0x7a8] sm:$0xff]
    %v3942 = vld [vmem:[#allocation10 + $0x7b0] sm:$0xff]
    %v3943 = vld [vmem:[#allocation10 + $0x7b8] sm:$0xff]
    %v3944 = vld [vmem:[#allocation10 + $0x7c0] sm:$0xff]
    %v3945 = vld [vmem:[#allocation10 + $0x7c8] sm:$0xff]
    %v3946 = vld [vmem:[#allocation10 + $0x7d0] sm:$0xff]
    %v3947 = vld [vmem:[#allocation10 + $0x7d8] sm:$0xff]
    %v3948 = vld [vmem:[#allocation10 + $0x7e0] sm:$0xff]
    %v3949 = vld [vmem:[#allocation10 + $0x7e8] sm:$0xff]
    %v3950 = vld [vmem:[#allocation10 + $0x7f0] sm:$0xff]
    %v3951 = vld [vmem:[#allocation10 + $0x7f8] sm:$0xff]
    %v3952 = vld [vmem:[#allocation10 + $0x800] sm:$0xff]
    %v3953 = vld [vmem:[#allocation10 + $0x808] sm:$0xff]
    %v3954 = vld [vmem:[#allocation10 + $0x810] sm:$0xff]
    %v3955 = vld [vmem:[#allocation10 + $0x818] sm:$0xff]
    %v3956 = vld [vmem:[#allocation10 + $0x820] sm:$0xff]
    %v3957 = vld [vmem:[#allocation10 + $0x828] sm:$0xff]
    %v3958 = vld [vmem:[#allocation10 + $0x830] sm:$0xff]
    %v3959 = vld [vmem:[#allocation10 + $0x838] sm:$0xff]
    %v3960 = vld [vmem:[#allocation10 + $0x840] sm:$0xff]
    %v3961 = vld [vmem:[#allocation10 + $0x848] sm:$0xff]
    %v3962 = vld [vmem:[#allocation10 + $0x850] sm:$0xff]
    %v3963 = vld [vmem:[#allocation10 + $0x858] sm:$0xff]
    %v3964 = vld [vmem:[#allocation10 + $0x860] sm:$0xff]
    %v3965 = vld [vmem:[#allocation10 + $0x868] sm:$0xff]
    %v3966 = vld [vmem:[#allocation10 + $0x870] sm:$0xff]
    %v3967 = vld [vmem:[#allocation10 + $0x878] sm:$0xff]
    %v3968 = vld [vmem:[#allocation10 + $0x880] sm:$0xff]
    %v3969 = vld [vmem:[#allocation10 + $0x888] sm:$0xff]
    %v3970 = vld [vmem:[#allocation10 + $0x890] sm:$0xff]
    %v3971 = vld [vmem:[#allocation10 + $0x898] sm:$0xff]
    %v3972 = vld [vmem:[#allocation10 + $0x8a0] sm:$0xff]
    %v3973 = vld [vmem:[#allocation10 + $0x8a8] sm:$0xff]
    %v3974 = vld [vmem:[#allocation10 + $0x8b0] sm:$0xff]
    %v3975 = vld [vmem:[#allocation10 + $0x8b8] sm:$0xff]
    %v3976 = vld [vmem:[#allocation10 + $0x8c0] sm:$0xff]
    %v3977 = vld [vmem:[#allocation10 + $0x8c8] sm:$0xff]
    %v3978 = vld [vmem:[#allocation10 + $0x8d0] sm:$0xff]
    %v3979 = vld [vmem:[#allocation10 + $0x8d8] sm:$0xff]
    %v3980 = vld [vmem:[#allocation10 + $0x8e0] sm:$0xff]
    %v3981 = vld [vmem:[#allocation10 + $0x8e8] sm:$0xff]
    %v3982 = vld [vmem:[#allocation10 + $0x8f0] sm:$0xff]
    %v3983 = vld [vmem:[#allocation10 + $0x8f8] sm:$0xff]
    %v3984 = vld [vmem:[#allocation10 + $0x900] sm:$0xff]
    %v3985 = vld [vmem:[#allocation10 + $0x908] sm:$0xff]
    %v3986 = vld [vmem:[#allocation10 + $0x910] sm:$0xff]
    %v3987 = vld [vmem:[#allocation10 + $0x918] sm:$0xff]
    %v3988 = vld [vmem:[#allocation10 + $0x920] sm:$0xff]
    %v3989 = vld [vmem:[#allocation10 + $0x928] sm:$0xff]
    %v3990 = vld [vmem:[#allocation10 + $0x930] sm:$0xff]
    %v3991 = vld [vmem:[#allocation10 + $0x938] sm:$0xff]
    %v3992 = vld [vmem:[#allocation10 + $0x940] sm:$0xff]
    %v3993 = vld [vmem:[#allocation10 + $0x948] sm:$0xff]
    %v3994 = vld [vmem:[#allocation10 + $0x950] sm:$0xff]
    %v3995 = vld [vmem:[#allocation10 + $0x958] sm:$0xff]
    %v3996 = vld [vmem:[#allocation10 + $0x960] sm:$0xff]
    %v3997 = vld [vmem:[#allocation10 + $0x968] sm:$0xff]
    %v3998 = vld [vmem:[#allocation10 + $0x970] sm:$0xff]
    %v3999 = vld [vmem:[#allocation10 + $0x978] sm:$0xff]
    %v4000 = vld [vmem:[#allocation10 + $0x980] sm:$0xff]
    %v4001 = vld [vmem:[#allocation10 + $0x988] sm:$0xff]
    %v4002 = vld [vmem:[#allocation10 + $0x990] sm:$0xff]
    %v4003 = vld [vmem:[#allocation10 + $0x998] sm:$0xff]
    %v4004 = vld [vmem:[#allocation10 + $0x9a0] sm:$0xff]
    %v4005 = vld [vmem:[#allocation10 + $0x9a8] sm:$0xff]
    %v4006 = vld [vmem:[#allocation10 + $0x9b0] sm:$0xff]
    %v4007 = vld [vmem:[#allocation10 + $0x9b8] sm:$0xff]
    %v4008 = vld [vmem:[#allocation10 + $0x9c0] sm:$0xff]
    %v4009 = vld [vmem:[#allocation10 + $0x9c8] sm:$0xff]
    %v4010 = vld [vmem:[#allocation10 + $0x9d0] sm:$0xff]
    %v4011 = vld [vmem:[#allocation10 + $0x9d8] sm:$0xff]
    %v4012 = vld [vmem:[#allocation10 + $0x9e0] sm:$0xff]
    %v4013 = vld [vmem:[#allocation10 + $0x9e8] sm:$0xff]
    %v4014 = vld [vmem:[#allocation10 + $0x9f0] sm:$0xff]
    %v4015 = vld [vmem:[#allocation10 + $0x9f8] sm:$0xff]
    %v4016 = vld [vmem:[#allocation10 + $0xa00] sm:$0xff]
    %v4017 = vld [vmem:[#allocation10 + $0xa08] sm:$0xff]
    %v4018 = vld [vmem:[#allocation10 + $0xa10] sm:$0xff]
    %v4019 = vld [vmem:[#allocation10 + $0xa18] sm:$0xff]
    %v4020 = vld [vmem:[#allocation10 + $0xa20] sm:$0xff]
    %v4021 = vld [vmem:[#allocation10 + $0xa28] sm:$0xff]
    %v4022 = vld [vmem:[#allocation10 + $0xa30] sm:$0xff]
    %v4023 = vld [vmem:[#allocation10 + $0xa38] sm:$0xff]
    %v4024 = vld [vmem:[#allocation10 + $0xa40] sm:$0xff]
    %v4025 = vld [vmem:[#allocation10 + $0xa48] sm:$0xff]
    %v4026 = vld [vmem:[#allocation10 + $0xa50] sm:$0xff]
    %v4027 = vld [vmem:[#allocation10 + $0xa58] sm:$0xff]
    %v4028 = vld [vmem:[#allocation10 + $0xa60] sm:$0xff]
    %v4029 = vld [vmem:[#allocation10 + $0xa68] sm:$0xff]
    %v4030 = vld [vmem:[#allocation10 + $0xa70] sm:$0xff]
    %v4031 = vld [vmem:[#allocation10 + $0xa78] sm:$0xff]
    %v4032 = vld [vmem:[#allocation10 + $0xa80] sm:$0xff]
    %v4033 = vld [vmem:[#allocation10 + $0xa88] sm:$0xff]
    %v4034 = vld [vmem:[#allocation10 + $0xa90] sm:$0xff]
    %v4035 = vld [vmem:[#allocation10 + $0xa98] sm:$0xff]
    %v4036 = vld [vmem:[#allocation10 + $0xaa0] sm:$0xff]
    %v4037 = vld [vmem:[#allocation10 + $0xaa8] sm:$0xff]
    %v4038 = vld [vmem:[#allocation10 + $0xab0] sm:$0xff]
    %v4039 = vld [vmem:[#allocation10 + $0xab8] sm:$0xff]
    %v4040 = vld [vmem:[#allocation10 + $0xac0] sm:$0xff]
    %v4041 = vld [vmem:[#allocation10 + $0xac8] sm:$0xff]
    %v4042 = vld [vmem:[#allocation10 + $0xad0] sm:$0xff]
    %v4043 = vld [vmem:[#allocation10 + $0xad8] sm:$0xff]
    %v4044 = vld [vmem:[#allocation10 + $0xae0] sm:$0xff]
    %v4045 = vld [vmem:[#allocation10 + $0xae8] sm:$0xff]
    %v4046 = vld [vmem:[#allocation10 + $0xaf0] sm:$0xff]
    %v4047 = vld [vmem:[#allocation10 + $0xaf8] sm:$0xff]
    %v4048 = vld [vmem:[#allocation10 + $0xb00] sm:$0xff]
    %v4049 = vld [vmem:[#allocation10 + $0xb08] sm:$0xff]
    %v4050 = vld [vmem:[#allocation10 + $0xb10] sm:$0xff]
    %v4051 = vld [vmem:[#allocation10 + $0xb18] sm:$0xff]
    %v4052 = vld [vmem:[#allocation10 + $0xb20] sm:$0xff]
    %v4053 = vld [vmem:[#allocation10 + $0xb28] sm:$0xff]
    %v4054 = vld [vmem:[#allocation10 + $0xb30] sm:$0xff]
    %v4055 = vld [vmem:[#allocation10 + $0xb38] sm:$0xff]
    %v4056 = vld [vmem:[#allocation10 + $0xb40] sm:$0xff]
    %v4057 = vld [vmem:[#allocation10 + $0xb48] sm:$0xff]
    %v4058 = vld [vmem:[#allocation10 + $0xb50] sm:$0xff]
    %v4059 = vld [vmem:[#allocation10 + $0xb58] sm:$0xff]
    %v4060 = vld [vmem:[#allocation10 + $0xb60] sm:$0xff]
    %v4061 = vld [vmem:[#allocation10 + $0xb68] sm:$0xff]
    %v4062 = vld [vmem:[#allocation10 + $0xb70] sm:$0xff]
    %v4063 = vld [vmem:[#allocation10 + $0xb78] sm:$0xff]
    %v4064 = vld [vmem:[#allocation10 + $0xb80] sm:$0xff]
    %v4065 = vld [vmem:[#allocation10 + $0xb88] sm:$0xff]
    %v4066 = vld [vmem:[#allocation10 + $0xb90] sm:$0xff]
    %v4067 = vld [vmem:[#allocation10 + $0xb98] sm:$0xff]
    %v4068 = vld [vmem:[#allocation10 + $0xba0] sm:$0xff]
    %v4069 = vld [vmem:[#allocation10 + $0xba8] sm:$0xff]
    %v4070 = vld [vmem:[#allocation10 + $0xbb0] sm:$0xff]
    %v4071 = vld [vmem:[#allocation10 + $0xbb8] sm:$0xff]
    %v4072 = vld [vmem:[#allocation10 + $0xbc0] sm:$0xff]
    %v4073 = vld [vmem:[#allocation10 + $0xbc8] sm:$0xff]
    %v4074 = vld [vmem:[#allocation10 + $0xbd0] sm:$0xff]
    %v4075 = vld [vmem:[#allocation10 + $0xbd8] sm:$0xff]
    %v4076 = vld [vmem:[#allocation10 + $0xbe0] sm:$0xff]
    %v4077 = vld [vmem:[#allocation10 + $0xbe8] sm:$0xff]
    %v4078 = vld [vmem:[#allocation10 + $0xbf0] sm:$0xff]
    %v4079 = vld [vmem:[#allocation10 + $0xbf8] sm:$0xff]
    %v4464 = vunpack.c.l.b16 %v3696
    %v4465 = vunpack.c.h.b16 %v3696
    %v4466 = vunpack.c.l.b16 %v3697
    %v4467 = vunpack.c.h.b16 %v3697
    %v4468 = vunpack.c.l.b16 %v3698
    %v4469 = vunpack.c.h.b16 %v3698
    %v4470 = vunpack.c.l.b16 %v3699
    %v4471 = vunpack.c.h.b16 %v3699
    %v4472 = vunpack.c.l.b16 %v3700
    %v4473 = vunpack.c.h.b16 %v3700
    %v4474 = vunpack.c.l.b16 %v3701
    %v4475 = vunpack.c.h.b16 %v3701
    %v4476 = vunpack.c.l.b16 %v3702
    %v4477 = vunpack.c.h.b16 %v3702
    %v4478 = vunpack.c.l.b16 %v3703
    %v4479 = vunpack.c.h.b16 %v3703
    %v4480 = vunpack.c.l.b16 %v3704
    %v4481 = vunpack.c.h.b16 %v3704
    %v4482 = vunpack.c.l.b16 %v3705
    %v4483 = vunpack.c.h.b16 %v3705
    %v4484 = vunpack.c.l.b16 %v3706
    %v4485 = vunpack.c.h.b16 %v3706
    %v4486 = vunpack.c.l.b16 %v3707
    %v4487 = vunpack.c.h.b16 %v3707
    %v4488 = vunpack.c.l.b16 %v3708
    %v4489 = vunpack.c.h.b16 %v3708
    %v4490 = vunpack.c.l.b16 %v3709
    %v4491 = vunpack.c.h.b16 %v3709
    %v4492 = vunpack.c.l.b16 %v3710
    %v4493 = vunpack.c.h.b16 %v3710
    %v4494 = vunpack.c.l.b16 %v3711
    %v4495 = vunpack.c.h.b16 %v3711
    %v4496 = vunpack.c.l.b16 %v3712
    %v4497 = vunpack.c.h.b16 %v3712
    %v4498 = vunpack.c.l.b16 %v3713
    %v4499 = vunpack.c.h.b16 %v3713
    %v4500 = vunpack.c.l.b16 %v3714
    %v4501 = vunpack.c.h.b16 %v3714
    %v4502 = vunpack.c.l.b16 %v3715
    %v4503 = vunpack.c.h.b16 %v3715
    %v4504 = vunpack.c.l.b16 %v3716
    %v4505 = vunpack.c.h.b16 %v3716
    %v4506 = vunpack.c.l.b16 %v3717
    %v4507 = vunpack.c.h.b16 %v3717
    %v4508 = vunpack.c.l.b16 %v3718
    %v4509 = vunpack.c.h.b16 %v3718
    %v4510 = vunpack.c.l.b16 %v3719
    %v4511 = vunpack.c.h.b16 %v3719
    %v4512 = vunpack.c.l.b16 %v3720
    %v4513 = vunpack.c.h.b16 %v3720
    %v4514 = vunpack.c.l.b16 %v3721
    %v4515 = vunpack.c.h.b16 %v3721
    %v4516 = vunpack.c.l.b16 %v3722
    %v4517 = vunpack.c.h.b16 %v3722
    %v4518 = vunpack.c.l.b16 %v3723
    %v4519 = vunpack.c.h.b16 %v3723
    %v4520 = vunpack.c.l.b16 %v3724
    %v4521 = vunpack.c.h.b16 %v3724
    %v4522 = vunpack.c.l.b16 %v3725
    %v4523 = vunpack.c.h.b16 %v3725
    %v4524 = vunpack.c.l.b16 %v3726
    %v4525 = vunpack.c.h.b16 %v3726
    %v4526 = vunpack.c.l.b16 %v3727
    %v4527 = vunpack.c.h.b16 %v3727
    %v4528 = vunpack.c.l.b16 %v3728
    %v4529 = vunpack.c.h.b16 %v3728
    %v4530 = vunpack.c.l.b16 %v3729
    %v4531 = vunpack.c.h.b16 %v3729
    %v4532 = vunpack.c.l.b16 %v3730
    %v4533 = vunpack.c.h.b16 %v3730
    %v4534 = vunpack.c.l.b16 %v3731
    %v4535 = vunpack.c.h.b16 %v3731
    %v4536 = vunpack.c.l.b16 %v3732
    %v4537 = vunpack.c.h.b16 %v3732
    %v4538 = vunpack.c.l.b16 %v3733
    %v4539 = vunpack.c.h.b16 %v3733
    %v4540 = vunpack.c.l.b16 %v3734
    %v4541 = vunpack.c.h.b16 %v3734
    %v4542 = vunpack.c.l.b16 %v3735
    %v4543 = vunpack.c.h.b16 %v3735
    %v4544 = vunpack.c.l.b16 %v3736
    %v4545 = vunpack.c.h.b16 %v3736
    %v4546 = vunpack.c.l.b16 %v3737
    %v4547 = vunpack.c.h.b16 %v3737
    %v4548 = vunpack.c.l.b16 %v3738
    %v4549 = vunpack.c.h.b16 %v3738
    %v4550 = vunpack.c.l.b16 %v3739
    %v4551 = vunpack.c.h.b16 %v3739
    %v4552 = vunpack.c.l.b16 %v3740
    %v4553 = vunpack.c.h.b16 %v3740
    %v4554 = vunpack.c.l.b16 %v3741
    %v4555 = vunpack.c.h.b16 %v3741
    %v4556 = vunpack.c.l.b16 %v3742
    %v4557 = vunpack.c.h.b16 %v3742
    %v4558 = vunpack.c.l.b16 %v3743
    %v4559 = vunpack.c.h.b16 %v3743
    %v4560 = vunpack.c.l.b16 %v3744
    %v4561 = vunpack.c.h.b16 %v3744
    %v4562 = vunpack.c.l.b16 %v3745
    %v4563 = vunpack.c.h.b16 %v3745
    %v4564 = vunpack.c.l.b16 %v3746
    %v4565 = vunpack.c.h.b16 %v3746
    %v4566 = vunpack.c.l.b16 %v3747
    %v4567 = vunpack.c.h.b16 %v3747
    %v4568 = vunpack.c.l.b16 %v3748
    %v4569 = vunpack.c.h.b16 %v3748
    %v4570 = vunpack.c.l.b16 %v3749
    %v4571 = vunpack.c.h.b16 %v3749
    %v4572 = vunpack.c.l.b16 %v3750
    %v4573 = vunpack.c.h.b16 %v3750
    %v4574 = vunpack.c.l.b16 %v3751
    %v4575 = vunpack.c.h.b16 %v3751
    %v4576 = vunpack.c.l.b16 %v3752
    %v4577 = vunpack.c.h.b16 %v3752
    %v4578 = vunpack.c.l.b16 %v3753
    %v4579 = vunpack.c.h.b16 %v3753
    %v4580 = vunpack.c.l.b16 %v3754
    %v4581 = vunpack.c.h.b16 %v3754
    %v4582 = vunpack.c.l.b16 %v3755
    %v4583 = vunpack.c.h.b16 %v3755
    %v4584 = vunpack.c.l.b16 %v3756
    %v4585 = vunpack.c.h.b16 %v3756
    %v4586 = vunpack.c.l.b16 %v3757
    %v4587 = vunpack.c.h.b16 %v3757
    %v4588 = vunpack.c.l.b16 %v3758
    %v4589 = vunpack.c.h.b16 %v3758
    %v4590 = vunpack.c.l.b16 %v3759
    %v4591 = vunpack.c.h.b16 %v3759
    %v4592 = vunpack.c.l.b16 %v3760
    %v4593 = vunpack.c.h.b16 %v3760
    %v4594 = vunpack.c.l.b16 %v3761
    %v4595 = vunpack.c.h.b16 %v3761
    %v4596 = vunpack.c.l.b16 %v3762
    %v4597 = vunpack.c.h.b16 %v3762
    %v4598 = vunpack.c.l.b16 %v3763
    %v4599 = vunpack.c.h.b16 %v3763
    %v4600 = vunpack.c.l.b16 %v3764
    %v4601 = vunpack.c.h.b16 %v3764
    %v4602 = vunpack.c.l.b16 %v3765
    %v4603 = vunpack.c.h.b16 %v3765
    %v4604 = vunpack.c.l.b16 %v3766
    %v4605 = vunpack.c.h.b16 %v3766
    %v4606 = vunpack.c.l.b16 %v3767
    %v4607 = vunpack.c.h.b16 %v3767
    %v4608 = vunpack.c.l.b16 %v3768
    %v4609 = vunpack.c.h.b16 %v3768
    %v4610 = vunpack.c.l.b16 %v3769
    %v4611 = vunpack.c.h.b16 %v3769
    %v4612 = vunpack.c.l.b16 %v3770
    %v4613 = vunpack.c.h.b16 %v3770
    %v4614 = vunpack.c.l.b16 %v3771
    %v4615 = vunpack.c.h.b16 %v3771
    %v4616 = vunpack.c.l.b16 %v3772
    %v4617 = vunpack.c.h.b16 %v3772
    %v4618 = vunpack.c.l.b16 %v3773
    %v4619 = vunpack.c.h.b16 %v3773
    %v4620 = vunpack.c.l.b16 %v3774
    %v4621 = vunpack.c.h.b16 %v3774
    %v4622 = vunpack.c.l.b16 %v3775
    %v4623 = vunpack.c.h.b16 %v3775
    %v4624 = vunpack.c.l.b16 %v3776
    %v4625 = vunpack.c.h.b16 %v3776
    %v4626 = vunpack.c.l.b16 %v3777
    %v4627 = vunpack.c.h.b16 %v3777
    %v4628 = vunpack.c.l.b16 %v3778
    %v4629 = vunpack.c.h.b16 %v3778
    %v4630 = vunpack.c.l.b16 %v3779
    %v4631 = vunpack.c.h.b16 %v3779
    %v4632 = vunpack.c.l.b16 %v3780
    %v4633 = vunpack.c.h.b16 %v3780
    %v4634 = vunpack.c.l.b16 %v3781
    %v4635 = vunpack.c.h.b16 %v3781
    %v4636 = vunpack.c.l.b16 %v3782
    %v4637 = vunpack.c.h.b16 %v3782
    %v4638 = vunpack.c.l.b16 %v3783
    %v4639 = vunpack.c.h.b16 %v3783
    %v4640 = vunpack.c.l.b16 %v3784
    %v4641 = vunpack.c.h.b16 %v3784
    %v4642 = vunpack.c.l.b16 %v3785
    %v4643 = vunpack.c.h.b16 %v3785
    %v4644 = vunpack.c.l.b16 %v3786
    %v4645 = vunpack.c.h.b16 %v3786
    %v4646 = vunpack.c.l.b16 %v3787
    %v4647 = vunpack.c.h.b16 %v3787
    %v4648 = vunpack.c.l.b16 %v3788
    %v4649 = vunpack.c.h.b16 %v3788
    %v4650 = vunpack.c.l.b16 %v3789
    %v4651 = vunpack.c.h.b16 %v3789
    %v4652 = vunpack.c.l.b16 %v3790
    %v4653 = vunpack.c.h.b16 %v3790
    %v4654 = vunpack.c.l.b16 %v3791
    %v4655 = vunpack.c.h.b16 %v3791
    %v4656 = vunpack.c.l.b16 %v3792
    %v4657 = vunpack.c.h.b16 %v3792
    %v4658 = vunpack.c.l.b16 %v3793
    %v4659 = vunpack.c.h.b16 %v3793
    %v4660 = vunpack.c.l.b16 %v3794
    %v4661 = vunpack.c.h.b16 %v3794
    %v4662 = vunpack.c.l.b16 %v3795
    %v4663 = vunpack.c.h.b16 %v3795
    %v4664 = vunpack.c.l.b16 %v3796
    %v4665 = vunpack.c.h.b16 %v3796
    %v4666 = vunpack.c.l.b16 %v3797
    %v4667 = vunpack.c.h.b16 %v3797
    %v4668 = vunpack.c.l.b16 %v3798
    %v4669 = vunpack.c.h.b16 %v3798
    %v4670 = vunpack.c.l.b16 %v3799
    %v4671 = vunpack.c.h.b16 %v3799
    %v4672 = vunpack.c.l.b16 %v3800
    %v4673 = vunpack.c.h.b16 %v3800
    %v4674 = vunpack.c.l.b16 %v3801
    %v4675 = vunpack.c.h.b16 %v3801
    %v4676 = vunpack.c.l.b16 %v3802
    %v4677 = vunpack.c.h.b16 %v3802
    %v4678 = vunpack.c.l.b16 %v3803
    %v4679 = vunpack.c.h.b16 %v3803
    %v4680 = vunpack.c.l.b16 %v3804
    %v4681 = vunpack.c.h.b16 %v3804
    %v4682 = vunpack.c.l.b16 %v3805
    %v4683 = vunpack.c.h.b16 %v3805
    %v4684 = vunpack.c.l.b16 %v3806
    %v4685 = vunpack.c.h.b16 %v3806
    %v4686 = vunpack.c.l.b16 %v3807
    %v4687 = vunpack.c.h.b16 %v3807
    %v4688 = vunpack.c.l.b16 %v3808
    %v4689 = vunpack.c.h.b16 %v3808
    %v4690 = vunpack.c.l.b16 %v3809
    %v4691 = vunpack.c.h.b16 %v3809
    %v4692 = vunpack.c.l.b16 %v3810
    %v4693 = vunpack.c.h.b16 %v3810
    %v4694 = vunpack.c.l.b16 %v3811
    %v4695 = vunpack.c.h.b16 %v3811
    %v4696 = vunpack.c.l.b16 %v3812
    %v4697 = vunpack.c.h.b16 %v3812
    %v4698 = vunpack.c.l.b16 %v3813
    %v4699 = vunpack.c.h.b16 %v3813
    %v4700 = vunpack.c.l.b16 %v3814
    %v4701 = vunpack.c.h.b16 %v3814
    %v4702 = vunpack.c.l.b16 %v3815
    %v4703 = vunpack.c.h.b16 %v3815
    %v4704 = vunpack.c.l.b16 %v3816
    %v4705 = vunpack.c.h.b16 %v3816
    %v4706 = vunpack.c.l.b16 %v3817
    %v4707 = vunpack.c.h.b16 %v3817
    %v4708 = vunpack.c.l.b16 %v3818
    %v4709 = vunpack.c.h.b16 %v3818
    %v4710 = vunpack.c.l.b16 %v3819
    %v4711 = vunpack.c.h.b16 %v3819
    %v4712 = vunpack.c.l.b16 %v3820
    %v4713 = vunpack.c.h.b16 %v3820
    %v4714 = vunpack.c.l.b16 %v3821
    %v4715 = vunpack.c.h.b16 %v3821
    %v4716 = vunpack.c.l.b16 %v3822
    %v4717 = vunpack.c.h.b16 %v3822
    %v4718 = vunpack.c.l.b16 %v3823
    %v4719 = vunpack.c.h.b16 %v3823
    %v4720 = vunpack.c.l.b16 %v3824
    %v4721 = vunpack.c.h.b16 %v3824
    %v4722 = vunpack.c.l.b16 %v3825
    %v4723 = vunpack.c.h.b16 %v3825
    %v4724 = vunpack.c.l.b16 %v3826
    %v4725 = vunpack.c.h.b16 %v3826
    %v4726 = vunpack.c.l.b16 %v3827
    %v4727 = vunpack.c.h.b16 %v3827
    %v4728 = vunpack.c.l.b16 %v3828
    %v4729 = vunpack.c.h.b16 %v3828
    %v4730 = vunpack.c.l.b16 %v3829
    %v4731 = vunpack.c.h.b16 %v3829
    %v4732 = vunpack.c.l.b16 %v3830
    %v4733 = vunpack.c.h.b16 %v3830
    %v4734 = vunpack.c.l.b16 %v3831
    %v4735 = vunpack.c.h.b16 %v3831
    %v4736 = vunpack.c.l.b16 %v3832
    %v4737 = vunpack.c.h.b16 %v3832
    %v4738 = vunpack.c.l.b16 %v3833
    %v4739 = vunpack.c.h.b16 %v3833
    %v4740 = vunpack.c.l.b16 %v3834
    %v4741 = vunpack.c.h.b16 %v3834
    %v4742 = vunpack.c.l.b16 %v3835
    %v4743 = vunpack.c.h.b16 %v3835
    %v4744 = vunpack.c.l.b16 %v3836
    %v4745 = vunpack.c.h.b16 %v3836
    %v4746 = vunpack.c.l.b16 %v3837
    %v4747 = vunpack.c.h.b16 %v3837
    %v4748 = vunpack.c.l.b16 %v3838
    %v4749 = vunpack.c.h.b16 %v3838
    %v4750 = vunpack.c.l.b16 %v3839
    %v4751 = vunpack.c.h.b16 %v3839
    %v4752 = vunpack.c.l.b16 %v3840
    %v4753 = vunpack.c.h.b16 %v3840
    %v4754 = vunpack.c.l.b16 %v3841
    %v4755 = vunpack.c.h.b16 %v3841
    %v4756 = vunpack.c.l.b16 %v3842
    %v4757 = vunpack.c.h.b16 %v3842
    %v4758 = vunpack.c.l.b16 %v3843
    %v4759 = vunpack.c.h.b16 %v3843
    %v4760 = vunpack.c.l.b16 %v3844
    %v4761 = vunpack.c.h.b16 %v3844
    %v4762 = vunpack.c.l.b16 %v3845
    %v4763 = vunpack.c.h.b16 %v3845
    %v4764 = vunpack.c.l.b16 %v3846
    %v4765 = vunpack.c.h.b16 %v3846
    %v4766 = vunpack.c.l.b16 %v3847
    %v4767 = vunpack.c.h.b16 %v3847
    %v4768 = vunpack.c.l.b16 %v3848
    %v4769 = vunpack.c.h.b16 %v3848
    %v4770 = vunpack.c.l.b16 %v3849
    %v4771 = vunpack.c.h.b16 %v3849
    %v4772 = vunpack.c.l.b16 %v3850
    %v4773 = vunpack.c.h.b16 %v3850
    %v4774 = vunpack.c.l.b16 %v3851
    %v4775 = vunpack.c.h.b16 %v3851
    %v4776 = vunpack.c.l.b16 %v3852
    %v4777 = vunpack.c.h.b16 %v3852
    %v4778 = vunpack.c.l.b16 %v3853
    %v4779 = vunpack.c.h.b16 %v3853
    %v4780 = vunpack.c.l.b16 %v3854
    %v4781 = vunpack.c.h.b16 %v3854
    %v4782 = vunpack.c.l.b16 %v3855
    %v4783 = vunpack.c.h.b16 %v3855
    %v4784 = vunpack.c.l.b16 %v3856
    %v4785 = vunpack.c.h.b16 %v3856
    %v4786 = vunpack.c.l.b16 %v3857
    %v4787 = vunpack.c.h.b16 %v3857
    %v4788 = vunpack.c.l.b16 %v3858
    %v4789 = vunpack.c.h.b16 %v3858
    %v4790 = vunpack.c.l.b16 %v3859
    %v4791 = vunpack.c.h.b16 %v3859
    %v4792 = vunpack.c.l.b16 %v3860
    %v4793 = vunpack.c.h.b16 %v3860
    %v4794 = vunpack.c.l.b16 %v3861
    %v4795 = vunpack.c.h.b16 %v3861
    %v4796 = vunpack.c.l.b16 %v3862
    %v4797 = vunpack.c.h.b16 %v3862
    %v4798 = vunpack.c.l.b16 %v3863
    %v4799 = vunpack.c.h.b16 %v3863
    %v4800 = vunpack.c.l.b16 %v3864
    %v4801 = vunpack.c.h.b16 %v3864
    %v4802 = vunpack.c.l.b16 %v3865
    %v4803 = vunpack.c.h.b16 %v3865
    %v4804 = vunpack.c.l.b16 %v3866
    %v4805 = vunpack.c.h.b16 %v3866
    %v4806 = vunpack.c.l.b16 %v3867
    %v4807 = vunpack.c.h.b16 %v3867
    %v4808 = vunpack.c.l.b16 %v3868
    %v4809 = vunpack.c.h.b16 %v3868
    %v4810 = vunpack.c.l.b16 %v3869
    %v4811 = vunpack.c.h.b16 %v3869
    %v4812 = vunpack.c.l.b16 %v3870
    %v4813 = vunpack.c.h.b16 %v3870
    %v4814 = vunpack.c.l.b16 %v3871
    %v4815 = vunpack.c.h.b16 %v3871
    %v4816 = vunpack.c.l.b16 %v3872
    %v4817 = vunpack.c.h.b16 %v3872
    %v4818 = vunpack.c.l.b16 %v3873
    %v4819 = vunpack.c.h.b16 %v3873
    %v4820 = vunpack.c.l.b16 %v3874
    %v4821 = vunpack.c.h.b16 %v3874
    %v4822 = vunpack.c.l.b16 %v3875
    %v4823 = vunpack.c.h.b16 %v3875
    %v4824 = vunpack.c.l.b16 %v3876
    %v4825 = vunpack.c.h.b16 %v3876
    %v4826 = vunpack.c.l.b16 %v3877
    %v4827 = vunpack.c.h.b16 %v3877
    %v4828 = vunpack.c.l.b16 %v3878
    %v4829 = vunpack.c.h.b16 %v3878
    %v4830 = vunpack.c.l.b16 %v3879
    %v4831 = vunpack.c.h.b16 %v3879
    %v4832 = vunpack.c.l.b16 %v3880
    %v4833 = vunpack.c.h.b16 %v3880
    %v4834 = vunpack.c.l.b16 %v3881
    %v4835 = vunpack.c.h.b16 %v3881
    %v4836 = vunpack.c.l.b16 %v3882
    %v4837 = vunpack.c.h.b16 %v3882
    %v4838 = vunpack.c.l.b16 %v3883
    %v4839 = vunpack.c.h.b16 %v3883
    %v4840 = vunpack.c.l.b16 %v3884
    %v4841 = vunpack.c.h.b16 %v3884
    %v4842 = vunpack.c.l.b16 %v3885
    %v4843 = vunpack.c.h.b16 %v3885
    %v4844 = vunpack.c.l.b16 %v3886
    %v4845 = vunpack.c.h.b16 %v3886
    %v4846 = vunpack.c.l.b16 %v3887
    %v4847 = vunpack.c.h.b16 %v3887
    %v4848 = vunpack.c.l.b16 %v3888
    %v4849 = vunpack.c.h.b16 %v3888
    %v4850 = vunpack.c.l.b16 %v3889
    %v4851 = vunpack.c.h.b16 %v3889
    %v4852 = vunpack.c.l.b16 %v3890
    %v4853 = vunpack.c.h.b16 %v3890
    %v4854 = vunpack.c.l.b16 %v3891
    %v4855 = vunpack.c.h.b16 %v3891
    %v4856 = vunpack.c.l.b16 %v3892
    %v4857 = vunpack.c.h.b16 %v3892
    %v4858 = vunpack.c.l.b16 %v3893
    %v4859 = vunpack.c.h.b16 %v3893
    %v4860 = vunpack.c.l.b16 %v3894
    %v4861 = vunpack.c.h.b16 %v3894
    %v4862 = vunpack.c.l.b16 %v3895
    %v4863 = vunpack.c.h.b16 %v3895
    %v4864 = vunpack.c.l.b16 %v3896
    %v4865 = vunpack.c.h.b16 %v3896
    %v4866 = vunpack.c.l.b16 %v3897
    %v4867 = vunpack.c.h.b16 %v3897
    %v4868 = vunpack.c.l.b16 %v3898
    %v4869 = vunpack.c.h.b16 %v3898
    %v4870 = vunpack.c.l.b16 %v3899
    %v4871 = vunpack.c.h.b16 %v3899
    %v4872 = vunpack.c.l.b16 %v3900
    %v4873 = vunpack.c.h.b16 %v3900
    %v4874 = vunpack.c.l.b16 %v3901
    %v4875 = vunpack.c.h.b16 %v3901
    %v4876 = vunpack.c.l.b16 %v3902
    %v4877 = vunpack.c.h.b16 %v3902
    %v4878 = vunpack.c.l.b16 %v3903
    %v4879 = vunpack.c.h.b16 %v3903
    %v4880 = vunpack.c.l.b16 %v3904
    %v4881 = vunpack.c.h.b16 %v3904
    %v4882 = vunpack.c.l.b16 %v3905
    %v4883 = vunpack.c.h.b16 %v3905
    %v4884 = vunpack.c.l.b16 %v3906
    %v4885 = vunpack.c.h.b16 %v3906
    %v4886 = vunpack.c.l.b16 %v3907
    %v4887 = vunpack.c.h.b16 %v3907
    %v4888 = vunpack.c.l.b16 %v3908
    %v4889 = vunpack.c.h.b16 %v3908
    %v4890 = vunpack.c.l.b16 %v3909
    %v4891 = vunpack.c.h.b16 %v3909
    %v4892 = vunpack.c.l.b16 %v3910
    %v4893 = vunpack.c.h.b16 %v3910
    %v4894 = vunpack.c.l.b16 %v3911
    %v4895 = vunpack.c.h.b16 %v3911
    %v4896 = vunpack.c.l.b16 %v3912
    %v4897 = vunpack.c.h.b16 %v3912
    %v4898 = vunpack.c.l.b16 %v3913
    %v4899 = vunpack.c.h.b16 %v3913
    %v4900 = vunpack.c.l.b16 %v3914
    %v4901 = vunpack.c.h.b16 %v3914
    %v4902 = vunpack.c.l.b16 %v3915
    %v4903 = vunpack.c.h.b16 %v3915
    %v4904 = vunpack.c.l.b16 %v3916
    %v4905 = vunpack.c.h.b16 %v3916
    %v4906 = vunpack.c.l.b16 %v3917
    %v4907 = vunpack.c.h.b16 %v3917
    %v4908 = vunpack.c.l.b16 %v3918
    %v4909 = vunpack.c.h.b16 %v3918
    %v4910 = vunpack.c.l.b16 %v3919
    %v4911 = vunpack.c.h.b16 %v3919
    %v4912 = vunpack.c.l.b16 %v3920
    %v4913 = vunpack.c.h.b16 %v3920
    %v4914 = vunpack.c.l.b16 %v3921
    %v4915 = vunpack.c.h.b16 %v3921
    %v4916 = vunpack.c.l.b16 %v3922
    %v4917 = vunpack.c.h.b16 %v3922
    %v4918 = vunpack.c.l.b16 %v3923
    %v4919 = vunpack.c.h.b16 %v3923
    %v4920 = vunpack.c.l.b16 %v3924
    %v4921 = vunpack.c.h.b16 %v3924
    %v4922 = vunpack.c.l.b16 %v3925
    %v4923 = vunpack.c.h.b16 %v3925
    %v4924 = vunpack.c.l.b16 %v3926
    %v4925 = vunpack.c.h.b16 %v3926
    %v4926 = vunpack.c.l.b16 %v3927
    %v4927 = vunpack.c.h.b16 %v3927
    %v4928 = vunpack.c.l.b16 %v3928
    %v4929 = vunpack.c.h.b16 %v3928
    %v4930 = vunpack.c.l.b16 %v3929
    %v4931 = vunpack.c.h.b16 %v3929
    %v4932 = vunpack.c.l.b16 %v3930
    %v4933 = vunpack.c.h.b16 %v3930
    %v4934 = vunpack.c.l.b16 %v3931
    %v4935 = vunpack.c.h.b16 %v3931
    %v4936 = vunpack.c.l.b16 %v3932
    %v4937 = vunpack.c.h.b16 %v3932
    %v4938 = vunpack.c.l.b16 %v3933
    %v4939 = vunpack.c.h.b16 %v3933
    %v4940 = vunpack.c.l.b16 %v3934
    %v4941 = vunpack.c.h.b16 %v3934
    %v4942 = vunpack.c.l.b16 %v3935
    %v4943 = vunpack.c.h.b16 %v3935
    %v4944 = vunpack.c.l.b16 %v3936
    %v4945 = vunpack.c.h.b16 %v3936
    %v4946 = vunpack.c.l.b16 %v3937
    %v4947 = vunpack.c.h.b16 %v3937
    %v4948 = vunpack.c.l.b16 %v3938
    %v4949 = vunpack.c.h.b16 %v3938
    %v4950 = vunpack.c.l.b16 %v3939
    %v4951 = vunpack.c.h.b16 %v3939
    %v4952 = vunpack.c.l.b16 %v3940
    %v4953 = vunpack.c.h.b16 %v3940
    %v4954 = vunpack.c.l.b16 %v3941
    %v4955 = vunpack.c.h.b16 %v3941
    %v4956 = vunpack.c.l.b16 %v3942
    %v4957 = vunpack.c.h.b16 %v3942
    %v4958 = vunpack.c.l.b16 %v3943
    %v4959 = vunpack.c.h.b16 %v3943
    %v4960 = vunpack.c.l.b16 %v3944
    %v4961 = vunpack.c.h.b16 %v3944
    %v4962 = vunpack.c.l.b16 %v3945
    %v4963 = vunpack.c.h.b16 %v3945
    %v4964 = vunpack.c.l.b16 %v3946
    %v4965 = vunpack.c.h.b16 %v3946
    %v4966 = vunpack.c.l.b16 %v3947
    %v4967 = vunpack.c.h.b16 %v3947
    %v4968 = vunpack.c.l.b16 %v3948
    %v4969 = vunpack.c.h.b16 %v3948
    %v4970 = vunpack.c.l.b16 %v3949
    %v4971 = vunpack.c.h.b16 %v3949
    %v4972 = vunpack.c.l.b16 %v3950
    %v4973 = vunpack.c.h.b16 %v3950
    %v4974 = vunpack.c.l.b16 %v3951
    %v4975 = vunpack.c.h.b16 %v3951
    %v4976 = vunpack.c.l.b16 %v3952
    %v4977 = vunpack.c.h.b16 %v3952
    %v4978 = vunpack.c.l.b16 %v3953
    %v4979 = vunpack.c.h.b16 %v3953
    %v4980 = vunpack.c.l.b16 %v3954
    %v4981 = vunpack.c.h.b16 %v3954
    %v4982 = vunpack.c.l.b16 %v3955
    %v4983 = vunpack.c.h.b16 %v3955
    %v4984 = vunpack.c.l.b16 %v3956
    %v4985 = vunpack.c.h.b16 %v3956
    %v4986 = vunpack.c.l.b16 %v3957
    %v4987 = vunpack.c.h.b16 %v3957
    %v4988 = vunpack.c.l.b16 %v3958
    %v4989 = vunpack.c.h.b16 %v3958
    %v4990 = vunpack.c.l.b16 %v3959
    %v4991 = vunpack.c.h.b16 %v3959
    %v4992 = vunpack.c.l.b16 %v3960
    %v4993 = vunpack.c.h.b16 %v3960
    %v4994 = vunpack.c.l.b16 %v3961
    %v4995 = vunpack.c.h.b16 %v3961
    %v4996 = vunpack.c.l.b16 %v3962
    %v4997 = vunpack.c.h.b16 %v3962
    %v4998 = vunpack.c.l.b16 %v3963
    %v4999 = vunpack.c.h.b16 %v3963
    %v5000 = vunpack.c.l.b16 %v3964
    %v5001 = vunpack.c.h.b16 %v3964
    %v5002 = vunpack.c.l.b16 %v3965
    %v5003 = vunpack.c.h.b16 %v3965
    %v5004 = vunpack.c.l.b16 %v3966
    %v5005 = vunpack.c.h.b16 %v3966
    %v5006 = vunpack.c.l.b16 %v3967
    %v5007 = vunpack.c.h.b16 %v3967
    %v5008 = vunpack.c.l.b16 %v3968
    %v5009 = vunpack.c.h.b16 %v3968
    %v5010 = vunpack.c.l.b16 %v3969
    %v5011 = vunpack.c.h.b16 %v3969
    %v5012 = vunpack.c.l.b16 %v3970
    %v5013 = vunpack.c.h.b16 %v3970
    %v5014 = vunpack.c.l.b16 %v3971
    %v5015 = vunpack.c.h.b16 %v3971
    %v5016 = vunpack.c.l.b16 %v3972
    %v5017 = vunpack.c.h.b16 %v3972
    %v5018 = vunpack.c.l.b16 %v3973
    %v5019 = vunpack.c.h.b16 %v3973
    %v5020 = vunpack.c.l.b16 %v3974
    %v5021 = vunpack.c.h.b16 %v3974
    %v5022 = vunpack.c.l.b16 %v3975
    %v5023 = vunpack.c.h.b16 %v3975
    %v5024 = vunpack.c.l.b16 %v3976
    %v5025 = vunpack.c.h.b16 %v3976
    %v5026 = vunpack.c.l.b16 %v3977
    %v5027 = vunpack.c.h.b16 %v3977
    %v5028 = vunpack.c.l.b16 %v3978
    %v5029 = vunpack.c.h.b16 %v3978
    %v5030 = vunpack.c.l.b16 %v3979
    %v5031 = vunpack.c.h.b16 %v3979
    %v5032 = vunpack.c.l.b16 %v3980
    %v5033 = vunpack.c.h.b16 %v3980
    %v5034 = vunpack.c.l.b16 %v3981
    %v5035 = vunpack.c.h.b16 %v3981
    %v5036 = vunpack.c.l.b16 %v3982
    %v5037 = vunpack.c.h.b16 %v3982
    %v5038 = vunpack.c.l.b16 %v3983
    %v5039 = vunpack.c.h.b16 %v3983
    %v5040 = vunpack.c.l.b16 %v3984
    %v5041 = vunpack.c.h.b16 %v3984
    %v5042 = vunpack.c.l.b16 %v3985
    %v5043 = vunpack.c.h.b16 %v3985
    %v5044 = vunpack.c.l.b16 %v3986
    %v5045 = vunpack.c.h.b16 %v3986
    %v5046 = vunpack.c.l.b16 %v3987
    %v5047 = vunpack.c.h.b16 %v3987
    %v5048 = vunpack.c.l.b16 %v3988
    %v5049 = vunpack.c.h.b16 %v3988
    %v5050 = vunpack.c.l.b16 %v3989
    %v5051 = vunpack.c.h.b16 %v3989
    %v5052 = vunpack.c.l.b16 %v3990
    %v5053 = vunpack.c.h.b16 %v3990
    %v5054 = vunpack.c.l.b16 %v3991
    %v5055 = vunpack.c.h.b16 %v3991
    %v5056 = vunpack.c.l.b16 %v3992
    %v5057 = vunpack.c.h.b16 %v3992
    %v5058 = vunpack.c.l.b16 %v3993
    %v5059 = vunpack.c.h.b16 %v3993
    %v5060 = vunpack.c.l.b16 %v3994
    %v5061 = vunpack.c.h.b16 %v3994
    %v5062 = vunpack.c.l.b16 %v3995
    %v5063 = vunpack.c.h.b16 %v3995
    %v5064 = vunpack.c.l.b16 %v3996
    %v5065 = vunpack.c.h.b16 %v3996
    %v5066 = vunpack.c.l.b16 %v3997
    %v5067 = vunpack.c.h.b16 %v3997
    %v5068 = vunpack.c.l.b16 %v3998
    %v5069 = vunpack.c.h.b16 %v3998
    %v5070 = vunpack.c.l.b16 %v3999
    %v5071 = vunpack.c.h.b16 %v3999
    %v5072 = vunpack.c.l.b16 %v4000
    %v5073 = vunpack.c.h.b16 %v4000
    %v5074 = vunpack.c.l.b16 %v4001
    %v5075 = vunpack.c.h.b16 %v4001
    %v5076 = vunpack.c.l.b16 %v4002
    %v5077 = vunpack.c.h.b16 %v4002
    %v5078 = vunpack.c.l.b16 %v4003
    %v5079 = vunpack.c.h.b16 %v4003
    %v5080 = vunpack.c.l.b16 %v4004
    %v5081 = vunpack.c.h.b16 %v4004
    %v5082 = vunpack.c.l.b16 %v4005
    %v5083 = vunpack.c.h.b16 %v4005
    %v5084 = vunpack.c.l.b16 %v4006
    %v5085 = vunpack.c.h.b16 %v4006
    %v5086 = vunpack.c.l.b16 %v4007
    %v5087 = vunpack.c.h.b16 %v4007
    %v5088 = vunpack.c.l.b16 %v4008
    %v5089 = vunpack.c.h.b16 %v4008
    %v5090 = vunpack.c.l.b16 %v4009
    %v5091 = vunpack.c.h.b16 %v4009
    %v5092 = vunpack.c.l.b16 %v4010
    %v5093 = vunpack.c.h.b16 %v4010
    %v5094 = vunpack.c.l.b16 %v4011
    %v5095 = vunpack.c.h.b16 %v4011
    %v5096 = vunpack.c.l.b16 %v4012
    %v5097 = vunpack.c.h.b16 %v4012
    %v5098 = vunpack.c.l.b16 %v4013
    %v5099 = vunpack.c.h.b16 %v4013
    %v5100 = vunpack.c.l.b16 %v4014
    %v5101 = vunpack.c.h.b16 %v4014
    %v5102 = vunpack.c.l.b16 %v4015
    %v5103 = vunpack.c.h.b16 %v4015
    %v5104 = vunpack.c.l.b16 %v4016
    %v5105 = vunpack.c.h.b16 %v4016
    %v5106 = vunpack.c.l.b16 %v4017
    %v5107 = vunpack.c.h.b16 %v4017
    %v5108 = vunpack.c.l.b16 %v4018
    %v5109 = vunpack.c.h.b16 %v4018
    %v5110 = vunpack.c.l.b16 %v4019
    %v5111 = vunpack.c.h.b16 %v4019
    %v5112 = vunpack.c.l.b16 %v4020
    %v5113 = vunpack.c.h.b16 %v4020
    %v5114 = vunpack.c.l.b16 %v4021
    %v5115 = vunpack.c.h.b16 %v4021
    %v5116 = vunpack.c.l.b16 %v4022
    %v5117 = vunpack.c.h.b16 %v4022
    %v5118 = vunpack.c.l.b16 %v4023
    %v5119 = vunpack.c.h.b16 %v4023
    %v5120 = vunpack.c.l.b16 %v4024
    %v5121 = vunpack.c.h.b16 %v4024
    %v5122 = vunpack.c.l.b16 %v4025
    %v5123 = vunpack.c.h.b16 %v4025
    %v5124 = vunpack.c.l.b16 %v4026
    %v5125 = vunpack.c.h.b16 %v4026
    %v5126 = vunpack.c.l.b16 %v4027
    %v5127 = vunpack.c.h.b16 %v4027
    %v5128 = vunpack.c.l.b16 %v4028
    %v5129 = vunpack.c.h.b16 %v4028
    %v5130 = vunpack.c.l.b16 %v4029
    %v5131 = vunpack.c.h.b16 %v4029
    %v5132 = vunpack.c.l.b16 %v4030
    %v5133 = vunpack.c.h.b16 %v4030
    %v5134 = vunpack.c.l.b16 %v4031
    %v5135 = vunpack.c.h.b16 %v4031
    %v5136 = vunpack.c.l.b16 %v4032
    %v5137 = vunpack.c.h.b16 %v4032
    %v5138 = vunpack.c.l.b16 %v4033
    %v5139 = vunpack.c.h.b16 %v4033
    %v5140 = vunpack.c.l.b16 %v4034
    %v5141 = vunpack.c.h.b16 %v4034
    %v5142 = vunpack.c.l.b16 %v4035
    %v5143 = vunpack.c.h.b16 %v4035
    %v5144 = vunpack.c.l.b16 %v4036
    %v5145 = vunpack.c.h.b16 %v4036
    %v5146 = vunpack.c.l.b16 %v4037
    %v5147 = vunpack.c.h.b16 %v4037
    %v5148 = vunpack.c.l.b16 %v4038
    %v5149 = vunpack.c.h.b16 %v4038
    %v5150 = vunpack.c.l.b16 %v4039
    %v5151 = vunpack.c.h.b16 %v4039
    %v5152 = vunpack.c.l.b16 %v4040
    %v5153 = vunpack.c.h.b16 %v4040
    %v5154 = vunpack.c.l.b16 %v4041
    %v5155 = vunpack.c.h.b16 %v4041
    %v5156 = vunpack.c.l.b16 %v4042
    %v5157 = vunpack.c.h.b16 %v4042
    %v5158 = vunpack.c.l.b16 %v4043
    %v5159 = vunpack.c.h.b16 %v4043
    %v5160 = vunpack.c.l.b16 %v4044
    %v5161 = vunpack.c.h.b16 %v4044
    %v5162 = vunpack.c.l.b16 %v4045
    %v5163 = vunpack.c.h.b16 %v4045
    %v5164 = vunpack.c.l.b16 %v4046
    %v5165 = vunpack.c.h.b16 %v4046
    %v5166 = vunpack.c.l.b16 %v4047
    %v5167 = vunpack.c.h.b16 %v4047
    %v5168 = vunpack.c.l.b16 %v4048
    %v5169 = vunpack.c.h.b16 %v4048
    %v5170 = vunpack.c.l.b16 %v4049
    %v5171 = vunpack.c.h.b16 %v4049
    %v5172 = vunpack.c.l.b16 %v4050
    %v5173 = vunpack.c.h.b16 %v4050
    %v5174 = vunpack.c.l.b16 %v4051
    %v5175 = vunpack.c.h.b16 %v4051
    %v5176 = vunpack.c.l.b16 %v4052
    %v5177 = vunpack.c.h.b16 %v4052
    %v5178 = vunpack.c.l.b16 %v4053
    %v5179 = vunpack.c.h.b16 %v4053
    %v5180 = vunpack.c.l.b16 %v4054
    %v5181 = vunpack.c.h.b16 %v4054
    %v5182 = vunpack.c.l.b16 %v4055
    %v5183 = vunpack.c.h.b16 %v4055
    %v5184 = vunpack.c.l.b16 %v4056
    %v5185 = vunpack.c.h.b16 %v4056
    %v5186 = vunpack.c.l.b16 %v4057
    %v5187 = vunpack.c.h.b16 %v4057
    %v5188 = vunpack.c.l.b16 %v4058
    %v5189 = vunpack.c.h.b16 %v4058
    %v5190 = vunpack.c.l.b16 %v4059
    %v5191 = vunpack.c.h.b16 %v4059
    %v5192 = vunpack.c.l.b16 %v4060
    %v5193 = vunpack.c.h.b16 %v4060
    %v5194 = vunpack.c.l.b16 %v4061
    %v5195 = vunpack.c.h.b16 %v4061
    %v5196 = vunpack.c.l.b16 %v4062
    %v5197 = vunpack.c.h.b16 %v4062
    %v5198 = vunpack.c.l.b16 %v4063
    %v5199 = vunpack.c.h.b16 %v4063
    %v5200 = vunpack.c.l.b16 %v4064
    %v5201 = vunpack.c.h.b16 %v4064
    %v5202 = vunpack.c.l.b16 %v4065
    %v5203 = vunpack.c.h.b16 %v4065
    %v5204 = vunpack.c.l.b16 %v4066
    %v5205 = vunpack.c.h.b16 %v4066
    %v5206 = vunpack.c.l.b16 %v4067
    %v5207 = vunpack.c.h.b16 %v4067
    %v5208 = vunpack.c.l.b16 %v4068
    %v5209 = vunpack.c.h.b16 %v4068
    %v5210 = vunpack.c.l.b16 %v4069
    %v5211 = vunpack.c.h.b16 %v4069
    %v5212 = vunpack.c.l.b16 %v4070
    %v5213 = vunpack.c.h.b16 %v4070
    %v5214 = vunpack.c.l.b16 %v4071
    %v5215 = vunpack.c.h.b16 %v4071
    %v5216 = vunpack.c.l.b16 %v4072
    %v5217 = vunpack.c.h.b16 %v4072
    %v5218 = vunpack.c.l.b16 %v4073
    %v5219 = vunpack.c.h.b16 %v4073
    %v5220 = vunpack.c.l.b16 %v4074
    %v5221 = vunpack.c.h.b16 %v4074
    %v5222 = vunpack.c.l.b16 %v4075
    %v5223 = vunpack.c.h.b16 %v4075
    %v5224 = vunpack.c.l.b16 %v4076
    %v5225 = vunpack.c.h.b16 %v4076
    %v5226 = vunpack.c.l.b16 %v4077
    %v5227 = vunpack.c.h.b16 %v4077
    %v5228 = vunpack.c.l.b16 %v4078
    %v5229 = vunpack.c.h.b16 %v4078
    %v5230 = vunpack.c.l.b16 %v4079
    %v5231 = vunpack.c.h.b16 %v4079
    %v5232 = vpack.c.b16 %v4468, %v4464
    %v5233 = vpack.c.b16 %v4469, %v4465
    %v5234 = vpack.c.b16 %v4470, %v4466
    %v5235 = vpack.c.b16 %v4471, %v4467
    %v5236 = vpack.c.b16 %v4476, %v4472
    %v5237 = vpack.c.b16 %v4477, %v4473
    %v5238 = vpack.c.b16 %v4478, %v4474
    %v5239 = vpack.c.b16 %v4479, %v4475
    %v5240 = vpack.c.b16 %v4484, %v4480
    %v5241 = vpack.c.b16 %v4485, %v4481
    %v5242 = vpack.c.b16 %v4486, %v4482
    %v5243 = vpack.c.b16 %v4487, %v4483
    %v5244 = vpack.c.b16 %v4492, %v4488
    %v5245 = vpack.c.b16 %v4493, %v4489
    %v5246 = vpack.c.b16 %v4494, %v4490
    %v5247 = vpack.c.b16 %v4495, %v4491
    %v5248 = vpack.c.b16 %v4500, %v4496
    %v5249 = vpack.c.b16 %v4501, %v4497
    %v5250 = vpack.c.b16 %v4502, %v4498
    %v5251 = vpack.c.b16 %v4503, %v4499
    %v5252 = vpack.c.b16 %v4508, %v4504
    %v5253 = vpack.c.b16 %v4509, %v4505
    %v5254 = vpack.c.b16 %v4510, %v4506
    %v5255 = vpack.c.b16 %v4511, %v4507
    %v5256 = vpack.c.b16 %v4516, %v4512
    %v5257 = vpack.c.b16 %v4517, %v4513
    %v5258 = vpack.c.b16 %v4518, %v4514
    %v5259 = vpack.c.b16 %v4519, %v4515
    %v5260 = vpack.c.b16 %v4524, %v4520
    %v5261 = vpack.c.b16 %v4525, %v4521
    %v5262 = vpack.c.b16 %v4526, %v4522
    %v5263 = vpack.c.b16 %v4527, %v4523
    %v5264 = vpack.c.b16 %v4532, %v4528
    %v5265 = vpack.c.b16 %v4533, %v4529
    %v5266 = vpack.c.b16 %v4534, %v4530
    %v5267 = vpack.c.b16 %v4535, %v4531
    %v5268 = vpack.c.b16 %v4540, %v4536
    %v5269 = vpack.c.b16 %v4541, %v4537
    %v5270 = vpack.c.b16 %v4542, %v4538
    %v5271 = vpack.c.b16 %v4543, %v4539
    %v5272 = vpack.c.b16 %v4548, %v4544
    %v5273 = vpack.c.b16 %v4549, %v4545
    %v5274 = vpack.c.b16 %v4550, %v4546
    %v5275 = vpack.c.b16 %v4551, %v4547
    %v5276 = vpack.c.b16 %v4556, %v4552
    %v5277 = vpack.c.b16 %v4557, %v4553
    %v5278 = vpack.c.b16 %v4558, %v4554
    %v5279 = vpack.c.b16 %v4559, %v4555
    %v5280 = vpack.c.b16 %v4564, %v4560
    %v5281 = vpack.c.b16 %v4565, %v4561
    %v5282 = vpack.c.b16 %v4566, %v4562
    %v5283 = vpack.c.b16 %v4567, %v4563
    %v5284 = vpack.c.b16 %v4572, %v4568
    %v5285 = vpack.c.b16 %v4573, %v4569
    %v5286 = vpack.c.b16 %v4574, %v4570
    %v5287 = vpack.c.b16 %v4575, %v4571
    %v5288 = vpack.c.b16 %v4580, %v4576
    %v5289 = vpack.c.b16 %v4581, %v4577
    %v5290 = vpack.c.b16 %v4582, %v4578
    %v5291 = vpack.c.b16 %v4583, %v4579
    %v5292 = vpack.c.b16 %v4588, %v4584
    %v5293 = vpack.c.b16 %v4589, %v4585
    %v5294 = vpack.c.b16 %v4590, %v4586
    %v5295 = vpack.c.b16 %v4591, %v4587
    %v5296 = vpack.c.b16 %v4596, %v4592
    %v5297 = vpack.c.b16 %v4597, %v4593
    %v5298 = vpack.c.b16 %v4598, %v4594
    %v5299 = vpack.c.b16 %v4599, %v4595
    %v5300 = vpack.c.b16 %v4604, %v4600
    %v5301 = vpack.c.b16 %v4605, %v4601
    %v5302 = vpack.c.b16 %v4606, %v4602
    %v5303 = vpack.c.b16 %v4607, %v4603
    %v5304 = vpack.c.b16 %v4612, %v4608
    %v5305 = vpack.c.b16 %v4613, %v4609
    %v5306 = vpack.c.b16 %v4614, %v4610
    %v5307 = vpack.c.b16 %v4615, %v4611
    %v5308 = vpack.c.b16 %v4620, %v4616
    %v5309 = vpack.c.b16 %v4621, %v4617
    %v5310 = vpack.c.b16 %v4622, %v4618
    %v5311 = vpack.c.b16 %v4623, %v4619
    %v5312 = vpack.c.b16 %v4628, %v4624
    %v5313 = vpack.c.b16 %v4629, %v4625
    %v5314 = vpack.c.b16 %v4630, %v4626
    %v5315 = vpack.c.b16 %v4631, %v4627
    %v5316 = vpack.c.b16 %v4636, %v4632
    %v5317 = vpack.c.b16 %v4637, %v4633
    %v5318 = vpack.c.b16 %v4638, %v4634
    %v5319 = vpack.c.b16 %v4639, %v4635
    %v5320 = vpack.c.b16 %v4644, %v4640
    %v5321 = vpack.c.b16 %v4645, %v4641
    %v5322 = vpack.c.b16 %v4646, %v4642
    %v5323 = vpack.c.b16 %v4647, %v4643
    %v5324 = vpack.c.b16 %v4652, %v4648
    %v5325 = vpack.c.b16 %v4653, %v4649
    %v5326 = vpack.c.b16 %v4654, %v4650
    %v5327 = vpack.c.b16 %v4655, %v4651
    %v5328 = vpack.c.b16 %v4660, %v4656
    %v5329 = vpack.c.b16 %v4661, %v4657
    %v5330 = vpack.c.b16 %v4662, %v4658
    %v5331 = vpack.c.b16 %v4663, %v4659
    %v5332 = vpack.c.b16 %v4668, %v4664
    %v5333 = vpack.c.b16 %v4669, %v4665
    %v5334 = vpack.c.b16 %v4670, %v4666
    %v5335 = vpack.c.b16 %v4671, %v4667
    %v5336 = vpack.c.b16 %v4676, %v4672
    %v5337 = vpack.c.b16 %v4677, %v4673
    %v5338 = vpack.c.b16 %v4678, %v4674
    %v5339 = vpack.c.b16 %v4679, %v4675
    %v5340 = vpack.c.b16 %v4684, %v4680
    %v5341 = vpack.c.b16 %v4685, %v4681
    %v5342 = vpack.c.b16 %v4686, %v4682
    %v5343 = vpack.c.b16 %v4687, %v4683
    %v5344 = vpack.c.b16 %v4692, %v4688
    %v5345 = vpack.c.b16 %v4693, %v4689
    %v5346 = vpack.c.b16 %v4694, %v4690
    %v5347 = vpack.c.b16 %v4695, %v4691
    %v5348 = vpack.c.b16 %v4700, %v4696
    %v5349 = vpack.c.b16 %v4701, %v4697
    %v5350 = vpack.c.b16 %v4702, %v4698
    %v5351 = vpack.c.b16 %v4703, %v4699
    %v5352 = vpack.c.b16 %v4708, %v4704
    %v5353 = vpack.c.b16 %v4709, %v4705
    %v5354 = vpack.c.b16 %v4710, %v4706
    %v5355 = vpack.c.b16 %v4711, %v4707
    %v5356 = vpack.c.b16 %v4716, %v4712
    %v5357 = vpack.c.b16 %v4717, %v4713
    %v5358 = vpack.c.b16 %v4718, %v4714
    %v5359 = vpack.c.b16 %v4719, %v4715
    %v5360 = vpack.c.b16 %v4724, %v4720
    %v5361 = vpack.c.b16 %v4725, %v4721
    %v5362 = vpack.c.b16 %v4726, %v4722
    %v5363 = vpack.c.b16 %v4727, %v4723
    %v5364 = vpack.c.b16 %v4732, %v4728
    %v5365 = vpack.c.b16 %v4733, %v4729
    %v5366 = vpack.c.b16 %v4734, %v4730
    %v5367 = vpack.c.b16 %v4735, %v4731
    %v5368 = vpack.c.b16 %v4740, %v4736
    %v5369 = vpack.c.b16 %v4741, %v4737
    %v5370 = vpack.c.b16 %v4742, %v4738
    %v5371 = vpack.c.b16 %v4743, %v4739
    %v5372 = vpack.c.b16 %v4748, %v4744
    %v5373 = vpack.c.b16 %v4749, %v4745
    %v5374 = vpack.c.b16 %v4750, %v4746
    %v5375 = vpack.c.b16 %v4751, %v4747
    %v5376 = vpack.c.b16 %v4756, %v4752
    %v5377 = vpack.c.b16 %v4757, %v4753
    %v5378 = vpack.c.b16 %v4758, %v4754
    %v5379 = vpack.c.b16 %v4759, %v4755
    %v5380 = vpack.c.b16 %v4764, %v4760
    %v5381 = vpack.c.b16 %v4765, %v4761
    %v5382 = vpack.c.b16 %v4766, %v4762
    %v5383 = vpack.c.b16 %v4767, %v4763
    %v5384 = vpack.c.b16 %v4772, %v4768
    %v5385 = vpack.c.b16 %v4773, %v4769
    %v5386 = vpack.c.b16 %v4774, %v4770
    %v5387 = vpack.c.b16 %v4775, %v4771
    %v5388 = vpack.c.b16 %v4780, %v4776
    %v5389 = vpack.c.b16 %v4781, %v4777
    %v5390 = vpack.c.b16 %v4782, %v4778
    %v5391 = vpack.c.b16 %v4783, %v4779
    %v5392 = vpack.c.b16 %v4788, %v4784
    %v5393 = vpack.c.b16 %v4789, %v4785
    %v5394 = vpack.c.b16 %v4790, %v4786
    %v5395 = vpack.c.b16 %v4791, %v4787
    %v5396 = vpack.c.b16 %v4796, %v4792
    %v5397 = vpack.c.b16 %v4797, %v4793
    %v5398 = vpack.c.b16 %v4798, %v4794
    %v5399 = vpack.c.b16 %v4799, %v4795
    %v5400 = vpack.c.b16 %v4804, %v4800
    %v5401 = vpack.c.b16 %v4805, %v4801
    %v5402 = vpack.c.b16 %v4806, %v4802
    %v5403 = vpack.c.b16 %v4807, %v4803
    %v5404 = vpack.c.b16 %v4812, %v4808
    %v5405 = vpack.c.b16 %v4813, %v4809
    %v5406 = vpack.c.b16 %v4814, %v4810
    %v5407 = vpack.c.b16 %v4815, %v4811
    %v5408 = vpack.c.b16 %v4820, %v4816
    %v5409 = vpack.c.b16 %v4821, %v4817
    %v5410 = vpack.c.b16 %v4822, %v4818
    %v5411 = vpack.c.b16 %v4823, %v4819
    %v5412 = vpack.c.b16 %v4828, %v4824
    %v5413 = vpack.c.b16 %v4829, %v4825
    %v5414 = vpack.c.b16 %v4830, %v4826
    %v5415 = vpack.c.b16 %v4831, %v4827
    %v5416 = vpack.c.b16 %v4836, %v4832
    %v5417 = vpack.c.b16 %v4837, %v4833
    %v5418 = vpack.c.b16 %v4838, %v4834
    %v5419 = vpack.c.b16 %v4839, %v4835
    %v5420 = vpack.c.b16 %v4844, %v4840
    %v5421 = vpack.c.b16 %v4845, %v4841
    %v5422 = vpack.c.b16 %v4846, %v4842
    %v5423 = vpack.c.b16 %v4847, %v4843
    %v5424 = vpack.c.b16 %v4852, %v4848
    %v5425 = vpack.c.b16 %v4853, %v4849
    %v5426 = vpack.c.b16 %v4854, %v4850
    %v5427 = vpack.c.b16 %v4855, %v4851
    %v5428 = vpack.c.b16 %v4860, %v4856
    %v5429 = vpack.c.b16 %v4861, %v4857
    %v5430 = vpack.c.b16 %v4862, %v4858
    %v5431 = vpack.c.b16 %v4863, %v4859
    %v5432 = vpack.c.b16 %v4868, %v4864
    %v5433 = vpack.c.b16 %v4869, %v4865
    %v5434 = vpack.c.b16 %v4870, %v4866
    %v5435 = vpack.c.b16 %v4871, %v4867
    %v5436 = vpack.c.b16 %v4876, %v4872
    %v5437 = vpack.c.b16 %v4877, %v4873
    %v5438 = vpack.c.b16 %v4878, %v4874
    %v5439 = vpack.c.b16 %v4879, %v4875
    %v5440 = vpack.c.b16 %v4884, %v4880
    %v5441 = vpack.c.b16 %v4885, %v4881
    %v5442 = vpack.c.b16 %v4886, %v4882
    %v5443 = vpack.c.b16 %v4887, %v4883
    %v5444 = vpack.c.b16 %v4892, %v4888
    %v5445 = vpack.c.b16 %v4893, %v4889
    %v5446 = vpack.c.b16 %v4894, %v4890
    %v5447 = vpack.c.b16 %v4895, %v4891
    %v5448 = vpack.c.b16 %v4900, %v4896
    %v5449 = vpack.c.b16 %v4901, %v4897
    %v5450 = vpack.c.b16 %v4902, %v4898
    %v5451 = vpack.c.b16 %v4903, %v4899
    %v5452 = vpack.c.b16 %v4908, %v4904
    %v5453 = vpack.c.b16 %v4909, %v4905
    %v5454 = vpack.c.b16 %v4910, %v4906
    %v5455 = vpack.c.b16 %v4911, %v4907
    %v5456 = vpack.c.b16 %v4916, %v4912
    %v5457 = vpack.c.b16 %v4917, %v4913
    %v5458 = vpack.c.b16 %v4918, %v4914
    %v5459 = vpack.c.b16 %v4919, %v4915
    %v5460 = vpack.c.b16 %v4924, %v4920
    %v5461 = vpack.c.b16 %v4925, %v4921
    %v5462 = vpack.c.b16 %v4926, %v4922
    %v5463 = vpack.c.b16 %v4927, %v4923
    %v5464 = vpack.c.b16 %v4932, %v4928
    %v5465 = vpack.c.b16 %v4933, %v4929
    %v5466 = vpack.c.b16 %v4934, %v4930
    %v5467 = vpack.c.b16 %v4935, %v4931
    %v5468 = vpack.c.b16 %v4940, %v4936
    %v5469 = vpack.c.b16 %v4941, %v4937
    %v5470 = vpack.c.b16 %v4942, %v4938
    %v5471 = vpack.c.b16 %v4943, %v4939
    %v5472 = vpack.c.b16 %v4948, %v4944
    %v5473 = vpack.c.b16 %v4949, %v4945
    %v5474 = vpack.c.b16 %v4950, %v4946
    %v5475 = vpack.c.b16 %v4951, %v4947
    %v5476 = vpack.c.b16 %v4956, %v4952
    %v5477 = vpack.c.b16 %v4957, %v4953
    %v5478 = vpack.c.b16 %v4958, %v4954
    %v5479 = vpack.c.b16 %v4959, %v4955
    %v5480 = vpack.c.b16 %v4964, %v4960
    %v5481 = vpack.c.b16 %v4965, %v4961
    %v5482 = vpack.c.b16 %v4966, %v4962
    %v5483 = vpack.c.b16 %v4967, %v4963
    %v5484 = vpack.c.b16 %v4972, %v4968
    %v5485 = vpack.c.b16 %v4973, %v4969
    %v5486 = vpack.c.b16 %v4974, %v4970
    %v5487 = vpack.c.b16 %v4975, %v4971
    %v5488 = vpack.c.b16 %v4980, %v4976
    %v5489 = vpack.c.b16 %v4981, %v4977
    %v5490 = vpack.c.b16 %v4982, %v4978
    %v5491 = vpack.c.b16 %v4983, %v4979
    %v5492 = vpack.c.b16 %v4988, %v4984
    %v5493 = vpack.c.b16 %v4989, %v4985
    %v5494 = vpack.c.b16 %v4990, %v4986
    %v5495 = vpack.c.b16 %v4991, %v4987
    %v5496 = vpack.c.b16 %v4996, %v4992
    %v5497 = vpack.c.b16 %v4997, %v4993
    %v5498 = vpack.c.b16 %v4998, %v4994
    %v5499 = vpack.c.b16 %v4999, %v4995
    %v5500 = vpack.c.b16 %v5004, %v5000
    %v5501 = vpack.c.b16 %v5005, %v5001
    %v5502 = vpack.c.b16 %v5006, %v5002
    %v5503 = vpack.c.b16 %v5007, %v5003
    %v5504 = vpack.c.b16 %v5012, %v5008
    %v5505 = vpack.c.b16 %v5013, %v5009
    %v5506 = vpack.c.b16 %v5014, %v5010
    %v5507 = vpack.c.b16 %v5015, %v5011
    %v5508 = vpack.c.b16 %v5020, %v5016
    %v5509 = vpack.c.b16 %v5021, %v5017
    %v5510 = vpack.c.b16 %v5022, %v5018
    %v5511 = vpack.c.b16 %v5023, %v5019
    %v5512 = vpack.c.b16 %v5028, %v5024
    %v5513 = vpack.c.b16 %v5029, %v5025
    %v5514 = vpack.c.b16 %v5030, %v5026
    %v5515 = vpack.c.b16 %v5031, %v5027
    %v5516 = vpack.c.b16 %v5036, %v5032
    %v5517 = vpack.c.b16 %v5037, %v5033
    %v5518 = vpack.c.b16 %v5038, %v5034
    %v5519 = vpack.c.b16 %v5039, %v5035
    %v5520 = vpack.c.b16 %v5044, %v5040
    %v5521 = vpack.c.b16 %v5045, %v5041
    %v5522 = vpack.c.b16 %v5046, %v5042
    %v5523 = vpack.c.b16 %v5047, %v5043
    %v5524 = vpack.c.b16 %v5052, %v5048
    %v5525 = vpack.c.b16 %v5053, %v5049
    %v5526 = vpack.c.b16 %v5054, %v5050
    %v5527 = vpack.c.b16 %v5055, %v5051
    %v5528 = vpack.c.b16 %v5060, %v5056
    %v5529 = vpack.c.b16 %v5061, %v5057
    %v5530 = vpack.c.b16 %v5062, %v5058
    %v5531 = vpack.c.b16 %v5063, %v5059
    %v5532 = vpack.c.b16 %v5068, %v5064
    %v5533 = vpack.c.b16 %v5069, %v5065
    %v5534 = vpack.c.b16 %v5070, %v5066
    %v5535 = vpack.c.b16 %v5071, %v5067
    %v5536 = vpack.c.b16 %v5076, %v5072
    %v5537 = vpack.c.b16 %v5077, %v5073
    %v5538 = vpack.c.b16 %v5078, %v5074
    %v5539 = vpack.c.b16 %v5079, %v5075
    %v5540 = vpack.c.b16 %v5084, %v5080
    %v5541 = vpack.c.b16 %v5085, %v5081
    %v5542 = vpack.c.b16 %v5086, %v5082
    %v5543 = vpack.c.b16 %v5087, %v5083
    %v5544 = vpack.c.b16 %v5092, %v5088
    %v5545 = vpack.c.b16 %v5093, %v5089
    %v5546 = vpack.c.b16 %v5094, %v5090
    %v5547 = vpack.c.b16 %v5095, %v5091
    %v5548 = vpack.c.b16 %v5100, %v5096
    %v5549 = vpack.c.b16 %v5101, %v5097
    %v5550 = vpack.c.b16 %v5102, %v5098
    %v5551 = vpack.c.b16 %v5103, %v5099
    %v5552 = vpack.c.b16 %v5108, %v5104
    %v5553 = vpack.c.b16 %v5109, %v5105
    %v5554 = vpack.c.b16 %v5110, %v5106
    %v5555 = vpack.c.b16 %v5111, %v5107
    %v5556 = vpack.c.b16 %v5116, %v5112
    %v5557 = vpack.c.b16 %v5117, %v5113
    %v5558 = vpack.c.b16 %v5118, %v5114
    %v5559 = vpack.c.b16 %v5119, %v5115
    %v5560 = vpack.c.b16 %v5124, %v5120
    %v5561 = vpack.c.b16 %v5125, %v5121
    %v5562 = vpack.c.b16 %v5126, %v5122
    %v5563 = vpack.c.b16 %v5127, %v5123
    %v5564 = vpack.c.b16 %v5132, %v5128
    %v5565 = vpack.c.b16 %v5133, %v5129
    %v5566 = vpack.c.b16 %v5134, %v5130
    %v5567 = vpack.c.b16 %v5135, %v5131
    %v5568 = vpack.c.b16 %v5140, %v5136
    %v5569 = vpack.c.b16 %v5141, %v5137
    %v5570 = vpack.c.b16 %v5142, %v5138
    %v5571 = vpack.c.b16 %v5143, %v5139
    %v5572 = vpack.c.b16 %v5148, %v5144
    %v5573 = vpack.c.b16 %v5149, %v5145
    %v5574 = vpack.c.b16 %v5150, %v5146
    %v5575 = vpack.c.b16 %v5151, %v5147
    %v5576 = vpack.c.b16 %v5156, %v5152
    %v5577 = vpack.c.b16 %v5157, %v5153
    %v5578 = vpack.c.b16 %v5158, %v5154
    %v5579 = vpack.c.b16 %v5159, %v5155
    %v5580 = vpack.c.b16 %v5164, %v5160
    %v5581 = vpack.c.b16 %v5165, %v5161
    %v5582 = vpack.c.b16 %v5166, %v5162
    %v5583 = vpack.c.b16 %v5167, %v5163
    %v5584 = vpack.c.b16 %v5172, %v5168
    %v5585 = vpack.c.b16 %v5173, %v5169
    %v5586 = vpack.c.b16 %v5174, %v5170
    %v5587 = vpack.c.b16 %v5175, %v5171
    %v5588 = vpack.c.b16 %v5180, %v5176
    %v5589 = vpack.c.b16 %v5181, %v5177
    %v5590 = vpack.c.b16 %v5182, %v5178
    %v5591 = vpack.c.b16 %v5183, %v5179
    %v5592 = vpack.c.b16 %v5188, %v5184
    %v5593 = vpack.c.b16 %v5189, %v5185
    %v5594 = vpack.c.b16 %v5190, %v5186
    %v5595 = vpack.c.b16 %v5191, %v5187
    %v5596 = vpack.c.b16 %v5196, %v5192
    %v5597 = vpack.c.b16 %v5197, %v5193
    %v5598 = vpack.c.b16 %v5198, %v5194
    %v5599 = vpack.c.b16 %v5199, %v5195
    %v5600 = vpack.c.b16 %v5204, %v5200
    %v5601 = vpack.c.b16 %v5205, %v5201
    %v5602 = vpack.c.b16 %v5206, %v5202
    %v5603 = vpack.c.b16 %v5207, %v5203
    %v5604 = vpack.c.b16 %v5212, %v5208
    %v5605 = vpack.c.b16 %v5213, %v5209
    %v5606 = vpack.c.b16 %v5214, %v5210
    %v5607 = vpack.c.b16 %v5215, %v5211
    %v5608 = vpack.c.b16 %v5220, %v5216
    %v5609 = vpack.c.b16 %v5221, %v5217
    %v5610 = vpack.c.b16 %v5222, %v5218
    %v5611 = vpack.c.b16 %v5223, %v5219
    %v5612 = vpack.c.b16 %v5228, %v5224
    %v5613 = vpack.c.b16 %v5229, %v5225
    %v5614 = vpack.c.b16 %v5230, %v5226
    %v5615 = vpack.c.b16 %v5231, %v5227
    %6000 = vmatprep.subr.bf16.mxu0 %v5233
    %6001 = vmatpush1.bf16.msra.mxu0 %v5232
    %6002 = vmatprep.subr.bf16.mxu0 %v5237
    %6003 = vmatpush1.bf16.msra.mxu0 %v5236
    %6004 = vmatprep.subr.bf16.mxu0 %v5241
    %6005 = vmatpush1.bf16.msra.mxu0 %v5240
    %6006 = vmatprep.subr.bf16.mxu0 %v5245
    %6007 = vmatpush1.bf16.msra.mxu0 %v5244
    %6008 = vmatprep.subr.bf16.mxu0 %v5249
    %6009 = vmatpush1.bf16.msra.mxu0 %v5248
    %6010 = vmatprep.subr.bf16.mxu0 %v5253
    %6011 = vmatpush1.bf16.msra.mxu0 %v5252
    %6012 = vmatprep.subr.bf16.mxu0 %v5257
    %6013 = vmatpush1.bf16.msra.mxu0 %v5256
    %6014 = vmatprep.subr.bf16.mxu0 %v5261
    %6015 = vmatpush1.bf16.msra.mxu0 %v5260
    %6016 = vmatprep.subr.bf16.mxu0 %v5265
    %6017 = vmatpush1.bf16.msra.mxu0 %v5264
    %6018 = vmatprep.subr.bf16.mxu0 %v5269
    %6019 = vmatpush1.bf16.msra.mxu0 %v5268
    %6020 = vmatprep.subr.bf16.mxu0 %v5273
    %6021 = vmatpush1.bf16.msra.mxu0 %v5272
    %6022 = vmatprep.subr.bf16.mxu0 %v5277
    %6023 = vmatpush1.bf16.msra.mxu0 %v5276
    %6024 = vmatprep.subr.bf16.mxu0 %v5281
    %6025 = vmatpush1.bf16.msra.mxu0 %v5280
    %6026 = vmatprep.subr.bf16.mxu0 %v5285
    %6027 = vmatpush1.bf16.msra.mxu0 %v5284
    %6028 = vmatprep.subr.bf16.mxu0 %v5289
    %6029 = vmatpush1.bf16.msra.mxu0 %v5288
    %6030 = vmatprep.subr.bf16.mxu0 %v5293
    %6031 = vmatpush1.bf16.msra.mxu0 %v5292
    %6032 = vmatprep.mubr.bf16.mxu0 %v3673
    %6033 = vmatmul.mubr.bf16.gmra.mrb[0].mxu0 %v3672
    %v6034 = vpop.f32.mrb[0].mxu0
    %v6035 = vadd.f32 0.0, %v6034
    %v6036 = vpop.f32.mrb[0].mxu0
    %v6037 = vadd.f32 0.0, %v6036
    %v6038 = vpop.f32.mrb[0].mxu0
    %v6039 = vadd.f32 0.0, %v6038
    %v6040 = vpop.f32.mrb[0].mxu0
    %v6041 = vadd.f32 0.0, %v6040
    %6042 = vmatprep.mubr.bf16.mxu0 %v3685
    %6043 = vmatmul.mubr.bf16.gmra.mrb[0].mxu0 %v3684
    %v6044 = vpop.f32.mrb[0].mxu0
    %v6045 = vadd.f32 0.0, %v6044
    %v6046 = vpop.f32.mrb[0].mxu0
    %v6047 = vadd.f32 0.0, %v6046
    %v6048 = vpop.f32.mrb[0].mxu0
    %v6049 = vadd.f32 0.0, %v6048
    %v6050 = vpop.f32.mrb[0].mxu0
    %v6051 = vadd.f32 0.0, %v6050
    %6052 = vdwg.mxu0
    %6053 = vmatprep.subr.bf16.mxu0 %v5297
    %6054 = vmatpush1.bf16.msra.mxu0 %v5296
    %6055 = vmatprep.subr.bf16.mxu0 %v5301
    %6056 = vmatpush1.bf16.msra.mxu0 %v5300
    %6057 = vmatprep.subr.bf16.mxu0 %v5305
    %6058 = vmatpush1.bf16.msra.mxu0 %v5304
    %6059 = vmatprep.subr.bf16.mxu0 %v5309
    %6060 = vmatpush1.bf16.msra.mxu0 %v5308
    %6061 = vmatprep.subr.bf16.mxu0 %v5313
    %6062 = vmatpush1.bf16.msra.mxu0 %v5312
    %6063 = vmatprep.subr.bf16.mxu0 %v5317
    %6064 = vmatpush1.bf16.msra.mxu0 %v5316
    %6065 = vmatprep.subr.bf16.mxu0 %v5321
    %6066 = vmatpush1.bf16.msra.mxu0 %v5320
    %6067 = vmatprep.subr.bf16.mxu0 %v5325
    %6068 = vmatpush1.bf16.msra.mxu0 %v5324
    %6069 = vmatprep.subr.bf16.mxu0 %v5329
    %6070 = vmatpush1.bf16.msra.mxu0 %v5328
    %6071 = vmatprep.subr.bf16.mxu0 %v5333
    %6072 = vmatpush1.bf16.msra.mxu0 %v5332
    %6073 = vmatprep.subr.bf16.mxu0 %v5337
    %6074 = vmatpush1.bf16.msra.mxu0 %v5336
    %6075 = vmatprep.subr.bf16.mxu0 %v5341
    %6076 = vmatpush1.bf16.msra.mxu0 %v5340
    %6077 = vmatprep.subr.bf16.mxu0 %v5345
    %6078 = vmatpush1.bf16.msra.mxu0 %v5344
    %6079 = vmatprep.subr.bf16.mxu0 %v5349
    %6080 = vmatpush1.bf16.msra.mxu0 %v5348
    %6081 = vmatprep.subr.bf16.mxu0 %v5353
    %6082 = vmatpush1.bf16.msra.mxu0 %v5352
    %6083 = vmatprep.subr.bf16.mxu0 %v5357
    %6084 = vmatpush1.bf16.msra.mxu0 %v5356
    %6085 = vmatprep.mubr.bf16.mxu0 %v3675
    %6086 = vmatmul.mubr.bf16.gmra.mrb[0].mxu0 %v3674
    %v6087 = vpop.f32.mrb[0].mxu0
    %v6088 = vadd.f32 %v6035, %v6087
    %v6089 = vpop.f32.mrb[0].mxu0
    %v6090 = vadd.f32 %v6037, %v6089
    %v6091 = vpop.f32.mrb[0].mxu0
    %v6092 = vadd.f32 %v6039, %v6091
    %v6093 = vpop.f32.mrb[0].mxu0
    %v6094 = vadd.f32 %v6041, %v6093
    %6095 = vmatprep.mubr.bf16.mxu0 %v3687
    %6096 = vmatmul.mubr.bf16.gmra.mrb[0].mxu0 %v3686
    %v6097 = vpop.f32.mrb[0].mxu0
    %v6098 = vadd.f32 %v6045, %v6097
    %v6099 = vpop.f32.mrb[0].mxu0
    %v6100 = vadd.f32 %v6047, %v6099
    %v6101 = vpop.f32.mrb[0].mxu0
    %v6102 = vadd.f32 %v6049, %v6101
    %v6103 = vpop.f32.mrb[0].mxu0
    %v6104 = vadd.f32 %v6051, %v6103
    %6105 = vdwg.mxu0
    %6106 = vmatprep.subr.bf16.mxu0 %v5361
    %6107 = vmatpush1.bf16.msra.mxu0 %v5360
    %6108 = vmatprep.subr.bf16.mxu0 %v5365
    %6109 = vmatpush1.bf16.msra.mxu0 %v5364
    %6110 = vmatprep.subr.bf16.mxu0 %v5369
    %6111 = vmatpush1.bf16.msra.mxu0 %v5368
    %6112 = vmatprep.subr.bf16.mxu0 %v5373
    %6113 = vmatpush1.bf16.msra.mxu0 %v5372
    %6114 = vmatprep.subr.bf16.mxu0 %v5377
    %6115 = vmatpush1.bf16.msra.mxu0 %v5376
    %6116 = vmatprep.subr.bf16.mxu0 %v5381
    %6117 = vmatpush1.bf16.msra.mxu0 %v5380
    %6118 = vmatprep.subr.bf16.mxu0 %v5385
    %6119 = vmatpush1.bf16.msra.mxu0 %v5384
    %6120 = vmatprep.subr.bf16.mxu0 %v5389
    %6121 = vmatpush1.bf16.msra.mxu0 %v5388
    %6122 = vmatprep.subr.bf16.mxu0 %v5393
    %6123 = vmatpush1.bf16.msra.mxu0 %v5392
    %6124 = vmatprep.subr.bf16.mxu0 %v5397
    %6125 = vmatpush1.bf16.msra.mxu0 %v5396
    %6126 = vmatprep.subr.bf16.mxu0 %v5401
    %6127 = vmatpush1.bf16.msra.mxu0 %v5400
    %6128 = vmatprep.subr.bf16.mxu0 %v5405
    %6129 = vmatpush1.bf16.msra.mxu0 %v5404
    %6130 = vmatprep.subr.bf16.mxu0 %v5409
    %6131 = vmatpush1.bf16.msra.mxu0 %v5408
    %6132 = vmatprep.subr.bf16.mxu0 %v5413
    %6133 = vmatpush1.bf16.msra.mxu0 %v5412
    %6134 = vmatprep.subr.bf16.mxu0 %v5417
    %6135 = vmatpush1.bf16.msra.mxu0 %v5416
    %6136 = vmatprep.subr.bf16.mxu0 %v5421
    %6137 = vmatpush1.bf16.msra.mxu0 %v5420
    %6138 = vmatprep.mubr.bf16.mxu0 %v3677
    %6139 = vmatmul.mubr.bf16.gmra.mrb[0].mxu0 %v3676
    %v6140 = vpop.f32.mrb[0].mxu0
    %v6141 = vadd.f32 %v6088, %v6140
    %v6142 = vpop.f32.mrb[0].mxu0
    %v6143 = vadd.f32 %v6090, %v6142
    %v6144 = vpop.f32.mrb[0].mxu0
    %v6145 = vadd.f32 %v6092, %v6144
    %v6146 = vpop.f32.mrb[0].mxu0
    %v6147 = vadd.f32 %v6094, %v6146
    %6148 = vmatprep.mubr.bf16.mxu0 %v3689
    %6149 = vmatmul.mubr.bf16.gmra.mrb[0].mxu0 %v3688
    %v6150 = vpop.f32.mrb[0].mxu0
    %v6151 = vadd.f32 %v6098, %v6150
    %v6152 = vpop.f32.mrb[0].mxu0
    %v6153 = vadd.f32 %v6100, %v6152
    %v6154 = vpop.f32.mrb[0].mxu0
    %v6155 = vadd.f32 %v6102, %v6154
    %v6156 = vpop.f32.mrb[0].mxu0
    %v6157 = vadd.f32 %v6104, %v6156
    %6158 = vdwg.mxu0
    %6159 = vmatprep.subr.bf16.mxu0 %v5425
    %6160 = vmatpush1.bf16.msra.mxu0 %v5424
    %6161 = vmatprep.subr.bf16.mxu0 %v5429
    %6162 = vmatpush1.bf16.msra.mxu0 %v5428
    %6163 = vmatprep.subr.bf16.mxu0 %v5433
    %6164 = vmatpush1.bf16.msra.mxu0 %v5432
    %6165 = vmatprep.subr.bf16.mxu0 %v5437
    %6166 = vmatpush1.bf16.msra.mxu0 %v5436
    %6167 = vmatprep.subr.bf16.mxu0 %v5441
    %6168 = vmatpush1.bf16.msra.mxu0 %v5440
    %6169 = vmatprep.subr.bf16.mxu0 %v5445
    %6170 = vmatpush1.bf16.msra.mxu0 %v5444
    %6171 = vmatprep.subr.bf16.mxu0 %v5449
    %6172 = vmatpush1.bf16.msra.mxu0 %v5448
    %6173 = vmatprep.subr.bf16.mxu0 %v5453
    %6174 = vmatpush1.bf16.msra.mxu0 %v5452
    %6175 = vmatprep.subr.bf16.mxu0 %v5457
    %6176 = vmatpush1.bf16.msra.mxu0 %v5456
    %6177 = vmatprep.subr.bf16.mxu0 %v5461
    %6178 = vmatpush1.bf16.msra.mxu0 %v5460
    %6179 = vmatprep.subr.bf16.mxu0 %v5465
    %6180 = vmatpush1.bf16.msra.mxu0 %v5464
    %6181 = vmatprep.subr.bf16.mxu0 %v5469
    %6182 = vmatpush1.bf16.msra.mxu0 %v5468
    %6183 = vmatprep.subr.bf16.mxu0 %v5473
    %6184 = vmatpush1.bf16.msra.mxu0 %v5472
    %6185 = vmatprep.subr.bf16.mxu0 %v5477
    %6186 = vmatpush1.bf16.msra.mxu0 %v5476
    %6187 = vmatprep.subr.bf16.mxu0 %v5481
    %6188 = vmatpush1.bf16.msra.mxu0 %v5480
    %6189 = vmatprep.subr.bf16.mxu0 %v5485
    %6190 = vmatpush1.bf16.msra.mxu0 %v5484
    %6191 = vmatprep.mubr.bf16.mxu0 %v3679
    %6192 = vmatmul.mubr.bf16.gmra.mrb[0].mxu0 %v3678
    %v6193 = vpop.f32.mrb[0].mxu0
    %v6194 = vadd.f32 %v6141, %v6193
    %v6195 = vpop.f32.mrb[0].mxu0
    %v6196 = vadd.f32 %v6143, %v6195
    %v6197 = vpop.f32.mrb[0].mxu0
    %v6198 = vadd.f32 %v6145, %v6197
    %v6199 = vpop.f32.mrb[0].mxu0
    %v6200 = vadd.f32 %v6147, %v6199
    %6201 = vmatprep.mubr.bf16.mxu0 %v3691
    %6202 = vmatmul.mubr.bf16.gmra.mrb[0].mxu0 %v3690
    %v6203 = vpop.f32.mrb[0].mxu0
    %v6204 = vadd.f32 %v6151, %v6203
    %v6205 = vpop.f32.mrb[0].mxu0
    %v6206 = vadd.f32 %v6153, %v6205
    %v6207 = vpop.f32.mrb[0].mxu0
    %v6208 = vadd.f32 %v6155, %v6207
    %v6209 = vpop.f32.mrb[0].mxu0
    %v6210 = vadd.f32 %v6157, %v6209
    %6211 = vdwg.mxu0
    %6212 = vmatprep.subr.bf16.mxu0 %v5489
    %6213 = vmatpush1.bf16.msra.mxu0 %v5488
    %6214 = vmatprep.subr.bf16.mxu0 %v5493
    %6215 = vmatpush1.bf16.msra.mxu0 %v5492
    %6216 = vmatprep.subr.bf16.mxu0 %v5497
    %6217 = vmatpush1.bf16.msra.mxu0 %v5496
    %6218 = vmatprep.subr.bf16.mxu0 %v5501
    %6219 = vmatpush1.bf16.msra.mxu0 %v5500
    %6220 = vmatprep.subr.bf16.mxu0 %v5505
    %6221 = vmatpush1.bf16.msra.mxu0 %v5504
    %6222 = vmatprep.subr.bf16.mxu0 %v5509
    %6223 = vmatpush1.bf16.msra.mxu0 %v5508
    %6224 = vmatprep.subr.bf16.mxu0 %v5513
    %6225 = vmatpush1.bf16.msra.mxu0 %v5512
    %6226 = vmatprep.subr.bf16.mxu0 %v5517
    %6227 = vmatpush1.bf16.msra.mxu0 %v5516
    %6228 = vmatprep.subr.bf16.mxu0 %v5521
    %6229 = vmatpush1.bf16.msra.mxu0 %v5520
    %6230 = vmatprep.subr.bf16.mxu0 %v5525
    %6231 = vmatpush1.bf16.msra.mxu0 %v5524
    %6232 = vmatprep.subr.bf16.mxu0 %v5529
    %6233 = vmatpush1.bf16.msra.mxu0 %v5528
    %6234 = vmatprep.subr.bf16.mxu0 %v5533
    %6235 = vmatpush1.bf16.msra.mxu0 %v5532
    %6236 = vmatprep.subr.bf16.mxu0 %v5537
    %6237 = vmatpush1.bf16.msra.mxu0 %v5536
    %6238 = vmatprep.subr.bf16.mxu0 %v5541
    %6239 = vmatpush1.bf16.msra.mxu0 %v5540
    %6240 = vmatprep.subr.bf16.mxu0 %v5545
    %6241 = vmatpush1.bf16.msra.mxu0 %v5544
    %6242 = vmatprep.subr.bf16.mxu0 %v5549
    %6243 = vmatpush1.bf16.msra.mxu0 %v5548
    %6244 = vmatprep.mubr.bf16.mxu0 %v3681
    %6245 = vmatmul.mubr.bf16.gmra.mrb[0].mxu0 %v3680
    %v6246 = vpop.f32.mrb[0].mxu0
    %v6247 = vadd.f32 %v6194, %v6246
    %v6248 = vpop.f32.mrb[0].mxu0
    %v6249 = vadd.f32 %v6196, %v6248
    %v6250 = vpop.f32.mrb[0].mxu0
    %v6251 = vadd.f32 %v6198, %v6250
    %v6252 = vpop.f32.mrb[0].mxu0
    %v6253 = vadd.f32 %v6200, %v6252
    %6254 = vmatprep.mubr.bf16.mxu0 %v3693
    %6255 = vmatmul.mubr.bf16.gmra.mrb[0].mxu0 %v3692
    %v6256 = vpop.f32.mrb[0].mxu0
    %v6257 = vadd.f32 %v6204, %v6256
    %v6258 = vpop.f32.mrb[0].mxu0
    %v6259 = vadd.f32 %v6206, %v6258
    %v6260 = vpop.f32.mrb[0].mxu0
    %v6261 = vadd.f32 %v6208, %v6260
    %v6262 = vpop.f32.mrb[0].mxu0
    %v6263 = vadd.f32 %v6210, %v6262
    %6264 = vdwg.mxu0
    %6265 = vmatprep.subr.bf16.mxu0 %v5553
    %6266 = vmatpush1.bf16.msra.mxu0 %v5552
    %6267 = vmatprep.subr.bf16.mxu0 %v5557
    %6268 = vmatpush1.bf16.msra.mxu0 %v5556
    %6269 = vmatprep.subr.bf16.mxu0 %v5561
    %6270 = vmatpush1.bf16.msra.mxu0 %v5560
    %6271 = vmatprep.subr.bf16.mxu0 %v5565
    %6272 = vmatpush1.bf16.msra.mxu0 %v5564
    %6273 = vmatprep.subr.bf16.mxu0 %v5569
    %6274 = vmatpush1.bf16.msra.mxu0 %v5568
    %6275 = vmatprep.subr.bf16.mxu0 %v5573
    %6276 = vmatpush1.bf16.msra.mxu0 %v5572
    %6277 = vmatprep.subr.bf16.mxu0 %v5577
    %6278 = vmatpush1.bf16.msra.mxu0 %v5576
    %6279 = vmatprep.subr.bf16.mxu0 %v5581
    %6280 = vmatpush1.bf16.msra.mxu0 %v5580
    %6281 = vmatprep.subr.bf16.mxu0 %v5585
    %6282 = vmatpush1.bf16.msra.mxu0 %v5584
    %6283 = vmatprep.subr.bf16.mxu0 %v5589
    %6284 = vmatpush1.bf16.msra.mxu0 %v5588
    %6285 = vmatprep.subr.bf16.mxu0 %v5593
    %6286 = vmatpush1.bf16.msra.mxu0 %v5592
    %6287 = vmatprep.subr.bf16.mxu0 %v5597
    %6288 = vmatpush1.bf16.msra.mxu0 %v5596
    %6289 = vmatprep.subr.bf16.mxu0 %v5601
    %6290 = vmatpush1.bf16.msra.mxu0 %v5600
    %6291 = vmatprep.subr.bf16.mxu0 %v5605
    %6292 = vmatpush1.bf16.msra.mxu0 %v5604
    %6293 = vmatprep.subr.bf16.mxu0 %v5609
    %6294 = vmatpush1.bf16.msra.mxu0 %v5608
    %6295 = vmatprep.subr.bf16.mxu0 %v5613
    %6296 = vmatpush1.bf16.msra.mxu0 %v5612
    %6297 = vmatprep.mubr.bf16.mxu0 %v3683
    %6298 = vmatmul.mubr.bf16.gmra.mrb[0].mxu0 %v3682
    %v6299 = vpop.f32.mrb[0].mxu0
    %v6300 = vadd.f32 %v6247, %v6299
    %v6301 = vpop.f32.mrb[0].mxu0
    %v6302 = vadd.f32 %v6249, %v6301
    %v6303 = vpop.f32.mrb[0].mxu0
    %v6304 = vadd.f32 %v6251, %v6303
    %v6305 = vpop.f32.mrb[0].mxu0
    %v6306 = vadd.f32 %v6253, %v6305
    %6307 = vmatprep.mubr.bf16.mxu0 %v3695
    %6308 = vmatmul.mubr.bf16.gmra.mrb[0].mxu0 %v3694
    %v6309 = vpop.f32.mrb[0].mxu0
    %v6310 = vadd.f32 %v6257, %v6309
    %v6311 = vpop.f32.mrb[0].mxu0
    %v6312 = vadd.f32 %v6259, %v6311
    %v6313 = vpop.f32.mrb[0].mxu0
    %v6314 = vadd.f32 %v6261, %v6313
    %v6315 = vpop.f32.mrb[0].mxu0
    %v6316 = vadd.f32 %v6263, %v6315
    %6317 = vdwg.mxu0
    %6318 = vmatprep.subr.bf16.mxu0 %v5235
    %6319 = vmatpush1.bf16.msra.mxu0 %v5234
    %6320 = vmatprep.subr.bf16.mxu0 %v5239
    %6321 = vmatpush1.bf16.msra.mxu0 %v5238
    %6322 = vmatprep.subr.bf16.mxu0 %v5243
    %6323 = vmatpush1.bf16.msra.mxu0 %v5242
    %6324 = vmatprep.subr.bf16.mxu0 %v5247
    %6325 = vmatpush1.bf16.msra.mxu0 %v5246
    %6326 = vmatprep.subr.bf16.mxu0 %v5251
    %6327 = vmatpush1.bf16.msra.mxu0 %v5250
    %6328 = vmatprep.subr.bf16.mxu0 %v5255
    %6329 = vmatpush1.bf16.msra.mxu0 %v5254
    %6330 = vmatprep.subr.bf16.mxu0 %v5259
    %6331 = vmatpush1.bf16.msra.mxu0 %v5258
    %6332 = vmatprep.subr.bf16.mxu0 %v5263
    %6333 = vmatpush1.bf16.msra.mxu0 %v5262
    %6334 = vmatprep.subr.bf16.mxu0 %v5267
    %6335 = vmatpush1.bf16.msra.mxu0 %v5266
    %6336 = vmatprep.subr.bf16.mxu0 %v5271
    %6337 = vmatpush1.bf16.msra.mxu0 %v5270
    %6338 = vmatprep.subr.bf16.mxu0 %v5275
    %6339 = vmatpush1.bf16.msra.mxu0 %v5274
    %6340 = vmatprep.subr.bf16.mxu0 %v5279
    %6341 = vmatpush1.bf16.msra.mxu0 %v5278
    %6342 = vmatprep.subr.bf16.mxu0 %v5283
    %6343 = vmatpush1.bf16.msra.mxu0 %v5282
    %6344 = vmatprep.subr.bf16.mxu0 %v5287
    %6345 = vmatpush1.bf16.msra.mxu0 %v5286
    %6346 = vmatprep.subr.bf16.mxu0 %v5291
    %6347 = vmatpush1.bf16.msra.mxu0 %v5290
    %6348 = vmatprep.subr.bf16.mxu0 %v5295
    %6349 = vmatpush1.bf16.msra.mxu0 %v5294
    %6350 = vmatprep.mubr.bf16.mxu0 %v3673
    %6351 = vmatmul.mubr.bf16.gmra.mrb[0].mxu0 %v3672
    %v6352 = vpop.f32.mrb[0].mxu0
    %v6353 = vadd.f32 0.0, %v6352
    %v6354 = vpop.f32.mrb[0].mxu0
    %v6355 = vadd.f32 0.0, %v6354
    %v6356 = vpop.f32.mrb[0].mxu0
    %v6357 = vadd.f32 0.0, %v6356
    %v6358 = vpop.f32.mrb[0].mxu0
    %v6359 = vadd.f32 0.0, %v6358
    %6360 = vmatprep.mubr.bf16.mxu0 %v3685
    %6361 = vmatmul.mubr.bf16.gmra.mrb[0].mxu0 %v3684
    %v6362 = vpop.f32.mrb[0].mxu0
    %v6363 = vadd.f32 0.0, %v6362
    %v6364 = vpop.f32.mrb[0].mxu0
    %v6365 = vadd.f32 0.0, %v6364
    %v6366 = vpop.f32.mrb[0].mxu0
    %v6367 = vadd.f32 0.0, %v6366
    %v6368 = vpop.f32.mrb[0].mxu0
    %v6369 = vadd.f32 0.0, %v6368
    %6370 = vdwg.mxu0
    %6371 = vmatprep.subr.bf16.mxu0 %v5299
    %6372 = vmatpush1.bf16.msra.mxu0 %v5298
    %6373 = vmatprep.subr.bf16.mxu0 %v5303
    %6374 = vmatpush1.bf16.msra.mxu0 %v5302
    %6375 = vmatprep.subr.bf16.mxu0 %v5307
    %6376 = vmatpush1.bf16.msra.mxu0 %v5306
    %6377 = vmatprep.subr.bf16.mxu0 %v5311
    %6378 = vmatpush1.bf16.msra.mxu0 %v5310
    %6379 = vmatprep.subr.bf16.mxu0 %v5315
    %6380 = vmatpush1.bf16.msra.mxu0 %v5314
    %6381 = vmatprep.subr.bf16.mxu0 %v5319
    %6382 = vmatpush1.bf16.msra.mxu0 %v5318
    %6383 = vmatprep.subr.bf16.mxu0 %v5323
    %6384 = vmatpush1.bf16.msra.mxu0 %v5322
    %6385 = vmatprep.subr.bf16.mxu0 %v5327
    %6386 = vmatpush1.bf16.msra.mxu0 %v5326
    %6387 = vmatprep.subr.bf16.mxu0 %v5331
    %6388 = vmatpush1.bf16.msra.mxu0 %v5330
    %6389 = vmatprep.subr.bf16.mxu0 %v5335
    %6390 = vmatpush1.bf16.msra.mxu0 %v5334
    %6391 = vmatprep.subr.bf16.mxu0 %v5339
    %6392 = vmatpush1.bf16.msra.mxu0 %v5338
    %6393 = vmatprep.subr.bf16.mxu0 %v5343
    %6394 = vmatpush1.bf16.msra.mxu0 %v5342
    %6395 = vmatprep.subr.bf16.mxu0 %v5347
    %6396 = vmatpush1.bf16.msra.mxu0 %v5346
    %6397 = vmatprep.subr.bf16.mxu0 %v5351
    %6398 = vmatpush1.bf16.msra.mxu0 %v5350
    %6399 = vmatprep.subr.bf16.mxu0 %v5355
    %6400 = vmatpush1.bf16.msra.mxu0 %v5354
    %6401 = vmatprep.subr.bf16.mxu0 %v5359
    %6402 = vmatpush1.bf16.msra.mxu0 %v5358
    %6403 = vmatprep.mubr.bf16.mxu0 %v3675
    %6404 = vmatmul.mubr.bf16.gmra.mrb[0].mxu0 %v3674
    %v6405 = vpop.f32.mrb[0].mxu0
    %v6406 = vadd.f32 %v6353, %v6405
    %v6407 = vpop.f32.mrb[0].mxu0
    %v6408 = vadd.f32 %v6355, %v6407
    %v6409 = vpop.f32.mrb[0].mxu0
    %v6410 = vadd.f32 %v6357, %v6409
    %v6411 = vpop.f32.mrb[0].mxu0
    %v6412 = vadd.f32 %v6359, %v6411
    %6413 = vmatprep.mubr.bf16.mxu0 %v3687
    %6414 = vmatmul.mubr.bf16.gmra.mrb[0].mxu0 %v3686
    %v6415 = vpop.f32.mrb[0].mxu0
    %v6416 = vadd.f32 %v6363, %v6415
    %v6417 = vpop.f32.mrb[0].mxu0
    %v6418 = vadd.f32 %v6365, %v6417
    %v6419 = vpop.f32.mrb[0].mxu0
    %v6420 = vadd.f32 %v6367, %v6419
    %v6421 = vpop.f32.mrb[0].mxu0
    %v6422 = vadd.f32 %v6369, %v6421
    %6423 = vdwg.mxu0
    %6424 = vmatprep.subr.bf16.mxu0 %v5363
    %6425 = vmatpush1.bf16.msra.mxu0 %v5362
    %6426 = vmatprep.subr.bf16.mxu0 %v5367
    %6427 = vmatpush1.bf16.msra.mxu0 %v5366
    %6428 = vmatprep.subr.bf16.mxu0 %v5371
    %6429 = vmatpush1.bf16.msra.mxu0 %v5370
    %6430 = vmatprep.subr.bf16.mxu0 %v5375
    %6431 = vmatpush1.bf16.msra.mxu0 %v5374
    %6432 = vmatprep.subr.bf16.mxu0 %v5379
    %6433 = vmatpush1.bf16.msra.mxu0 %v5378
    %6434 = vmatprep.subr.bf16.mxu0 %v5383
    %6435 = vmatpush1.bf16.msra.mxu0 %v5382
    %6436 = vmatprep.subr.bf16.mxu0 %v5387
    %6437 = vmatpush1.bf16.msra.mxu0 %v5386
    %6438 = vmatprep.subr.bf16.mxu0 %v5391
    %6439 = vmatpush1.bf16.msra.mxu0 %v5390
    %6440 = vmatprep.subr.bf16.mxu0 %v5395
    %6441 = vmatpush1.bf16.msra.mxu0 %v5394
    %6442 = vmatprep.subr.bf16.mxu0 %v5399
    %6443 = vmatpush1.bf16.msra.mxu0 %v5398
    %6444 = vmatprep.subr.bf16.mxu0 %v5403
    %6445 = vmatpush1.bf16.msra.mxu0 %v5402
    %6446 = vmatprep.subr.bf16.mxu0 %v5407
    %6447 = vmatpush1.bf16.msra.mxu0 %v5406
    %6448 = vmatprep.subr.bf16.mxu0 %v5411
    %6449 = vmatpush1.bf16.msra.mxu0 %v5410
    %6450 = vmatprep.subr.bf16.mxu0 %v5415
    %6451 = vmatpush1.bf16.msra.mxu0 %v5414
    %6452 = vmatprep.subr.bf16.mxu0 %v5419
    %6453 = vmatpush1.bf16.msra.mxu0 %v5418
    %6454 = vmatprep.subr.bf16.mxu0 %v5423
    %6455 = vmatpush1.bf16.msra.mxu0 %v5422
    %6456 = vmatprep.mubr.bf16.mxu0 %v3677
    %6457 = vmatmul.mubr.bf16.gmra.mrb[0].mxu0 %v3676
    %v6458 = vpop.f32.mrb[0].mxu0
    %v6459 = vadd.f32 %v6406, %v6458
    %v6460 = vpop.f32.mrb[0].mxu0
    %v6461 = vadd.f32 %v6408, %v6460
    %v6462 = vpop.f32.mrb[0].mxu0
    %v6463 = vadd.f32 %v6410, %v6462
    %v6464 = vpop.f32.mrb[0].mxu0
    %v6465 = vadd.f32 %v6412, %v6464
    %6466 = vmatprep.mubr.bf16.mxu0 %v3689
    %6467 = vmatmul.mubr.bf16.gmra.mrb[0].mxu0 %v3688
    %v6468 = vpop.f32.mrb[0].mxu0
    %v6469 = vadd.f32 %v6416, %v6468
    %v6470 = vpop.f32.mrb[0].mxu0
    %v6471 = vadd.f32 %v6418, %v6470
    %v6472 = vpop.f32.mrb[0].mxu0
    %v6473 = vadd.f32 %v6420, %v6472
    %v6474 = vpop.f32.mrb[0].mxu0
    %v6475 = vadd.f32 %v6422, %v6474
    %6476 = vdwg.mxu0
    %6477 = vmatprep.subr.bf16.mxu0 %v5427
    %6478 = vmatpush1.bf16.msra.mxu0 %v5426
    %6479 = vmatprep.subr.bf16.mxu0 %v5431
    %6480 = vmatpush1.bf16.msra.mxu0 %v5430
    %6481 = vmatprep.subr.bf16.mxu0 %v5435
    %6482 = vmatpush1.bf16.msra.mxu0 %v5434
    %6483 = vmatprep.subr.bf16.mxu0 %v5439
    %6484 = vmatpush1.bf16.msra.mxu0 %v5438
    %6485 = vmatprep.subr.bf16.mxu0 %v5443
    %6486 = vmatpush1.bf16.msra.mxu0 %v5442
    %6487 = vmatprep.subr.bf16.mxu0 %v5447
    %6488 = vmatpush1.bf16.msra.mxu0 %v5446
    %6489 = vmatprep.subr.bf16.mxu0 %v5451
    %6490 = vmatpush1.bf16.msra.mxu0 %v5450
    %6491 = vmatprep.subr.bf16.mxu0 %v5455
    %6492 = vmatpush1.bf16.msra.mxu0 %v5454
    %6493 = vmatprep.subr.bf16.mxu0 %v5459
    %6494 = vmatpush1.bf16.msra.mxu0 %v5458
    %6495 = vmatprep.subr.bf16.mxu0 %v5463
    %6496 = vmatpush1.bf16.msra.mxu0 %v5462
    %6497 = vmatprep.subr.bf16.mxu0 %v5467
    %6498 = vmatpush1.bf16.msra.mxu0 %v5466
    %6499 = vmatprep.subr.bf16.mxu0 %v5471
    %6500 = vmatpush1.bf16.msra.mxu0 %v5470
    %6501 = vmatprep.subr.bf16.mxu0 %v5475
    %6502 = vmatpush1.bf16.msra.mxu0 %v5474
    %6503 = vmatprep.subr.bf16.mxu0 %v5479
    %6504 = vmatpush1.bf16.msra.mxu0 %v5478
    %6505 = vmatprep.subr.bf16.mxu0 %v5483
    %6506 = vmatpush1.bf16.msra.mxu0 %v5482
    %6507 = vmatprep.subr.bf16.mxu0 %v5487
    %6508 = vmatpush1.bf16.msra.mxu0 %v5486
    %6509 = vmatprep.mubr.bf16.mxu0 %v3679
    %6510 = vmatmul.mubr.bf16.gmra.mrb[0].mxu0 %v3678
    %v6511 = vpop.f32.mrb[0].mxu0
    %v6512 = vadd.f32 %v6459, %v6511
    %v6513 = vpop.f32.mrb[0].mxu0
    %v6514 = vadd.f32 %v6461, %v6513
    %v6515 = vpop.f32.mrb[0].mxu0
    %v6516 = vadd.f32 %v6463, %v6515
    %v6517 = vpop.f32.mrb[0].mxu0
    %v6518 = vadd.f32 %v6465, %v6517
    %6519 = vmatprep.mubr.bf16.mxu0 %v3691
    %6520 = vmatmul.mubr.bf16.gmra.mrb[0].mxu0 %v3690
    %v6521 = vpop.f32.mrb[0].mxu0
    %v6522 = vadd.f32 %v6469, %v6521
    %v6523 = vpop.f32.mrb[0].mxu0
    %v6524 = vadd.f32 %v6471, %v6523
    %v6525 = vpop.f32.mrb[0].mxu0
    %v6526 = vadd.f32 %v6473, %v6525
    %v6527 = vpop.f32.mrb[0].mxu0
    %v6528 = vadd.f32 %v6475, %v6527
    %6529 = vdwg.mxu0
    %6530 = vmatprep.subr.bf16.mxu0 %v5491
    %6531 = vmatpush1.bf16.msra.mxu0 %v5490
    %6532 = vmatprep.subr.bf16.mxu0 %v5495
    %6533 = vmatpush1.bf16.msra.mxu0 %v5494
    %6534 = vmatprep.subr.bf16.mxu0 %v5499
    %6535 = vmatpush1.bf16.msra.mxu0 %v5498
    %6536 = vmatprep.subr.bf16.mxu0 %v5503
    %6537 = vmatpush1.bf16.msra.mxu0 %v5502
    %6538 = vmatprep.subr.bf16.mxu0 %v5507
    %6539 = vmatpush1.bf16.msra.mxu0 %v5506
    %6540 = vmatprep.subr.bf16.mxu0 %v5511
    %6541 = vmatpush1.bf16.msra.mxu0 %v5510
    %6542 = vmatprep.subr.bf16.mxu0 %v5515
    %6543 = vmatpush1.bf16.msra.mxu0 %v5514
    %6544 = vmatprep.subr.bf16.mxu0 %v5519
    %6545 = vmatpush1.bf16.msra.mxu0 %v5518
    %6546 = vmatprep.subr.bf16.mxu0 %v5523
    %6547 = vmatpush1.bf16.msra.mxu0 %v5522
    %6548 = vmatprep.subr.bf16.mxu0 %v5527
    %6549 = vmatpush1.bf16.msra.mxu0 %v5526
    %6550 = vmatprep.subr.bf16.mxu0 %v5531
    %6551 = vmatpush1.bf16.msra.mxu0 %v5530
    %6552 = vmatprep.subr.bf16.mxu0 %v5535
    %6553 = vmatpush1.bf16.msra.mxu0 %v5534
    %6554 = vmatprep.subr.bf16.mxu0 %v5539
    %6555 = vmatpush1.bf16.msra.mxu0 %v5538
    %6556 = vmatprep.subr.bf16.mxu0 %v5543
    %6557 = vmatpush1.bf16.msra.mxu0 %v5542
    %6558 = vmatprep.subr.bf16.mxu0 %v5547
    %6559 = vmatpush1.bf16.msra.mxu0 %v5546
    %6560 = vmatprep.subr.bf16.mxu0 %v5551
    %6561 = vmatpush1.bf16.msra.mxu0 %v5550
    %6562 = vmatprep.mubr.bf16.mxu0 %v3681
    %6563 = vmatmul.mubr.bf16.gmra.mrb[0].mxu0 %v3680
    %v6564 = vpop.f32.mrb[0].mxu0
    %v6565 = vadd.f32 %v6512, %v6564
    %v6566 = vpop.f32.mrb[0].mxu0
    %v6567 = vadd.f32 %v6514, %v6566
    %v6568 = vpop.f32.mrb[0].mxu0
    %v6569 = vadd.f32 %v6516, %v6568
    %v6570 = vpop.f32.mrb[0].mxu0
    %v6571 = vadd.f32 %v6518, %v6570
    %6572 = vmatprep.mubr.bf16.mxu0 %v3693
    %6573 = vmatmul.mubr.bf16.gmra.mrb[0].mxu0 %v3692
    %v6574 = vpop.f32.mrb[0].mxu0
    %v6575 = vadd.f32 %v6522, %v6574
    %v6576 = vpop.f32.mrb[0].mxu0
    %v6577 = vadd.f32 %v6524, %v6576
    %v6578 = vpop.f32.mrb[0].mxu0
    %v6579 = vadd.f32 %v6526, %v6578
    %v6580 = vpop.f32.mrb[0].mxu0
    %v6581 = vadd.f32 %v6528, %v6580
    %6582 = vdwg.mxu0
    %6583 = vmatprep.subr.bf16.mxu0 %v5555
    %6584 = vmatpush1.bf16.msra.mxu0 %v5554
    %6585 = vmatprep.subr.bf16.mxu0 %v5559
    %6586 = vmatpush1.bf16.msra.mxu0 %v5558
    %6587 = vmatprep.subr.bf16.mxu0 %v5563
    %6588 = vmatpush1.bf16.msra.mxu0 %v5562
    %6589 = vmatprep.subr.bf16.mxu0 %v5567
    %6590 = vmatpush1.bf16.msra.mxu0 %v5566
    %6591 = vmatprep.subr.bf16.mxu0 %v5571
    %6592 = vmatpush1.bf16.msra.mxu0 %v5570
    %6593 = vmatprep.subr.bf16.mxu0 %v5575
    %6594 = vmatpush1.bf16.msra.mxu0 %v5574
    %6595 = vmatprep.subr.bf16.mxu0 %v5579
    %6596 = vmatpush1.bf16.msra.mxu0 %v5578
    %6597 = vmatprep.subr.bf16.mxu0 %v5583
    %6598 = vmatpush1.bf16.msra.mxu0 %v5582
    %6599 = vmatprep.subr.bf16.mxu0 %v5587
    %6600 = vmatpush1.bf16.msra.mxu0 %v5586
    %6601 = vmatprep.subr.bf16.mxu0 %v5591
    %6602 = vmatpush1.bf16.msra.mxu0 %v5590
    %6603 = vmatprep.subr.bf16.mxu0 %v5595
    %6604 = vmatpush1.bf16.msra.mxu0 %v5594
    %6605 = vmatprep.subr.bf16.mxu0 %v5599
    %6606 = vmatpush1.bf16.msra.mxu0 %v5598
    %6607 = vmatprep.subr.bf16.mxu0 %v5603
    %6608 = vmatpush1.bf16.msra.mxu0 %v5602
    %6609 = vmatprep.subr.bf16.mxu0 %v5607
    %6610 = vmatpush1.bf16.msra.mxu0 %v5606
    %6611 = vmatprep.subr.bf16.mxu0 %v5611
    %6612 = vmatpush1.bf16.msra.mxu0 %v5610
    %6613 = vmatprep.subr.bf16.mxu0 %v5615
    %6614 = vmatpush1.bf16.msra.mxu0 %v5614
    %6615 = vmatprep.mubr.bf16.mxu0 %v3683
    %6616 = vmatmul.mubr.bf16.gmra.mrb[0].mxu0 %v3682
    %v6617 = vpop.f32.mrb[0].mxu0
    %v6618 = vadd.f32 %v6565, %v6617
    %v6619 = vpop.f32.mrb[0].mxu0
    %v6620 = vadd.f32 %v6567, %v6619
    %v6621 = vpop.f32.mrb[0].mxu0
    %v6622 = vadd.f32 %v6569, %v6621
    %v6623 = vpop.f32.mrb[0].mxu0
    %v6624 = vadd.f32 %v6571, %v6623
    %6625 = vmatprep.mubr.bf16.mxu0 %v3695
    %6626 = vmatmul.mubr.bf16.gmra.mrb[0].mxu0 %v3694
    %v6627 = vpop.f32.mrb[0].mxu0
    %v6628 = vadd.f32 %v6575, %v6627
    %v6629 = vpop.f32.mrb[0].mxu0
    %v6630 = vadd.f32 %v6577, %v6629
    %v6631 = vpop.f32.mrb[0].mxu0
    %v6632 = vadd.f32 %v6579, %v6631
    %v6633 = vpop.f32.mrb[0].mxu0
    %v6634 = vadd.f32 %v6581, %v6633
    %6635 = vdwg.mxu0
    %v6636 = vadd.f32 %v6300, %v6304
    %v6637 = vadd.f32 %v6636, %v6310
    %v6638 = vadd.f32 %v6637, %v6314
    %v6639 = vrot.slane %v6638, 4
    %v6640 = vadd.f32 %v6638, %v6639
    %v6641 = vrot.slane %v6640, 2
    %v6642 = vadd.f32 %v6640, %v6641
    %v6643 = vrot.slane %v6642, 1
    %v6644 = vadd.f32 %v6642, %v6643
    %v6645 = vadd.f32 %v6302, %v6306
    %v6646 = vadd.f32 %v6645, %v6312
    %v6647 = vadd.f32 %v6646, %v6316
    %v6648 = vrot.slane %v6647, 4
    %v6649 = vadd.f32 %v6647, %v6648
    %v6650 = vrot.slane %v6649, 2
    %v6651 = vadd.f32 %v6649, %v6650
    %v6652 = vrot.slane %v6651, 1
    %v6653 = vadd.f32 %v6651, %v6652
    %v6654 = vadd.f32 %v6618, %v6622
    %v6655 = vadd.f32 %v6654, %v6628
    %v6656 = vadd.f32 %v6655, %v6632
    %v6657 = vrot.slane %v6656, 4
    %v6658 = vadd.f32 %v6656, %v6657
    %v6659 = vrot.slane %v6658, 2
    %v6660 = vadd.f32 %v6658, %v6659
    %v6661 = vrot.slane %v6660, 1
    %v6662 = vadd.f32 %v6660, %v6661
    %v6663 = vadd.f32 %v6620, %v6624
    %v6664 = vadd.f32 %v6663, %v6630
    %v6665 = vadd.f32 %v6664, %v6634
    %v6666 = vrot.slane %v6665, 4
    %v6667 = vadd.f32 %v6665, %v6666
    %v6668 = vrot.slane %v6667, 2
    %v6669 = vadd.f32 %v6667, %v6668
    %v6670 = vrot.slane %v6669, 1
    %v6671 = vadd.f32 %v6669, %v6670
    %v6672 = vadd.f32 %v6644, %v6662
    %v6673 = vadd.f32 %v6653, %v6671
    %v6674 = vadd.f32 %v6672, %v6673
    %6675 = vrot.lane.b32.xlu0 %v6674, 64
    %v6676 = vpop.permute.xlu0 %6675
    %v6677 = vadd.f32 %v6674, %v6676
    %6678 = vrot.lane.b32.xlu0 %v6677, 32
    %v6679 = vpop.permute.xlu0 %6678
    %v6680 = vadd.f32 %v6677, %v6679
    %v6681 = vmul.f32 %v6680, 0.001953125
    %v6682 = vlaneseq
    %v6683 = vshrl.u32 %v6682, 7
    %v6684 = vsub.s32 0, %v6683
    %v6685 = vrot.slane %v6681, %v6684
    %v6686 = vsub.f32 %v6300, %v6685
    %v6687 = vsub.f32 %v6302, %v6685
    %v6688 = vsub.f32 %v6618, %v6685
    %v6689 = vsub.f32 %v6620, %v6685
    %v6690 = vsub.f32 %v6304, %v6685
    %v6691 = vsub.f32 %v6306, %v6685
    %v6692 = vsub.f32 %v6622, %v6685
    %v6693 = vsub.f32 %v6624, %v6685
    %v6694 = vsub.f32 %v6310, %v6685
    %v6695 = vsub.f32 %v6312, %v6685
    %v6696 = vsub.f32 %v6628, %v6685
    %v6697 = vsub.f32 %v6630, %v6685
    %v6698 = vsub.f32 %v6314, %v6685
    %v6699 = vsub.f32 %v6316, %v6685
    %v6700 = vsub.f32 %v6632, %v6685
    %v6701 = vsub.f32 %v6634, %v6685
    %v6702 = vmul.f32 %v6686, %v6686
    %v6703 = vmul.f32 %v6687, %v6687
    %v6704 = vmul.f32 %v6688, %v6688
    %v6705 = vmul.f32 %v6689, %v6689
    %v6706 = vmul.f32 %v6690, %v6690
    %v6707 = vmul.f32 %v6691, %v6691
    %v6708 = vmul.f32 %v6692, %v6692
    %v6709 = vmul.f32 %v6693, %v6693
    %v6710 = vmul.f32 %v6694, %v6694
    %v6711 = vmul.f32 %v6695, %v6695
    %v6712 = vmul.f32 %v6696, %v6696
    %v6713 = vmul.f32 %v6697, %v6697
    %v6714 = vmul.f32 %v6698, %v6698
    %v6715 = vmul.f32 %v6699, %v6699
    %v6716 = vmul.f32 %v6700, %v6700
    %v6717 = vmul.f32 %v6701, %v6701
    %v6718 = vadd.f32 %v6702, %v6706
    %v6719 = vadd.f32 %v6718, %v6710
    %v6720 = vadd.f32 %v6719, %v6714
    %v6721 = vrot.slane %v6720, 4
    %v6722 = vadd.f32 %v6720, %v6721
    %v6723 = vrot.slane %v6722, 2
    %v6724 = vadd.f32 %v6722, %v6723
    %v6725 = vrot.slane %v6724, 1
    %v6726 = vadd.f32 %v6724, %v6725
    %v6727 = vadd.f32 %v6703, %v6707
    %v6728 = vadd.f32 %v6727, %v6711
    %v6729 = vadd.f32 %v6728, %v6715
    %v6730 = vrot.slane %v6729, 4
    %v6731 = vadd.f32 %v6729, %v6730
    %v6732 = vrot.slane %v6731, 2
    %v6733 = vadd.f32 %v6731, %v6732
    %v6734 = vrot.slane %v6733, 1
    %v6735 = vadd.f32 %v6733, %v6734
    %v6736 = vadd.f32 %v6704, %v6708
    %v6737 = vadd.f32 %v6736, %v6712
    %v6738 = vadd.f32 %v6737, %v6716
    %v6739 = vrot.slane %v6738, 4
    %v6740 = vadd.f32 %v6738, %v6739
    %v6741 = vrot.slane %v6740, 2
    %v6742 = vadd.f32 %v6740, %v6741
    %v6743 = vrot.slane %v6742, 1
    %v6744 = vadd.f32 %v6742, %v6743
    %v6745 = vadd.f32 %v6705, %v6709
    %v6746 = vadd.f32 %v6745, %v6713
    %v6747 = vadd.f32 %v6746, %v6717
    %v6748 = vrot.slane %v6747, 4
    %v6749 = vadd.f32 %v6747, %v6748
    %v6750 = vrot.slane %v6749, 2
    %v6751 = vadd.f32 %v6749, %v6750
    %v6752 = vrot.slane %v6751, 1
    %v6753 = vadd.f32 %v6751, %v6752
    %v6754 = vadd.f32 %v6726, %v6744
    %v6755 = vadd.f32 %v6735, %v6753
    %v6756 = vadd.f32 %v6754, %v6755
    %6757 = vrot.lane.b32.xlu0 %v6756, 64
    %v6758 = vpop.permute.xlu0 %6757
    %v6759 = vadd.f32 %v6756, %v6758
    %6760 = vrot.lane.b32.xlu0 %v6759, 32
    %v6761 = vpop.permute.xlu0 %6760
    %v6762 = vadd.f32 %v6759, %v6761
    %v6763 = vmul.f32 %v6762, 0.001953125
    %v6764 = vld [vmem:[#allocation11] sm:$0xf]
    %v6765 = vadd.f32 %v6763, 1e-05
    %v6766 = vrsqrt.pop %v6765
    %v6768 = vcombine.low %v6766, %v6766
    %v6770 = vunpack.c.l.s4 1966171168
    %v6771 = vunpack.c.0.s8 %v6770
    %v6772 = vlaneseq
    %v6773 = vshrl.u32 %v6772, 7
    %v6774 = vsub.s32 %v6771, %v6773
    %v6775 = vrot.slane %v6768, %v6774
    %v6776 = vcombine.low %v6775, %v6775
    %v6778 = vunpack.c.l.s4 1966171168
    %v6779 = vunpack.c.0.s8 %v6778
    %v6780 = vlaneseq
    %v6781 = vshrl.u32 %v6780, 7
    %v6782 = vsub.s32 %v6779, %v6781
    %v6783 = vrot.slane %v6776, %v6782
    %v6785 = vmul.f32 %v6764, %v6783
    %v6786 = vld [vmem:[#allocation13] sm:$0xf]
    %v6788 = vlaneseq
    %v6789 = vshrl.u32 %v6788, 7
    %v6790 = vsub.s32 0, %v6789
    %v6791 = vrot.slane %v6785, %v6790
    %v6792 = vlaneseq
    %v6793 = vshrl.u32 %v6792, 7
    %v6794 = vsub.s32 1, %v6793
    %v6795 = vrot.slane %v6785, %v6794
    %v6796 = vlaneseq
    %v6797 = vshrl.u32 %v6796, 7
    %v6798 = vsub.s32 2, %v6797
    %v6799 = vrot.slane %v6785, %v6798
    %v6800 = vlaneseq
    %v6801 = vshrl.u32 %v6800, 7
    %v6802 = vsub.s32 3, %v6801
    %v6803 = vrot.slane %v6785, %v6802
    %v6808 = vmul.f32 %v6681, %v6791
    %v6809 = vmul.f32 %v6681, %v6795
    %v6810 = vmul.f32 %v6681, %v6799
    %v6811 = vmul.f32 %v6681, %v6803
    %v6816 = vcombine.low %v6808, %v6809
    %v6817 = vcombine.low %v6810, %v6811
    %v6819 = vunpack.c.l.s4 1966171168
    %v6820 = vunpack.c.0.s8 %v6819
    %v6821 = vlaneseq
    %v6822 = vshrl.u32 %v6821, 7
    %v6823 = vsub.s32 %v6820, %v6822
    %v6824 = vrot.slane %v6816, %v6823
    %v6826 = vunpack.c.l.s4 1966171168
    %v6827 = vunpack.c.0.s8 %v6826
    %v6828 = vlaneseq
    %v6829 = vshrl.u32 %v6828, 7
    %v6830 = vsub.s32 %v6827, %v6829
    %v6831 = vrot.slane %v6817, %v6830
    %v6832 = vcombine.low %v6824, %v6831
    %v6834 = vunpack.c.l.s4 1966171168
    %v6835 = vunpack.c.0.s8 %v6834
    %v6836 = vlaneseq
    %v6837 = vshrl.u32 %v6836, 7
    %v6838 = vsub.s32 %v6835, %v6837
    %v6839 = vrot.slane %v6832, %v6838
    %v6841 = vsub.f32 %v6786, %v6839
    %v6842 = vmul.f32 %v6300, %v6791
    %v6843 = vmul.f32 %v6302, %v6795
    %v6844 = vmul.f32 %v6618, %v6799
    %v6845 = vmul.f32 %v6620, %v6803
    %v6846 = vmul.f32 %v6304, %v6791
    %v6847 = vmul.f32 %v6306, %v6795
    %v6848 = vmul.f32 %v6622, %v6799
    %v6849 = vmul.f32 %v6624, %v6803
    %v6850 = vmul.f32 %v6310, %v6791
    %v6851 = vmul.f32 %v6312, %v6795
    %v6852 = vmul.f32 %v6628, %v6799
    %v6853 = vmul.f32 %v6630, %v6803
    %v6854 = vmul.f32 %v6314, %v6791
    %v6855 = vmul.f32 %v6316, %v6795
    %v6856 = vmul.f32 %v6632, %v6799
    %v6857 = vmul.f32 %v6634, %v6803
    %v6859 = vlaneseq
    %v6860 = vshrl.u32 %v6859, 7
    %v6861 = vsub.s32 0, %v6860
    %v6862 = vrot.slane %v6841, %v6861
    %v6863 = vlaneseq
    %v6864 = vshrl.u32 %v6863, 7
    %v6865 = vsub.s32 1, %v6864
    %v6866 = vrot.slane %v6841, %v6865
    %v6867 = vlaneseq
    %v6868 = vshrl.u32 %v6867, 7
    %v6869 = vsub.s32 2, %v6868
    %v6870 = vrot.slane %v6841, %v6869
    %v6871 = vlaneseq
    %v6872 = vshrl.u32 %v6871, 7
    %v6873 = vsub.s32 3, %v6872
    %v6874 = vrot.slane %v6841, %v6873
    %v6879 = vadd.f32 %v6842, %v6862
    %v6880 = vadd.f32 %v6843, %v6866
    %v6881 = vadd.f32 %v6844, %v6870
    %v6882 = vadd.f32 %v6845, %v6874
    %v6883 = vadd.f32 %v6846, %v6862
    %v6884 = vadd.f32 %v6847, %v6866
    %v6885 = vadd.f32 %v6848, %v6870
    %v6886 = vadd.f32 %v6849, %v6874
    %v6887 = vadd.f32 %v6850, %v6862
    %v6888 = vadd.f32 %v6851, %v6866
    %v6889 = vadd.f32 %v6852, %v6870
    %v6890 = vadd.f32 %v6853, %v6874
    %v6891 = vadd.f32 %v6854, %v6862
    %v6892 = vadd.f32 %v6855, %v6866
    %v6893 = vadd.f32 %v6856, %v6870
    %v6894 = vadd.f32 %v6857, %v6874
    %v6895 = vmax.f32 %v6879, 0.0
    %v6896 = vmax.f32 %v6880, 0.0
    %v6897 = vmax.f32 %v6881, 0.0
    %v6898 = vmax.f32 %v6882, 0.0
    %v6899 = vmax.f32 %v6883, 0.0
    %v6900 = vmax.f32 %v6884, 0.0
    %v6901 = vmax.f32 %v6885, 0.0
    %v6902 = vmax.f32 %v6886, 0.0
    %v6903 = vmax.f32 %v6887, 0.0
    %v6904 = vmax.f32 %v6888, 0.0
    %v6905 = vmax.f32 %v6889, 0.0
    %v6906 = vmax.f32 %v6890, 0.0
    %v6907 = vmax.f32 %v6891, 0.0
    %v6908 = vmax.f32 %v6892, 0.0
    %v6909 = vmax.f32 %v6893, 0.0
    %v6910 = vmax.f32 %v6894, 0.0
    %v6919 = vrot.slane %v6895, 7
    %v6920 = vrot.slane %v6896, 7
    %v6921 = vrot.slane %v6897, 7
    %v6922 = vrot.slane %v6898, 7
    %v6923 = vrot.slane %v6899, 7
    %v6924 = vsel %vm213, %v6919, %v6923
    %v6925 = vrot.slane %v6900, 7
    %v6926 = vsel %vm213, %v6920, %v6925
    %v6927 = vrot.slane %v6901, 7
    %v6928 = vsel %vm213, %v6921, %v6927
    %v6929 = vrot.slane %v6902, 7
    %v6930 = vsel %vm213, %v6922, %v6929
    %v6947 = vrot.slane %v6903, 7
    %v6948 = vrot.slane %v6904, 7
    %v6949 = vrot.slane %v6905, 7
    %v6950 = vrot.slane %v6906, 7
    %v6951 = vrot.slane %v6907, 7
    %v6952 = vsel %vm213, %v6947, %v6951
    %v6953 = vrot.slane %v6908, 7
    %v6954 = vsel %vm213, %v6948, %v6953
    %v6955 = vrot.slane %v6909, 7
    %v6956 = vsel %vm213, %v6949, %v6955
    %v6957 = vrot.slane %v6910, 7
    %v6958 = vsel %vm213, %v6950, %v6957
    %v6967 = vsel %vm213, 0.0, %v6919
    %v6968 = vsel %vm213, 0.0, %v6920
    %v6969 = vsel %vm213, 0.0, %v6921
    %v6970 = vsel %vm213, 0.0, %v6922
    %v6971 = vsel %vm213, 0.0, %v6947
    %v6972 = vsel %vm213, 0.0, %v6948
    %v6973 = vsel %vm213, 0.0, %v6949
    %v6974 = vsel %vm213, 0.0, %v6950
    %v6975 = vrot.slane %v6895, 1
    %v6976 = vrot.slane %v6899, 1
    %v6977 = vsel %vm270, %v6975, %v6976
    %v6978 = vrot.slane %v6896, 1
    %v6979 = vrot.slane %v6900, 1
    %v6980 = vsel %vm270, %v6978, %v6979
    %v6981 = vrot.slane %v6897, 1
    %v6982 = vrot.slane %v6901, 1
    %v6983 = vsel %vm270, %v6981, %v6982
    %v6984 = vrot.slane %v6898, 1
    %v6985 = vrot.slane %v6902, 1
    %v6986 = vsel %vm270, %v6984, %v6985
    %v6995 = vrot.slane %v6903, 1
    %v6996 = vrot.slane %v6907, 1
    %v6997 = vsel %vm270, %v6995, %v6996
    %v6998 = vrot.slane %v6904, 1
    %v6999 = vrot.slane %v6908, 1
    %v7000 = vsel %vm270, %v6998, %v6999
    %v7001 = vrot.slane %v6905, 1
    %v7002 = vrot.slane %v6909, 1
    %v7003 = vsel %vm270, %v7001, %v7002
    %v7004 = vrot.slane %v6906, 1
    %v7005 = vrot.slane %v6910, 1
    %v7006 = vsel %vm270, %v7004, %v7005
    %v7015 = vsel %vm270, %v6976, 0.0
    %v7016 = vsel %vm270, %v6979, 0.0
    %v7017 = vsel %vm270, %v6982, 0.0
    %v7018 = vsel %vm270, %v6985, 0.0
    %v7019 = vsel %vm270, %v6996, 0.0
    %v7020 = vsel %vm270, %v6999, 0.0
    %v7021 = vsel %vm270, %v7002, 0.0
    %v7022 = vsel %vm270, %v7005, 0.0
    %v7023 = vpack.c.bf16 %v6924, %v6967
    %v7024 = vpack.c.bf16 %v6926, %v6968
    %v7025 = vpack.c.bf16 %v6928, %v6969
    %v7026 = vpack.c.bf16 %v6930, %v6970
    %v7027 = vpack.c.bf16 %v6899, %v6895
    %v7028 = vpack.c.bf16 %v6900, %v6896
    %v7029 = vpack.c.bf16 %v6901, %v6897
    %v7030 = vpack.c.bf16 %v6902, %v6898
    %v7031 = vpack.c.bf16 %v7015, %v6977
    %v7032 = vpack.c.bf16 %v7016, %v6980
    %v7033 = vpack.c.bf16 %v7017, %v6983
    %v7034 = vpack.c.bf16 %v7018, %v6986
    %v7035 = vpack.c.bf16 %v6952, %v6971
    %v7036 = vpack.c.bf16 %v6954, %v6972
    %v7037 = vpack.c.bf16 %v6956, %v6973
    %v7038 = vpack.c.bf16 %v6958, %v6974
    %v7039 = vpack.c.bf16 %v6907, %v6903
    %v7040 = vpack.c.bf16 %v6908, %v6904
    %v7041 = vpack.c.bf16 %v6909, %v6905
    %v7042 = vpack.c.bf16 %v6910, %v6906
    %v7043 = vpack.c.bf16 %v7019, %v6997
    %v7044 = vpack.c.bf16 %v7020, %v7000
    %v7045 = vpack.c.bf16 %v7021, %v7003
    %v7046 = vpack.c.bf16 %v7022, %v7006
    %v7047 = vld [vmem:[#allocation14] sm:$0xff]
    %v7048 = vld [vmem:[#allocation14 + $0x8] sm:$0xff]
    %v7049 = vld [vmem:[#allocation14 + $0x10] sm:$0xff]
    %v7050 = vld [vmem:[#allocation14 + $0x18] sm:$0xff]
    %v7051 = vld [vmem:[#allocation14 + $0x20] sm:$0xff]
    %v7052 = vld [vmem:[#allocation14 + $0x28] sm:$0xff]
    %v7053 = vld [vmem:[#allocation14 + $0x30] sm:$0xff]
    %v7054 = vld [vmem:[#allocation14 + $0x38] sm:$0xff]
    %v7055 = vld [vmem:[#allocation14 + $0x40] sm:$0xff]
    %v7056 = vld [vmem:[#allocation14 + $0x48] sm:$0xff]
    %v7057 = vld [vmem:[#allocation14 + $0x50] sm:$0xff]
    %v7058 = vld [vmem:[#allocation14 + $0x58] sm:$0xff]
    %v7059 = vld [vmem:[#allocation14 + $0x60] sm:$0xff]
    %v7060 = vld [vmem:[#allocation14 + $0x68] sm:$0xff]
    %v7061 = vld [vmem:[#allocation14 + $0x70] sm:$0xff]
    %v7062 = vld [vmem:[#allocation14 + $0x78] sm:$0xff]
    %v7063 = vld [vmem:[#allocation14 + $0x80] sm:$0xff]
    %v7064 = vld [vmem:[#allocation14 + $0x88] sm:$0xff]
    %v7065 = vld [vmem:[#allocation14 + $0x90] sm:$0xff]
    %v7066 = vld [vmem:[#allocation14 + $0x98] sm:$0xff]
    %v7067 = vld [vmem:[#allocation14 + $0xa0] sm:$0xff]
    %v7068 = vld [vmem:[#allocation14 + $0xa8] sm:$0xff]
    %v7069 = vld [vmem:[#allocation14 + $0xb0] sm:$0xff]
    %v7070 = vld [vmem:[#allocation14 + $0xb8] sm:$0xff]
    %v7071 = vld [vmem:[#allocation14 + $0xc0] sm:$0xff]
    %v7072 = vld [vmem:[#allocation14 + $0xc8] sm:$0xff]
    %v7073 = vld [vmem:[#allocation14 + $0xd0] sm:$0xff]
    %v7074 = vld [vmem:[#allocation14 + $0xd8] sm:$0xff]
    %v7075 = vld [vmem:[#allocation14 + $0xe0] sm:$0xff]
    %v7076 = vld [vmem:[#allocation14 + $0xe8] sm:$0xff]
    %v7077 = vld [vmem:[#allocation14 + $0xf0] sm:$0xff]
    %v7078 = vld [vmem:[#allocation14 + $0xf8] sm:$0xff]
    %v7079 = vld [vmem:[#allocation14 + $0x100] sm:$0xff]
    %v7080 = vld [vmem:[#allocation14 + $0x108] sm:$0xff]
    %v7081 = vld [vmem:[#allocation14 + $0x110] sm:$0xff]
    %v7082 = vld [vmem:[#allocation14 + $0x118] sm:$0xff]
    %v7083 = vld [vmem:[#allocation14 + $0x120] sm:$0xff]
    %v7084 = vld [vmem:[#allocation14 + $0x128] sm:$0xff]
    %v7085 = vld [vmem:[#allocation14 + $0x130] sm:$0xff]
    %v7086 = vld [vmem:[#allocation14 + $0x138] sm:$0xff]
    %v7087 = vld [vmem:[#allocation14 + $0x140] sm:$0xff]
    %v7088 = vld [vmem:[#allocation14 + $0x148] sm:$0xff]
    %v7089 = vld [vmem:[#allocation14 + $0x150] sm:$0xff]
    %v7090 = vld [vmem:[#allocation14 + $0x158] sm:$0xff]
    %v7091 = vld [vmem:[#allocation14 + $0x160] sm:$0xff]
    %v7092 = vld [vmem:[#allocation14 + $0x168] sm:$0xff]
    %v7093 = vld [vmem:[#allocation14 + $0x170] sm:$0xff]
    %v7094 = vld [vmem:[#allocation14 + $0x178] sm:$0xff]
    %v7095 = vld [vmem:[#allocation14 + $0x180] sm:$0xff]
    %v7096 = vld [vmem:[#allocation14 + $0x188] sm:$0xff]
    %v7097 = vld [vmem:[#allocation14 + $0x190] sm:$0xff]
    %v7098 = vld [vmem:[#allocation14 + $0x198] sm:$0xff]
    %v7099 = vld [vmem:[#allocation14 + $0x1a0] sm:$0xff]
    %v7100 = vld [vmem:[#allocation14 + $0x1a8] sm:$0xff]
    %v7101 = vld [vmem:[#allocation14 + $0x1b0] sm:$0xff]
    %v7102 = vld [vmem:[#allocation14 + $0x1b8] sm:$0xff]
    %v7103 = vld [vmem:[#allocation14 + $0x1c0] sm:$0xff]
    %v7104 = vld [vmem:[#allocation14 + $0x1c8] sm:$0xff]
    %v7105 = vld [vmem:[#allocation14 + $0x1d0] sm:$0xff]
    %v7106 = vld [vmem:[#allocation14 + $0x1d8] sm:$0xff]
    %v7107 = vld [vmem:[#allocation14 + $0x1e0] sm:$0xff]
    %v7108 = vld [vmem:[#allocation14 + $0x1e8] sm:$0xff]
    %v7109 = vld [vmem:[#allocation14 + $0x1f0] sm:$0xff]
    %v7110 = vld [vmem:[#allocation14 + $0x1f8] sm:$0xff]
    %v7111 = vld [vmem:[#allocation14 + $0x200] sm:$0xff]
    %v7112 = vld [vmem:[#allocation14 + $0x208] sm:$0xff]
    %v7113 = vld [vmem:[#allocation14 + $0x210] sm:$0xff]
    %v7114 = vld [vmem:[#allocation14 + $0x218] sm:$0xff]
    %v7115 = vld [vmem:[#allocation14 + $0x220] sm:$0xff]
    %v7116 = vld [vmem:[#allocation14 + $0x228] sm:$0xff]
    %v7117 = vld [vmem:[#allocation14 + $0x230] sm:$0xff]
    %v7118 = vld [vmem:[#allocation14 + $0x238] sm:$0xff]
    %v7119 = vld [vmem:[#allocation14 + $0x240] sm:$0xff]
    %v7120 = vld [vmem:[#allocation14 + $0x248] sm:$0xff]
    %v7121 = vld [vmem:[#allocation14 + $0x250] sm:$0xff]
    %v7122 = vld [vmem:[#allocation14 + $0x258] sm:$0xff]
    %v7123 = vld [vmem:[#allocation14 + $0x260] sm:$0xff]
    %v7124 = vld [vmem:[#allocation14 + $0x268] sm:$0xff]
    %v7125 = vld [vmem:[#allocation14 + $0x270] sm:$0xff]
    %v7126 = vld [vmem:[#allocation14 + $0x278] sm:$0xff]
    %v7127 = vld [vmem:[#allocation14 + $0x280] sm:$0xff]
    %v7128 = vld [vmem:[#allocation14 + $0x288] sm:$0xff]
    %v7129 = vld [vmem:[#allocation14 + $0x290] sm:$0xff]
    %v7130 = vld [vmem:[#allocation14 + $0x298] sm:$0xff]
    %v7131 = vld [vmem:[#allocation14 + $0x2a0] sm:$0xff]
    %v7132 = vld [vmem:[#allocation14 + $0x2a8] sm:$0xff]
    %v7133 = vld [vmem:[#allocation14 + $0x2b0] sm:$0xff]
    %v7134 = vld [vmem:[#allocation14 + $0x2b8] sm:$0xff]
    %v7135 = vld [vmem:[#allocation14 + $0x2c0] sm:$0xff]
    %v7136 = vld [vmem:[#allocation14 + $0x2c8] sm:$0xff]
    %v7137 = vld [vmem:[#allocation14 + $0x2d0] sm:$0xff]
    %v7138 = vld [vmem:[#allocation14 + $0x2d8] sm:$0xff]
    %v7139 = vld [vmem:[#allocation14 + $0x2e0] sm:$0xff]
    %v7140 = vld [vmem:[#allocation14 + $0x2e8] sm:$0xff]
    %v7141 = vld [vmem:[#allocation14 + $0x2f0] sm:$0xff]
    %v7142 = vld [vmem:[#allocation14 + $0x2f8] sm:$0xff]
    %v7143 = vld [vmem:[#allocation14 + $0x300] sm:$0xff]
    %v7144 = vld [vmem:[#allocation14 + $0x308] sm:$0xff]
    %v7145 = vld [vmem:[#allocation14 + $0x310] sm:$0xff]
    %v7146 = vld [vmem:[#allocation14 + $0x318] sm:$0xff]
    %v7147 = vld [vmem:[#allocation14 + $0x320] sm:$0xff]
    %v7148 = vld [vmem:[#allocation14 + $0x328] sm:$0xff]
    %v7149 = vld [vmem:[#allocation14 + $0x330] sm:$0xff]
    %v7150 = vld [vmem:[#allocation14 + $0x338] sm:$0xff]
    %v7151 = vld [vmem:[#allocation14 + $0x340] sm:$0xff]
    %v7152 = vld [vmem:[#allocation14 + $0x348] sm:$0xff]
    %v7153 = vld [vmem:[#allocation14 + $0x350] sm:$0xff]
    %v7154 = vld [vmem:[#allocation14 + $0x358] sm:$0xff]
    %v7155 = vld [vmem:[#allocation14 + $0x360] sm:$0xff]
    %v7156 = vld [vmem:[#allocation14 + $0x368] sm:$0xff]
    %v7157 = vld [vmem:[#allocation14 + $0x370] sm:$0xff]
    %v7158 = vld [vmem:[#allocation14 + $0x378] sm:$0xff]
    %v7159 = vld [vmem:[#allocation14 + $0x380] sm:$0xff]
    %v7160 = vld [vmem:[#allocation14 + $0x388] sm:$0xff]
    %v7161 = vld [vmem:[#allocation14 + $0x390] sm:$0xff]
    %v7162 = vld [vmem:[#allocation14 + $0x398] sm:$0xff]
    %v7163 = vld [vmem:[#allocation14 + $0x3a0] sm:$0xff]
    %v7164 = vld [vmem:[#allocation14 + $0x3a8] sm:$0xff]
    %v7165 = vld [vmem:[#allocation14 + $0x3b0] sm:$0xff]
    %v7166 = vld [vmem:[#allocation14 + $0x3b8] sm:$0xff]
    %v7167 = vld [vmem:[#allocation14 + $0x3c0] sm:$0xff]
    %v7168 = vld [vmem:[#allocation14 + $0x3c8] sm:$0xff]
    %v7169 = vld [vmem:[#allocation14 + $0x3d0] sm:$0xff]
    %v7170 = vld [vmem:[#allocation14 + $0x3d8] sm:$0xff]
    %v7171 = vld [vmem:[#allocation14 + $0x3e0] sm:$0xff]
    %v7172 = vld [vmem:[#allocation14 + $0x3e8] sm:$0xff]
    %v7173 = vld [vmem:[#allocation14 + $0x3f0] sm:$0xff]
    %v7174 = vld [vmem:[#allocation14 + $0x3f8] sm:$0xff]
    %v7175 = vld [vmem:[#allocation14 + $0x400] sm:$0xff]
    %v7176 = vld [vmem:[#allocation14 + $0x408] sm:$0xff]
    %v7177 = vld [vmem:[#allocation14 + $0x410] sm:$0xff]
    %v7178 = vld [vmem:[#allocation14 + $0x418] sm:$0xff]
    %v7179 = vld [vmem:[#allocation14 + $0x420] sm:$0xff]
    %v7180 = vld [vmem:[#allocation14 + $0x428] sm:$0xff]
    %v7181 = vld [vmem:[#allocation14 + $0x430] sm:$0xff]
    %v7182 = vld [vmem:[#allocation14 + $0x438] sm:$0xff]
    %v7183 = vld [vmem:[#allocation14 + $0x440] sm:$0xff]
    %v7184 = vld [vmem:[#allocation14 + $0x448] sm:$0xff]
    %v7185 = vld [vmem:[#allocation14 + $0x450] sm:$0xff]
    %v7186 = vld [vmem:[#allocation14 + $0x458] sm:$0xff]
    %v7187 = vld [vmem:[#allocation14 + $0x460] sm:$0xff]
    %v7188 = vld [vmem:[#allocation14 + $0x468] sm:$0xff]
    %v7189 = vld [vmem:[#allocation14 + $0x470] sm:$0xff]
    %v7190 = vld [vmem:[#allocation14 + $0x478] sm:$0xff]
    %v7191 = vld [vmem:[#allocation14 + $0x480] sm:$0xff]
    %v7192 = vld [vmem:[#allocation14 + $0x488] sm:$0xff]
    %v7193 = vld [vmem:[#allocation14 + $0x490] sm:$0xff]
    %v7194 = vld [vmem:[#allocation14 + $0x498] sm:$0xff]
    %v7195 = vld [vmem:[#allocation14 + $0x4a0] sm:$0xff]
    %v7196 = vld [vmem:[#allocation14 + $0x4a8] sm:$0xff]
    %v7197 = vld [vmem:[#allocation14 + $0x4b0] sm:$0xff]
    %v7198 = vld [vmem:[#allocation14 + $0x4b8] sm:$0xff]
    %v7199 = vld [vmem:[#allocation14 + $0x4c0] sm:$0xff]
    %v7200 = vld [vmem:[#allocation14 + $0x4c8] sm:$0xff]
    %v7201 = vld [vmem:[#allocation14 + $0x4d0] sm:$0xff]
    %v7202 = vld [vmem:[#allocation14 + $0x4d8] sm:$0xff]
    %v7203 = vld [vmem:[#allocation14 + $0x4e0] sm:$0xff]
    %v7204 = vld [vmem:[#allocation14 + $0x4e8] sm:$0xff]
    %v7205 = vld [vmem:[#allocation14 + $0x4f0] sm:$0xff]
    %v7206 = vld [vmem:[#allocation14 + $0x4f8] sm:$0xff]
    %v7207 = vld [vmem:[#allocation14 + $0x500] sm:$0xff]
    %v7208 = vld [vmem:[#allocation14 + $0x508] sm:$0xff]
    %v7209 = vld [vmem:[#allocation14 + $0x510] sm:$0xff]
    %v7210 = vld [vmem:[#allocation14 + $0x518] sm:$0xff]
    %v7211 = vld [vmem:[#allocation14 + $0x520] sm:$0xff]
    %v7212 = vld [vmem:[#allocation14 + $0x528] sm:$0xff]
    %v7213 = vld [vmem:[#allocation14 + $0x530] sm:$0xff]
    %v7214 = vld [vmem:[#allocation14 + $0x538] sm:$0xff]
    %v7215 = vld [vmem:[#allocation14 + $0x540] sm:$0xff]
    %v7216 = vld [vmem:[#allocation14 + $0x548] sm:$0xff]
    %v7217 = vld [vmem:[#allocation14 + $0x550] sm:$0xff]
    %v7218 = vld [vmem:[#allocation14 + $0x558] sm:$0xff]
    %v7219 = vld [vmem:[#allocation14 + $0x560] sm:$0xff]
    %v7220 = vld [vmem:[#allocation14 + $0x568] sm:$0xff]
    %v7221 = vld [vmem:[#allocation14 + $0x570] sm:$0xff]
    %v7222 = vld [vmem:[#allocation14 + $0x578] sm:$0xff]
    %v7223 = vld [vmem:[#allocation14 + $0x580] sm:$0xff]
    %v7224 = vld [vmem:[#allocation14 + $0x588] sm:$0xff]
    %v7225 = vld [vmem:[#allocation14 + $0x590] sm:$0xff]
    %v7226 = vld [vmem:[#allocation14 + $0x598] sm:$0xff]
    %v7227 = vld [vmem:[#allocation14 + $0x5a0] sm:$0xff]
    %v7228 = vld [vmem:[#allocation14 + $0x5a8] sm:$0xff]
    %v7229 = vld [vmem:[#allocation14 + $0x5b0] sm:$0xff]
    %v7230 = vld [vmem:[#allocation14 + $0x5b8] sm:$0xff]
    %v7231 = vld [vmem:[#allocation14 + $0x5c0] sm:$0xff]
    %v7232 = vld [vmem:[#allocation14 + $0x5c8] sm:$0xff]
    %v7233 = vld [vmem:[#allocation14 + $0x5d0] sm:$0xff]
    %v7234 = vld [vmem:[#allocation14 + $0x5d8] sm:$0xff]
    %v7235 = vld [vmem:[#allocation14 + $0x5e0] sm:$0xff]
    %v7236 = vld [vmem:[#allocation14 + $0x5e8] sm:$0xff]
    %v7237 = vld [vmem:[#allocation14 + $0x5f0] sm:$0xff]
    %v7238 = vld [vmem:[#allocation14 + $0x5f8] sm:$0xff]
    %v7239 = vld [vmem:[#allocation14 + $0x600] sm:$0xff]
    %v7240 = vld [vmem:[#allocation14 + $0x608] sm:$0xff]
    %v7241 = vld [vmem:[#allocation14 + $0x610] sm:$0xff]
    %v7242 = vld [vmem:[#allocation14 + $0x618] sm:$0xff]
    %v7243 = vld [vmem:[#allocation14 + $0x620] sm:$0xff]
    %v7244 = vld [vmem:[#allocation14 + $0x628] sm:$0xff]
    %v7245 = vld [vmem:[#allocation14 + $0x630] sm:$0xff]
    %v7246 = vld [vmem:[#allocation14 + $0x638] sm:$0xff]
    %v7247 = vld [vmem:[#allocation14 + $0x640] sm:$0xff]
    %v7248 = vld [vmem:[#allocation14 + $0x648] sm:$0xff]
    %v7249 = vld [vmem:[#allocation14 + $0x650] sm:$0xff]
    %v7250 = vld [vmem:[#allocation14 + $0x658] sm:$0xff]
    %v7251 = vld [vmem:[#allocation14 + $0x660] sm:$0xff]
    %v7252 = vld [vmem:[#allocation14 + $0x668] sm:$0xff]
    %v7253 = vld [vmem:[#allocation14 + $0x670] sm:$0xff]
    %v7254 = vld [vmem:[#allocation14 + $0x678] sm:$0xff]
    %v7255 = vld [vmem:[#allocation14 + $0x680] sm:$0xff]
    %v7256 = vld [vmem:[#allocation14 + $0x688] sm:$0xff]
    %v7257 = vld [vmem:[#allocation14 + $0x690] sm:$0xff]
    %v7258 = vld [vmem:[#allocation14 + $0x698] sm:$0xff]
    %v7259 = vld [vmem:[#allocation14 + $0x6a0] sm:$0xff]
    %v7260 = vld [vmem:[#allocation14 + $0x6a8] sm:$0xff]
    %v7261 = vld [vmem:[#allocation14 + $0x6b0] sm:$0xff]
    %v7262 = vld [vmem:[#allocation14 + $0x6b8] sm:$0xff]
    %v7263 = vld [vmem:[#allocation14 + $0x6c0] sm:$0xff]
    %v7264 = vld [vmem:[#allocation14 + $0x6c8] sm:$0xff]
    %v7265 = vld [vmem:[#allocation14 + $0x6d0] sm:$0xff]
    %v7266 = vld [vmem:[#allocation14 + $0x6d8] sm:$0xff]
    %v7267 = vld [vmem:[#allocation14 + $0x6e0] sm:$0xff]
    %v7268 = vld [vmem:[#allocation14 + $0x6e8] sm:$0xff]
    %v7269 = vld [vmem:[#allocation14 + $0x6f0] sm:$0xff]
    %v7270 = vld [vmem:[#allocation14 + $0x6f8] sm:$0xff]
    %v7271 = vld [vmem:[#allocation14 + $0x700] sm:$0xff]
    %v7272 = vld [vmem:[#allocation14 + $0x708] sm:$0xff]
    %v7273 = vld [vmem:[#allocation14 + $0x710] sm:$0xff]
    %v7274 = vld [vmem:[#allocation14 + $0x718] sm:$0xff]
    %v7275 = vld [vmem:[#allocation14 + $0x720] sm:$0xff]
    %v7276 = vld [vmem:[#allocation14 + $0x728] sm:$0xff]
    %v7277 = vld [vmem:[#allocation14 + $0x730] sm:$0xff]
    %v7278 = vld [vmem:[#allocation14 + $0x738] sm:$0xff]
    %v7279 = vld [vmem:[#allocation14 + $0x740] sm:$0xff]
    %v7280 = vld [vmem:[#allocation14 + $0x748] sm:$0xff]
    %v7281 = vld [vmem:[#allocation14 + $0x750] sm:$0xff]
    %v7282 = vld [vmem:[#allocation14 + $0x758] sm:$0xff]
    %v7283 = vld [vmem:[#allocation14 + $0x760] sm:$0xff]
    %v7284 = vld [vmem:[#allocation14 + $0x768] sm:$0xff]
    %v7285 = vld [vmem:[#allocation14 + $0x770] sm:$0xff]
    %v7286 = vld [vmem:[#allocation14 + $0x778] sm:$0xff]
    %v7287 = vld [vmem:[#allocation14 + $0x780] sm:$0xff]
    %v7288 = vld [vmem:[#allocation14 + $0x788] sm:$0xff]
    %v7289 = vld [vmem:[#allocation14 + $0x790] sm:$0xff]
    %v7290 = vld [vmem:[#allocation14 + $0x798] sm:$0xff]
    %v7291 = vld [vmem:[#allocation14 + $0x7a0] sm:$0xff]
    %v7292 = vld [vmem:[#allocation14 + $0x7a8] sm:$0xff]
    %v7293 = vld [vmem:[#allocation14 + $0x7b0] sm:$0xff]
    %v7294 = vld [vmem:[#allocation14 + $0x7b8] sm:$0xff]
    %v7295 = vld [vmem:[#allocation14 + $0x7c0] sm:$0xff]
    %v7296 = vld [vmem:[#allocation14 + $0x7c8] sm:$0xff]
    %v7297 = vld [vmem:[#allocation14 + $0x7d0] sm:$0xff]
    %v7298 = vld [vmem:[#allocation14 + $0x7d8] sm:$0xff]
    %v7299 = vld [vmem:[#allocation14 + $0x7e0] sm:$0xff]
    %v7300 = vld [vmem:[#allocation14 + $0x7e8] sm:$0xff]
    %v7301 = vld [vmem:[#allocation14 + $0x7f0] sm:$0xff]
    %v7302 = vld [vmem:[#allocation14 + $0x7f8] sm:$0xff]
    %v7303 = vld [vmem:[#allocation14 + $0x800] sm:$0xff]
    %v7304 = vld [vmem:[#allocation14 + $0x808] sm:$0xff]
    %v7305 = vld [vmem:[#allocation14 + $0x810] sm:$0xff]
    %v7306 = vld [vmem:[#allocation14 + $0x818] sm:$0xff]
    %v7307 = vld [vmem:[#allocation14 + $0x820] sm:$0xff]
    %v7308 = vld [vmem:[#allocation14 + $0x828] sm:$0xff]
    %v7309 = vld [vmem:[#allocation14 + $0x830] sm:$0xff]
    %v7310 = vld [vmem:[#allocation14 + $0x838] sm:$0xff]
    %v7311 = vld [vmem:[#allocation14 + $0x840] sm:$0xff]
    %v7312 = vld [vmem:[#allocation14 + $0x848] sm:$0xff]
    %v7313 = vld [vmem:[#allocation14 + $0x850] sm:$0xff]
    %v7314 = vld [vmem:[#allocation14 + $0x858] sm:$0xff]
    %v7315 = vld [vmem:[#allocation14 + $0x860] sm:$0xff]
    %v7316 = vld [vmem:[#allocation14 + $0x868] sm:$0xff]
    %v7317 = vld [vmem:[#allocation14 + $0x870] sm:$0xff]
    %v7318 = vld [vmem:[#allocation14 + $0x878] sm:$0xff]
    %v7319 = vld [vmem:[#allocation14 + $0x880] sm:$0xff]
    %v7320 = vld [vmem:[#allocation14 + $0x888] sm:$0xff]
    %v7321 = vld [vmem:[#allocation14 + $0x890] sm:$0xff]
    %v7322 = vld [vmem:[#allocation14 + $0x898] sm:$0xff]
    %v7323 = vld [vmem:[#allocation14 + $0x8a0] sm:$0xff]
    %v7324 = vld [vmem:[#allocation14 + $0x8a8] sm:$0xff]
    %v7325 = vld [vmem:[#allocation14 + $0x8b0] sm:$0xff]
    %v7326 = vld [vmem:[#allocation14 + $0x8b8] sm:$0xff]
    %v7327 = vld [vmem:[#allocation14 + $0x8c0] sm:$0xff]
    %v7328 = vld [vmem:[#allocation14 + $0x8c8] sm:$0xff]
    %v7329 = vld [vmem:[#allocation14 + $0x8d0] sm:$0xff]
    %v7330 = vld [vmem:[#allocation14 + $0x8d8] sm:$0xff]
    %v7331 = vld [vmem:[#allocation14 + $0x8e0] sm:$0xff]
    %v7332 = vld [vmem:[#allocation14 + $0x8e8] sm:$0xff]
    %v7333 = vld [vmem:[#allocation14 + $0x8f0] sm:$0xff]
    %v7334 = vld [vmem:[#allocation14 + $0x8f8] sm:$0xff]
    %v7335 = vld [vmem:[#allocation14 + $0x900] sm:$0xff]
    %v7336 = vld [vmem:[#allocation14 + $0x908] sm:$0xff]
    %v7337 = vld [vmem:[#allocation14 + $0x910] sm:$0xff]
    %v7338 = vld [vmem:[#allocation14 + $0x918] sm:$0xff]
    %v7339 = vld [vmem:[#allocation14 + $0x920] sm:$0xff]
    %v7340 = vld [vmem:[#allocation14 + $0x928] sm:$0xff]
    %v7341 = vld [vmem:[#allocation14 + $0x930] sm:$0xff]
    %v7342 = vld [vmem:[#allocation14 + $0x938] sm:$0xff]
    %v7343 = vld [vmem:[#allocation14 + $0x940] sm:$0xff]
    %v7344 = vld [vmem:[#allocation14 + $0x948] sm:$0xff]
    %v7345 = vld [vmem:[#allocation14 + $0x950] sm:$0xff]
    %v7346 = vld [vmem:[#allocation14 + $0x958] sm:$0xff]
    %v7347 = vld [vmem:[#allocation14 + $0x960] sm:$0xff]
    %v7348 = vld [vmem:[#allocation14 + $0x968] sm:$0xff]
    %v7349 = vld [vmem:[#allocation14 + $0x970] sm:$0xff]
    %v7350 = vld [vmem:[#allocation14 + $0x978] sm:$0xff]
    %v7351 = vld [vmem:[#allocation14 + $0x980] sm:$0xff]
    %v7352 = vld [vmem:[#allocation14 + $0x988] sm:$0xff]
    %v7353 = vld [vmem:[#allocation14 + $0x990] sm:$0xff]
    %v7354 = vld [vmem:[#allocation14 + $0x998] sm:$0xff]
    %v7355 = vld [vmem:[#allocation14 + $0x9a0] sm:$0xff]
    %v7356 = vld [vmem:[#allocation14 + $0x9a8] sm:$0xff]
    %v7357 = vld [vmem:[#allocation14 + $0x9b0] sm:$0xff]
    %v7358 = vld [vmem:[#allocation14 + $0x9b8] sm:$0xff]
    %v7359 = vld [vmem:[#allocation14 + $0x9c0] sm:$0xff]
    %v7360 = vld [vmem:[#allocation14 + $0x9c8] sm:$0xff]
    %v7361 = vld [vmem:[#allocation14 + $0x9d0] sm:$0xff]
    %v7362 = vld [vmem:[#allocation14 + $0x9d8] sm:$0xff]
    %v7363 = vld [vmem:[#allocation14 + $0x9e0] sm:$0xff]
    %v7364 = vld [vmem:[#allocation14 + $0x9e8] sm:$0xff]
    %v7365 = vld [vmem:[#allocation14 + $0x9f0] sm:$0xff]
    %v7366 = vld [vmem:[#allocation14 + $0x9f8] sm:$0xff]
    %v7367 = vld [vmem:[#allocation14 + $0xa00] sm:$0xff]
    %v7368 = vld [vmem:[#allocation14 + $0xa08] sm:$0xff]
    %v7369 = vld [vmem:[#allocation14 + $0xa10] sm:$0xff]
    %v7370 = vld [vmem:[#allocation14 + $0xa18] sm:$0xff]
    %v7371 = vld [vmem:[#allocation14 + $0xa20] sm:$0xff]
    %v7372 = vld [vmem:[#allocation14 + $0xa28] sm:$0xff]
    %v7373 = vld [vmem:[#allocation14 + $0xa30] sm:$0xff]
    %v7374 = vld [vmem:[#allocation14 + $0xa38] sm:$0xff]
    %v7375 = vld [vmem:[#allocation14 + $0xa40] sm:$0xff]
    %v7376 = vld [vmem:[#allocation14 + $0xa48] sm:$0xff]
    %v7377 = vld [vmem:[#allocation14 + $0xa50] sm:$0xff]
    %v7378 = vld [vmem:[#allocation14 + $0xa58] sm:$0xff]
    %v7379 = vld [vmem:[#allocation14 + $0xa60] sm:$0xff]
    %v7380 = vld [vmem:[#allocation14 + $0xa68] sm:$0xff]
    %v7381 = vld [vmem:[#allocation14 + $0xa70] sm:$0xff]
    %v7382 = vld [vmem:[#allocation14 + $0xa78] sm:$0xff]
    %v7383 = vld [vmem:[#allocation14 + $0xa80] sm:$0xff]
    %v7384 = vld [vmem:[#allocation14 + $0xa88] sm:$0xff]
    %v7385 = vld [vmem:[#allocation14 + $0xa90] sm:$0xff]
    %v7386 = vld [vmem:[#allocation14 + $0xa98] sm:$0xff]
    %v7387 = vld [vmem:[#allocation14 + $0xaa0] sm:$0xff]
    %v7388 = vld [vmem:[#allocation14 + $0xaa8] sm:$0xff]
    %v7389 = vld [vmem:[#allocation14 + $0xab0] sm:$0xff]
    %v7390 = vld [vmem:[#allocation14 + $0xab8] sm:$0xff]
    %v7391 = vld [vmem:[#allocation14 + $0xac0] sm:$0xff]
    %v7392 = vld [vmem:[#allocation14 + $0xac8] sm:$0xff]
    %v7393 = vld [vmem:[#allocation14 + $0xad0] sm:$0xff]
    %v7394 = vld [vmem:[#allocation14 + $0xad8] sm:$0xff]
    %v7395 = vld [vmem:[#allocation14 + $0xae0] sm:$0xff]
    %v7396 = vld [vmem:[#allocation14 + $0xae8] sm:$0xff]
    %v7397 = vld [vmem:[#allocation14 + $0xaf0] sm:$0xff]
    %v7398 = vld [vmem:[#allocation14 + $0xaf8] sm:$0xff]
    %v7399 = vld [vmem:[#allocation14 + $0xb00] sm:$0xff]
    %v7400 = vld [vmem:[#allocation14 + $0xb08] sm:$0xff]
    %v7401 = vld [vmem:[#allocation14 + $0xb10] sm:$0xff]
    %v7402 = vld [vmem:[#allocation14 + $0xb18] sm:$0xff]
    %v7403 = vld [vmem:[#allocation14 + $0xb20] sm:$0xff]
    %v7404 = vld [vmem:[#allocation14 + $0xb28] sm:$0xff]
    %v7405 = vld [vmem:[#allocation14 + $0xb30] sm:$0xff]
    %v7406 = vld [vmem:[#allocation14 + $0xb38] sm:$0xff]
    %v7407 = vld [vmem:[#allocation14 + $0xb40] sm:$0xff]
    %v7408 = vld [vmem:[#allocation14 + $0xb48] sm:$0xff]
    %v7409 = vld [vmem:[#allocation14 + $0xb50] sm:$0xff]
    %v7410 = vld [vmem:[#allocation14 + $0xb58] sm:$0xff]
    %v7411 = vld [vmem:[#allocation14 + $0xb60] sm:$0xff]
    %v7412 = vld [vmem:[#allocation14 + $0xb68] sm:$0xff]
    %v7413 = vld [vmem:[#allocation14 + $0xb70] sm:$0xff]
    %v7414 = vld [vmem:[#allocation14 + $0xb78] sm:$0xff]
    %v7415 = vld [vmem:[#allocation14 + $0xb80] sm:$0xff]
    %v7416 = vld [vmem:[#allocation14 + $0xb88] sm:$0xff]
    %v7417 = vld [vmem:[#allocation14 + $0xb90] sm:$0xff]
    %v7418 = vld [vmem:[#allocation14 + $0xb98] sm:$0xff]
    %v7419 = vld [vmem:[#allocation14 + $0xba0] sm:$0xff]
    %v7420 = vld [vmem:[#allocation14 + $0xba8] sm:$0xff]
    %v7421 = vld [vmem:[#allocation14 + $0xbb0] sm:$0xff]
    %v7422 = vld [vmem:[#allocation14 + $0xbb8] sm:$0xff]
    %v7423 = vld [vmem:[#allocation14 + $0xbc0] sm:$0xff]
    %v7424 = vld [vmem:[#allocation14 + $0xbc8] sm:$0xff]
    %v7425 = vld [vmem:[#allocation14 + $0xbd0] sm:$0xff]
    %v7426 = vld [vmem:[#allocation14 + $0xbd8] sm:$0xff]
    %v7427 = vld [vmem:[#allocation14 + $0xbe0] sm:$0xff]
    %v7428 = vld [vmem:[#allocation14 + $0xbe8] sm:$0xff]
    %v7429 = vld [vmem:[#allocation14 + $0xbf0] sm:$0xff]
    %v7430 = vld [vmem:[#allocation14 + $0xbf8] sm:$0xff]
    %v7815 = vunpack.c.l.b16 %v7047
    %v7816 = vunpack.c.h.b16 %v7047
    %v7817 = vunpack.c.l.b16 %v7048
    %v7818 = vunpack.c.h.b16 %v7048
    %v7819 = vunpack.c.l.b16 %v7049
    %v7820 = vunpack.c.h.b16 %v7049
    %v7821 = vunpack.c.l.b16 %v7050
    %v7822 = vunpack.c.h.b16 %v7050
    %v7823 = vunpack.c.l.b16 %v7051
    %v7824 = vunpack.c.h.b16 %v7051
    %v7825 = vunpack.c.l.b16 %v7052
    %v7826 = vunpack.c.h.b16 %v7052
    %v7827 = vunpack.c.l.b16 %v7053
    %v7828 = vunpack.c.h.b16 %v7053
    %v7829 = vunpack.c.l.b16 %v7054
    %v7830 = vunpack.c.h.b16 %v7054
    %v7831 = vunpack.c.l.b16 %v7055
    %v7832 = vunpack.c.h.b16 %v7055
    %v7833 = vunpack.c.l.b16 %v7056
    %v7834 = vunpack.c.h.b16 %v7056
    %v7835 = vunpack.c.l.b16 %v7057
    %v7836 = vunpack.c.h.b16 %v7057
    %v7837 = vunpack.c.l.b16 %v7058
    %v7838 = vunpack.c.h.b16 %v7058
    %v7839 = vunpack.c.l.b16 %v7059
    %v7840 = vunpack.c.h.b16 %v7059
    %v7841 = vunpack.c.l.b16 %v7060
    %v7842 = vunpack.c.h.b16 %v7060
    %v7843 = vunpack.c.l.b16 %v7061
    %v7844 = vunpack.c.h.b16 %v7061
    %v7845 = vunpack.c.l.b16 %v7062
    %v7846 = vunpack.c.h.b16 %v7062
    %v7847 = vunpack.c.l.b16 %v7063
    %v7848 = vunpack.c.h.b16 %v7063
    %v7849 = vunpack.c.l.b16 %v7064
    %v7850 = vunpack.c.h.b16 %v7064
    %v7851 = vunpack.c.l.b16 %v7065
    %v7852 = vunpack.c.h.b16 %v7065
    %v7853 = vunpack.c.l.b16 %v7066
    %v7854 = vunpack.c.h.b16 %v7066
    %v7855 = vunpack.c.l.b16 %v7067
    %v7856 = vunpack.c.h.b16 %v7067
    %v7857 = vunpack.c.l.b16 %v7068
    %v7858 = vunpack.c.h.b16 %v7068
    %v7859 = vunpack.c.l.b16 %v7069
    %v7860 = vunpack.c.h.b16 %v7069
    %v7861 = vunpack.c.l.b16 %v7070
    %v7862 = vunpack.c.h.b16 %v7070
    %v7863 = vunpack.c.l.b16 %v7071
    %v7864 = vunpack.c.h.b16 %v7071
    %v7865 = vunpack.c.l.b16 %v7072
    %v7866 = vunpack.c.h.b16 %v7072
    %v7867 = vunpack.c.l.b16 %v7073
    %v7868 = vunpack.c.h.b16 %v7073
    %v7869 = vunpack.c.l.b16 %v7074
    %v7870 = vunpack.c.h.b16 %v7074
    %v7871 = vunpack.c.l.b16 %v7075
    %v7872 = vunpack.c.h.b16 %v7075
    %v7873 = vunpack.c.l.b16 %v7076
    %v7874 = vunpack.c.h.b16 %v7076
    %v7875 = vunpack.c.l.b16 %v7077
    %v7876 = vunpack.c.h.b16 %v7077
    %v7877 = vunpack.c.l.b16 %v7078
    %v7878 = vunpack.c.h.b16 %v7078
    %v7879 = vunpack.c.l.b16 %v7079
    %v7880 = vunpack.c.h.b16 %v7079
    %v7881 = vunpack.c.l.b16 %v7080
    %v7882 = vunpack.c.h.b16 %v7080
    %v7883 = vunpack.c.l.b16 %v7081
    %v7884 = vunpack.c.h.b16 %v7081
    %v7885 = vunpack.c.l.b16 %v7082
    %v7886 = vunpack.c.h.b16 %v7082
    %v7887 = vunpack.c.l.b16 %v7083
    %v7888 = vunpack.c.h.b16 %v7083
    %v7889 = vunpack.c.l.b16 %v7084
    %v7890 = vunpack.c.h.b16 %v7084
    %v7891 = vunpack.c.l.b16 %v7085
    %v7892 = vunpack.c.h.b16 %v7085
    %v7893 = vunpack.c.l.b16 %v7086
    %v7894 = vunpack.c.h.b16 %v7086
    %v7895 = vunpack.c.l.b16 %v7087
    %v7896 = vunpack.c.h.b16 %v7087
    %v7897 = vunpack.c.l.b16 %v7088
    %v7898 = vunpack.c.h.b16 %v7088
    %v7899 = vunpack.c.l.b16 %v7089
    %v7900 = vunpack.c.h.b16 %v7089
    %v7901 = vunpack.c.l.b16 %v7090
    %v7902 = vunpack.c.h.b16 %v7090
    %v7903 = vunpack.c.l.b16 %v7091
    %v7904 = vunpack.c.h.b16 %v7091
    %v7905 = vunpack.c.l.b16 %v7092
    %v7906 = vunpack.c.h.b16 %v7092
    %v7907 = vunpack.c.l.b16 %v7093
    %v7908 = vunpack.c.h.b16 %v7093
    %v7909 = vunpack.c.l.b16 %v7094
    %v7910 = vunpack.c.h.b16 %v7094
    %v7911 = vunpack.c.l.b16 %v7095
    %v7912 = vunpack.c.h.b16 %v7095
    %v7913 = vunpack.c.l.b16 %v7096
    %v7914 = vunpack.c.h.b16 %v7096
    %v7915 = vunpack.c.l.b16 %v7097
    %v7916 = vunpack.c.h.b16 %v7097
    %v7917 = vunpack.c.l.b16 %v7098
    %v7918 = vunpack.c.h.b16 %v7098
    %v7919 = vunpack.c.l.b16 %v7099
    %v7920 = vunpack.c.h.b16 %v7099
    %v7921 = vunpack.c.l.b16 %v7100
    %v7922 = vunpack.c.h.b16 %v7100
    %v7923 = vunpack.c.l.b16 %v7101
    %v7924 = vunpack.c.h.b16 %v7101
    %v7925 = vunpack.c.l.b16 %v7102
    %v7926 = vunpack.c.h.b16 %v7102
    %v7927 = vunpack.c.l.b16 %v7103
    %v7928 = vunpack.c.h.b16 %v7103
    %v7929 = vunpack.c.l.b16 %v7104
    %v7930 = vunpack.c.h.b16 %v7104
    %v7931 = vunpack.c.l.b16 %v7105
    %v7932 = vunpack.c.h.b16 %v7105
    %v7933 = vunpack.c.l.b16 %v7106
    %v7934 = vunpack.c.h.b16 %v7106
    %v7935 = vunpack.c.l.b16 %v7107
    %v7936 = vunpack.c.h.b16 %v7107
    %v7937 = vunpack.c.l.b16 %v7108
    %v7938 = vunpack.c.h.b16 %v7108
    %v7939 = vunpack.c.l.b16 %v7109
    %v7940 = vunpack.c.h.b16 %v7109
    %v7941 = vunpack.c.l.b16 %v7110
    %v7942 = vunpack.c.h.b16 %v7110
    %v7943 = vunpack.c.l.b16 %v7111
    %v7944 = vunpack.c.h.b16 %v7111
    %v7945 = vunpack.c.l.b16 %v7112
    %v7946 = vunpack.c.h.b16 %v7112
    %v7947 = vunpack.c.l.b16 %v7113
    %v7948 = vunpack.c.h.b16 %v7113
    %v7949 = vunpack.c.l.b16 %v7114
    %v7950 = vunpack.c.h.b16 %v7114
    %v7951 = vunpack.c.l.b16 %v7115
    %v7952 = vunpack.c.h.b16 %v7115
    %v7953 = vunpack.c.l.b16 %v7116
    %v7954 = vunpack.c.h.b16 %v7116
    %v7955 = vunpack.c.l.b16 %v7117
    %v7956 = vunpack.c.h.b16 %v7117
    %v7957 = vunpack.c.l.b16 %v7118
    %v7958 = vunpack.c.h.b16 %v7118
    %v7959 = vunpack.c.l.b16 %v7119
    %v7960 = vunpack.c.h.b16 %v7119
    %v7961 = vunpack.c.l.b16 %v7120
    %v7962 = vunpack.c.h.b16 %v7120
    %v7963 = vunpack.c.l.b16 %v7121
    %v7964 = vunpack.c.h.b16 %v7121
    %v7965 = vunpack.c.l.b16 %v7122
    %v7966 = vunpack.c.h.b16 %v7122
    %v7967 = vunpack.c.l.b16 %v7123
    %v7968 = vunpack.c.h.b16 %v7123
    %v7969 = vunpack.c.l.b16 %v7124
    %v7970 = vunpack.c.h.b16 %v7124
    %v7971 = vunpack.c.l.b16 %v7125
    %v7972 = vunpack.c.h.b16 %v7125
    %v7973 = vunpack.c.l.b16 %v7126
    %v7974 = vunpack.c.h.b16 %v7126
    %v7975 = vunpack.c.l.b16 %v7127
    %v7976 = vunpack.c.h.b16 %v7127
    %v7977 = vunpack.c.l.b16 %v7128
    %v7978 = vunpack.c.h.b16 %v7128
    %v7979 = vunpack.c.l.b16 %v7129
    %v7980 = vunpack.c.h.b16 %v7129
    %v7981 = vunpack.c.l.b16 %v7130
    %v7982 = vunpack.c.h.b16 %v7130
    %v7983 = vunpack.c.l.b16 %v7131
    %v7984 = vunpack.c.h.b16 %v7131
    %v7985 = vunpack.c.l.b16 %v7132
    %v7986 = vunpack.c.h.b16 %v7132
    %v7987 = vunpack.c.l.b16 %v7133
    %v7988 = vunpack.c.h.b16 %v7133
    %v7989 = vunpack.c.l.b16 %v7134
    %v7990 = vunpack.c.h.b16 %v7134
    %v7991 = vunpack.c.l.b16 %v7135
    %v7992 = vunpack.c.h.b16 %v7135
    %v7993 = vunpack.c.l.b16 %v7136
    %v7994 = vunpack.c.h.b16 %v7136
    %v7995 = vunpack.c.l.b16 %v7137
    %v7996 = vunpack.c.h.b16 %v7137
    %v7997 = vunpack.c.l.b16 %v7138
    %v7998 = vunpack.c.h.b16 %v7138
    %v7999 = vunpack.c.l.b16 %v7139
    %v8000 = vunpack.c.h.b16 %v7139
    %v8001 = vunpack.c.l.b16 %v7140
    %v8002 = vunpack.c.h.b16 %v7140
    %v8003 = vunpack.c.l.b16 %v7141
    %v8004 = vunpack.c.h.b16 %v7141
    %v8005 = vunpack.c.l.b16 %v7142
    %v8006 = vunpack.c.h.b16 %v7142
    %v8007 = vunpack.c.l.b16 %v7143
    %v8008 = vunpack.c.h.b16 %v7143
    %v8009 = vunpack.c.l.b16 %v7144
    %v8010 = vunpack.c.h.b16 %v7144
    %v8011 = vunpack.c.l.b16 %v7145
    %v8012 = vunpack.c.h.b16 %v7145
    %v8013 = vunpack.c.l.b16 %v7146
    %v8014 = vunpack.c.h.b16 %v7146
    %v8015 = vunpack.c.l.b16 %v7147
    %v8016 = vunpack.c.h.b16 %v7147
    %v8017 = vunpack.c.l.b16 %v7148
    %v8018 = vunpack.c.h.b16 %v7148
    %v8019 = vunpack.c.l.b16 %v7149
    %v8020 = vunpack.c.h.b16 %v7149
    %v8021 = vunpack.c.l.b16 %v7150
    %v8022 = vunpack.c.h.b16 %v7150
    %v8023 = vunpack.c.l.b16 %v7151
    %v8024 = vunpack.c.h.b16 %v7151
    %v8025 = vunpack.c.l.b16 %v7152
    %v8026 = vunpack.c.h.b16 %v7152
    %v8027 = vunpack.c.l.b16 %v7153
    %v8028 = vunpack.c.h.b16 %v7153
    %v8029 = vunpack.c.l.b16 %v7154
    %v8030 = vunpack.c.h.b16 %v7154
    %v8031 = vunpack.c.l.b16 %v7155
    %v8032 = vunpack.c.h.b16 %v7155
    %v8033 = vunpack.c.l.b16 %v7156
    %v8034 = vunpack.c.h.b16 %v7156
    %v8035 = vunpack.c.l.b16 %v7157
    %v8036 = vunpack.c.h.b16 %v7157
    %v8037 = vunpack.c.l.b16 %v7158
    %v8038 = vunpack.c.h.b16 %v7158
    %v8039 = vunpack.c.l.b16 %v7159
    %v8040 = vunpack.c.h.b16 %v7159
    %v8041 = vunpack.c.l.b16 %v7160
    %v8042 = vunpack.c.h.b16 %v7160
    %v8043 = vunpack.c.l.b16 %v7161
    %v8044 = vunpack.c.h.b16 %v7161
    %v8045 = vunpack.c.l.b16 %v7162
    %v8046 = vunpack.c.h.b16 %v7162
    %v8047 = vunpack.c.l.b16 %v7163
    %v8048 = vunpack.c.h.b16 %v7163
    %v8049 = vunpack.c.l.b16 %v7164
    %v8050 = vunpack.c.h.b16 %v7164
    %v8051 = vunpack.c.l.b16 %v7165
    %v8052 = vunpack.c.h.b16 %v7165
    %v8053 = vunpack.c.l.b16 %v7166
    %v8054 = vunpack.c.h.b16 %v7166
    %v8055 = vunpack.c.l.b16 %v7167
    %v8056 = vunpack.c.h.b16 %v7167
    %v8057 = vunpack.c.l.b16 %v7168
    %v8058 = vunpack.c.h.b16 %v7168
    %v8059 = vunpack.c.l.b16 %v7169
    %v8060 = vunpack.c.h.b16 %v7169
    %v8061 = vunpack.c.l.b16 %v7170
    %v8062 = vunpack.c.h.b16 %v7170
    %v8063 = vunpack.c.l.b16 %v7171
    %v8064 = vunpack.c.h.b16 %v7171
    %v8065 = vunpack.c.l.b16 %v7172
    %v8066 = vunpack.c.h.b16 %v7172
    %v8067 = vunpack.c.l.b16 %v7173
    %v8068 = vunpack.c.h.b16 %v7173
    %v8069 = vunpack.c.l.b16 %v7174
    %v8070 = vunpack.c.h.b16 %v7174
    %v8071 = vunpack.c.l.b16 %v7175
    %v8072 = vunpack.c.h.b16 %v7175
    %v8073 = vunpack.c.l.b16 %v7176
    %v8074 = vunpack.c.h.b16 %v7176
    %v8075 = vunpack.c.l.b16 %v7177
    %v8076 = vunpack.c.h.b16 %v7177
    %v8077 = vunpack.c.l.b16 %v7178
    %v8078 = vunpack.c.h.b16 %v7178
    %v8079 = vunpack.c.l.b16 %v7179
    %v8080 = vunpack.c.h.b16 %v7179
    %v8081 = vunpack.c.l.b16 %v7180
    %v8082 = vunpack.c.h.b16 %v7180
    %v8083 = vunpack.c.l.b16 %v7181
    %v8084 = vunpack.c.h.b16 %v7181
    %v8085 = vunpack.c.l.b16 %v7182
    %v8086 = vunpack.c.h.b16 %v7182
    %v8087 = vunpack.c.l.b16 %v7183
    %v8088 = vunpack.c.h.b16 %v7183
    %v8089 = vunpack.c.l.b16 %v7184
    %v8090 = vunpack.c.h.b16 %v7184
    %v8091 = vunpack.c.l.b16 %v7185
    %v8092 = vunpack.c.h.b16 %v7185
    %v8093 = vunpack.c.l.b16 %v7186
    %v8094 = vunpack.c.h.b16 %v7186
    %v8095 = vunpack.c.l.b16 %v7187
    %v8096 = vunpack.c.h.b16 %v7187
    %v8097 = vunpack.c.l.b16 %v7188
    %v8098 = vunpack.c.h.b16 %v7188
    %v8099 = vunpack.c.l.b16 %v7189
    %v8100 = vunpack.c.h.b16 %v7189
    %v8101 = vunpack.c.l.b16 %v7190
    %v8102 = vunpack.c.h.b16 %v7190
    %v8103 = vunpack.c.l.b16 %v7191
    %v8104 = vunpack.c.h.b16 %v7191
    %v8105 = vunpack.c.l.b16 %v7192
    %v8106 = vunpack.c.h.b16 %v7192
    %v8107 = vunpack.c.l.b16 %v7193
    %v8108 = vunpack.c.h.b16 %v7193
    %v8109 = vunpack.c.l.b16 %v7194
    %v8110 = vunpack.c.h.b16 %v7194
    %v8111 = vunpack.c.l.b16 %v7195
    %v8112 = vunpack.c.h.b16 %v7195
    %v8113 = vunpack.c.l.b16 %v7196
    %v8114 = vunpack.c.h.b16 %v7196
    %v8115 = vunpack.c.l.b16 %v7197
    %v8116 = vunpack.c.h.b16 %v7197
    %v8117 = vunpack.c.l.b16 %v7198
    %v8118 = vunpack.c.h.b16 %v7198
    %v8119 = vunpack.c.l.b16 %v7199
    %v8120 = vunpack.c.h.b16 %v7199
    %v8121 = vunpack.c.l.b16 %v7200
    %v8122 = vunpack.c.h.b16 %v7200
    %v8123 = vunpack.c.l.b16 %v7201
    %v8124 = vunpack.c.h.b16 %v7201
    %v8125 = vunpack.c.l.b16 %v7202
    %v8126 = vunpack.c.h.b16 %v7202
    %v8127 = vunpack.c.l.b16 %v7203
    %v8128 = vunpack.c.h.b16 %v7203
    %v8129 = vunpack.c.l.b16 %v7204
    %v8130 = vunpack.c.h.b16 %v7204
    %v8131 = vunpack.c.l.b16 %v7205
    %v8132 = vunpack.c.h.b16 %v7205
    %v8133 = vunpack.c.l.b16 %v7206
    %v8134 = vunpack.c.h.b16 %v7206
    %v8135 = vunpack.c.l.b16 %v7207
    %v8136 = vunpack.c.h.b16 %v7207
    %v8137 = vunpack.c.l.b16 %v7208
    %v8138 = vunpack.c.h.b16 %v7208
    %v8139 = vunpack.c.l.b16 %v7209
    %v8140 = vunpack.c.h.b16 %v7209
    %v8141 = vunpack.c.l.b16 %v7210
    %v8142 = vunpack.c.h.b16 %v7210
    %v8143 = vunpack.c.l.b16 %v7211
    %v8144 = vunpack.c.h.b16 %v7211
    %v8145 = vunpack.c.l.b16 %v7212
    %v8146 = vunpack.c.h.b16 %v7212
    %v8147 = vunpack.c.l.b16 %v7213
    %v8148 = vunpack.c.h.b16 %v7213
    %v8149 = vunpack.c.l.b16 %v7214
    %v8150 = vunpack.c.h.b16 %v7214
    %v8151 = vunpack.c.l.b16 %v7215
    %v8152 = vunpack.c.h.b16 %v7215
    %v8153 = vunpack.c.l.b16 %v7216
    %v8154 = vunpack.c.h.b16 %v7216
    %v8155 = vunpack.c.l.b16 %v7217
    %v8156 = vunpack.c.h.b16 %v7217
    %v8157 = vunpack.c.l.b16 %v7218
    %v8158 = vunpack.c.h.b16 %v7218
    %v8159 = vunpack.c.l.b16 %v7219
    %v8160 = vunpack.c.h.b16 %v7219
    %v8161 = vunpack.c.l.b16 %v7220
    %v8162 = vunpack.c.h.b16 %v7220
    %v8163 = vunpack.c.l.b16 %v7221
    %v8164 = vunpack.c.h.b16 %v7221
    %v8165 = vunpack.c.l.b16 %v7222
    %v8166 = vunpack.c.h.b16 %v7222
    %v8167 = vunpack.c.l.b16 %v7223
    %v8168 = vunpack.c.h.b16 %v7223
    %v8169 = vunpack.c.l.b16 %v7224
    %v8170 = vunpack.c.h.b16 %v7224
    %v8171 = vunpack.c.l.b16 %v7225
    %v8172 = vunpack.c.h.b16 %v7225
    %v8173 = vunpack.c.l.b16 %v7226
    %v8174 = vunpack.c.h.b16 %v7226
    %v8175 = vunpack.c.l.b16 %v7227
    %v8176 = vunpack.c.h.b16 %v7227
    %v8177 = vunpack.c.l.b16 %v7228
    %v8178 = vunpack.c.h.b16 %v7228
    %v8179 = vunpack.c.l.b16 %v7229
    %v8180 = vunpack.c.h.b16 %v7229
    %v8181 = vunpack.c.l.b16 %v7230
    %v8182 = vunpack.c.h.b16 %v7230
    %v8183 = vunpack.c.l.b16 %v7231
    %v8184 = vunpack.c.h.b16 %v7231
    %v8185 = vunpack.c.l.b16 %v7232
    %v8186 = vunpack.c.h.b16 %v7232
    %v8187 = vunpack.c.l.b16 %v7233
    %v8188 = vunpack.c.h.b16 %v7233
    %v8189 = vunpack.c.l.b16 %v7234
    %v8190 = vunpack.c.h.b16 %v7234
    %v8191 = vunpack.c.l.b16 %v7235
    %v8192 = vunpack.c.h.b16 %v7235
    %v8193 = vunpack.c.l.b16 %v7236
    %v8194 = vunpack.c.h.b16 %v7236
    %v8195 = vunpack.c.l.b16 %v7237
    %v8196 = vunpack.c.h.b16 %v7237
    %v8197 = vunpack.c.l.b16 %v7238
    %v8198 = vunpack.c.h.b16 %v7238
    %v8199 = vunpack.c.l.b16 %v7239
    %v8200 = vunpack.c.h.b16 %v7239
    %v8201 = vunpack.c.l.b16 %v7240
    %v8202 = vunpack.c.h.b16 %v7240
    %v8203 = vunpack.c.l.b16 %v7241
    %v8204 = vunpack.c.h.b16 %v7241
    %v8205 = vunpack.c.l.b16 %v7242
    %v8206 = vunpack.c.h.b16 %v7242
    %v8207 = vunpack.c.l.b16 %v7243
    %v8208 = vunpack.c.h.b16 %v7243
    %v8209 = vunpack.c.l.b16 %v7244
    %v8210 = vunpack.c.h.b16 %v7244
    %v8211 = vunpack.c.l.b16 %v7245
    %v8212 = vunpack.c.h.b16 %v7245
    %v8213 = vunpack.c.l.b16 %v7246
    %v8214 = vunpack.c.h.b16 %v7246
    %v8215 = vunpack.c.l.b16 %v7247
    %v8216 = vunpack.c.h.b16 %v7247
    %v8217 = vunpack.c.l.b16 %v7248
    %v8218 = vunpack.c.h.b16 %v7248
    %v8219 = vunpack.c.l.b16 %v7249
    %v8220 = vunpack.c.h.b16 %v7249
    %v8221 = vunpack.c.l.b16 %v7250
    %v8222 = vunpack.c.h.b16 %v7250
    %v8223 = vunpack.c.l.b16 %v7251
    %v8224 = vunpack.c.h.b16 %v7251
    %v8225 = vunpack.c.l.b16 %v7252
    %v8226 = vunpack.c.h.b16 %v7252
    %v8227 = vunpack.c.l.b16 %v7253
    %v8228 = vunpack.c.h.b16 %v7253
    %v8229 = vunpack.c.l.b16 %v7254
    %v8230 = vunpack.c.h.b16 %v7254
    %v8231 = vunpack.c.l.b16 %v7255
    %v8232 = vunpack.c.h.b16 %v7255
    %v8233 = vunpack.c.l.b16 %v7256
    %v8234 = vunpack.c.h.b16 %v7256
    %v8235 = vunpack.c.l.b16 %v7257
    %v8236 = vunpack.c.h.b16 %v7257
    %v8237 = vunpack.c.l.b16 %v7258
    %v8238 = vunpack.c.h.b16 %v7258
    %v8239 = vunpack.c.l.b16 %v7259
    %v8240 = vunpack.c.h.b16 %v7259
    %v8241 = vunpack.c.l.b16 %v7260
    %v8242 = vunpack.c.h.b16 %v7260
    %v8243 = vunpack.c.l.b16 %v7261
    %v8244 = vunpack.c.h.b16 %v7261
    %v8245 = vunpack.c.l.b16 %v7262
    %v8246 = vunpack.c.h.b16 %v7262
    %v8247 = vunpack.c.l.b16 %v7263
    %v8248 = vunpack.c.h.b16 %v7263
    %v8249 = vunpack.c.l.b16 %v7264
    %v8250 = vunpack.c.h.b16 %v7264
    %v8251 = vunpack.c.l.b16 %v7265
    %v8252 = vunpack.c.h.b16 %v7265
    %v8253 = vunpack.c.l.b16 %v7266
    %v8254 = vunpack.c.h.b16 %v7266
    %v8255 = vunpack.c.l.b16 %v7267
    %v8256 = vunpack.c.h.b16 %v7267
    %v8257 = vunpack.c.l.b16 %v7268
    %v8258 = vunpack.c.h.b16 %v7268
    %v8259 = vunpack.c.l.b16 %v7269
    %v8260 = vunpack.c.h.b16 %v7269
    %v8261 = vunpack.c.l.b16 %v7270
    %v8262 = vunpack.c.h.b16 %v7270
    %v8263 = vunpack.c.l.b16 %v7271
    %v8264 = vunpack.c.h.b16 %v7271
    %v8265 = vunpack.c.l.b16 %v7272
    %v8266 = vunpack.c.h.b16 %v7272
    %v8267 = vunpack.c.l.b16 %v7273
    %v8268 = vunpack.c.h.b16 %v7273
    %v8269 = vunpack.c.l.b16 %v7274
    %v8270 = vunpack.c.h.b16 %v7274
    %v8271 = vunpack.c.l.b16 %v7275
    %v8272 = vunpack.c.h.b16 %v7275
    %v8273 = vunpack.c.l.b16 %v7276
    %v8274 = vunpack.c.h.b16 %v7276
    %v8275 = vunpack.c.l.b16 %v7277
    %v8276 = vunpack.c.h.b16 %v7277
    %v8277 = vunpack.c.l.b16 %v7278
    %v8278 = vunpack.c.h.b16 %v7278
    %v8279 = vunpack.c.l.b16 %v7279
    %v8280 = vunpack.c.h.b16 %v7279
    %v8281 = vunpack.c.l.b16 %v7280
    %v8282 = vunpack.c.h.b16 %v7280
    %v8283 = vunpack.c.l.b16 %v7281
    %v8284 = vunpack.c.h.b16 %v7281
    %v8285 = vunpack.c.l.b16 %v7282
    %v8286 = vunpack.c.h.b16 %v7282
    %v8287 = vunpack.c.l.b16 %v7283
    %v8288 = vunpack.c.h.b16 %v7283
    %v8289 = vunpack.c.l.b16 %v7284
    %v8290 = vunpack.c.h.b16 %v7284
    %v8291 = vunpack.c.l.b16 %v7285
    %v8292 = vunpack.c.h.b16 %v7285
    %v8293 = vunpack.c.l.b16 %v7286
    %v8294 = vunpack.c.h.b16 %v7286
    %v8295 = vunpack.c.l.b16 %v7287
    %v8296 = vunpack.c.h.b16 %v7287
    %v8297 = vunpack.c.l.b16 %v7288
    %v8298 = vunpack.c.h.b16 %v7288
    %v8299 = vunpack.c.l.b16 %v7289
    %v8300 = vunpack.c.h.b16 %v7289
    %v8301 = vunpack.c.l.b16 %v7290
    %v8302 = vunpack.c.h.b16 %v7290
    %v8303 = vunpack.c.l.b16 %v7291
    %v8304 = vunpack.c.h.b16 %v7291
    %v8305 = vunpack.c.l.b16 %v7292
    %v8306 = vunpack.c.h.b16 %v7292
    %v8307 = vunpack.c.l.b16 %v7293
    %v8308 = vunpack.c.h.b16 %v7293
    %v8309 = vunpack.c.l.b16 %v7294
    %v8310 = vunpack.c.h.b16 %v7294
    %v8311 = vunpack.c.l.b16 %v7295
    %v8312 = vunpack.c.h.b16 %v7295
    %v8313 = vunpack.c.l.b16 %v7296
    %v8314 = vunpack.c.h.b16 %v7296
    %v8315 = vunpack.c.l.b16 %v7297
    %v8316 = vunpack.c.h.b16 %v7297
    %v8317 = vunpack.c.l.b16 %v7298
    %v8318 = vunpack.c.h.b16 %v7298
    %v8319 = vunpack.c.l.b16 %v7299
    %v8320 = vunpack.c.h.b16 %v7299
    %v8321 = vunpack.c.l.b16 %v7300
    %v8322 = vunpack.c.h.b16 %v7300
    %v8323 = vunpack.c.l.b16 %v7301
    %v8324 = vunpack.c.h.b16 %v7301
    %v8325 = vunpack.c.l.b16 %v7302
    %v8326 = vunpack.c.h.b16 %v7302
    %v8327 = vunpack.c.l.b16 %v7303
    %v8328 = vunpack.c.h.b16 %v7303
    %v8329 = vunpack.c.l.b16 %v7304
    %v8330 = vunpack.c.h.b16 %v7304
    %v8331 = vunpack.c.l.b16 %v7305
    %v8332 = vunpack.c.h.b16 %v7305
    %v8333 = vunpack.c.l.b16 %v7306
    %v8334 = vunpack.c.h.b16 %v7306
    %v8335 = vunpack.c.l.b16 %v7307
    %v8336 = vunpack.c.h.b16 %v7307
    %v8337 = vunpack.c.l.b16 %v7308
    %v8338 = vunpack.c.h.b16 %v7308
    %v8339 = vunpack.c.l.b16 %v7309
    %v8340 = vunpack.c.h.b16 %v7309
    %v8341 = vunpack.c.l.b16 %v7310
    %v8342 = vunpack.c.h.b16 %v7310
    %v8343 = vunpack.c.l.b16 %v7311
    %v8344 = vunpack.c.h.b16 %v7311
    %v8345 = vunpack.c.l.b16 %v7312
    %v8346 = vunpack.c.h.b16 %v7312
    %v8347 = vunpack.c.l.b16 %v7313
    %v8348 = vunpack.c.h.b16 %v7313
    %v8349 = vunpack.c.l.b16 %v7314
    %v8350 = vunpack.c.h.b16 %v7314
    %v8351 = vunpack.c.l.b16 %v7315
    %v8352 = vunpack.c.h.b16 %v7315
    %v8353 = vunpack.c.l.b16 %v7316
    %v8354 = vunpack.c.h.b16 %v7316
    %v8355 = vunpack.c.l.b16 %v7317
    %v8356 = vunpack.c.h.b16 %v7317
    %v8357 = vunpack.c.l.b16 %v7318
    %v8358 = vunpack.c.h.b16 %v7318
    %v8359 = vunpack.c.l.b16 %v7319
    %v8360 = vunpack.c.h.b16 %v7319
    %v8361 = vunpack.c.l.b16 %v7320
    %v8362 = vunpack.c.h.b16 %v7320
    %v8363 = vunpack.c.l.b16 %v7321
    %v8364 = vunpack.c.h.b16 %v7321
    %v8365 = vunpack.c.l.b16 %v7322
    %v8366 = vunpack.c.h.b16 %v7322
    %v8367 = vunpack.c.l.b16 %v7323
    %v8368 = vunpack.c.h.b16 %v7323
    %v8369 = vunpack.c.l.b16 %v7324
    %v8370 = vunpack.c.h.b16 %v7324
    %v8371 = vunpack.c.l.b16 %v7325
    %v8372 = vunpack.c.h.b16 %v7325
    %v8373 = vunpack.c.l.b16 %v7326
    %v8374 = vunpack.c.h.b16 %v7326
    %v8375 = vunpack.c.l.b16 %v7327
    %v8376 = vunpack.c.h.b16 %v7327
    %v8377 = vunpack.c.l.b16 %v7328
    %v8378 = vunpack.c.h.b16 %v7328
    %v8379 = vunpack.c.l.b16 %v7329
    %v8380 = vunpack.c.h.b16 %v7329
    %v8381 = vunpack.c.l.b16 %v7330
    %v8382 = vunpack.c.h.b16 %v7330
    %v8383 = vunpack.c.l.b16 %v7331
    %v8384 = vunpack.c.h.b16 %v7331
    %v8385 = vunpack.c.l.b16 %v7332
    %v8386 = vunpack.c.h.b16 %v7332
    %v8387 = vunpack.c.l.b16 %v7333
    %v8388 = vunpack.c.h.b16 %v7333
    %v8389 = vunpack.c.l.b16 %v7334
    %v8390 = vunpack.c.h.b16 %v7334
    %v8391 = vunpack.c.l.b16 %v7335
    %v8392 = vunpack.c.h.b16 %v7335
    %v8393 = vunpack.c.l.b16 %v7336
    %v8394 = vunpack.c.h.b16 %v7336
    %v8395 = vunpack.c.l.b16 %v7337
    %v8396 = vunpack.c.h.b16 %v7337
    %v8397 = vunpack.c.l.b16 %v7338
    %v8398 = vunpack.c.h.b16 %v7338
    %v8399 = vunpack.c.l.b16 %v7339
    %v8400 = vunpack.c.h.b16 %v7339
    %v8401 = vunpack.c.l.b16 %v7340
    %v8402 = vunpack.c.h.b16 %v7340
    %v8403 = vunpack.c.l.b16 %v7341
    %v8404 = vunpack.c.h.b16 %v7341
    %v8405 = vunpack.c.l.b16 %v7342
    %v8406 = vunpack.c.h.b16 %v7342
    %v8407 = vunpack.c.l.b16 %v7343
    %v8408 = vunpack.c.h.b16 %v7343
    %v8409 = vunpack.c.l.b16 %v7344
    %v8410 = vunpack.c.h.b16 %v7344
    %v8411 = vunpack.c.l.b16 %v7345
    %v8412 = vunpack.c.h.b16 %v7345
    %v8413 = vunpack.c.l.b16 %v7346
    %v8414 = vunpack.c.h.b16 %v7346
    %v8415 = vunpack.c.l.b16 %v7347
    %v8416 = vunpack.c.h.b16 %v7347
    %v8417 = vunpack.c.l.b16 %v7348
    %v8418 = vunpack.c.h.b16 %v7348
    %v8419 = vunpack.c.l.b16 %v7349
    %v8420 = vunpack.c.h.b16 %v7349
    %v8421 = vunpack.c.l.b16 %v7350
    %v8422 = vunpack.c.h.b16 %v7350
    %v8423 = vunpack.c.l.b16 %v7351
    %v8424 = vunpack.c.h.b16 %v7351
    %v8425 = vunpack.c.l.b16 %v7352
    %v8426 = vunpack.c.h.b16 %v7352
    %v8427 = vunpack.c.l.b16 %v7353
    %v8428 = vunpack.c.h.b16 %v7353
    %v8429 = vunpack.c.l.b16 %v7354
    %v8430 = vunpack.c.h.b16 %v7354
    %v8431 = vunpack.c.l.b16 %v7355
    %v8432 = vunpack.c.h.b16 %v7355
    %v8433 = vunpack.c.l.b16 %v7356
    %v8434 = vunpack.c.h.b16 %v7356
    %v8435 = vunpack.c.l.b16 %v7357
    %v8436 = vunpack.c.h.b16 %v7357
    %v8437 = vunpack.c.l.b16 %v7358
    %v8438 = vunpack.c.h.b16 %v7358
    %v8439 = vunpack.c.l.b16 %v7359
    %v8440 = vunpack.c.h.b16 %v7359
    %v8441 = vunpack.c.l.b16 %v7360
    %v8442 = vunpack.c.h.b16 %v7360
    %v8443 = vunpack.c.l.b16 %v7361
    %v8444 = vunpack.c.h.b16 %v7361
    %v8445 = vunpack.c.l.b16 %v7362
    %v8446 = vunpack.c.h.b16 %v7362
    %v8447 = vunpack.c.l.b16 %v7363
    %v8448 = vunpack.c.h.b16 %v7363
    %v8449 = vunpack.c.l.b16 %v7364
    %v8450 = vunpack.c.h.b16 %v7364
    %v8451 = vunpack.c.l.b16 %v7365
    %v8452 = vunpack.c.h.b16 %v7365
    %v8453 = vunpack.c.l.b16 %v7366
    %v8454 = vunpack.c.h.b16 %v7366
    %v8455 = vunpack.c.l.b16 %v7367
    %v8456 = vunpack.c.h.b16 %v7367
    %v8457 = vunpack.c.l.b16 %v7368
    %v8458 = vunpack.c.h.b16 %v7368
    %v8459 = vunpack.c.l.b16 %v7369
    %v8460 = vunpack.c.h.b16 %v7369
    %v8461 = vunpack.c.l.b16 %v7370
    %v8462 = vunpack.c.h.b16 %v7370
    %v8463 = vunpack.c.l.b16 %v7371
    %v8464 = vunpack.c.h.b16 %v7371
    %v8465 = vunpack.c.l.b16 %v7372
    %v8466 = vunpack.c.h.b16 %v7372
    %v8467 = vunpack.c.l.b16 %v7373
    %v8468 = vunpack.c.h.b16 %v7373
    %v8469 = vunpack.c.l.b16 %v7374
    %v8470 = vunpack.c.h.b16 %v7374
    %v8471 = vunpack.c.l.b16 %v7375
    %v8472 = vunpack.c.h.b16 %v7375
    %v8473 = vunpack.c.l.b16 %v7376
    %v8474 = vunpack.c.h.b16 %v7376
    %v8475 = vunpack.c.l.b16 %v7377
    %v8476 = vunpack.c.h.b16 %v7377
    %v8477 = vunpack.c.l.b16 %v7378
    %v8478 = vunpack.c.h.b16 %v7378
    %v8479 = vunpack.c.l.b16 %v7379
    %v8480 = vunpack.c.h.b16 %v7379
    %v8481 = vunpack.c.l.b16 %v7380
    %v8482 = vunpack.c.h.b16 %v7380
    %v8483 = vunpack.c.l.b16 %v7381
    %v8484 = vunpack.c.h.b16 %v7381
    %v8485 = vunpack.c.l.b16 %v7382
    %v8486 = vunpack.c.h.b16 %v7382
    %v8487 = vunpack.c.l.b16 %v7383
    %v8488 = vunpack.c.h.b16 %v7383
    %v8489 = vunpack.c.l.b16 %v7384
    %v8490 = vunpack.c.h.b16 %v7384
    %v8491 = vunpack.c.l.b16 %v7385
    %v8492 = vunpack.c.h.b16 %v7385
    %v8493 = vunpack.c.l.b16 %v7386
    %v8494 = vunpack.c.h.b16 %v7386
    %v8495 = vunpack.c.l.b16 %v7387
    %v8496 = vunpack.c.h.b16 %v7387
    %v8497 = vunpack.c.l.b16 %v7388
    %v8498 = vunpack.c.h.b16 %v7388
    %v8499 = vunpack.c.l.b16 %v7389
    %v8500 = vunpack.c.h.b16 %v7389
    %v8501 = vunpack.c.l.b16 %v7390
    %v8502 = vunpack.c.h.b16 %v7390
    %v8503 = vunpack.c.l.b16 %v7391
    %v8504 = vunpack.c.h.b16 %v7391
    %v8505 = vunpack.c.l.b16 %v7392
    %v8506 = vunpack.c.h.b16 %v7392
    %v8507 = vunpack.c.l.b16 %v7393
    %v8508 = vunpack.c.h.b16 %v7393
    %v8509 = vunpack.c.l.b16 %v7394
    %v8510 = vunpack.c.h.b16 %v7394
    %v8511 = vunpack.c.l.b16 %v7395
    %v8512 = vunpack.c.h.b16 %v7395
    %v8513 = vunpack.c.l.b16 %v7396
    %v8514 = vunpack.c.h.b16 %v7396
    %v8515 = vunpack.c.l.b16 %v7397
    %v8516 = vunpack.c.h.b16 %v7397
    %v8517 = vunpack.c.l.b16 %v7398
    %v8518 = vunpack.c.h.b16 %v7398
    %v8519 = vunpack.c.l.b16 %v7399
    %v8520 = vunpack.c.h.b16 %v7399
    %v8521 = vunpack.c.l.b16 %v7400
    %v8522 = vunpack.c.h.b16 %v7400
    %v8523 = vunpack.c.l.b16 %v7401
    %v8524 = vunpack.c.h.b16 %v7401
    %v8525 = vunpack.c.l.b16 %v7402
    %v8526 = vunpack.c.h.b16 %v7402
    %v8527 = vunpack.c.l.b16 %v7403
    %v8528 = vunpack.c.h.b16 %v7403
    %v8529 = vunpack.c.l.b16 %v7404
    %v8530 = vunpack.c.h.b16 %v7404
    %v8531 = vunpack.c.l.b16 %v7405
    %v8532 = vunpack.c.h.b16 %v7405
    %v8533 = vunpack.c.l.b16 %v7406
    %v8534 = vunpack.c.h.b16 %v7406
    %v8535 = vunpack.c.l.b16 %v7407
    %v8536 = vunpack.c.h.b16 %v7407
    %v8537 = vunpack.c.l.b16 %v7408
    %v8538 = vunpack.c.h.b16 %v7408
    %v8539 = vunpack.c.l.b16 %v7409
    %v8540 = vunpack.c.h.b16 %v7409
    %v8541 = vunpack.c.l.b16 %v7410
    %v8542 = vunpack.c.h.b16 %v7410
    %v8543 = vunpack.c.l.b16 %v7411
    %v8544 = vunpack.c.h.b16 %v7411
    %v8545 = vunpack.c.l.b16 %v7412
    %v8546 = vunpack.c.h.b16 %v7412
    %v8547 = vunpack.c.l.b16 %v7413
    %v8548 = vunpack.c.h.b16 %v7413
    %v8549 = vunpack.c.l.b16 %v7414
    %v8550 = vunpack.c.h.b16 %v7414
    %v8551 = vunpack.c.l.b16 %v7415
    %v8552 = vunpack.c.h.b16 %v7415
    %v8553 = vunpack.c.l.b16 %v7416
    %v8554 = vunpack.c.h.b16 %v7416
    %v8555 = vunpack.c.l.b16 %v7417
    %v8556 = vunpack.c.h.b16 %v7417
    %v8557 = vunpack.c.l.b16 %v7418
    %v8558 = vunpack.c.h.b16 %v7418
    %v8559 = vunpack.c.l.b16 %v7419
    %v8560 = vunpack.c.h.b16 %v7419
    %v8561 = vunpack.c.l.b16 %v7420
    %v8562 = vunpack.c.h.b16 %v7420
    %v8563 = vunpack.c.l.b16 %v7421
    %v8564 = vunpack.c.h.b16 %v7421
    %v8565 = vunpack.c.l.b16 %v7422
    %v8566 = vunpack.c.h.b16 %v7422
    %v8567 = vunpack.c.l.b16 %v7423
    %v8568 = vunpack.c.h.b16 %v7423
    %v8569 = vunpack.c.l.b16 %v7424
    %v8570 = vunpack.c.h.b16 %v7424
    %v8571 = vunpack.c.l.b16 %v7425
    %v8572 = vunpack.c.h.b16 %v7425
    %v8573 = vunpack.c.l.b16 %v7426
    %v8574 = vunpack.c.h.b16 %v7426
    %v8575 = vunpack.c.l.b16 %v7427
    %v8576 = vunpack.c.h.b16 %v7427
    %v8577 = vunpack.c.l.b16 %v7428
    %v8578 = vunpack.c.h.b16 %v7428
    %v8579 = vunpack.c.l.b16 %v7429
    %v8580 = vunpack.c.h.b16 %v7429
    %v8581 = vunpack.c.l.b16 %v7430
    %v8582 = vunpack.c.h.b16 %v7430
    %v8583 = vpack.c.b16 %v7819, %v7815
    %v8584 = vpack.c.b16 %v7820, %v7816
    %v8585 = vpack.c.b16 %v7821, %v7817
    %v8586 = vpack.c.b16 %v7822, %v7818
    %v8587 = vpack.c.b16 %v7827, %v7823
    %v8588 = vpack.c.b16 %v7828, %v7824
    %v8589 = vpack.c.b16 %v7829, %v7825
    %v8590 = vpack.c.b16 %v7830, %v7826
    %v8591 = vpack.c.b16 %v7835, %v7831
    %v8592 = vpack.c.b16 %v7836, %v7832
    %v8593 = vpack.c.b16 %v7837, %v7833
    %v8594 = vpack.c.b16 %v7838, %v7834
    %v8595 = vpack.c.b16 %v7843, %v7839
    %v8596 = vpack.c.b16 %v7844, %v7840
    %v8597 = vpack.c.b16 %v7845, %v7841
    %v8598 = vpack.c.b16 %v7846, %v7842
    %v8599 = vpack.c.b16 %v7851, %v7847
    %v8600 = vpack.c.b16 %v7852, %v7848
    %v8601 = vpack.c.b16 %v7853, %v7849
    %v8602 = vpack.c.b16 %v7854, %v7850
    %v8603 = vpack.c.b16 %v7859, %v7855
    %v8604 = vpack.c.b16 %v7860, %v7856
    %v8605 = vpack.c.b16 %v7861, %v7857
    %v8606 = vpack.c.b16 %v7862, %v7858
    %v8607 = vpack.c.b16 %v7867, %v7863
    %v8608 = vpack.c.b16 %v7868, %v7864
    %v8609 = vpack.c.b16 %v7869, %v7865
    %v8610 = vpack.c.b16 %v7870, %v7866
    %v8611 = vpack.c.b16 %v7875, %v7871
    %v8612 = vpack.c.b16 %v7876, %v7872
    %v8613 = vpack.c.b16 %v7877, %v7873
    %v8614 = vpack.c.b16 %v7878, %v7874
    %v8615 = vpack.c.b16 %v7883, %v7879
    %v8616 = vpack.c.b16 %v7884, %v7880
    %v8617 = vpack.c.b16 %v7885, %v7881
    %v8618 = vpack.c.b16 %v7886, %v7882
    %v8619 = vpack.c.b16 %v7891, %v7887
    %v8620 = vpack.c.b16 %v7892, %v7888
    %v8621 = vpack.c.b16 %v7893, %v7889
    %v8622 = vpack.c.b16 %v7894, %v7890
    %v8623 = vpack.c.b16 %v7899, %v7895
    %v8624 = vpack.c.b16 %v7900, %v7896
    %v8625 = vpack.c.b16 %v7901, %v7897
    %v8626 = vpack.c.b16 %v7902, %v7898
    %v8627 = vpack.c.b16 %v7907, %v7903
    %v8628 = vpack.c.b16 %v7908, %v7904
    %v8629 = vpack.c.b16 %v7909, %v7905
    %v8630 = vpack.c.b16 %v7910, %v7906
    %v8631 = vpack.c.b16 %v7915, %v7911
    %v8632 = vpack.c.b16 %v7916, %v7912
    %v8633 = vpack.c.b16 %v7917, %v7913
    %v8634 = vpack.c.b16 %v7918, %v7914
    %v8635 = vpack.c.b16 %v7923, %v7919
    %v8636 = vpack.c.b16 %v7924, %v7920
    %v8637 = vpack.c.b16 %v7925, %v7921
    %v8638 = vpack.c.b16 %v7926, %v7922
    %v8639 = vpack.c.b16 %v7931, %v7927
    %v8640 = vpack.c.b16 %v7932, %v7928
    %v8641 = vpack.c.b16 %v7933, %v7929
    %v8642 = vpack.c.b16 %v7934, %v7930
    %v8643 = vpack.c.b16 %v7939, %v7935
    %v8644 = vpack.c.b16 %v7940, %v7936
    %v8645 = vpack.c.b16 %v7941, %v7937
    %v8646 = vpack.c.b16 %v7942, %v7938
    %v8647 = vpack.c.b16 %v7947, %v7943
    %v8648 = vpack.c.b16 %v7948, %v7944
    %v8649 = vpack.c.b16 %v7949, %v7945
    %v8650 = vpack.c.b16 %v7950, %v7946
    %v8651 = vpack.c.b16 %v7955, %v7951
    %v8652 = vpack.c.b16 %v7956, %v7952
    %v8653 = vpack.c.b16 %v7957, %v7953
    %v8654 = vpack.c.b16 %v7958, %v7954
    %v8655 = vpack.c.b16 %v7963, %v7959
    %v8656 = vpack.c.b16 %v7964, %v7960
    %v8657 = vpack.c.b16 %v7965, %v7961
    %v8658 = vpack.c.b16 %v7966, %v7962
    %v8659 = vpack.c.b16 %v7971, %v7967
    %v8660 = vpack.c.b16 %v7972, %v7968
    %v8661 = vpack.c.b16 %v7973, %v7969
    %v8662 = vpack.c.b16 %v7974, %v7970
    %v8663 = vpack.c.b16 %v7979, %v7975
    %v8664 = vpack.c.b16 %v7980, %v7976
    %v8665 = vpack.c.b16 %v7981, %v7977
    %v8666 = vpack.c.b16 %v7982, %v7978
    %v8667 = vpack.c.b16 %v7987, %v7983
    %v8668 = vpack.c.b16 %v7988, %v7984
    %v8669 = vpack.c.b16 %v7989, %v7985
    %v8670 = vpack.c.b16 %v7990, %v7986
    %v8671 = vpack.c.b16 %v7995, %v7991
    %v8672 = vpack.c.b16 %v7996, %v7992
    %v8673 = vpack.c.b16 %v7997, %v7993
    %v8674 = vpack.c.b16 %v7998, %v7994
    %v8675 = vpack.c.b16 %v8003, %v7999
    %v8676 = vpack.c.b16 %v8004, %v8000
    %v8677 = vpack.c.b16 %v8005, %v8001
    %v8678 = vpack.c.b16 %v8006, %v8002
    %v8679 = vpack.c.b16 %v8011, %v8007
    %v8680 = vpack.c.b16 %v8012, %v8008
    %v8681 = vpack.c.b16 %v8013, %v8009
    %v8682 = vpack.c.b16 %v8014, %v8010
    %v8683 = vpack.c.b16 %v8019, %v8015
    %v8684 = vpack.c.b16 %v8020, %v8016
    %v8685 = vpack.c.b16 %v8021, %v8017
    %v8686 = vpack.c.b16 %v8022, %v8018
    %v8687 = vpack.c.b16 %v8027, %v8023
    %v8688 = vpack.c.b16 %v8028, %v8024
    %v8689 = vpack.c.b16 %v8029, %v8025
    %v8690 = vpack.c.b16 %v8030, %v8026
    %v8691 = vpack.c.b16 %v8035, %v8031
    %v8692 = vpack.c.b16 %v8036, %v8032
    %v8693 = vpack.c.b16 %v8037, %v8033
    %v8694 = vpack.c.b16 %v8038, %v8034
    %v8695 = vpack.c.b16 %v8043, %v8039
    %v8696 = vpack.c.b16 %v8044, %v8040
    %v8697 = vpack.c.b16 %v8045, %v8041
    %v8698 = vpack.c.b16 %v8046, %v8042
    %v8699 = vpack.c.b16 %v8051, %v8047
    %v8700 = vpack.c.b16 %v8052, %v8048
    %v8701 = vpack.c.b16 %v8053, %v8049
    %v8702 = vpack.c.b16 %v8054, %v8050
    %v8703 = vpack.c.b16 %v8059, %v8055
    %v8704 = vpack.c.b16 %v8060, %v8056
    %v8705 = vpack.c.b16 %v8061, %v8057
    %v8706 = vpack.c.b16 %v8062, %v8058
    %v8707 = vpack.c.b16 %v8067, %v8063
    %v8708 = vpack.c.b16 %v8068, %v8064
    %v8709 = vpack.c.b16 %v8069, %v8065
    %v8710 = vpack.c.b16 %v8070, %v8066
    %v8711 = vpack.c.b16 %v8075, %v8071
    %v8712 = vpack.c.b16 %v8076, %v8072
    %v8713 = vpack.c.b16 %v8077, %v8073
    %v8714 = vpack.c.b16 %v8078, %v8074
    %v8715 = vpack.c.b16 %v8083, %v8079
    %v8716 = vpack.c.b16 %v8084, %v8080
    %v8717 = vpack.c.b16 %v8085, %v8081
    %v8718 = vpack.c.b16 %v8086, %v8082
    %v8719 = vpack.c.b16 %v8091, %v8087
    %v8720 = vpack.c.b16 %v8092, %v8088
    %v8721 = vpack.c.b16 %v8093, %v8089
    %v8722 = vpack.c.b16 %v8094, %v8090
    %v8723 = vpack.c.b16 %v8099, %v8095
    %v8724 = vpack.c.b16 %v8100, %v8096
    %v8725 = vpack.c.b16 %v8101, %v8097
    %v8726 = vpack.c.b16 %v8102, %v8098
    %v8727 = vpack.c.b16 %v8107, %v8103
    %v8728 = vpack.c.b16 %v8108, %v8104
    %v8729 = vpack.c.b16 %v8109, %v8105
    %v8730 = vpack.c.b16 %v8110, %v8106
    %v8731 = vpack.c.b16 %v8115, %v8111
    %v8732 = vpack.c.b16 %v8116, %v8112
    %v8733 = vpack.c.b16 %v8117, %v8113
    %v8734 = vpack.c.b16 %v8118, %v8114
    %v8735 = vpack.c.b16 %v8123, %v8119
    %v8736 = vpack.c.b16 %v8124, %v8120
    %v8737 = vpack.c.b16 %v8125, %v8121
    %v8738 = vpack.c.b16 %v8126, %v8122
    %v8739 = vpack.c.b16 %v8131, %v8127
    %v8740 = vpack.c.b16 %v8132, %v8128
    %v8741 = vpack.c.b16 %v8133, %v8129
    %v8742 = vpack.c.b16 %v8134, %v8130
    %v8743 = vpack.c.b16 %v8139, %v8135
    %v8744 = vpack.c.b16 %v8140, %v8136
    %v8745 = vpack.c.b16 %v8141, %v8137
    %v8746 = vpack.c.b16 %v8142, %v8138
    %v8747 = vpack.c.b16 %v8147, %v8143
    %v8748 = vpack.c.b16 %v8148, %v8144
    %v8749 = vpack.c.b16 %v8149, %v8145
    %v8750 = vpack.c.b16 %v8150, %v8146
    %v8751 = vpack.c.b16 %v8155, %v8151
    %v8752 = vpack.c.b16 %v8156, %v8152
    %v8753 = vpack.c.b16 %v8157, %v8153
    %v8754 = vpack.c.b16 %v8158, %v8154
    %v8755 = vpack.c.b16 %v8163, %v8159
    %v8756 = vpack.c.b16 %v8164, %v8160
    %v8757 = vpack.c.b16 %v8165, %v8161
    %v8758 = vpack.c.b16 %v8166, %v8162
    %v8759 = vpack.c.b16 %v8171, %v8167
    %v8760 = vpack.c.b16 %v8172, %v8168
    %v8761 = vpack.c.b16 %v8173, %v8169
    %v8762 = vpack.c.b16 %v8174, %v8170
    %v8763 = vpack.c.b16 %v8179, %v8175
    %v8764 = vpack.c.b16 %v8180, %v8176
    %v8765 = vpack.c.b16 %v8181, %v8177
    %v8766 = vpack.c.b16 %v8182, %v8178
    %v8767 = vpack.c.b16 %v8187, %v8183
    %v8768 = vpack.c.b16 %v8188, %v8184
    %v8769 = vpack.c.b16 %v8189, %v8185
    %v8770 = vpack.c.b16 %v8190, %v8186
    %v8771 = vpack.c.b16 %v8195, %v8191
    %v8772 = vpack.c.b16 %v8196, %v8192
    %v8773 = vpack.c.b16 %v8197, %v8193
    %v8774 = vpack.c.b16 %v8198, %v8194
    %v8775 = vpack.c.b16 %v8203, %v8199
    %v8776 = vpack.c.b16 %v8204, %v8200
    %v8777 = vpack.c.b16 %v8205, %v8201
    %v8778 = vpack.c.b16 %v8206, %v8202
    %v8779 = vpack.c.b16 %v8211, %v8207
    %v8780 = vpack.c.b16 %v8212, %v8208
    %v8781 = vpack.c.b16 %v8213, %v8209
    %v8782 = vpack.c.b16 %v8214, %v8210
    %v8783 = vpack.c.b16 %v8219, %v8215
    %v8784 = vpack.c.b16 %v8220, %v8216
    %v8785 = vpack.c.b16 %v8221, %v8217
    %v8786 = vpack.c.b16 %v8222, %v8218
    %v8787 = vpack.c.b16 %v8227, %v8223
    %v8788 = vpack.c.b16 %v8228, %v8224
    %v8789 = vpack.c.b16 %v8229, %v8225
    %v8790 = vpack.c.b16 %v8230, %v8226
    %v8791 = vpack.c.b16 %v8235, %v8231
    %v8792 = vpack.c.b16 %v8236, %v8232
    %v8793 = vpack.c.b16 %v8237, %v8233
    %v8794 = vpack.c.b16 %v8238, %v8234
    %v8795 = vpack.c.b16 %v8243, %v8239
    %v8796 = vpack.c.b16 %v8244, %v8240
    %v8797 = vpack.c.b16 %v8245, %v8241
    %v8798 = vpack.c.b16 %v8246, %v8242
    %v8799 = vpack.c.b16 %v8251, %v8247
    %v8800 = vpack.c.b16 %v8252, %v8248
    %v8801 = vpack.c.b16 %v8253, %v8249
    %v8802 = vpack.c.b16 %v8254, %v8250
    %v8803 = vpack.c.b16 %v8259, %v8255
    %v8804 = vpack.c.b16 %v8260, %v8256
    %v8805 = vpack.c.b16 %v8261, %v8257
    %v8806 = vpack.c.b16 %v8262, %v8258
    %v8807 = vpack.c.b16 %v8267, %v8263
    %v8808 = vpack.c.b16 %v8268, %v8264
    %v8809 = vpack.c.b16 %v8269, %v8265
    %v8810 = vpack.c.b16 %v8270, %v8266
    %v8811 = vpack.c.b16 %v8275, %v8271
    %v8812 = vpack.c.b16 %v8276, %v8272
    %v8813 = vpack.c.b16 %v8277, %v8273
    %v8814 = vpack.c.b16 %v8278, %v8274
    %v8815 = vpack.c.b16 %v8283, %v8279
    %v8816 = vpack.c.b16 %v8284, %v8280
    %v8817 = vpack.c.b16 %v8285, %v8281
    %v8818 = vpack.c.b16 %v8286, %v8282
    %v8819 = vpack.c.b16 %v8291, %v8287
    %v8820 = vpack.c.b16 %v8292, %v8288
    %v8821 = vpack.c.b16 %v8293, %v8289
    %v8822 = vpack.c.b16 %v8294, %v8290
    %v8823 = vpack.c.b16 %v8299, %v8295
    %v8824 = vpack.c.b16 %v8300, %v8296
    %v8825 = vpack.c.b16 %v8301, %v8297
    %v8826 = vpack.c.b16 %v8302, %v8298
    %v8827 = vpack.c.b16 %v8307, %v8303
    %v8828 = vpack.c.b16 %v8308, %v8304
    %v8829 = vpack.c.b16 %v8309, %v8305
    %v8830 = vpack.c.b16 %v8310, %v8306
    %v8831 = vpack.c.b16 %v8315, %v8311
    %v8832 = vpack.c.b16 %v8316, %v8312
    %v8833 = vpack.c.b16 %v8317, %v8313
    %v8834 = vpack.c.b16 %v8318, %v8314
    %v8835 = vpack.c.b16 %v8323, %v8319
    %v8836 = vpack.c.b16 %v8324, %v8320
    %v8837 = vpack.c.b16 %v8325, %v8321
    %v8838 = vpack.c.b16 %v8326, %v8322
    %v8839 = vpack.c.b16 %v8331, %v8327
    %v8840 = vpack.c.b16 %v8332, %v8328
    %v8841 = vpack.c.b16 %v8333, %v8329
    %v8842 = vpack.c.b16 %v8334, %v8330
    %v8843 = vpack.c.b16 %v8339, %v8335
    %v8844 = vpack.c.b16 %v8340, %v8336
    %v8845 = vpack.c.b16 %v8341, %v8337
    %v8846 = vpack.c.b16 %v8342, %v8338
    %v8847 = vpack.c.b16 %v8347, %v8343
    %v8848 = vpack.c.b16 %v8348, %v8344
    %v8849 = vpack.c.b16 %v8349, %v8345
    %v8850 = vpack.c.b16 %v8350, %v8346
    %v8851 = vpack.c.b16 %v8355, %v8351
    %v8852 = vpack.c.b16 %v8356, %v8352
    %v8853 = vpack.c.b16 %v8357, %v8353
    %v8854 = vpack.c.b16 %v8358, %v8354
    %v8855 = vpack.c.b16 %v8363, %v8359
    %v8856 = vpack.c.b16 %v8364, %v8360
    %v8857 = vpack.c.b16 %v8365, %v8361
    %v8858 = vpack.c.b16 %v8366, %v8362
    %v8859 = vpack.c.b16 %v8371, %v8367
    %v8860 = vpack.c.b16 %v8372, %v8368
    %v8861 = vpack.c.b16 %v8373, %v8369
    %v8862 = vpack.c.b16 %v8374, %v8370
    %v8863 = vpack.c.b16 %v8379, %v8375
    %v8864 = vpack.c.b16 %v8380, %v8376
    %v8865 = vpack.c.b16 %v8381, %v8377
    %v8866 = vpack.c.b16 %v8382, %v8378
    %v8867 = vpack.c.b16 %v8387, %v8383
    %v8868 = vpack.c.b16 %v8388, %v8384
    %v8869 = vpack.c.b16 %v8389, %v8385
    %v8870 = vpack.c.b16 %v8390, %v8386
    %v8871 = vpack.c.b16 %v8395, %v8391
    %v8872 = vpack.c.b16 %v8396, %v8392
    %v8873 = vpack.c.b16 %v8397, %v8393
    %v8874 = vpack.c.b16 %v8398, %v8394
    %v8875 = vpack.c.b16 %v8403, %v8399
    %v8876 = vpack.c.b16 %v8404, %v8400
    %v8877 = vpack.c.b16 %v8405, %v8401
    %v8878 = vpack.c.b16 %v8406, %v8402
    %v8879 = vpack.c.b16 %v8411, %v8407
    %v8880 = vpack.c.b16 %v8412, %v8408
    %v8881 = vpack.c.b16 %v8413, %v8409
    %v8882 = vpack.c.b16 %v8414, %v8410
    %v8883 = vpack.c.b16 %v8419, %v8415
    %v8884 = vpack.c.b16 %v8420, %v8416
    %v8885 = vpack.c.b16 %v8421, %v8417
    %v8886 = vpack.c.b16 %v8422, %v8418
    %v8887 = vpack.c.b16 %v8427, %v8423
    %v8888 = vpack.c.b16 %v8428, %v8424
    %v8889 = vpack.c.b16 %v8429, %v8425
    %v8890 = vpack.c.b16 %v8430, %v8426
    %v8891 = vpack.c.b16 %v8435, %v8431
    %v8892 = vpack.c.b16 %v8436, %v8432
    %v8893 = vpack.c.b16 %v8437, %v8433
    %v8894 = vpack.c.b16 %v8438, %v8434
    %v8895 = vpack.c.b16 %v8443, %v8439
    %v8896 = vpack.c.b16 %v8444, %v8440
    %v8897 = vpack.c.b16 %v8445, %v8441
    %v8898 = vpack.c.b16 %v8446, %v8442
    %v8899 = vpack.c.b16 %v8451, %v8447
    %v8900 = vpack.c.b16 %v8452, %v8448
    %v8901 = vpack.c.b16 %v8453, %v8449
    %v8902 = vpack.c.b16 %v8454, %v8450
    %v8903 = vpack.c.b16 %v8459, %v8455
    %v8904 = vpack.c.b16 %v8460, %v8456
    %v8905 = vpack.c.b16 %v8461, %v8457
    %v8906 = vpack.c.b16 %v8462, %v8458
    %v8907 = vpack.c.b16 %v8467, %v8463
    %v8908 = vpack.c.b16 %v8468, %v8464
    %v8909 = vpack.c.b16 %v8469, %v8465
    %v8910 = vpack.c.b16 %v8470, %v8466
    %v8911 = vpack.c.b16 %v8475, %v8471
    %v8912 = vpack.c.b16 %v8476, %v8472
    %v8913 = vpack.c.b16 %v8477, %v8473
    %v8914 = vpack.c.b16 %v8478, %v8474
    %v8915 = vpack.c.b16 %v8483, %v8479
    %v8916 = vpack.c.b16 %v8484, %v8480
    %v8917 = vpack.c.b16 %v8485, %v8481
    %v8918 = vpack.c.b16 %v8486, %v8482
    %v8919 = vpack.c.b16 %v8491, %v8487
    %v8920 = vpack.c.b16 %v8492, %v8488
    %v8921 = vpack.c.b16 %v8493, %v8489
    %v8922 = vpack.c.b16 %v8494, %v8490
    %v8923 = vpack.c.b16 %v8499, %v8495
    %v8924 = vpack.c.b16 %v8500, %v8496
    %v8925 = vpack.c.b16 %v8501, %v8497
    %v8926 = vpack.c.b16 %v8502, %v8498
    %v8927 = vpack.c.b16 %v8507, %v8503
    %v8928 = vpack.c.b16 %v8508, %v8504
    %v8929 = vpack.c.b16 %v8509, %v8505
    %v8930 = vpack.c.b16 %v8510, %v8506
    %v8931 = vpack.c.b16 %v8515, %v8511
    %v8932 = vpack.c.b16 %v8516, %v8512
    %v8933 = vpack.c.b16 %v8517, %v8513
    %v8934 = vpack.c.b16 %v8518, %v8514
    %v8935 = vpack.c.b16 %v8523, %v8519
    %v8936 = vpack.c.b16 %v8524, %v8520
    %v8937 = vpack.c.b16 %v8525, %v8521
    %v8938 = vpack.c.b16 %v8526, %v8522
    %v8939 = vpack.c.b16 %v8531, %v8527
    %v8940 = vpack.c.b16 %v8532, %v8528
    %v8941 = vpack.c.b16 %v8533, %v8529
    %v8942 = vpack.c.b16 %v8534, %v8530
    %v8943 = vpack.c.b16 %v8539, %v8535
    %v8944 = vpack.c.b16 %v8540, %v8536
    %v8945 = vpack.c.b16 %v8541, %v8537
    %v8946 = vpack.c.b16 %v8542, %v8538
    %v8947 = vpack.c.b16 %v8547, %v8543
    %v8948 = vpack.c.b16 %v8548, %v8544
    %v8949 = vpack.c.b16 %v8549, %v8545
    %v8950 = vpack.c.b16 %v8550, %v8546
    %v8951 = vpack.c.b16 %v8555, %v8551
    %v8952 = vpack.c.b16 %v8556, %v8552
    %v8953 = vpack.c.b16 %v8557, %v8553
    %v8954 = vpack.c.b16 %v8558, %v8554
    %v8955 = vpack.c.b16 %v8563, %v8559
    %v8956 = vpack.c.b16 %v8564, %v8560
    %v8957 = vpack.c.b16 %v8565, %v8561
    %v8958 = vpack.c.b16 %v8566, %v8562
    %v8959 = vpack.c.b16 %v8571, %v8567
    %v8960 = vpack.c.b16 %v8572, %v8568
    %v8961 = vpack.c.b16 %v8573, %v8569
    %v8962 = vpack.c.b16 %v8574, %v8570
    %v8963 = vpack.c.b16 %v8579, %v8575
    %v8964 = vpack.c.b16 %v8580, %v8576
    %v8965 = vpack.c.b16 %v8581, %v8577
    %v8966 = vpack.c.b16 %v8582, %v8578
    %9351 = vmatprep.subr.bf16.mxu0 %v8584
    %9352 = vmatpush1.bf16.msra.mxu0 %v8583
    %9353 = vmatprep.subr.bf16.mxu0 %v8588
    %9354 = vmatpush1.bf16.msra.mxu0 %v8587
    %9355 = vmatprep.subr.bf16.mxu0 %v8592
    %9356 = vmatpush1.bf16.msra.mxu0 %v8591
    %9357 = vmatprep.subr.bf16.mxu0 %v8596
    %9358 = vmatpush1.bf16.msra.mxu0 %v8595
    %9359 = vmatprep.subr.bf16.mxu0 %v8600
    %9360 = vmatpush1.bf16.msra.mxu0 %v8599
    %9361 = vmatprep.subr.bf16.mxu0 %v8604
    %9362 = vmatpush1.bf16.msra.mxu0 %v8603
    %9363 = vmatprep.subr.bf16.mxu0 %v8608
    %9364 = vmatpush1.bf16.msra.mxu0 %v8607
    %9365 = vmatprep.subr.bf16.mxu0 %v8612
    %9366 = vmatpush1.bf16.msra.mxu0 %v8611
    %9367 = vmatprep.subr.bf16.mxu0 %v8616
    %9368 = vmatpush1.bf16.msra.mxu0 %v8615
    %9369 = vmatprep.subr.bf16.mxu0 %v8620
    %9370 = vmatpush1.bf16.msra.mxu0 %v8619
    %9371 = vmatprep.subr.bf16.mxu0 %v8624
    %9372 = vmatpush1.bf16.msra.mxu0 %v8623
    %9373 = vmatprep.subr.bf16.mxu0 %v8628
    %9374 = vmatpush1.bf16.msra.mxu0 %v8627
    %9375 = vmatprep.subr.bf16.mxu0 %v8632
    %9376 = vmatpush1.bf16.msra.mxu0 %v8631
    %9377 = vmatprep.subr.bf16.mxu0 %v8636
    %9378 = vmatpush1.bf16.msra.mxu0 %v8635
    %9379 = vmatprep.subr.bf16.mxu0 %v8640
    %9380 = vmatpush1.bf16.msra.mxu0 %v8639
    %9381 = vmatprep.subr.bf16.mxu0 %v8644
    %9382 = vmatpush1.bf16.msra.mxu0 %v8643
    %9383 = vmatprep.mubr.bf16.mxu0 %v7024
    %9384 = vmatmul.mubr.bf16.gmra.mrb[0].mxu0 %v7023
    %v9385 = vpop.f32.mrb[0].mxu0
    %v9386 = vadd.f32 0.0, %v9385
    %v9387 = vpop.f32.mrb[0].mxu0
    %v9388 = vadd.f32 0.0, %v9387
    %v9389 = vpop.f32.mrb[0].mxu0
    %v9390 = vadd.f32 0.0, %v9389
    %v9391 = vpop.f32.mrb[0].mxu0
    %v9392 = vadd.f32 0.0, %v9391
    %9393 = vmatprep.mubr.bf16.mxu0 %v7036
    %9394 = vmatmul.mubr.bf16.gmra.mrb[0].mxu0 %v7035
    %v9395 = vpop.f32.mrb[0].mxu0
    %v9396 = vadd.f32 0.0, %v9395
    %v9397 = vpop.f32.mrb[0].mxu0
    %v9398 = vadd.f32 0.0, %v9397
    %v9399 = vpop.f32.mrb[0].mxu0
    %v9400 = vadd.f32 0.0, %v9399
    %v9401 = vpop.f32.mrb[0].mxu0
    %v9402 = vadd.f32 0.0, %v9401
    %9403 = vdwg.mxu0
    %9404 = vmatprep.subr.bf16.mxu0 %v8648
    %9405 = vmatpush1.bf16.msra.mxu0 %v8647
    %9406 = vmatprep.subr.bf16.mxu0 %v8652
    %9407 = vmatpush1.bf16.msra.mxu0 %v8651
    %9408 = vmatprep.subr.bf16.mxu0 %v8656
    %9409 = vmatpush1.bf16.msra.mxu0 %v8655
    %9410 = vmatprep.subr.bf16.mxu0 %v8660
    %9411 = vmatpush1.bf16.msra.mxu0 %v8659
    %9412 = vmatprep.subr.bf16.mxu0 %v8664
    %9413 = vmatpush1.bf16.msra.mxu0 %v8663
    %9414 = vmatprep.subr.bf16.mxu0 %v8668
    %9415 = vmatpush1.bf16.msra.mxu0 %v8667
    %9416 = vmatprep.subr.bf16.mxu0 %v8672
    %9417 = vmatpush1.bf16.msra.mxu0 %v8671
    %9418 = vmatprep.subr.bf16.mxu0 %v8676
    %9419 = vmatpush1.bf16.msra.mxu0 %v8675
    %9420 = vmatprep.subr.bf16.mxu0 %v8680
    %9421 = vmatpush1.bf16.msra.mxu0 %v8679
    %9422 = vmatprep.subr.bf16.mxu0 %v8684
    %9423 = vmatpush1.bf16.msra.mxu0 %v8683
    %9424 = vmatprep.subr.bf16.mxu0 %v8688
    %9425 = vmatpush1.bf16.msra.mxu0 %v8687
    %9426 = vmatprep.subr.bf16.mxu0 %v8692
    %9427 = vmatpush1.bf16.msra.mxu0 %v8691
    %9428 = vmatprep.subr.bf16.mxu0 %v8696
    %9429 = vmatpush1.bf16.msra.mxu0 %v8695
    %9430 = vmatprep.subr.bf16.mxu0 %v8700
    %9431 = vmatpush1.bf16.msra.mxu0 %v8699
    %9432 = vmatprep.subr.bf16.mxu0 %v8704
    %9433 = vmatpush1.bf16.msra.mxu0 %v8703
    %9434 = vmatprep.subr.bf16.mxu0 %v8708
    %9435 = vmatpush1.bf16.msra.mxu0 %v8707
    %9436 = vmatprep.mubr.bf16.mxu0 %v7026
    %9437 = vmatmul.mubr.bf16.gmra.mrb[0].mxu0 %v7025
    %v9438 = vpop.f32.mrb[0].mxu0
    %v9439 = vadd.f32 %v9386, %v9438
    %v9440 = vpop.f32.mrb[0].mxu0
    %v9441 = vadd.f32 %v9388, %v9440
    %v9442 = vpop.f32.mrb[0].mxu0
    %v9443 = vadd.f32 %v9390, %v9442
    %v9444 = vpop.f32.mrb[0].mxu0
    %v9445 = vadd.f32 %v9392, %v9444
    %9446 = vmatprep.mubr.bf16.mxu0 %v7038
    %9447 = vmatmul.mubr.bf16.gmra.mrb[0].mxu0 %v7037
    %v9448 = vpop.f32.mrb[0].mxu0
    %v9449 = vadd.f32 %v9396, %v9448
    %v9450 = vpop.f32.mrb[0].mxu0
    %v9451 = vadd.f32 %v9398, %v9450
    %v9452 = vpop.f32.mrb[0].mxu0
    %v9453 = vadd.f32 %v9400, %v9452
    %v9454 = vpop.f32.mrb[0].mxu0
    %v9455 = vadd.f32 %v9402, %v9454
    %9456 = vdwg.mxu0
    %9457 = vmatprep.subr.bf16.mxu0 %v8712
    %9458 = vmatpush1.bf16.msra.mxu0 %v8711
    %9459 = vmatprep.subr.bf16.mxu0 %v8716
    %9460 = vmatpush1.bf16.msra.mxu0 %v8715
    %9461 = vmatprep.subr.bf16.mxu0 %v8720
    %9462 = vmatpush1.bf16.msra.mxu0 %v8719
    %9463 = vmatprep.subr.bf16.mxu0 %v8724
    %9464 = vmatpush1.bf16.msra.mxu0 %v8723
    %9465 = vmatprep.subr.bf16.mxu0 %v8728
    %9466 = vmatpush1.bf16.msra.mxu0 %v8727
    %9467 = vmatprep.subr.bf16.mxu0 %v8732
    %9468 = vmatpush1.bf16.msra.mxu0 %v8731
    %9469 = vmatprep.subr.bf16.mxu0 %v8736
    %9470 = vmatpush1.bf16.msra.mxu0 %v8735
    %9471 = vmatprep.subr.bf16.mxu0 %v8740
    %9472 = vmatpush1.bf16.msra.mxu0 %v8739
    %9473 = vmatprep.subr.bf16.mxu0 %v8744
    %9474 = vmatpush1.bf16.msra.mxu0 %v8743
    %9475 = vmatprep.subr.bf16.mxu0 %v8748
    %9476 = vmatpush1.bf16.msra.mxu0 %v8747
    %9477 = vmatprep.subr.bf16.mxu0 %v8752
    %9478 = vmatpush1.bf16.msra.mxu0 %v8751
    %9479 = vmatprep.subr.bf16.mxu0 %v8756
    %9480 = vmatpush1.bf16.msra.mxu0 %v8755
    %9481 = vmatprep.subr.bf16.mxu0 %v8760
    %9482 = vmatpush1.bf16.msra.mxu0 %v8759
    %9483 = vmatprep.subr.bf16.mxu0 %v8764
    %9484 = vmatpush1.bf16.msra.mxu0 %v8763
    %9485 = vmatprep.subr.bf16.mxu0 %v8768
    %9486 = vmatpush1.bf16.msra.mxu0 %v8767
    %9487 = vmatprep.subr.bf16.mxu0 %v8772
    %9488 = vmatpush1.bf16.msra.mxu0 %v8771
    %9489 = vmatprep.mubr.bf16.mxu0 %v7028
    %9490 = vmatmul.mubr.bf16.gmra.mrb[0].mxu0 %v7027
    %v9491 = vpop.f32.mrb[0].mxu0
    %v9492 = vadd.f32 %v9439, %v9491
    %v9493 = vpop.f32.mrb[0].mxu0
    %v9494 = vadd.f32 %v9441, %v9493
    %v9495 = vpop.f32.mrb[0].mxu0
    %v9496 = vadd.f32 %v9443, %v9495
    %v9497 = vpop.f32.mrb[0].mxu0
    %v9498 = vadd.f32 %v9445, %v9497
    %9499 = vmatprep.mubr.bf16.mxu0 %v7040
    %9500 = vmatmul.mubr.bf16.gmra.mrb[0].mxu0 %v7039
    %v9501 = vpop.f32.mrb[0].mxu0
    %v9502 = vadd.f32 %v9449, %v9501
    %v9503 = vpop.f32.mrb[0].mxu0
    %v9504 = vadd.f32 %v9451, %v9503
    %v9505 = vpop.f32.mrb[0].mxu0
    %v9506 = vadd.f32 %v9453, %v9505
    %v9507 = vpop.f32.mrb[0].mxu0
    %v9508 = vadd.f32 %v9455, %v9507
    %9509 = vdwg.mxu0
    %9510 = vmatprep.subr.bf16.mxu0 %v8776
    %9511 = vmatpush1.bf16.msra.mxu0 %v8775
    %9512 = vmatprep.subr.bf16.mxu0 %v8780
    %9513 = vmatpush1.bf16.msra.mxu0 %v8779
    %9514 = vmatprep.subr.bf16.mxu0 %v8784
    %9515 = vmatpush1.bf16.msra.mxu0 %v8783
    %9516 = vmatprep.subr.bf16.mxu0 %v8788
    %9517 = vmatpush1.bf16.msra.mxu0 %v8787
    %9518 = vmatprep.subr.bf16.mxu0 %v8792
    %9519 = vmatpush1.bf16.msra.mxu0 %v8791
    %9520 = vmatprep.subr.bf16.mxu0 %v8796
    %9521 = vmatpush1.bf16.msra.mxu0 %v8795
    %9522 = vmatprep.subr.bf16.mxu0 %v8800
    %9523 = vmatpush1.bf16.msra.mxu0 %v8799
    %9524 = vmatprep.subr.bf16.mxu0 %v8804
    %9525 = vmatpush1.bf16.msra.mxu0 %v8803
    %9526 = vmatprep.subr.bf16.mxu0 %v8808
    %9527 = vmatpush1.bf16.msra.mxu0 %v8807
    %9528 = vmatprep.subr.bf16.mxu0 %v8812
    %9529 = vmatpush1.bf16.msra.mxu0 %v8811
    %9530 = vmatprep.subr.bf16.mxu0 %v8816
    %9531 = vmatpush1.bf16.msra.mxu0 %v8815
    %9532 = vmatprep.subr.bf16.mxu0 %v8820
    %9533 = vmatpush1.bf16.msra.mxu0 %v8819
    %9534 = vmatprep.subr.bf16.mxu0 %v8824
    %9535 = vmatpush1.bf16.msra.mxu0 %v8823
    %9536 = vmatprep.subr.bf16.mxu0 %v8828
    %9537 = vmatpush1.bf16.msra.mxu0 %v8827
    %9538 = vmatprep.subr.bf16.mxu0 %v8832
    %9539 = vmatpush1.bf16.msra.mxu0 %v8831
    %9540 = vmatprep.subr.bf16.mxu0 %v8836
    %9541 = vmatpush1.bf16.msra.mxu0 %v8835
    %9542 = vmatprep.mubr.bf16.mxu0 %v7030
    %9543 = vmatmul.mubr.bf16.gmra.mrb[0].mxu0 %v7029
    %v9544 = vpop.f32.mrb[0].mxu0
    %v9545 = vadd.f32 %v9492, %v9544
    %v9546 = vpop.f32.mrb[0].mxu0
    %v9547 = vadd.f32 %v9494, %v9546
    %v9548 = vpop.f32.mrb[0].mxu0
    %v9549 = vadd.f32 %v9496, %v9548
    %v9550 = vpop.f32.mrb[0].mxu0
    %v9551 = vadd.f32 %v9498, %v9550
    %9552 = vmatprep.mubr.bf16.mxu0 %v7042
    %9553 = vmatmul.mubr.bf16.gmra.mrb[0].mxu0 %v7041
    %v9554 = vpop.f32.mrb[0].mxu0
    %v9555 = vadd.f32 %v9502, %v9554
    %v9556 = vpop.f32.mrb[0].mxu0
    %v9557 = vadd.f32 %v9504, %v9556
    %v9558 = vpop.f32.mrb[0].mxu0
    %v9559 = vadd.f32 %v9506, %v9558
    %v9560 = vpop.f32.mrb[0].mxu0
    %v9561 = vadd.f32 %v9508, %v9560
    %9562 = vdwg.mxu0
    %9563 = vmatprep.subr.bf16.mxu0 %v8840
    %9564 = vmatpush1.bf16.msra.mxu0 %v8839
    %9565 = vmatprep.subr.bf16.mxu0 %v8844
    %9566 = vmatpush1.bf16.msra.mxu0 %v8843
    %9567 = vmatprep.subr.bf16.mxu0 %v8848
    %9568 = vmatpush1.bf16.msra.mxu0 %v8847
    %9569 = vmatprep.subr.bf16.mxu0 %v8852
    %9570 = vmatpush1.bf16.msra.mxu0 %v8851
    %9571 = vmatprep.subr.bf16.mxu0 %v8856
    %9572 = vmatpush1.bf16.msra.mxu0 %v8855
    %9573 = vmatprep.subr.bf16.mxu0 %v8860
    %9574 = vmatpush1.bf16.msra.mxu0 %v8859
    %9575 = vmatprep.subr.bf16.mxu0 %v8864
    %9576 = vmatpush1.bf16.msra.mxu0 %v8863
    %9577 = vmatprep.subr.bf16.mxu0 %v8868
    %9578 = vmatpush1.bf16.msra.mxu0 %v8867
    %9579 = vmatprep.subr.bf16.mxu0 %v8872
    %9580 = vmatpush1.bf16.msra.mxu0 %v8871
    %9581 = vmatprep.subr.bf16.mxu0 %v8876
    %9582 = vmatpush1.bf16.msra.mxu0 %v8875
    %9583 = vmatprep.subr.bf16.mxu0 %v8880
    %9584 = vmatpush1.bf16.msra.mxu0 %v8879
    %9585 = vmatprep.subr.bf16.mxu0 %v8884
    %9586 = vmatpush1.bf16.msra.mxu0 %v8883
    %9587 = vmatprep.subr.bf16.mxu0 %v8888
    %9588 = vmatpush1.bf16.msra.mxu0 %v8887
    %9589 = vmatprep.subr.bf16.mxu0 %v8892
    %9590 = vmatpush1.bf16.msra.mxu0 %v8891
    %9591 = vmatprep.subr.bf16.mxu0 %v8896
    %9592 = vmatpush1.bf16.msra.mxu0 %v8895
    %9593 = vmatprep.subr.bf16.mxu0 %v8900
    %9594 = vmatpush1.bf16.msra.mxu0 %v8899
    %9595 = vmatprep.mubr.bf16.mxu0 %v7032
    %9596 = vmatmul.mubr.bf16.gmra.mrb[0].mxu0 %v7031
    %v9597 = vpop.f32.mrb[0].mxu0
    %v9598 = vadd.f32 %v9545, %v9597
    %v9599 = vpop.f32.mrb[0].mxu0
    %v9600 = vadd.f32 %v9547, %v9599
    %v9601 = vpop.f32.mrb[0].mxu0
    %v9602 = vadd.f32 %v9549, %v9601
    %v9603 = vpop.f32.mrb[0].mxu0
    %v9604 = vadd.f32 %v9551, %v9603
    %9605 = vmatprep.mubr.bf16.mxu0 %v7044
    %9606 = vmatmul.mubr.bf16.gmra.mrb[0].mxu0 %v7043
    %v9607 = vpop.f32.mrb[0].mxu0
    %v9608 = vadd.f32 %v9555, %v9607
    %v9609 = vpop.f32.mrb[0].mxu0
    %v9610 = vadd.f32 %v9557, %v9609
    %v9611 = vpop.f32.mrb[0].mxu0
    %v9612 = vadd.f32 %v9559, %v9611
    %v9613 = vpop.f32.mrb[0].mxu0
    %v9614 = vadd.f32 %v9561, %v9613
    %9615 = vdwg.mxu0
    %9616 = vmatprep.subr.bf16.mxu0 %v8904
    %9617 = vmatpush1.bf16.msra.mxu0 %v8903
    %9618 = vmatprep.subr.bf16.mxu0 %v8908
    %9619 = vmatpush1.bf16.msra.mxu0 %v8907
    %9620 = vmatprep.subr.bf16.mxu0 %v8912
    %9621 = vmatpush1.bf16.msra.mxu0 %v8911
    %9622 = vmatprep.subr.bf16.mxu0 %v8916
    %9623 = vmatpush1.bf16.msra.mxu0 %v8915
    %9624 = vmatprep.subr.bf16.mxu0 %v8920
    %9625 = vmatpush1.bf16.msra.mxu0 %v8919
    %9626 = vmatprep.subr.bf16.mxu0 %v8924
    %9627 = vmatpush1.bf16.msra.mxu0 %v8923
    %9628 = vmatprep.subr.bf16.mxu0 %v8928
    %9629 = vmatpush1.bf16.msra.mxu0 %v8927
    %9630 = vmatprep.subr.bf16.mxu0 %v8932
    %9631 = vmatpush1.bf16.msra.mxu0 %v8931
    %9632 = vmatprep.subr.bf16.mxu0 %v8936
    %9633 = vmatpush1.bf16.msra.mxu0 %v8935
    %9634 = vmatprep.subr.bf16.mxu0 %v8940
    %9635 = vmatpush1.bf16.msra.mxu0 %v8939
    %9636 = vmatprep.subr.bf16.mxu0 %v8944
    %9637 = vmatpush1.bf16.msra.mxu0 %v8943
    %9638 = vmatprep.subr.bf16.mxu0 %v8948
    %9639 = vmatpush1.bf16.msra.mxu0 %v8947
    %9640 = vmatprep.subr.bf16.mxu0 %v8952
    %9641 = vmatpush1.bf16.msra.mxu0 %v8951
    %9642 = vmatprep.subr.bf16.mxu0 %v8956
    %9643 = vmatpush1.bf16.msra.mxu0 %v8955
    %9644 = vmatprep.subr.bf16.mxu0 %v8960
    %9645 = vmatpush1.bf16.msra.mxu0 %v8959
    %9646 = vmatprep.subr.bf16.mxu0 %v8964
    %9647 = vmatpush1.bf16.msra.mxu0 %v8963
    %9648 = vmatprep.mubr.bf16.mxu0 %v7034
    %9649 = vmatmul.mubr.bf16.gmra.mrb[0].mxu0 %v7033
    %v9650 = vpop.f32.mrb[0].mxu0
    %v9651 = vadd.f32 %v9598, %v9650
    %v9652 = vpop.f32.mrb[0].mxu0
    %v9653 = vadd.f32 %v9600, %v9652
    %v9654 = vpop.f32.mrb[0].mxu0
    %v9655 = vadd.f32 %v9602, %v9654
    %v9656 = vpop.f32.mrb[0].mxu0
    %v9657 = vadd.f32 %v9604, %v9656
    %9658 = vmatprep.mubr.bf16.mxu0 %v7046
    %9659 = vmatmul.mubr.bf16.gmra.mrb[0].mxu0 %v7045
    %v9660 = vpop.f32.mrb[0].mxu0
    %v9661 = vadd.f32 %v9608, %v9660
    %v9662 = vpop.f32.mrb[0].mxu0
    %v9663 = vadd.f32 %v9610, %v9662
    %v9664 = vpop.f32.mrb[0].mxu0
    %v9665 = vadd.f32 %v9612, %v9664
    %v9666 = vpop.f32.mrb[0].mxu0
    %v9667 = vadd.f32 %v9614, %v9666
    %9668 = vdwg.mxu0
    %9669 = vmatprep.subr.bf16.mxu0 %v8586
    %9670 = vmatpush1.bf16.msra.mxu0 %v8585
    %9671 = vmatprep.subr.bf16.mxu0 %v8590
    %9672 = vmatpush1.bf16.msra.mxu0 %v8589
    %9673 = vmatprep.subr.bf16.mxu0 %v8594
    %9674 = vmatpush1.bf16.msra.mxu0 %v8593
    %9675 = vmatprep.subr.bf16.mxu0 %v8598
    %9676 = vmatpush1.bf16.msra.mxu0 %v8597
    %9677 = vmatprep.subr.bf16.mxu0 %v8602
    %9678 = vmatpush1.bf16.msra.mxu0 %v8601
    %9679 = vmatprep.subr.bf16.mxu0 %v8606
    %9680 = vmatpush1.bf16.msra.mxu0 %v8605
    %9681 = vmatprep.subr.bf16.mxu0 %v8610
    %9682 = vmatpush1.bf16.msra.mxu0 %v8609
    %9683 = vmatprep.subr.bf16.mxu0 %v8614
    %9684 = vmatpush1.bf16.msra.mxu0 %v8613
    %9685 = vmatprep.subr.bf16.mxu0 %v8618
    %9686 = vmatpush1.bf16.msra.mxu0 %v8617
    %9687 = vmatprep.subr.bf16.mxu0 %v8622
    %9688 = vmatpush1.bf16.msra.mxu0 %v8621
    %9689 = vmatprep.subr.bf16.mxu0 %v8626
    %9690 = vmatpush1.bf16.msra.mxu0 %v8625
    %9691 = vmatprep.subr.bf16.mxu0 %v8630
    %9692 = vmatpush1.bf16.msra.mxu0 %v8629
    %9693 = vmatprep.subr.bf16.mxu0 %v8634
    %9694 = vmatpush1.bf16.msra.mxu0 %v8633
    %9695 = vmatprep.subr.bf16.mxu0 %v8638
    %9696 = vmatpush1.bf16.msra.mxu0 %v8637
    %9697 = vmatprep.subr.bf16.mxu0 %v8642
    %9698 = vmatpush1.bf16.msra.mxu0 %v8641
    %9699 = vmatprep.subr.bf16.mxu0 %v8646
    %9700 = vmatpush1.bf16.msra.mxu0 %v8645
    %9701 = vmatprep.mubr.bf16.mxu0 %v7024
    %9702 = vmatmul.mubr.bf16.gmra.mrb[0].mxu0 %v7023
    %v9703 = vpop.f32.mrb[0].mxu0
    %v9704 = vadd.f32 0.0, %v9703
    %v9705 = vpop.f32.mrb[0].mxu0
    %v9706 = vadd.f32 0.0, %v9705
    %v9707 = vpop.f32.mrb[0].mxu0
    %v9708 = vadd.f32 0.0, %v9707
    %v9709 = vpop.f32.mrb[0].mxu0
    %v9710 = vadd.f32 0.0, %v9709
    %9711 = vmatprep.mubr.bf16.mxu0 %v7036
    %9712 = vmatmul.mubr.bf16.gmra.mrb[0].mxu0 %v7035
    %v9713 = vpop.f32.mrb[0].mxu0
    %v9714 = vadd.f32 0.0, %v9713
    %v9715 = vpop.f32.mrb[0].mxu0
    %v9716 = vadd.f32 0.0, %v9715
    %v9717 = vpop.f32.mrb[0].mxu0
    %v9718 = vadd.f32 0.0, %v9717
    %v9719 = vpop.f32.mrb[0].mxu0
    %v9720 = vadd.f32 0.0, %v9719
    %9721 = vdwg.mxu0
    %9722 = vmatprep.subr.bf16.mxu0 %v8650
    %9723 = vmatpush1.bf16.msra.mxu0 %v8649
    %9724 = vmatprep.subr.bf16.mxu0 %v8654
    %9725 = vmatpush1.bf16.msra.mxu0 %v8653
    %9726 = vmatprep.subr.bf16.mxu0 %v8658
    %9727 = vmatpush1.bf16.msra.mxu0 %v8657
    %9728 = vmatprep.subr.bf16.mxu0 %v8662
    %9729 = vmatpush1.bf16.msra.mxu0 %v8661
    %9730 = vmatprep.subr.bf16.mxu0 %v8666
    %9731 = vmatpush1.bf16.msra.mxu0 %v8665
    %9732 = vmatprep.subr.bf16.mxu0 %v8670
    %9733 = vmatpush1.bf16.msra.mxu0 %v8669
    %9734 = vmatprep.subr.bf16.mxu0 %v8674
    %9735 = vmatpush1.bf16.msra.mxu0 %v8673
    %9736 = vmatprep.subr.bf16.mxu0 %v8678
    %9737 = vmatpush1.bf16.msra.mxu0 %v8677
    %9738 = vmatprep.subr.bf16.mxu0 %v8682
    %9739 = vmatpush1.bf16.msra.mxu0 %v8681
    %9740 = vmatprep.subr.bf16.mxu0 %v8686
    %9741 = vmatpush1.bf16.msra.mxu0 %v8685
    %9742 = vmatprep.subr.bf16.mxu0 %v8690
    %9743 = vmatpush1.bf16.msra.mxu0 %v8689
    %9744 = vmatprep.subr.bf16.mxu0 %v8694
    %9745 = vmatpush1.bf16.msra.mxu0 %v8693
    %9746 = vmatprep.subr.bf16.mxu0 %v8698
    %9747 = vmatpush1.bf16.msra.mxu0 %v8697
    %9748 = vmatprep.subr.bf16.mxu0 %v8702
    %9749 = vmatpush1.bf16.msra.mxu0 %v8701
    %9750 = vmatprep.subr.bf16.mxu0 %v8706
    %9751 = vmatpush1.bf16.msra.mxu0 %v8705
    %9752 = vmatprep.subr.bf16.mxu0 %v8710
    %9753 = vmatpush1.bf16.msra.mxu0 %v8709
    %9754 = vmatprep.mubr.bf16.mxu0 %v7026
    %9755 = vmatmul.mubr.bf16.gmra.mrb[0].mxu0 %v7025
    %v9756 = vpop.f32.mrb[0].mxu0
    %v9757 = vadd.f32 %v9704, %v9756
    %v9758 = vpop.f32.mrb[0].mxu0
    %v9759 = vadd.f32 %v9706, %v9758
    %v9760 = vpop.f32.mrb[0].mxu0
    %v9761 = vadd.f32 %v9708, %v9760
    %v9762 = vpop.f32.mrb[0].mxu0
    %v9763 = vadd.f32 %v9710, %v9762
    %9764 = vmatprep.mubr.bf16.mxu0 %v7038
    %9765 = vmatmul.mubr.bf16.gmra.mrb[0].mxu0 %v7037
    %v9766 = vpop.f32.mrb[0].mxu0
    %v9767 = vadd.f32 %v9714, %v9766
    %v9768 = vpop.f32.mrb[0].mxu0
    %v9769 = vadd.f32 %v9716, %v9768
    %v9770 = vpop.f32.mrb[0].mxu0
    %v9771 = vadd.f32 %v9718, %v9770
    %v9772 = vpop.f32.mrb[0].mxu0
    %v9773 = vadd.f32 %v9720, %v9772
    %9774 = vdwg.mxu0
    %9775 = vmatprep.subr.bf16.mxu0 %v8714
    %9776 = vmatpush1.bf16.msra.mxu0 %v8713
    %9777 = vmatprep.subr.bf16.mxu0 %v8718
    %9778 = vmatpush1.bf16.msra.mxu0 %v8717
    %9779 = vmatprep.subr.bf16.mxu0 %v8722
    %9780 = vmatpush1.bf16.msra.mxu0 %v8721
    %9781 = vmatprep.subr.bf16.mxu0 %v8726
    %9782 = vmatpush1.bf16.msra.mxu0 %v8725
    %9783 = vmatprep.subr.bf16.mxu0 %v8730
    %9784 = vmatpush1.bf16.msra.mxu0 %v8729
    %9785 = vmatprep.subr.bf16.mxu0 %v8734
    %9786 = vmatpush1.bf16.msra.mxu0 %v8733
    %9787 = vmatprep.subr.bf16.mxu0 %v8738
    %9788 = vmatpush1.bf16.msra.mxu0 %v8737
    %9789 = vmatprep.subr.bf16.mxu0 %v8742
    %9790 = vmatpush1.bf16.msra.mxu0 %v8741
    %9791 = vmatprep.subr.bf16.mxu0 %v8746
    %9792 = vmatpush1.bf16.msra.mxu0 %v8745
    %9793 = vmatprep.subr.bf16.mxu0 %v8750
    %9794 = vmatpush1.bf16.msra.mxu0 %v8749
    %9795 = vmatprep.subr.bf16.mxu0 %v8754
    %9796 = vmatpush1.bf16.msra.mxu0 %v8753
    %9797 = vmatprep.subr.bf16.mxu0 %v8758
    %9798 = vmatpush1.bf16.msra.mxu0 %v8757
    %9799 = vmatprep.subr.bf16.mxu0 %v8762
    %9800 = vmatpush1.bf16.msra.mxu0 %v8761
    %9801 = vmatprep.subr.bf16.mxu0 %v8766
    %9802 = vmatpush1.bf16.msra.mxu0 %v8765
    %9803 = vmatprep.subr.bf16.mxu0 %v8770
    %9804 = vmatpush1.bf16.msra.mxu0 %v8769
    %9805 = vmatprep.subr.bf16.mxu0 %v8774
    %9806 = vmatpush1.bf16.msra.mxu0 %v8773
    %9807 = vmatprep.mubr.bf16.mxu0 %v7028
    %9808 = vmatmul.mubr.bf16.gmra.mrb[0].mxu0 %v7027
    %v9809 = vpop.f32.mrb[0].mxu0
    %v9810 = vadd.f32 %v9757, %v9809
    %v9811 = vpop.f32.mrb[0].mxu0
    %v9812 = vadd.f32 %v9759, %v9811
    %v9813 = vpop.f32.mrb[0].mxu0
    %v9814 = vadd.f32 %v9761, %v9813
    %v9815 = vpop.f32.mrb[0].mxu0
    %v9816 = vadd.f32 %v9763, %v9815
    %9817 = vmatprep.mubr.bf16.mxu0 %v7040
    %9818 = vmatmul.mubr.bf16.gmra.mrb[0].mxu0 %v7039
    %v9819 = vpop.f32.mrb[0].mxu0
    %v9820 = vadd.f32 %v9767, %v9819
    %v9821 = vpop.f32.mrb[0].mxu0
    %v9822 = vadd.f32 %v9769, %v9821
    %v9823 = vpop.f32.mrb[0].mxu0
    %v9824 = vadd.f32 %v9771, %v9823
    %v9825 = vpop.f32.mrb[0].mxu0
    %v9826 = vadd.f32 %v9773, %v9825
    %9827 = vdwg.mxu0
    %9828 = vmatprep.subr.bf16.mxu0 %v8778
    %9829 = vmatpush1.bf16.msra.mxu0 %v8777
    %9830 = vmatprep.subr.bf16.mxu0 %v8782
    %9831 = vmatpush1.bf16.msra.mxu0 %v8781
    %9832 = vmatprep.subr.bf16.mxu0 %v8786
    %9833 = vmatpush1.bf16.msra.mxu0 %v8785
    %9834 = vmatprep.subr.bf16.mxu0 %v8790
    %9835 = vmatpush1.bf16.msra.mxu0 %v8789
    %9836 = vmatprep.subr.bf16.mxu0 %v8794
    %9837 = vmatpush1.bf16.msra.mxu0 %v8793
    %9838 = vmatprep.subr.bf16.mxu0 %v8798
    %9839 = vmatpush1.bf16.msra.mxu0 %v8797
    %9840 = vmatprep.subr.bf16.mxu0 %v8802
    %9841 = vmatpush1.bf16.msra.mxu0 %v8801
    %9842 = vmatprep.subr.bf16.mxu0 %v8806
    %9843 = vmatpush1.bf16.msra.mxu0 %v8805
    %9844 = vmatprep.subr.bf16.mxu0 %v8810
    %9845 = vmatpush1.bf16.msra.mxu0 %v8809
    %9846 = vmatprep.subr.bf16.mxu0 %v8814
    %9847 = vmatpush1.bf16.msra.mxu0 %v8813
    %9848 = vmatprep.subr.bf16.mxu0 %v8818
    %9849 = vmatpush1.bf16.msra.mxu0 %v8817
    %9850 = vmatprep.subr.bf16.mxu0 %v8822
    %9851 = vmatpush1.bf16.msra.mxu0 %v8821
    %9852 = vmatprep.subr.bf16.mxu0 %v8826
    %9853 = vmatpush1.bf16.msra.mxu0 %v8825
    %9854 = vmatprep.subr.bf16.mxu0 %v8830
    %9855 = vmatpush1.bf16.msra.mxu0 %v8829
    %9856 = vmatprep.subr.bf16.mxu0 %v8834
    %9857 = vmatpush1.bf16.msra.mxu0 %v8833
    %9858 = vmatprep.subr.bf16.mxu0 %v8838
    %9859 = vmatpush1.bf16.msra.mxu0 %v8837
    %9860 = vmatprep.mubr.bf16.mxu0 %v7030
    %9861 = vmatmul.mubr.bf16.gmra.mrb[0].mxu0 %v7029
    %v9862 = vpop.f32.mrb[0].mxu0
    %v9863 = vadd.f32 %v9810, %v9862
    %v9864 = vpop.f32.mrb[0].mxu0
    %v9865 = vadd.f32 %v9812, %v9864
    %v9866 = vpop.f32.mrb[0].mxu0
    %v9867 = vadd.f32 %v9814, %v9866
    %v9868 = vpop.f32.mrb[0].mxu0
    %v9869 = vadd.f32 %v9816, %v9868
    %9870 = vmatprep.mubr.bf16.mxu0 %v7042
    %9871 = vmatmul.mubr.bf16.gmra.mrb[0].mxu0 %v7041
    %v9872 = vpop.f32.mrb[0].mxu0
    %v9873 = vadd.f32 %v9820, %v9872
    %v9874 = vpop.f32.mrb[0].mxu0
    %v9875 = vadd.f32 %v9822, %v9874
    %v9876 = vpop.f32.mrb[0].mxu0
    %v9877 = vadd.f32 %v9824, %v9876
    %v9878 = vpop.f32.mrb[0].mxu0
    %v9879 = vadd.f32 %v9826, %v9878
    %9880 = vdwg.mxu0
    %9881 = vmatprep.subr.bf16.mxu0 %v8842
    %9882 = vmatpush1.bf16.msra.mxu0 %v8841
    %9883 = vmatprep.subr.bf16.mxu0 %v8846
    %9884 = vmatpush1.bf16.msra.mxu0 %v8845
    %9885 = vmatprep.subr.bf16.mxu0 %v8850
    %9886 = vmatpush1.bf16.msra.mxu0 %v8849
    %9887 = vmatprep.subr.bf16.mxu0 %v8854
    %9888 = vmatpush1.bf16.msra.mxu0 %v8853
    %9889 = vmatprep.subr.bf16.mxu0 %v8858
    %9890 = vmatpush1.bf16.msra.mxu0 %v8857
    %9891 = vmatprep.subr.bf16.mxu0 %v8862
    %9892 = vmatpush1.bf16.msra.mxu0 %v8861
    %9893 = vmatprep.subr.bf16.mxu0 %v8866
    %9894 = vmatpush1.bf16.msra.mxu0 %v8865
    %9895 = vmatprep.subr.bf16.mxu0 %v8870
    %9896 = vmatpush1.bf16.msra.mxu0 %v8869
    %9897 = vmatprep.subr.bf16.mxu0 %v8874
    %9898 = vmatpush1.bf16.msra.mxu0 %v8873
    %9899 = vmatprep.subr.bf16.mxu0 %v8878
    %9900 = vmatpush1.bf16.msra.mxu0 %v8877
    %9901 = vmatprep.subr.bf16.mxu0 %v8882
    %9902 = vmatpush1.bf16.msra.mxu0 %v8881
    %9903 = vmatprep.subr.bf16.mxu0 %v8886
    %9904 = vmatpush1.bf16.msra.mxu0 %v8885
    %9905 = vmatprep.subr.bf16.mxu0 %v8890
    %9906 = vmatpush1.bf16.msra.mxu0 %v8889
    %9907 = vmatprep.subr.bf16.mxu0 %v8894
    %9908 = vmatpush1.bf16.msra.mxu0 %v8893
    %9909 = vmatprep.subr.bf16.mxu0 %v8898
    %9910 = vmatpush1.bf16.msra.mxu0 %v8897
    %9911 = vmatprep.subr.bf16.mxu0 %v8902
    %9912 = vmatpush1.bf16.msra.mxu0 %v8901
    %9913 = vmatprep.mubr.bf16.mxu0 %v7032
    %9914 = vmatmul.mubr.bf16.gmra.mrb[0].mxu0 %v7031
    %v9915 = vpop.f32.mrb[0].mxu0
    %v9916 = vadd.f32 %v9863, %v9915
    %v9917 = vpop.f32.mrb[0].mxu0
    %v9918 = vadd.f32 %v9865, %v9917
    %v9919 = vpop.f32.mrb[0].mxu0
    %v9920 = vadd.f32 %v9867, %v9919
    %v9921 = vpop.f32.mrb[0].mxu0
    %v9922 = vadd.f32 %v9869, %v9921
    %9923 = vmatprep.mubr.bf16.mxu0 %v7044
    %9924 = vmatmul.mubr.bf16.gmra.mrb[0].mxu0 %v7043
    %v9925 = vpop.f32.mrb[0].mxu0
    %v9926 = vadd.f32 %v9873, %v9925
    %v9927 = vpop.f32.mrb[0].mxu0
    %v9928 = vadd.f32 %v9875, %v9927
    %v9929 = vpop.f32.mrb[0].mxu0
    %v9930 = vadd.f32 %v9877, %v9929
    %v9931 = vpop.f32.mrb[0].mxu0
    %v9932 = vadd.f32 %v9879, %v9931
    %9933 = vdwg.mxu0
    %9934 = vmatprep.subr.bf16.mxu0 %v8906
    %9935 = vmatpush1.bf16.msra.mxu0 %v8905
    %9936 = vmatprep.subr.bf16.mxu0 %v8910
    %9937 = vmatpush1.bf16.msra.mxu0 %v8909
    %9938 = vmatprep.subr.bf16.mxu0 %v8914
    %9939 = vmatpush1.bf16.msra.mxu0 %v8913
    %9940 = vmatprep.subr.bf16.mxu0 %v8918
    %9941 = vmatpush1.bf16.msra.mxu0 %v8917
    %9942 = vmatprep.subr.bf16.mxu0 %v8922
    %9943 = vmatpush1.bf16.msra.mxu0 %v8921
    %9944 = vmatprep.subr.bf16.mxu0 %v8926
    %9945 = vmatpush1.bf16.msra.mxu0 %v8925
    %9946 = vmatprep.subr.bf16.mxu0 %v8930
    %9947 = vmatpush1.bf16.msra.mxu0 %v8929
    %9948 = vmatprep.subr.bf16.mxu0 %v8934
    %9949 = vmatpush1.bf16.msra.mxu0 %v8933
    %9950 = vmatprep.subr.bf16.mxu0 %v8938
    %9951 = vmatpush1.bf16.msra.mxu0 %v8937
    %9952 = vmatprep.subr.bf16.mxu0 %v8942
    %9953 = vmatpush1.bf16.msra.mxu0 %v8941
    %9954 = vmatprep.subr.bf16.mxu0 %v8946
    %9955 = vmatpush1.bf16.msra.mxu0 %v8945
    %9956 = vmatprep.subr.bf16.mxu0 %v8950
    %9957 = vmatpush1.bf16.msra.mxu0 %v8949
    %9958 = vmatprep.subr.bf16.mxu0 %v8954
    %9959 = vmatpush1.bf16.msra.mxu0 %v8953
    %9960 = vmatprep.subr.bf16.mxu0 %v8958
    %9961 = vmatpush1.bf16.msra.mxu0 %v8957
    %9962 = vmatprep.subr.bf16.mxu0 %v8962
    %9963 = vmatpush1.bf16.msra.mxu0 %v8961
    %9964 = vmatprep.subr.bf16.mxu0 %v8966
    %9965 = vmatpush1.bf16.msra.mxu0 %v8965
    %9966 = vmatprep.mubr.bf16.mxu0 %v7034
    %9967 = vmatmul.mubr.bf16.gmra.mrb[0].mxu0 %v7033
    %v9968 = vpop.f32.mrb[0].mxu0
    %v9969 = vadd.f32 %v9916, %v9968
    %v9970 = vpop.f32.mrb[0].mxu0
    %v9971 = vadd.f32 %v9918, %v9970
    %v9972 = vpop.f32.mrb[0].mxu0
    %v9973 = vadd.f32 %v9920, %v9972
    %v9974 = vpop.f32.mrb[0].mxu0
    %v9975 = vadd.f32 %v9922, %v9974
    %9976 = vmatprep.mubr.bf16.mxu0 %v7046
    %9977 = vmatmul.mubr.bf16.gmra.mrb[0].mxu0 %v7045
    %v9978 = vpop.f32.mrb[0].mxu0
    %v9979 = vadd.f32 %v9926, %v9978
    %v9980 = vpop.f32.mrb[0].mxu0
    %v9981 = vadd.f32 %v9928, %v9980
    %v9982 = vpop.f32.mrb[0].mxu0
    %v9983 = vadd.f32 %v9930, %v9982
    %v9984 = vpop.f32.mrb[0].mxu0
    %v9985 = vadd.f32 %v9932, %v9984
    %9986 = vdwg.mxu0
    %v9987 = vadd.f32 %v9651, %v9655
    %v9988 = vadd.f32 %v9987, %v9661
    %v9989 = vadd.f32 %v9988, %v9665
    %v9990 = vrot.slane %v9989, 4
    %v9991 = vadd.f32 %v9989, %v9990
    %v9992 = vrot.slane %v9991, 2
    %v9993 = vadd.f32 %v9991, %v9992
    %v9994 = vrot.slane %v9993, 1
    %v9995 = vadd.f32 %v9993, %v9994
    %v9996 = vadd.f32 %v9653, %v9657
    %v9997 = vadd.f32 %v9996, %v9663
    %v9998 = vadd.f32 %v9997, %v9667
    %v9999 = vrot.slane %v9998, 4
    %v10000 = vadd.f32 %v9998, %v9999
    %v10001 = vrot.slane %v10000, 2
    %v10002 = vadd.f32 %v10000, %v10001
    %v10003 = vrot.slane %v10002, 1
    %v10004 = vadd.f32 %v10002, %v10003
    %v10005 = vadd.f32 %v9969, %v9973
    %v10006 = vadd.f32 %v10005, %v9979
    %v10007 = vadd.f32 %v10006, %v9983
    %v10008 = vrot.slane %v10007, 4
    %v10009 = vadd.f32 %v10007, %v10008
    %v10010 = vrot.slane %v10009, 2
    %v10011 = vadd.f32 %v10009, %v10010
    %v10012 = vrot.slane %v10011, 1
    %v10013 = vadd.f32 %v10011, %v10012
    %v10014 = vadd.f32 %v9971, %v9975
    %v10015 = vadd.f32 %v10014, %v9981
    %v10016 = vadd.f32 %v10015, %v9985
    %v10017 = vrot.slane %v10016, 4
    %v10018 = vadd.f32 %v10016, %v10017
    %v10019 = vrot.slane %v10018, 2
    %v10020 = vadd.f32 %v10018, %v10019
    %v10021 = vrot.slane %v10020, 1
    %v10022 = vadd.f32 %v10020, %v10021
    %v10023 = vadd.f32 %v9995, %v10013
    %v10024 = vadd.f32 %v10004, %v10022
    %v10025 = vadd.f32 %v10023, %v10024
    %10026 = vrot.lane.b32.xlu0 %v10025, 64
    %v10027 = vpop.permute.xlu0 %10026
    %v10028 = vadd.f32 %v10025, %v10027
    %10029 = vrot.lane.b32.xlu0 %v10028, 32
    %v10030 = vpop.permute.xlu0 %10029
    %v10031 = vadd.f32 %v10028, %v10030
    %v10032 = vmul.f32 %v10031, 0.001953125
    %v10033 = vlaneseq
    %v10034 = vshrl.u32 %v10033, 7
    %v10035 = vsub.s32 0, %v10034
    %v10036 = vrot.slane %v10032, %v10035
    %v10037 = vsub.f32 %v9651, %v10036
    %v10038 = vsub.f32 %v9653, %v10036
    %v10039 = vsub.f32 %v9969, %v10036
    %v10040 = vsub.f32 %v9971, %v10036
    %v10041 = vsub.f32 %v9655, %v10036
    %v10042 = vsub.f32 %v9657, %v10036
    %v10043 = vsub.f32 %v9973, %v10036
    %v10044 = vsub.f32 %v9975, %v10036
    %v10045 = vsub.f32 %v9661, %v10036
    %v10046 = vsub.f32 %v9663, %v10036
    %v10047 = vsub.f32 %v9979, %v10036
    %v10048 = vsub.f32 %v9981, %v10036
    %v10049 = vsub.f32 %v9665, %v10036
    %v10050 = vsub.f32 %v9667, %v10036
    %v10051 = vsub.f32 %v9983, %v10036
    %v10052 = vsub.f32 %v9985, %v10036
    %v10053 = vmul.f32 %v10037, %v10037
    %v10054 = vmul.f32 %v10038, %v10038
    %v10055 = vmul.f32 %v10039, %v10039
    %v10056 = vmul.f32 %v10040, %v10040
    %v10057 = vmul.f32 %v10041, %v10041
    %v10058 = vmul.f32 %v10042, %v10042
    %v10059 = vmul.f32 %v10043, %v10043
    %v10060 = vmul.f32 %v10044, %v10044
    %v10061 = vmul.f32 %v10045, %v10045
    %v10062 = vmul.f32 %v10046, %v10046
    %v10063 = vmul.f32 %v10047, %v10047
    %v10064 = vmul.f32 %v10048, %v10048
    %v10065 = vmul.f32 %v10049, %v10049
    %v10066 = vmul.f32 %v10050, %v10050
    %v10067 = vmul.f32 %v10051, %v10051
    %v10068 = vmul.f32 %v10052, %v10052
    %v10069 = vadd.f32 %v10053, %v10057
    %v10070 = vadd.f32 %v10069, %v10061
    %v10071 = vadd.f32 %v10070, %v10065
    %v10072 = vrot.slane %v10071, 4
    %v10073 = vadd.f32 %v10071, %v10072
    %v10074 = vrot.slane %v10073, 2
    %v10075 = vadd.f32 %v10073, %v10074
    %v10076 = vrot.slane %v10075, 1
    %v10077 = vadd.f32 %v10075, %v10076
    %v10078 = vadd.f32 %v10054, %v10058
    %v10079 = vadd.f32 %v10078, %v10062
    %v10080 = vadd.f32 %v10079, %v10066
    %v10081 = vrot.slane %v10080, 4
    %v10082 = vadd.f32 %v10080, %v10081
    %v10083 = vrot.slane %v10082, 2
    %v10084 = vadd.f32 %v10082, %v10083
    %v10085 = vrot.slane %v10084, 1
    %v10086 = vadd.f32 %v10084, %v10085
    %v10087 = vadd.f32 %v10055, %v10059
    %v10088 = vadd.f32 %v10087, %v10063
    %v10089 = vadd.f32 %v10088, %v10067
    %v10090 = vrot.slane %v10089, 4
    %v10091 = vadd.f32 %v10089, %v10090
    %v10092 = vrot.slane %v10091, 2
    %v10093 = vadd.f32 %v10091, %v10092
    %v10094 = vrot.slane %v10093, 1
    %v10095 = vadd.f32 %v10093, %v10094
    %v10096 = vadd.f32 %v10056, %v10060
    %v10097 = vadd.f32 %v10096, %v10064
    %v10098 = vadd.f32 %v10097, %v10068
    %v10099 = vrot.slane %v10098, 4
    %v10100 = vadd.f32 %v10098, %v10099
    %v10101 = vrot.slane %v10100, 2
    %v10102 = vadd.f32 %v10100, %v10101
    %v10103 = vrot.slane %v10102, 1
    %v10104 = vadd.f32 %v10102, %v10103
    %v10105 = vadd.f32 %v10077, %v10095
    %v10106 = vadd.f32 %v10086, %v10104
    %v10107 = vadd.f32 %v10105, %v10106
    %10108 = vrot.lane.b32.xlu0 %v10107, 64
    %v10109 = vpop.permute.xlu0 %10108
    %v10110 = vadd.f32 %v10107, %v10109
    %10111 = vrot.lane.b32.xlu0 %v10110, 32
    %v10112 = vpop.permute.xlu0 %10111
    %v10113 = vadd.f32 %v10110, %v10112
    %v10114 = vmul.f32 %v10113, 0.001953125
    %v10115 = vld [vmem:[#allocation16] sm:$0xf]
    %v10116 = vadd.f32 %v10114, 1e-05
    %v10117 = vrsqrt.pop %v10116
    %v10119 = vcombine.low %v10117, %v10117
    %v10121 = vunpack.c.l.s4 1966171168
    %v10122 = vunpack.c.0.s8 %v10121
    %v10123 = vlaneseq
    %v10124 = vshrl.u32 %v10123, 7
    %v10125 = vsub.s32 %v10122, %v10124
    %v10126 = vrot.slane %v10119, %v10125
    %v10127 = vcombine.low %v10126, %v10126
    %v10129 = vunpack.c.l.s4 1966171168
    %v10130 = vunpack.c.0.s8 %v10129
    %v10131 = vlaneseq
    %v10132 = vshrl.u32 %v10131, 7
    %v10133 = vsub.s32 %v10130, %v10132
    %v10134 = vrot.slane %v10127, %v10133
    %v10136 = vmul.f32 %v10115, %v10134
    %v10137 = vld [vmem:[#allocation17] sm:$0xf]
    %v10139 = vlaneseq
    %v10140 = vshrl.u32 %v10139, 7
    %v10141 = vsub.s32 0, %v10140
    %v10142 = vrot.slane %v10136, %v10141
    %v10143 = vlaneseq
    %v10144 = vshrl.u32 %v10143, 7
    %v10145 = vsub.s32 1, %v10144
    %v10146 = vrot.slane %v10136, %v10145
    %v10147 = vlaneseq
    %v10148 = vshrl.u32 %v10147, 7
    %v10149 = vsub.s32 2, %v10148
    %v10150 = vrot.slane %v10136, %v10149
    %v10151 = vlaneseq
    %v10152 = vshrl.u32 %v10151, 7
    %v10153 = vsub.s32 3, %v10152
    %v10154 = vrot.slane %v10136, %v10153
    %v10159 = vmul.f32 %v10032, %v10142
    %v10160 = vmul.f32 %v10032, %v10146
    %v10161 = vmul.f32 %v10032, %v10150
    %v10162 = vmul.f32 %v10032, %v10154
    %v10167 = vcombine.low %v10159, %v10160
    %v10168 = vcombine.low %v10161, %v10162
    %v10170 = vunpack.c.l.s4 1966171168
    %v10171 = vunpack.c.0.s8 %v10170
    %v10172 = vlaneseq
    %v10173 = vshrl.u32 %v10172, 7
    %v10174 = vsub.s32 %v10171, %v10173
    %v10175 = vrot.slane %v10167, %v10174
    %v10177 = vunpack.c.l.s4 1966171168
    %v10178 = vunpack.c.0.s8 %v10177
    %v10179 = vlaneseq
    %v10180 = vshrl.u32 %v10179, 7
    %v10181 = vsub.s32 %v10178, %v10180
    %v10182 = vrot.slane %v10168, %v10181
    %v10183 = vcombine.low %v10175, %v10182
    %v10185 = vunpack.c.l.s4 1966171168
    %v10186 = vunpack.c.0.s8 %v10185
    %v10187 = vlaneseq
    %v10188 = vshrl.u32 %v10187, 7
    %v10189 = vsub.s32 %v10186, %v10188
    %v10190 = vrot.slane %v10183, %v10189
    %v10192 = vsub.f32 %v10137, %v10190
    %v10193 = vmul.f32 %v9651, %v10142
    %v10194 = vmul.f32 %v9653, %v10146
    %v10195 = vmul.f32 %v9969, %v10150
    %v10196 = vmul.f32 %v9971, %v10154
    %v10197 = vmul.f32 %v9655, %v10142
    %v10198 = vmul.f32 %v9657, %v10146
    %v10199 = vmul.f32 %v9973, %v10150
    %v10200 = vmul.f32 %v9975, %v10154
    %v10201 = vmul.f32 %v9661, %v10142
    %v10202 = vmul.f32 %v9663, %v10146
    %v10203 = vmul.f32 %v9979, %v10150
    %v10204 = vmul.f32 %v9981, %v10154
    %v10205 = vmul.f32 %v9665, %v10142
    %v10206 = vmul.f32 %v9667, %v10146
    %v10207 = vmul.f32 %v9983, %v10150
    %v10208 = vmul.f32 %v9985, %v10154
    %v10210 = vlaneseq
    %v10211 = vshrl.u32 %v10210, 7
    %v10212 = vsub.s32 0, %v10211
    %v10213 = vrot.slane %v10192, %v10212
    %v10214 = vlaneseq
    %v10215 = vshrl.u32 %v10214, 7
    %v10216 = vsub.s32 1, %v10215
    %v10217 = vrot.slane %v10192, %v10216
    %v10218 = vlaneseq
    %v10219 = vshrl.u32 %v10218, 7
    %v10220 = vsub.s32 2, %v10219
    %v10221 = vrot.slane %v10192, %v10220
    %v10222 = vlaneseq
    %v10223 = vshrl.u32 %v10222, 7
    %v10224 = vsub.s32 3, %v10223
    %v10225 = vrot.slane %v10192, %v10224
    %v10230 = vadd.f32 %v10193, %v10213
    %v10231 = vadd.f32 %v10194, %v10217
    %v10232 = vadd.f32 %v10195, %v10221
    %v10233 = vadd.f32 %v10196, %v10225
    %v10234 = vadd.f32 %v10197, %v10213
    %v10235 = vadd.f32 %v10198, %v10217
    %v10236 = vadd.f32 %v10199, %v10221
    %v10237 = vadd.f32 %v10200, %v10225
    %v10238 = vadd.f32 %v10201, %v10213
    %v10239 = vadd.f32 %v10202, %v10217
    %v10240 = vadd.f32 %v10203, %v10221
    %v10241 = vadd.f32 %v10204, %v10225
    %v10242 = vadd.f32 %v10205, %v10213
    %v10243 = vadd.f32 %v10206, %v10217
    %v10244 = vadd.f32 %v10207, %v10221
    %v10245 = vadd.f32 %v10208, %v10225
    %v10246 = vadd.f32 %v10230, %v10234
    %v10247 = vrot.slane %v10246, 4
    %v10248 = vadd.f32 %v10246, %v10247
    %v10249 = vrot.slane %v10248, 2
    %v10250 = vadd.f32 %v10248, %v10249
    %v10251 = vrot.slane %v10250, 1
    %v10252 = vadd.f32 %v10250, %v10251
    %v10253 = vadd.f32 %v10231, %v10235
    %v10254 = vrot.slane %v10253, 4
    %v10255 = vadd.f32 %v10253, %v10254
    %v10256 = vrot.slane %v10255, 2
    %v10257 = vadd.f32 %v10255, %v10256
    %v10258 = vrot.slane %v10257, 1
    %v10259 = vadd.f32 %v10257, %v10258
    %v10260 = vadd.f32 %v10232, %v10236
    %v10261 = vrot.slane %v10260, 4
    %v10262 = vadd.f32 %v10260, %v10261
    %v10263 = vrot.slane %v10262, 2
    %v10264 = vadd.f32 %v10262, %v10263
    %v10265 = vrot.slane %v10264, 1
    %v10266 = vadd.f32 %v10264, %v10265
    %v10267 = vadd.f32 %v10233, %v10237
    %v10268 = vrot.slane %v10267, 4
    %v10269 = vadd.f32 %v10267, %v10268
    %v10270 = vrot.slane %v10269, 2
    %v10271 = vadd.f32 %v10269, %v10270
    %v10272 = vrot.slane %v10271, 1
    %v10273 = vadd.f32 %v10271, %v10272
    %v10274 = vadd.f32 %v10252, %v10266
    %v10275 = vadd.f32 %v10259, %v10273
    %v10276 = vadd.f32 %v10274, %v10275
    %10277 = vrot.lane.b32.xlu0 %v10276, 64
    %v10278 = vpop.permute.xlu0 %10277
    %v10279 = vadd.f32 %v10276, %v10278
    %10280 = vrot.lane.b32.xlu0 %v10279, 32
    %v10281 = vpop.permute.xlu0 %10280
    %v10282 = vadd.f32 %v10279, %v10281
    %v10283 = vadd.f32 %v10238, %v10242
    %v10284 = vrot.slane %v10283, 4
    %v10285 = vadd.f32 %v10283, %v10284
    %v10286 = vrot.slane %v10285, 2
    %v10287 = vadd.f32 %v10285, %v10286
    %v10288 = vrot.slane %v10287, 1
    %v10289 = vadd.f32 %v10287, %v10288
    %v10290 = vadd.f32 %v10239, %v10243
    %v10291 = vrot.slane %v10290, 4
    %v10292 = vadd.f32 %v10290, %v10291
    %v10293 = vrot.slane %v10292, 2
    %v10294 = vadd.f32 %v10292, %v10293
    %v10295 = vrot.slane %v10294, 1
    %v10296 = vadd.f32 %v10294, %v10295
    %v10297 = vadd.f32 %v10240, %v10244
    %v10298 = vrot.slane %v10297, 4
    %v10299 = vadd.f32 %v10297, %v10298
    %v10300 = vrot.slane %v10299, 2
    %v10301 = vadd.f32 %v10299, %v10300
    %v10302 = vrot.slane %v10301, 1
    %v10303 = vadd.f32 %v10301, %v10302
    %v10304 = vadd.f32 %v10241, %v10245
    %v10305 = vrot.slane %v10304, 4
    %v10306 = vadd.f32 %v10304, %v10305
    %v10307 = vrot.slane %v10306, 2
    %v10308 = vadd.f32 %v10306, %v10307
    %v10309 = vrot.slane %v10308, 1
    %v10310 = vadd.f32 %v10308, %v10309
    %v10311 = vadd.f32 %v10289, %v10303
    %v10312 = vadd.f32 %v10296, %v10310
    %v10313 = vadd.f32 %v10311, %v10312
    %10314 = vrot.lane.b32.xlu0 %v10313, 64
    %v10315 = vpop.permute.xlu0 %10314
    %v10316 = vadd.f32 %v10313, %v10315
    %10317 = vrot.lane.b32.xlu0 %v10316, 32
    %v10318 = vpop.permute.xlu0 %10317
    %v10319 = vadd.f32 %v10316, %v10318
    %v10321 = vrot.slane %v10319, 7
    %v10323 = vsel %vm213, %v10282, %v10321
    %v10324 = vmul.f32 %v10323, 0.00390625
    %v10325 = vld [vmem:[#allocation19] sm:$0x3]
    %v10328 = vunpack.c.l.s4 1966171168
    %v10329 = vunpack.c.0.s8 %v10328
    %v10330 = vlaneseq
    %v10331 = vshrl.u32 %v10330, 7
    %v10332 = vsub.s32 %v10329, %v10331
    %v10333 = vrot.slane %v10324, %v10332
    %v10334 = vcombine.high %v10333, %v10333
    %v10336 = vunpack.c.l.s4 1966171168
    %v10337 = vunpack.c.0.s8 %v10336
    %v10338 = vlaneseq
    %v10339 = vshrl.u32 %v10338, 7
    %v10340 = vsub.s32 %v10337, %v10339
    %v10341 = vrot.slane %v10333, %v10340
    %v10343 = vunpack.c.l.s4 1966171168
    %v10344 = vunpack.c.0.s8 %v10343
    %v10345 = vlaneseq
    %v10346 = vshrl.u32 %v10345, 7
    %v10347 = vsub.s32 %v10344, %v10346
    %v10348 = vrot.slane %v10334, %v10347
    %v10349 = vlaneseq
    %v10350 = vshrl.u32 %v10349, 7
    %v10351 = vsub.s32 0, %v10350
    %v10352 = vrot.slane %v10341, %v10351
    %v10353 = vlaneseq
    %v10354 = vshrl.u32 %v10353, 7
    %v10355 = vsub.s32 0, %v10354
    %v10356 = vrot.slane %v10348, %v10355
    %v10359 = vmul.f32 %v10352, %v10325
    %v10360 = vmul.f32 %v10356, %v10325
    %vm10361 = vcmask 254976
    %v10362 = vsel %vm10361, %v10359, 0.0
    %10363 = vadd.xlane.f32.xlu0 %v10362
    %v10364 = vpop.xlane.xlu0 %10363
    %v10365 = vsel %vm10361, %v10360, 0.0
    %10366 = vadd.xlane.f32.xlu0 %v10365
    %v10367 = vpop.xlane.xlu0 %10366
    %v10368 = vmax.f32 %v10364, 0.0
    %v10369 = vmax.f32 %v10367, 0.0
    %v10370 = vld [vmem:[#allocation20] sm:$0xff]
    %v10372 = vcombine.high %v10370, %v10370
    %v10374 = vunpack.c.l.s4 1983009808
    %v10375 = vunpack.c.0.s8 %v10374
    %v10376 = vlaneseq
    %v10377 = vshrl.u32 %v10376, 7
    %v10378 = vsub.s32 %v10375, %v10377
    %v10379 = vrot.slane %v10370, %v10378
    %v10381 = vunpack.c.l.s4 1983009808
    %v10382 = vunpack.c.0.s8 %v10381
    %v10383 = vlaneseq
    %v10384 = vshrl.u32 %v10383, 7
    %v10385 = vsub.s32 %v10382, %v10384
    %v10386 = vrot.slane %v10372, %v10385
    %v10387 = vcombine.high %v10379, %v10379
    %v10388 = vcombine.high %v10386, %v10386
    %v10393 = vmul.f32 %v10368, %v10379
    %v10394 = vmul.f32 %v10368, %v10387
    %v10395 = vmul.f32 %v10368, %v10386
    %v10396 = vmul.f32 %v10368, %v10388
    %v10397 = vmul.f32 %v10369, %v10379
    %v10398 = vmul.f32 %v10369, %v10387
    %v10399 = vmul.f32 %v10369, %v10386
    %v10400 = vmul.f32 %v10369, %v10388
    %vm10401 = vcmask 1041408
    %v10402 = vsel %vm10401, %v10393, 0.0
    %v10403 = vrot.slane %v10402, 4
    %v10404 = vadd.f32 %v10402, %v10403
    %v10405 = vrot.slane %v10404, 2
    %v10406 = vadd.f32 %v10404, %v10405
    %v10407 = vrot.slane %v10406, 1
    %v10408 = vadd.f32 %v10406, %v10407
    %v10409 = vsel %vm10401, %v10394, 0.0
    %v10410 = vrot.slane %v10409, 4
    %v10411 = vadd.f32 %v10409, %v10410
    %v10412 = vrot.slane %v10411, 2
    %v10413 = vadd.f32 %v10411, %v10412
    %v10414 = vrot.slane %v10413, 1
    %v10415 = vadd.f32 %v10413, %v10414
    %v10416 = vsel %vm10401, %v10395, 0.0
    %v10417 = vrot.slane %v10416, 4
    %v10418 = vadd.f32 %v10416, %v10417
    %v10419 = vrot.slane %v10418, 2
    %v10420 = vadd.f32 %v10418, %v10419
    %v10421 = vrot.slane %v10420, 1
    %v10422 = vadd.f32 %v10420, %v10421
    %v10423 = vsel %vm10401, %v10396, 0.0
    %v10424 = vrot.slane %v10423, 4
    %v10425 = vadd.f32 %v10423, %v10424
    %v10426 = vrot.slane %v10425, 2
    %v10427 = vadd.f32 %v10425, %v10426
    %v10428 = vrot.slane %v10427, 1
    %v10429 = vadd.f32 %v10427, %v10428
    %v10430 = vsel %vm10401, %v10397, 0.0
    %v10431 = vrot.slane %v10430, 4
    %v10432 = vadd.f32 %v10430, %v10431
    %v10433 = vrot.slane %v10432, 2
    %v10434 = vadd.f32 %v10432, %v10433
    %v10435 = vrot.slane %v10434, 1
    %v10436 = vadd.f32 %v10434, %v10435
    %v10437 = vsel %vm10401, %v10398, 0.0
    %v10438 = vrot.slane %v10437, 4
    %v10439 = vadd.f32 %v10437, %v10438
    %v10440 = vrot.slane %v10439, 2
    %v10441 = vadd.f32 %v10439, %v10440
    %v10442 = vrot.slane %v10441, 1
    %v10443 = vadd.f32 %v10441, %v10442
    %v10444 = vsel %vm10401, %v10399, 0.0
    %v10445 = vrot.slane %v10444, 4
    %v10446 = vadd.f32 %v10444, %v10445
    %v10447 = vrot.slane %v10446, 2
    %v10448 = vadd.f32 %v10446, %v10447
    %v10449 = vrot.slane %v10448, 1
    %v10450 = vadd.f32 %v10448, %v10449
    %v10451 = vsel %vm10401, %v10400, 0.0
    %v10452 = vrot.slane %v10451, 4
    %v10453 = vadd.f32 %v10451, %v10452
    %v10454 = vrot.slane %v10453, 2
    %v10455 = vadd.f32 %v10453, %v10454
    %v10456 = vrot.slane %v10455, 1
    %v10457 = vadd.f32 %v10455, %v10456
    %v10458 = vxor.u32 %v10408, 2147483648
    %v10459 = vxor.u32 %v10415, 2147483648
    %v10460 = vxor.u32 %v10422, 2147483648
    %v10461 = vxor.u32 %v10429, 2147483648
    %v10462 = vxor.u32 %v10436, 2147483648
    %v10463 = vxor.u32 %v10443, 2147483648
    %v10464 = vxor.u32 %v10450, 2147483648
    %v10465 = vxor.u32 %v10457, 2147483648
    %v10466 = vmul.f32 %v10458, 1.442695
    %v10467 = vpow.pop %v10466
    %v10468 = vmul.f32 %v10459, 1.442695
    %v10469 = vpow.pop %v10468
    %v10470 = vmul.f32 %v10460, 1.442695
    %v10471 = vpow.pop %v10470
    %v10472 = vmul.f32 %v10461, 1.442695
    %v10473 = vpow.pop %v10472
    %v10474 = vmul.f32 %v10462, 1.442695
    %v10475 = vpow.pop %v10474
    %v10476 = vmul.f32 %v10463, 1.442695
    %v10477 = vpow.pop %v10476
    %v10478 = vmul.f32 %v10464, 1.442695
    %v10479 = vpow.pop %v10478
    %v10480 = vmul.f32 %v10465, 1.442695
    %v10481 = vpow.pop %v10480
    %v10482 = vadd.f32 %v10467, 1.0
    %v10483 = vadd.f32 %v10469, 1.0
    %v10484 = vadd.f32 %v10471, 1.0
    %v10485 = vadd.f32 %v10473, 1.0
    %v10486 = vadd.f32 %v10475, 1.0
    %v10487 = vadd.f32 %v10477, 1.0
    %v10488 = vadd.f32 %v10479, 1.0
    %v10489 = vadd.f32 %v10481, 1.0
    %v10490 = vrcp.pop %v10482
    %v10491 = vmul.f32 1.0, %v10490
    %v10492 = vrcp.pop %v10483
    %v10493 = vmul.f32 1.0, %v10492
    %v10494 = vrcp.pop %v10484
    %v10495 = vmul.f32 1.0, %v10494
    %v10496 = vrcp.pop %v10485
    %v10497 = vmul.f32 1.0, %v10496
    %v10498 = vrcp.pop %v10486
    %v10499 = vmul.f32 1.0, %v10498
    %v10500 = vrcp.pop %v10487
    %v10501 = vmul.f32 1.0, %v10500
    %v10502 = vrcp.pop %v10488
    %v10503 = vmul.f32 1.0, %v10502
    %v10504 = vrcp.pop %v10489
    %v10505 = vmul.f32 1.0, %v10504
    %v10506 = vmul.f32 %v10230, %v10491
    %v10507 = vmul.f32 %v10231, %v10493
    %v10508 = vmul.f32 %v10232, %v10495
    %v10509 = vmul.f32 %v10233, %v10497
    %v10510 = vmul.f32 %v10234, %v10491
    %v10511 = vmul.f32 %v10235, %v10493
    %v10512 = vmul.f32 %v10236, %v10495
    %v10513 = vmul.f32 %v10237, %v10497
    %v10514 = vmul.f32 %v10238, %v10499
    %v10515 = vmul.f32 %v10239, %v10501
    %v10516 = vmul.f32 %v10240, %v10503
    %v10517 = vmul.f32 %v10241, %v10505
    %v10518 = vmul.f32 %v10242, %v10499
    %v10519 = vmul.f32 %v10243, %v10501
    %v10520 = vmul.f32 %v10244, %v10503
    %v10521 = vmul.f32 %v10245, %v10505
    %v10522 = vadd.f32 %v10506, %v189
    %v10523 = vadd.f32 %v10507, %v190
    %v10524 = vadd.f32 %v10508, %v191
    %v10525 = vadd.f32 %v10509, %v192
    %v10526 = vadd.f32 %v10510, %v193
    %v10527 = vadd.f32 %v10511, %v194
    %v10528 = vadd.f32 %v10512, %v195
    %v10529 = vadd.f32 %v10513, %v196
    %v10530 = vadd.f32 %v10514, %v197
    %v10531 = vadd.f32 %v10515, %v198
    %v10532 = vadd.f32 %v10516, %v199
    %v10533 = vadd.f32 %v10517, %v200
    %v10534 = vadd.f32 %v10518, %v201
    %v10535 = vadd.f32 %v10519, %v202
    %v10536 = vadd.f32 %v10520, %v203
    %v10537 = vadd.f32 %v10521, %v204
    %v10538 = vmax.f32 %v10522, 0.0
    %v10539 = vmax.f32 %v10523, 0.0
    %v10540 = vmax.f32 %v10524, 0.0
    %v10541 = vmax.f32 %v10525, 0.0
    %v10542 = vmax.f32 %v10526, 0.0
    %v10543 = vmax.f32 %v10527, 0.0
    %v10544 = vmax.f32 %v10528, 0.0
    %v10545 = vmax.f32 %v10529, 0.0
    %v10546 = vmax.f32 %v10530, 0.0
    %v10547 = vmax.f32 %v10531, 0.0
    %v10548 = vmax.f32 %v10532, 0.0
    %v10549 = vmax.f32 %v10533, 0.0
    %v10550 = vmax.f32 %v10534, 0.0
    %v10551 = vmax.f32 %v10535, 0.0
    %v10552 = vmax.f32 %v10536, 0.0
    %v10553 = vmax.f32 %v10537, 0.0
    %10554 = vst [vmem:[#allocation22] sm:$0xff] %v10538
    %10555 = vst [vmem:[#allocation22 + $0x8] sm:$0xff] %v10539
    %10556 = vst [vmem:[#allocation22 + $0x10] sm:$0xff] %v10540
    %10557 = vst [vmem:[#allocation22 + $0x18] sm:$0xff] %v10541
    %10558 = vst [vmem:[#allocation22 + $0x20] sm:$0xff] %v10542
    %10559 = vst [vmem:[#allocation22 + $0x28] sm:$0xff] %v10543
    %10560 = vst [vmem:[#allocation22 + $0x30] sm:$0xff] %v10544
    %10561 = vst [vmem:[#allocation22 + $0x38] sm:$0xff] %v10545
    %10562 = vst [vmem:[#allocation22 + $0x40] sm:$0xff] %v10546
    %10563 = vst [vmem:[#allocation22 + $0x48] sm:$0xff] %v10547
    %10564 = vst [vmem:[#allocation22 + $0x50] sm:$0xff] %v10548
    %10565 = vst [vmem:[#allocation22 + $0x58] sm:$0xff] %v10549
    %10566 = vst [vmem:[#allocation22 + $0x60] sm:$0xff] %v10550
    %10567 = vst [vmem:[#allocation22 + $0x68] sm:$0xff] %v10551
    %10568 = vst [vmem:[#allocation22 + $0x70] sm:$0xff] %v10552
    %10569 = vst [vmem:[#allocation22 + $0x78] sm:$0xff] %v10553
    // Predicated region
    $region98: #{tpu_custom_call.1} parent=1 // pred_check
      _
    $region99: #{tpu_custom_call.1} parent=1 // pred_check_branch
      %10571 = sbr.rel (0) target = $region101
    $region100: #{tpu_custom_call.1} parent=1 // pred_region
      %s10573 = ssub.s32 2048, 2048
      %10574 = vsyncadd [#allocation4], %s10573
      %s10575 = sshll.u32 [#allocation22], 4
      %s10576 = int_to_ptr.vmem [resolvable:$true] %s10575
      %10581 = dma.vmem_to_hbm [thread:$0]  %s10576, 2048, %s12, [#allocation4], 512, 512, 32
    $region101: #{tpu_custom_call.1} parent=1 // pred_fallthru
      _
    // Predicated region
    $region102: #{tpu_custom_call.1} parent=1 // pred_check
      _
    $region103: #{tpu_custom_call.1} parent=1 // pred_check_branch
      %10583 = sbr.rel (0) target = $region105
    $region104: #{tpu_custom_call.1} parent=1 // pred_region
      %10584 = dma.done [#allocation4], 2048
    $region105: #{tpu_custom_call.1} parent=1 // pred_fallthru
      _
    %10585 = vsyncpa [#allocation3], 1
    %10586 = vsyncpa [#allocation6], 1
    %10587 = vsyncpa [#allocation9], 1
    %10588 = vsyncpa [#allocation12], 1
    %10589 = vsyncpa [#allocation15], 1
    %10590 = vsyncpa [#allocation18], 1
    %10591 = vsyncpa [#allocation21], 1
    %10592 = vsyncpa [#allocation4], 1

</llo_original>
